<compile_context>
chip_gen: v7x
topology: tpu7x:2x2x1
jax: 0.10.0
libtpu: 0.0.40
codegen_flags: <defaults>
</compile_context>

<pallas_src>
import functools

import jax
import jax.numpy as jnp
from jax.experimental import pallas as pl
from jax.experimental.pallas import tpu as pltpu


# ---------------------------------------------------------------------------
# Pallas kernel 1: fused (transposed) matmul + folded-BN affine + SiLU (convs)
#   out[Cout, M] = SiLU(scale * (W[Cout,K] @ X[K,M]) + bias)
#   -> lane-dense stores (last dim = M tile), bf16 MXU operands, f32 accum.
# ---------------------------------------------------------------------------
def _matmul_bn_silu_t_kernel(xt_ref, wt_ref, s_ref, b_ref, o_ref):
    acc = jnp.dot(wt_ref[...], xt_ref[...],
                  preferred_element_type=jnp.float32)         # (Cout, tm) f32
    y = acc * s_ref[...] + b_ref[...]                          # folded BatchNorm
    o_ref[...] = (y * jax.nn.sigmoid(y)).astype(o_ref.dtype)   # SiLU


def matmul_bn_silu_t(xt, wt, scale, bias, *, tm=256):
    """xt: [K, M] (any float), wt: [Cout, K] bf16, scale/bias: [Cout, 1].

    Returns [Cout, M] float32 (channels-first, lane-dense output)."""
    K, M = xt.shape
    Cout = wt.shape[0]
    tm = min(tm, M)
    assert M % tm == 0, (M, tm)
    return pl.pallas_call(
        _matmul_bn_silu_t_kernel,
        out_shape=jax.ShapeDtypeStruct((Cout, M), jnp.float32),
        grid_spec=pltpu.PrefetchScalarGridSpec(
            num_scalar_prefetch=0,
            grid=(M // tm,),
            in_specs=[
                pl.BlockSpec((K, tm), lambda i: (0, i)),
                pl.BlockSpec((Cout, K), lambda i: (0, 0)),
                pl.BlockSpec((Cout, 1), lambda i: (0, 0)),
                pl.BlockSpec((Cout, 1), lambda i: (0, 0)),
            ],
            out_specs=pl.BlockSpec((Cout, tm), lambda i: (0, i)),
        ),
        compiler_params=pltpu.CompilerParams(
            dimension_semantics=("parallel",)),
    )(xt.astype(jnp.bfloat16), wt, scale, bias)


# ---------------------------------------------------------------------------
# Pallas kernel 2: one fused transformer layer (PreNorm-Attn + PreNorm-FFN)
#   Each program handles BPT sequences of N tokens; all projections run as
#   2-D (BPT*N, dim) matmuls in bf16 (f32 accumulation); attention einsums
#   are batched over the BPT sequences; LN / softmax / SiLU stay in f32.
# ---------------------------------------------------------------------------
def _layer_norm(x, g, b, eps=1e-5):
    mu = jnp.mean(x, axis=-1, keepdims=True)
    var = jnp.mean((x - mu) ** 2, axis=-1, keepdims=True)
    return (x - mu) * jax.lax.rsqrt(var + eps) * g + b


def _transformer_layer_kernel(x_ref, vecs_ref, wqkv_ref, wo_ref, w1_ref,
                              w2_ref, o_ref, *, heads, dim_head):
    bpt, n_tok, dim = x_ref.shape
    mlp_dim = w1_ref.shape[1]
    inner = heads * dim_head
    scale = dim_head ** (-0.5)
    bf16 = jnp.bfloat16

    x = x_ref[...]                               # (bpt, N, dim) f32
    t = bpt * n_tok
    x2 = x.reshape(t, dim)

    vecs = vecs_ref[...]                         # (8, max(dim, mlp_dim)) f32
    ln1_g = vecs[0:1, :dim]
    ln1_b = vecs[1:2, :dim]
    bo = vecs[2:3, :dim]
    ln2_g = vecs[3:4, :dim]
    ln2_b = vecs[4:5, :dim]
    b2 = vecs[5:6, :dim]
    b1 = vecs[6:7, :mlp_dim]

    # ---- PreNorm + multi-head self-attention + residual ----
    xn = _layer_norm(x2, ln1_g, ln1_b)
    qkv = jnp.dot(xn.astype(bf16), wqkv_ref[...],
                  preferred_element_type=jnp.float32)          # (t, 3*inner)
    qkv3 = qkv.reshape(bpt, n_tok, 3 * inner)

    head_outs = []
    for h in range(heads):                       # short unrolled loop
        lo = h * dim_head
        q = qkv3[:, :, lo:lo + dim_head]
        k = qkv3[:, :, inner + lo:inner + lo + dim_head]
        v = qkv3[:, :, 2 * inner + lo:2 * inner + lo + dim_head]
        dots = jnp.einsum('bqd,bkd->bqk', q.astype(bf16), k.astype(bf16),
                          preferred_element_type=jnp.float32) * scale
        m = jnp.max(dots, axis=-1, keepdims=True)
        e = jnp.exp(dots - m)
        p = e / jnp.sum(e, axis=-1, keepdims=True)             # softmax (f32)
        oh = jnp.einsum('bqk,bkd->bqd', p.astype(bf16), v.astype(bf16),
                        preferred_element_type=jnp.float32)    # (bpt, N, dh)
        head_outs.append(oh.reshape(t, dim_head))
    out = jnp.concatenate(head_outs, axis=-1)                  # (t, inner)
    attn_out = jnp.dot(out.astype(bf16), wo_ref[...],
                       preferred_element_type=jnp.float32) + bo
    x2 = x2 + attn_out

    # ---- PreNorm + FeedForward (Linear -> SiLU -> Linear) + residual ----
    xn2 = _layer_norm(x2, ln2_g, ln2_b)
    h1 = jnp.dot(xn2.astype(bf16), w1_ref[...],
                 preferred_element_type=jnp.float32) + b1
    h1 = h1 * jax.nn.sigmoid(h1)                               # SiLU (f32)
    ff = jnp.dot(h1.astype(bf16), w2_ref[...],
                 preferred_element_type=jnp.float32) + b2
    x2 = x2 + ff

    o_ref[...] = x2.reshape(bpt, n_tok, dim).astype(o_ref.dtype)


def transformer_layer(x, lp, heads, dim_head):
    """x: [B*P, N, dim] -> [B*P, N, dim]."""
    BP, N, dim = x.shape
    nprog = 2 if (BP % 2 == 0 and BP >= 2) else 1   # 2-way split -> both v7x TCs
    bpt = BP // nprog
    vw = lp['vecs'].shape[1]
    kernel = functools.partial(_transformer_layer_kernel,
                               heads=heads, dim_head=dim_head)
    return pl.pallas_call(
        kernel,
        out_shape=jax.ShapeDtypeStruct(x.shape, jnp.float32),
        grid_spec=pltpu.PrefetchScalarGridSpec(
            num_scalar_prefetch=0,
            grid=(nprog,),
            in_specs=[
                pl.BlockSpec((bpt, N, dim), lambda i: (i, 0, 0)),
                pl.BlockSpec((8, vw), lambda i: (0, 0)),
                pl.BlockSpec(lp['wqkv'].shape, lambda i: (0, 0)),
                pl.BlockSpec(lp['wo'].shape, lambda i: (0, 0)),
                pl.BlockSpec(lp['w1'].shape, lambda i: (0, 0)),
                pl.BlockSpec(lp['w2'].shape, lambda i: (0, 0)),
            ],
            out_specs=pl.BlockSpec((bpt, N, dim), lambda i: (i, 0, 0)),
        ),
        compiler_params=pltpu.CompilerParams(
            dimension_semantics=("parallel",)),
    )(x, lp['vecs'], lp['wqkv'], lp['wo'], lp['w1'], lp['w2'])


# ---------------------------------------------------------------------------
# Glue (plain JAX): channels-first im2col, patch rearranges, parameter setup
# ---------------------------------------------------------------------------
def im2col_t_3x3_cf(x_cf):
    """3x3 'same' conv patches, channels-first.

    [C, B, H, W] -> [9*C, B*H*W], rows ordered (tap, cin)."""
    C, B, H, W = x_cf.shape
    xp = jnp.pad(x_cf, ((0, 0), (0, 0), (1, 1), (1, 1)))
    taps = [xp[:, :, dh:dh + H, dw:dw + W]
            for dh in range(3) for dw in range(3)]
    return jnp.stack(taps, axis=0).reshape(9 * C, B * H * W)


def mobilevit_block(x_nchw, params, ph, pw, heads=4, dim_head=8):
    B, C, H, W = x_nchw.shape
    M = B * H * W
    x_cf = jnp.transpose(x_nchw, (1, 0, 2, 3))        # (C, B, H, W)
    y_cf = x_cf.reshape(C, M)                         # residual (x.clone())

    # conv1: 3x3, C -> C, BN, SiLU
    cols1 = im2col_t_3x3_cf(x_cf)                     # (9C, M)
    x1 = matmul_bn_silu_t(cols1, params['conv1_w'],
                          params['conv1_s'], params['conv1_b'])      # (C, M)

    # conv2: 1x1, C -> dim, BN, SiLU
    dim = params['conv2_w'].shape[0]
    x2 = matmul_bn_silu_t(x1, params['conv2_w'],
                          params['conv2_s'], params['conv2_b'])      # (dim, M)

    # rearrange: b d (h ph) (w pw) -> b (ph pw) (h w) d
    h, w = H // ph, W // pw
    xt = (x2.reshape(dim, B, h, ph, w, pw)
            .transpose(1, 3, 5, 2, 4, 0)
            .reshape(B * ph * pw, h * w, dim))

    # transformer (depth fused Pallas layers)
    for lp in params['layers']:
        xt = transformer_layer(xt, lp, heads, dim_head)

    # rearrange back: b (ph pw) (h w) d -> d b (h ph) (w pw)   (channels-first)
    x3 = (xt.reshape(B, ph, pw, h, w, dim)
            .transpose(5, 0, 3, 1, 4, 2)
            .reshape(dim, M))

    # conv3: 1x1, dim -> C, BN, SiLU
    x4 = matmul_bn_silu_t(x3, params['conv3_w'],
                          params['conv3_s'], params['conv3_b'])      # (C, M)

    # cat((x, y), channel) then conv4: 3x3, 2C -> C, BN, SiLU
    xcat = jnp.concatenate([x4, y_cf], axis=0).reshape(2 * C, B, H, W)
    cols4 = im2col_t_3x3_cf(xcat)                                    # (18C, M)
    x5 = matmul_bn_silu_t(cols4, params['conv4_w'],
                          params['conv4_s'], params['conv4_b'])      # (C, M)

    return x5.reshape(C, B, H, W).transpose(1, 0, 2, 3)              # NCHW


def init_params(key, C, dim, mlp_dim, depth, heads=4, dim_head=8):
    inner = heads * dim_head
    keys = iter(jax.random.split(key, 128))

    def rnd(shape, scale=0.1):
        return jax.random.normal(next(keys), shape, jnp.float32) * scale

    def bn_fold(cout, eps=1e-5):
        gamma = 1.0 + rnd((cout,), 0.05)
        beta = rnd((cout,), 0.05)
        mean = jnp.zeros((cout,), jnp.float32)        # default running stats
        var = jnp.ones((cout,), jnp.float32)
        s = gamma / jnp.sqrt(var + eps)
        b = beta - mean * s
        return s.reshape(cout, 1), b.reshape(cout, 1)

    p = {}
    # conv weights stored transposed [Cout, K] in bf16 (MXU operands).
    p['conv1_w'] = rnd((C, 9 * C)).astype(jnp.bfloat16)
    p['conv1_s'], p['conv1_b'] = bn_fold(C)
    p['conv2_w'] = rnd((dim, C)).astype(jnp.bfloat16)
    p['conv2_s'], p['conv2_b'] = bn_fold(dim)
    p['conv3_w'] = rnd((C, dim)).astype(jnp.bfloat16)
    p['conv3_s'], p['conv3_b'] = bn_fold(C)
    p['conv4_w'] = rnd((C, 9 * 2 * C)).astype(jnp.bfloat16)
    p['conv4_s'], p['conv4_b'] = bn_fold(C)

    vw = max(dim, mlp_dim)
    layers = []
    for _ in range(depth):
        ln1_g = jnp.ones((dim,), jnp.float32)
        ln1_b = jnp.zeros((dim,), jnp.float32)
        ln2_g = jnp.ones((dim,), jnp.float32)
        ln2_b = jnp.zeros((dim,), jnp.float32)
        bo = rnd((dim,))
        b1 = rnd((mlp_dim,))
        b2 = rnd((dim,))
        vecs = jnp.zeros((8, vw), jnp.float32)
        for r, v in enumerate([ln1_g, ln1_b, bo, ln2_g, ln2_b, b2, b1]):
            vecs = vecs.at[r, :v.shape[0]].set(v)
        layers.append({
            'vecs': vecs,                                        # packed small params
            'wqkv': rnd((dim, 3 * inner)).astype(jnp.bfloat16),  # Linear(dim,3*inner,bias=False)
            'wo': rnd((inner, dim)).astype(jnp.bfloat16),        # Linear(inner, dim)
            'w1': rnd((dim, mlp_dim)).astype(jnp.bfloat16),
            'w2': rnd((mlp_dim, dim)).astype(jnp.bfloat16),
        })
    p['layers'] = layers
    return p


if __name__ == "__main__":
    # MobileViTBlock(dim=32, depth=2, channel=4, kernel_size=3,
    #                patch_size=(2, 2), mlp_dim=64)
    B, C, H, W = 2, 4, 16, 16
    dim, depth, mlp_dim = 32, 2, 64
    ph, pw = 2, 2
    heads, dim_head = 4, 8

    key = jax.random.PRNGKey(0)
    kx, kp = jax.random.split(key)
    x = jax.random.normal(kx, (B, C, H, W), jnp.float32)
    params = init_params(kp, C, dim, mlp_dim, depth, heads, dim_head)

    fwd = jax.jit(functools.partial(mobilevit_block, ph=ph, pw=pw,
                                    heads=heads, dim_head=dim_head))
    out = fwd(x, params)
    out = jax.block_until_ready(out)
    assert out.shape == (B, C, H, W)
    print("KERNEL_OK")
</pallas_src>

<mosaic_0001>
module attributes {stable_mosaic.version = 11 : i64} {
  func.func @_matmul_bn_silu_t_kernel(%arg0: i32, %arg1: memref<36x256xbf16, #tpu.memory_space<vmem>>, %arg2: memref<4x36xbf16, #tpu.memory_space<vmem>>, %arg3: memref<4x1xf32, #tpu.memory_space<vmem>>, %arg4: memref<4x1xf32, #tpu.memory_space<vmem>>, %arg5: memref<4x256xf32, #tpu.memory_space<vmem>>) attributes {dimension_semantics = [#tpu.dimension_semantics<parallel>], iteration_bounds = array<i64: 2>, scalar_prefetch = 0 : i64, scratch_operands = 0 : i64, tpu.core_type = #tpu.core_type<tc>, window_params = [{transform_indices = @transform_0, window_bounds = array<i64: 36, 256>}, {pipeline_mode = #tpu.pipeline_mode<synchronous>, transform_indices = @transform_1, window_bounds = array<i64: 4, 36>}, {pipeline_mode = #tpu.pipeline_mode<synchronous>, transform_indices = @transform_2, window_bounds = array<i64: 4, 1>}, {pipeline_mode = #tpu.pipeline_mode<synchronous>, transform_indices = @transform_3, window_bounds = array<i64: 4, 1>}, {transform_indices = @transform_4, window_bounds = array<i64: 4, 256>}]} {
    %c0 = arith.constant 0 : index
    %c0_0 = arith.constant 0 : index
    %0 = vector.load %arg2[%c0, %c0_0] : memref<4x36xbf16, #tpu.memory_space<vmem>>, vector<4x36xbf16>
    %c0_1 = arith.constant 0 : index
    %c0_2 = arith.constant 0 : index
    %1 = vector.load %arg1[%c0_1, %c0_2] : memref<36x256xbf16, #tpu.memory_space<vmem>>, vector<36x256xbf16>
    %cst = arith.constant dense<0.000000e+00> : vector<4x256xf32>
    %2 = tpu.matmul %0, %1, %cst {dimension_numbers = #tpu.dot_dimension_numbers<[1], [0], [0], [1], [0, 0, 1, 1], [], []>} : vector<4x36xbf16>, vector<36x256xbf16>, vector<4x256xf32> -> vector<4x256xf32>
    %c0_3 = arith.constant 0 : index
    %c0_4 = arith.constant 0 : index
    %3 = vector.load %arg3[%c0_3, %c0_4] : memref<4x1xf32, #tpu.memory_space<vmem>>, vector<4x1xf32>
    %4 = vector.broadcast %3 : vector<4x1xf32> to vector<4x256xf32>
    %5 = arith.mulf %2, %4 : vector<4x256xf32>
    %c0_5 = arith.constant 0 : index
    %c0_6 = arith.constant 0 : index
    %6 = vector.load %arg4[%c0_5, %c0_6] : memref<4x1xf32, #tpu.memory_space<vmem>>, vector<4x1xf32>
    %7 = vector.broadcast %6 : vector<4x1xf32> to vector<4x256xf32>
    %8 = arith.addf %5, %7 : vector<4x256xf32>
    %9 = arith.negf %8 : vector<4x256xf32>
    %10 = math.exp %9 : vector<4x256xf32>
    %cst_7 = arith.constant 1.000000e+00 : f32
    %11 = vector.broadcast %cst_7 : f32 to vector<4x256xf32>
    %12 = arith.addf %11, %10 : vector<4x256xf32>
    %13 = arith.divf %11, %12 : vector<4x256xf32>
    %14 = arith.mulf %8, %13 : vector<4x256xf32>
    %c0_8 = arith.constant 0 : index
    %c0_9 = arith.constant 0 : index
    %15 = vector.load %arg5[%c0_8, %c0_9] : memref<4x256xf32, #tpu.memory_space<vmem>>, vector<4x256xf32>
    tpu.vector_store %arg5[%c0_8, %c0_9], %14 {strides = array<i32>} : memref<4x256xf32, #tpu.memory_space<vmem>>, vector<4x256xf32>,
    return
  }
  func.func @transform_0(%arg0: i32) -> (i32, i32) {
    %c0_i32 = arith.constant 0 : i32
    %c0_i32_0 = arith.constant 0 : i32
    return %c0_i32, %arg0 : i32, i32
  }
  func.func @transform_1(%arg0: i32) -> (i32, i32) {
    %c0_i32 = arith.constant 0 : i32
    %c0_i32_0 = arith.constant 0 : i32
    %c0_i32_1 = arith.constant 0 : i32
    return %c0_i32, %c0_i32_0 : i32, i32
  }
  func.func @transform_2(%arg0: i32) -> (i32, i32) {
    %c0_i32 = arith.constant 0 : i32
    %c0_i32_0 = arith.constant 0 : i32
    %c0_i32_1 = arith.constant 0 : i32
    return %c0_i32, %c0_i32_0 : i32, i32
  }
  func.func @transform_3(%arg0: i32) -> (i32, i32) {
    %c0_i32 = arith.constant 0 : i32
    %c0_i32_0 = arith.constant 0 : i32
    %c0_i32_1 = arith.constant 0 : i32
    return %c0_i32, %c0_i32_0 : i32, i32
  }
  func.func @transform_4(%arg0: i32) -> (i32, i32) {
    %c0_i32 = arith.constant 0 : i32
    %c0_i32_0 = arith.constant 0 : i32
    return %c0_i32, %arg0 : i32, i32
  }
}

module attributes {stable_mosaic.version = 11 : i64} {
  func.func @_matmul_bn_silu_t_kernel(%arg0: i32, %arg1: memref<4x256xbf16, #tpu.memory_space<vmem>>, %arg2: memref<32x4xbf16, #tpu.memory_space<vmem>>, %arg3: memref<32x1xf32, #tpu.memory_space<vmem>>, %arg4: memref<32x1xf32, #tpu.memory_space<vmem>>, %arg5: memref<32x256xf32, #tpu.memory_space<vmem>>) attributes {dimension_semantics = [#tpu.dimension_semantics<parallel>], iteration_bounds = array<i64: 2>, scalar_prefetch = 0 : i64, scratch_operands = 0 : i64, tpu.core_type = #tpu.core_type<tc>, window_params = [{transform_indices = @transform_0, window_bounds = array<i64: 4, 256>}, {pipeline_mode = #tpu.pipeline_mode<synchronous>, transform_indices = @transform_1, window_bounds = array<i64: 32, 4>}, {pipeline_mode = #tpu.pipeline_mode<synchronous>, transform_indices = @transform_2, window_bounds = array<i64: 32, 1>}, {pipeline_mode = #tpu.pipeline_mode<synchronous>, transform_indices = @transform_3, window_bounds = array<i64: 32, 1>}, {transform_indices = @transform_4, window_bounds = array<i64: 32, 256>}]} {
    %c0 = arith.constant 0 : index
    %c0_0 = arith.constant 0 : index
    %0 = vector.load %arg2[%c0, %c0_0] : memref<32x4xbf16, #tpu.memory_space<vmem>>, vector<32x4xbf16>
    %c0_1 = arith.constant 0 : index
    %c0_2 = arith.constant 0 : index
    %1 = vector.load %arg1[%c0_1, %c0_2] : memref<4x256xbf16, #tpu.memory_space<vmem>>, vector<4x256xbf16>
    %cst = arith.constant dense<0.000000e+00> : vector<32x256xf32>
    %2 = tpu.matmul %0, %1, %cst {dimension_numbers = #tpu.dot_dimension_numbers<[1], [0], [0], [1], [0, 0, 1, 1], [], []>} : vector<32x4xbf16>, vector<4x256xbf16>, vector<32x256xf32> -> vector<32x256xf32>
    %c0_3 = arith.constant 0 : index
    %c0_4 = arith.constant 0 : index
    %3 = vector.load %arg3[%c0_3, %c0_4] : memref<32x1xf32, #tpu.memory_space<vmem>>, vector<32x1xf32>
    %4 = vector.broadcast %3 : vector<32x1xf32> to vector<32x256xf32>
    %5 = arith.mulf %2, %4 : vector<32x256xf32>
    %c0_5 = arith.constant 0 : index
    %c0_6 = arith.constant 0 : index
    %6 = vector.load %arg4[%c0_5, %c0_6] : memref<32x1xf32, #tpu.memory_space<vmem>>, vector<32x1xf32>
    %7 = vector.broadcast %6 : vector<32x1xf32> to vector<32x256xf32>
    %8 = arith.addf %5, %7 : vector<32x256xf32>
    %9 = arith.negf %8 : vector<32x256xf32>
    %10 = math.exp %9 : vector<32x256xf32>
    %cst_7 = arith.constant 1.000000e+00 : f32
    %11 = vector.broadcast %cst_7 : f32 to vector<32x256xf32>
    %12 = arith.addf %11, %10 : vector<32x256xf32>
    %13 = arith.divf %11, %12 : vector<32x256xf32>
    %14 = arith.mulf %8, %13 : vector<32x256xf32>
    %c0_8 = arith.constant 0 : index
    %c0_9 = arith.constant 0 : index
    %15 = vector.load %arg5[%c0_8, %c0_9] : memref<32x256xf32, #tpu.memory_space<vmem>>, vector<32x256xf32>
    tpu.vector_store %arg5[%c0_8, %c0_9], %14 {strides = array<i32>} : memref<32x256xf32, #tpu.memory_space<vmem>>, vector<32x256xf32>,
    return
  }
  func.func @transform_0(%arg0: i32) -> (i32, i32) {
    %c0_i32 = arith.constant 0 : i32
    %c0_i32_0 = arith.constant 0 : i32
    return %c0_i32, %arg0 : i32, i32
  }
  func.func @transform_1(%arg0: i32) -> (i32, i32) {
    %c0_i32 = arith.constant 0 : i32
    %c0_i32_0 = arith.constant 0 : i32
    %c0_i32_1 = arith.constant 0 : i32
    return %c0_i32, %c0_i32_0 : i32, i32
  }
  func.func @transform_2(%arg0: i32) -> (i32, i32) {
    %c0_i32 = arith.constant 0 : i32
    %c0_i32_0 = arith.constant 0 : i32
    %c0_i32_1 = arith.constant 0 : i32
    return %c0_i32, %c0_i32_0 : i32, i32
  }
  func.func @transform_3(%arg0: i32) -> (i32, i32) {
    %c0_i32 = arith.constant 0 : i32
    %c0_i32_0 = arith.constant 0 : i32
    %c0_i32_1 = arith.constant 0 : i32
    return %c0_i32, %c0_i32_0 : i32, i32
  }
  func.func @transform_4(%arg0: i32) -> (i32, i32) {
    %c0_i32 = arith.constant 0 : i32
    %c0_i32_0 = arith.constant 0 : i32
    return %c0_i32, %arg0 : i32, i32
  }
}

module attributes {stable_mosaic.version = 11 : i64} {
  func.func @_transformer_layer_kernel(%arg0: i32, %arg1: memref<4x64x32xf32, #tpu.memory_space<vmem>>, %arg2: memref<8x64xf32, #tpu.memory_space<vmem>>, %arg3: memref<32x96xbf16, #tpu.memory_space<vmem>>, %arg4: memref<32x32xbf16, #tpu.memory_space<vmem>>, %arg5: memref<32x64xbf16, #tpu.memory_space<vmem>>, %arg6: memref<64x32xbf16, #tpu.memory_space<vmem>>, %arg7: memref<4x64x32xf32, #tpu.memory_space<vmem>>) attributes {dimension_semantics = [#tpu.dimension_semantics<parallel>], iteration_bounds = array<i64: 2>, scalar_prefetch = 0 : i64, scratch_operands = 0 : i64, tpu.core_type = #tpu.core_type<tc>, window_params = [{transform_indices = @transform_0, window_bounds = array<i64: 4, 64, 32>}, {pipeline_mode = #tpu.pipeline_mode<synchronous>, transform_indices = @transform_1, window_bounds = array<i64: 8, 64>}, {pipeline_mode = #tpu.pipeline_mode<synchronous>, transform_indices = @transform_2, window_bounds = array<i64: 32, 96>}, {pipeline_mode = #tpu.pipeline_mode<synchronous>, transform_indices = @transform_3, window_bounds = array<i64: 32, 32>}, {pipeline_mode = #tpu.pipeline_mode<synchronous>, transform_indices = @transform_4, window_bounds = array<i64: 32, 64>}, {pipeline_mode = #tpu.pipeline_mode<synchronous>, transform_indices = @transform_5, window_bounds = array<i64: 64, 32>}, {transform_indices = @transform_6, window_bounds = array<i64: 4, 64, 32>}]} {
    %c0 = arith.constant 0 : index
    %c0_0 = arith.constant 0 : index
    %c0_1 = arith.constant 0 : index
    %0 = vector.load %arg1[%c0, %c0_0, %c0_1] : memref<4x64x32xf32, #tpu.memory_space<vmem>>, vector<4x64x32xf32>
    %1 = vector.shape_cast %0 : vector<4x64x32xf32> to vector<256x32xf32>
    %c0_2 = arith.constant 0 : index
    %c0_3 = arith.constant 0 : index
    %2 = vector.load %arg2[%c0_2, %c0_3] : memref<8x64xf32, #tpu.memory_space<vmem>>, vector<8x64xf32>
    %3 = vector.extract_strided_slice %2 {offsets = [0, 0], sizes = [1, 32], strides = [1, 1]} : vector<8x64xf32> to vector<1x32xf32>
    %4 = vector.extract_strided_slice %2 {offsets = [1, 0], sizes = [1, 32], strides = [1, 1]} : vector<8x64xf32> to vector<1x32xf32>
    %5 = vector.extract_strided_slice %2 {offsets = [2, 0], sizes = [1, 32], strides = [1, 1]} : vector<8x64xf32> to vector<1x32xf32>
    %6 = vector.extract_strided_slice %2 {offsets = [3, 0], sizes = [1, 32], strides = [1, 1]} : vector<8x64xf32> to vector<1x32xf32>
    %7 = vector.extract_strided_slice %2 {offsets = [4, 0], sizes = [1, 32], strides = [1, 1]} : vector<8x64xf32> to vector<1x32xf32>
    %8 = vector.extract_strided_slice %2 {offsets = [5, 0], sizes = [1, 32], strides = [1, 1]} : vector<8x64xf32> to vector<1x32xf32>
    %9 = vector.extract_strided_slice %2 {offsets = [6, 0], sizes = [1, 64], strides = [1, 1]} : vector<8x64xf32> to vector<1x64xf32>
    %cst = arith.constant dense<0.000000e+00> : vector<256xf32>
    %10 = vector.multi_reduction <add>, %1, %cst [1] : vector<256x32xf32> to vector<256xf32>
    %11 = vector.shape_cast %10 : vector<256xf32> to vector<256x1xf32>
    %cst_4 = arith.constant 3.200000e+01 : f32
    %12 = vector.broadcast %cst_4 : f32 to vector<256x1xf32>
    %13 = arith.divf %11, %12 : vector<256x1xf32>
    %14 = vector.broadcast %13 : vector<256x1xf32> to vector<256x32xf32>
    %15 = arith.subf %1, %14 : vector<256x32xf32>
    %16 = arith.mulf %15, %15 : vector<256x32xf32>
    %cst_5 = arith.constant dense<0.000000e+00> : vector<256xf32>
    %17 = vector.multi_reduction <add>, %16, %cst_5 [1] : vector<256x32xf32> to vector<256xf32>
    %18 = vector.shape_cast %17 : vector<256xf32> to vector<256x1xf32>
    %cst_6 = arith.constant 3.200000e+01 : f32
    %19 = vector.broadcast %cst_6 : f32 to vector<256x1xf32>
    %20 = arith.divf %18, %19 : vector<256x1xf32>
    %21 = vector.broadcast %13 : vector<256x1xf32> to vector<256x32xf32>
    %22 = arith.subf %1, %21 : vector<256x32xf32>
    %cst_7 = arith.constant 9.99999974E-6 : f32
    %23 = vector.broadcast %cst_7 : f32 to vector<256x1xf32>
    %24 = arith.addf %20, %23 : vector<256x1xf32>
    %25 = math.rsqrt %24 : vector<256x1xf32>
    %26 = vector.broadcast %25 : vector<256x1xf32> to vector<256x32xf32>
    %27 = arith.mulf %22, %26 : vector<256x32xf32>
    %28 = vector.broadcast %3 : vector<1x32xf32> to vector<256x32xf32>
    %29 = arith.mulf %27, %28 : vector<256x32xf32>
    %30 = vector.broadcast %4 : vector<1x32xf32> to vector<256x32xf32>
    %31 = arith.addf %29, %30 : vector<256x32xf32>
    %32 = arith.truncf %31 : vector<256x32xf32> to vector<256x32xbf16>
    %c0_8 = arith.constant 0 : index
    %c0_9 = arith.constant 0 : index
    %33 = vector.load %arg3[%c0_8, %c0_9] : memref<32x96xbf16, #tpu.memory_space<vmem>>, vector<32x96xbf16>
    %cst_10 = arith.constant dense<0.000000e+00> : vector<256x96xf32>
    %34 = tpu.matmul %32, %33, %cst_10 {dimension_numbers = #tpu.dot_dimension_numbers<[1], [0], [0], [1], [0, 0, 1, 1], [], []>} : vector<256x32xbf16>, vector<32x96xbf16>, vector<256x96xf32> -> vector<256x96xf32>
    %35 = vector.shape_cast %34 : vector<256x96xf32> to vector<4x64x96xf32>
    %36 = vector.extract_strided_slice %35 {offsets = [0, 0, 0], sizes = [4, 64, 8], strides = [1, 1, 1]} : vector<4x64x96xf32> to vector<4x64x8xf32>
    %37 = vector.extract_strided_slice %35 {offsets = [0, 0, 32], sizes = [4, 64, 8], strides = [1, 1, 1]} : vector<4x64x96xf32> to vector<4x64x8xf32>
    %38 = vector.extract_strided_slice %35 {offsets = [0, 0, 64], sizes = [4, 64, 8], strides = [1, 1, 1]} : vector<4x64x96xf32> to vector<4x64x8xf32>
    %39 = arith.truncf %36 : vector<4x64x8xf32> to vector<4x64x8xbf16>
    %40 = arith.truncf %37 : vector<4x64x8xf32> to vector<4x64x8xbf16>
    "tpu.trace_start"() <{level = 10 : i32, message = "bqd,bkd->bqk"}> : () -> ()
    %cst_11 = arith.constant dense<0.000000e+00> : vector<4x64x64xf32>
    %41 = tpu.matmul %39, %40, %cst_11 {dimension_numbers = #tpu.dot_dimension_numbers<[2], [2], [1], [1], [0, 0, 0, 1, 1, 1], [0], [0]>} : vector<4x64x8xbf16>, vector<4x64x8xbf16>, vector<4x64x64xf32> -> vector<4x64x64xf32>
    "tpu.trace_stop"() : () -> ()
    %cst_12 = arith.constant 0.353553385 : f32
    %42 = vector.broadcast %cst_12 : f32 to vector<4x64x64xf32>
    %43 = arith.mulf %41, %42 : vector<4x64x64xf32>
    %cst_13 = arith.constant dense<0xFF800000> : vector<4x64xf32>
    %44 = vector.multi_reduction <maximumf>, %43, %cst_13 [2] : vector<4x64x64xf32> to vector<4x64xf32>
    %45 = vector.shape_cast %44 : vector<4x64xf32> to vector<4x64x1xf32>
    %46 = vector.broadcast %45 : vector<4x64x1xf32> to vector<4x64x64xf32>
    %47 = arith.subf %43, %46 : vector<4x64x64xf32>
    %48 = math.exp %47 : vector<4x64x64xf32>
    %cst_14 = arith.constant dense<0.000000e+00> : vector<4x64xf32>
    %49 = vector.multi_reduction <add>, %48, %cst_14 [2] : vector<4x64x64xf32> to vector<4x64xf32>
    %50 = vector.shape_cast %49 : vector<4x64xf32> to vector<4x64x1xf32>
    %51 = vector.broadcast %50 : vector<4x64x1xf32> to vector<4x64x64xf32>
    %52 = arith.divf %48, %51 : vector<4x64x64xf32>
    %53 = arith.truncf %52 : vector<4x64x64xf32> to vector<4x64x64xbf16>
    %54 = arith.truncf %38 : vector<4x64x8xf32> to vector<4x64x8xbf16>
    "tpu.trace_start"() <{level = 10 : i32, message = "bqk,bkd->bqd"}> : () -> ()
    %cst_15 = arith.constant dense<0.000000e+00> : vector<4x64x8xf32>
    %55 = tpu.matmul %53, %54, %cst_15 {dimension_numbers = #tpu.dot_dimension_numbers<[2], [1], [1], [2], [0, 0, 0, 1, 1, 2], [0], [0]>} : vector<4x64x64xbf16>, vector<4x64x8xbf16>, vector<4x64x8xf32> -> vector<4x64x8xf32>
    "tpu.trace_stop"() : () -> ()
    %56 = vector.shape_cast %55 : vector<4x64x8xf32> to vector<256x8xf32>
    %57 = vector.extract_strided_slice %35 {offsets = [0, 0, 8], sizes = [4, 64, 8], strides = [1, 1, 1]} : vector<4x64x96xf32> to vector<4x64x8xf32>
    %58 = vector.extract_strided_slice %35 {offsets = [0, 0, 40], sizes = [4, 64, 8], strides = [1, 1, 1]} : vector<4x64x96xf32> to vector<4x64x8xf32>
    %59 = vector.extract_strided_slice %35 {offsets = [0, 0, 72], sizes = [4, 64, 8], strides = [1, 1, 1]} : vector<4x64x96xf32> to vector<4x64x8xf32>
    %60 = arith.truncf %57 : vector<4x64x8xf32> to vector<4x64x8xbf16>
    %61 = arith.truncf %58 : vector<4x64x8xf32> to vector<4x64x8xbf16>
    "tpu.trace_start"() <{level = 10 : i32, message = "bqd,bkd->bqk"}> : () -> ()
    %cst_16 = arith.constant dense<0.000000e+00> : vector<4x64x64xf32>
    %62 = tpu.matmul %60, %61, %cst_16 {dimension_numbers = #tpu.dot_dimension_numbers<[2], [2], [1], [1], [0, 0, 0, 1, 1, 1], [0], [0]>} : vector<4x64x8xbf16>, vector<4x64x8xbf16>, vector<4x64x64xf32> -> vector<4x64x64xf32>
    "tpu.trace_stop"() : () -> ()
    %cst_17 = arith.constant 0.353553385 : f32
    %63 = vector.broadcast %cst_17 : f32 to vector<4x64x64xf32>
    %64 = arith.mulf %62, %63 : vector<4x64x64xf32>
    %cst_18 = arith.constant dense<0xFF800000> : vector<4x64xf32>
    %65 = vector.multi_reduction <maximumf>, %64, %cst_18 [2] : vector<4x64x64xf32> to vector<4x64xf32>
    %66 = vector.shape_cast %65 : vector<4x64xf32> to vector<4x64x1xf32>
    %67 = vector.broadcast %66 : vector<4x64x1xf32> to vector<4x64x64xf32>
    %68 = arith.subf %64, %67 : vector<4x64x64xf32>
    %69 = math.exp %68 : vector<4x64x64xf32>
    %cst_19 = arith.constant dense<0.000000e+00> : vector<4x64xf32>
    %70 = vector.multi_reduction <add>, %69, %cst_19 [2] : vector<4x64x64xf32> to vector<4x64xf32>
    %71 = vector.shape_cast %70 : vector<4x64xf32> to vector<4x64x1xf32>
    %72 = vector.broadcast %71 : vector<4x64x1xf32> to vector<4x64x64xf32>
    %73 = arith.divf %69, %72 : vector<4x64x64xf32>
    %74 = arith.truncf %73 : vector<4x64x64xf32> to vector<4x64x64xbf16>
    %75 = arith.truncf %59 : vector<4x64x8xf32> to vector<4x64x8xbf16>
    "tpu.trace_start"() <{level = 10 : i32, message = "bqk,bkd->bqd"}> : () -> ()
    %cst_20 = arith.constant dense<0.000000e+00> : vector<4x64x8xf32>
    %76 = tpu.matmul %74, %75, %cst_20 {dimension_numbers = #tpu.dot_dimension_numbers<[2], [1], [1], [2], [0, 0, 0, 1, 1, 2], [0], [0]>} : vector<4x64x64xbf16>, vector<4x64x8xbf16>, vector<4x64x8xf32> -> vector<4x64x8xf32>
    "tpu.trace_stop"() : () -> ()
    %77 = vector.shape_cast %76 : vector<4x64x8xf32> to vector<256x8xf32>
    %78 = vector.extract_strided_slice %35 {offsets = [0, 0, 16], sizes = [4, 64, 8], strides = [1, 1, 1]} : vector<4x64x96xf32> to vector<4x64x8xf32>
    %79 = vector.extract_strided_slice %35 {offsets = [0, 0, 48], sizes = [4, 64, 8], strides = [1, 1, 1]} : vector<4x64x96xf32> to vector<4x64x8xf32>
    %80 = vector.extract_strided_slice %35 {offsets = [0, 0, 80], sizes = [4, 64, 8], strides = [1, 1, 1]} : vector<4x64x96xf32> to vector<4x64x8xf32>
    %81 = arith.truncf %78 : vector<4x64x8xf32> to vector<4x64x8xbf16>
    %82 = arith.truncf %79 : vector<4x64x8xf32> to vector<4x64x8xbf16>
    "tpu.trace_start"() <{level = 10 : i32, message = "bqd,bkd->bqk"}> : () -> ()
    %cst_21 = arith.constant dense<0.000000e+00> : vector<4x64x64xf32>
    %83 = tpu.matmul %81, %82, %cst_21 {dimension_numbers = #tpu.dot_dimension_numbers<[2], [2], [1], [1], [0, 0, 0, 1, 1, 1], [0], [0]>} : vector<4x64x8xbf16>, vector<4x64x8xbf16>, vector<4x64x64xf32> -> vector<4x64x64xf32>
    "tpu.trace_stop"() : () -> ()
    %cst_22 = arith.constant 0.353553385 : f32
    %84 = vector.broadcast %cst_22 : f32 to vector<4x64x64xf32>
    %85 = arith.mulf %83, %84 : vector<4x64x64xf32>
    %cst_23 = arith.constant dense<0xFF800000> : vector<4x64xf32>
    %86 = vector.multi_reduction <maximumf>, %85, %cst_23 [2] : vector<4x64x64xf32> to vector<4x64xf32>
    %87 = vector.shape_cast %86 : vector<4x64xf32> to vector<4x64x1xf32>
    %88 = vector.broadcast %87 : vector<4x64x1xf32> to vector<4x64x64xf32>
    %89 = arith.subf %85, %88 : vector<4x64x64xf32>
    %90 = math.exp %89 : vector<4x64x64xf32>
    %cst_24 = arith.constant dense<0.000000e+00> : vector<4x64xf32>
    %91 = vector.multi_reduction <add>, %90, %cst_24 [2] : vector<4x64x64xf32> to vector<4x64xf32>
    %92 = vector.shape_cast %91 : vector<4x64xf32> to vector<4x64x1xf32>
    %93 = vector.broadcast %92 : vector<4x64x1xf32> to vector<4x64x64xf32>
    %94 = arith.divf %90, %93 : vector<4x64x64xf32>
    %95 = arith.truncf %94 : vector<4x64x64xf32> to vector<4x64x64xbf16>
    %96 = arith.truncf %80 : vector<4x64x8xf32> to vector<4x64x8xbf16>
    "tpu.trace_start"() <{level = 10 : i32, message = "bqk,bkd->bqd"}> : () -> ()
    %cst_25 = arith.constant dense<0.000000e+00> : vector<4x64x8xf32>
    %97 = tpu.matmul %95, %96, %cst_25 {dimension_numbers = #tpu.dot_dimension_numbers<[2], [1], [1], [2], [0, 0, 0, 1, 1, 2], [0], [0]>} : vector<4x64x64xbf16>, vector<4x64x8xbf16>, vector<4x64x8xf32> -> vector<4x64x8xf32>
    "tpu.trace_stop"() : () -> ()
    %98 = vector.shape_cast %97 : vector<4x64x8xf32> to vector<256x8xf32>
    %99 = vector.extract_strided_slice %35 {offsets = [0, 0, 24], sizes = [4, 64, 8], strides = [1, 1, 1]} : vector<4x64x96xf32> to vector<4x64x8xf32>
    %100 = vector.extract_strided_slice %35 {offsets = [0, 0, 56], sizes = [4, 64, 8], strides = [1, 1, 1]} : vector<4x64x96xf32> to vector<4x64x8xf32>
    %101 = vector.extract_strided_slice %35 {offsets = [0, 0, 88], sizes = [4, 64, 8], strides = [1, 1, 1]} : vector<4x64x96xf32> to vector<4x64x8xf32>
    %102 = arith.truncf %99 : vector<4x64x8xf32> to vector<4x64x8xbf16>
    %103 = arith.truncf %100 : vector<4x64x8xf32> to vector<4x64x8xbf16>
    "tpu.trace_start"() <{level = 10 : i32, message = "bqd,bkd->bqk"}> : () -> ()
    %cst_26 = arith.constant dense<0.000000e+00> : vector<4x64x64xf32>
    %104 = tpu.matmul %102, %103, %cst_26 {dimension_numbers = #tpu.dot_dimension_numbers<[2], [2], [1], [1], [0, 0, 0, 1, 1, 1], [0], [0]>} : vector<4x64x8xbf16>, vector<4x64x8xbf16>, vector<4x64x64xf32> -> vector<4x64x64xf32>
    "tpu.trace_stop"() : () -> ()
    %cst_27 = arith.constant 0.353553385 : f32
    %105 = vector.broadcast %cst_27 : f32 to vector<4x64x64xf32>
    %106 = arith.mulf %104, %105 : vector<4x64x64xf32>
    %cst_28 = arith.constant dense<0xFF800000> : vector<4x64xf32>
    %107 = vector.multi_reduction <maximumf>, %106, %cst_28 [2] : vector<4x64x64xf32> to vector<4x64xf32>
    %108 = vector.shape_cast %107 : vector<4x64xf32> to vector<4x64x1xf32>
    %109 = vector.broadcast %108 : vector<4x64x1xf32> to vector<4x64x64xf32>
    %110 = arith.subf %106, %109 : vector<4x64x64xf32>
    %111 = math.exp %110 : vector<4x64x64xf32>
    %cst_29 = arith.constant dense<0.000000e+00> : vector<4x64xf32>
    %112 = vector.multi_reduction <add>, %111, %cst_29 [2] : vector<4x64x64xf32> to vector<4x64xf32>
    %113 = vector.shape_cast %112 : vector<4x64xf32> to vector<4x64x1xf32>
    %114 = vector.broadcast %113 : vector<4x64x1xf32> to vector<4x64x64xf32>
    %115 = arith.divf %111, %114 : vector<4x64x64xf32>
    %116 = arith.truncf %115 : vector<4x64x64xf32> to vector<4x64x64xbf16>
    %117 = arith.truncf %101 : vector<4x64x8xf32> to vector<4x64x8xbf16>
    "tpu.trace_start"() <{level = 10 : i32, message = "bqk,bkd->bqd"}> : () -> ()
    %cst_30 = arith.constant dense<0.000000e+00> : vector<4x64x8xf32>
    %118 = tpu.matmul %116, %117, %cst_30 {dimension_numbers = #tpu.dot_dimension_numbers<[2], [1], [1], [2], [0, 0, 0, 1, 1, 2], [0], [0]>} : vector<4x64x64xbf16>, vector<4x64x8xbf16>, vector<4x64x8xf32> -> vector<4x64x8xf32>
    "tpu.trace_stop"() : () -> ()
    %119 = vector.shape_cast %118 : vector<4x64x8xf32> to vector<256x8xf32>
    %120 = tpu.concatenate %56, %77, %98, %119 in 1 : vector<256x8xf32>, vector<256x8xf32>, vector<256x8xf32>, vector<256x8xf32> -> vector<256x32xf32>
    %121 = arith.truncf %120 : vector<256x32xf32> to vector<256x32xbf16>
    %c0_31 = arith.constant 0 : index
    %c0_32 = arith.constant 0 : index
    %122 = vector.load %arg4[%c0_31, %c0_32] : memref<32x32xbf16, #tpu.memory_space<vmem>>, vector<32x32xbf16>
    %cst_33 = arith.constant dense<0.000000e+00> : vector<256x32xf32>
    %123 = tpu.matmul %121, %122, %cst_33 {dimension_numbers = #tpu.dot_dimension_numbers<[1], [0], [0], [1], [0, 0, 1, 1], [], []>} : vector<256x32xbf16>, vector<32x32xbf16>, vector<256x32xf32> -> vector<256x32xf32>
    %124 = vector.broadcast %5 : vector<1x32xf32> to vector<256x32xf32>
    %125 = arith.addf %123, %124 : vector<256x32xf32>
    %126 = arith.addf %1, %125 : vector<256x32xf32>
    %cst_34 = arith.constant dense<0.000000e+00> : vector<256xf32>
    %127 = vector.multi_reduction <add>, %126, %cst_34 [1] : vector<256x32xf32> to vector<256xf32>
    %128 = vector.shape_cast %127 : vector<256xf32> to vector<256x1xf32>
    %cst_35 = arith.constant 3.200000e+01 : f32
    %129 = vector.broadcast %cst_35 : f32 to vector<256x1xf32>
    %130 = arith.divf %128, %129 : vector<256x1xf32>
    %131 = vector.broadcast %130 : vector<256x1xf32> to vector<256x32xf32>
    %132 = arith.subf %126, %131 : vector<256x32xf32>
    %133 = arith.mulf %132, %132 : vector<256x32xf32>
    %cst_36 = arith.constant dense<0.000000e+00> : vector<256xf32>
    %134 = vector.multi_reduction <add>, %133, %cst_36 [1] : vector<256x32xf32> to vector<256xf32>
    %135 = vector.shape_cast %134 : vector<256xf32> to vector<256x1xf32>
    %cst_37 = arith.constant 3.200000e+01 : f32
    %136 = vector.broadcast %cst_37 : f32 to vector<256x1xf32>
    %137 = arith.divf %135, %136 : vector<256x1xf32>
    %138 = vector.broadcast %130 : vector<256x1xf32> to vector<256x32xf32>
    %139 = arith.subf %126, %138 : vector<256x32xf32>
    %cst_38 = arith.constant 9.99999974E-6 : f32
    %140 = vector.broadcast %cst_38 : f32 to vector<256x1xf32>
    %141 = arith.addf %137, %140 : vector<256x1xf32>
    %142 = math.rsqrt %141 : vector<256x1xf32>
    %143 = vector.broadcast %142 : vector<256x1xf32> to vector<256x32xf32>
    %144 = arith.mulf %139, %143 : vector<256x32xf32>
    %145 = vector.broadcast %6 : vector<1x32xf32> to vector<256x32xf32>
    %146 = arith.mulf %144, %145 : vector<256x32xf32>
    %147 = vector.broadcast %7 : vector<1x32xf32> to vector<256x32xf32>
    %148 = arith.addf %146, %147 : vector<256x32xf32>
    %149 = arith.truncf %148 : vector<256x32xf32> to vector<256x32xbf16>
    %c0_39 = arith.constant 0 : index
    %c0_40 = arith.constant 0 : index
    %150 = vector.load %arg5[%c0_39, %c0_40] : memref<32x64xbf16, #tpu.memory_space<vmem>>, vector<32x64xbf16>
    %cst_41 = arith.constant dense<0.000000e+00> : vector<256x64xf32>
    %151 = tpu.matmul %149, %150, %cst_41 {dimension_numbers = #tpu.dot_dimension_numbers<[1], [0], [0], [1], [0, 0, 1, 1], [], []>} : vector<256x32xbf16>, vector<32x64xbf16>, vector<256x64xf32> -> vector<256x64xf32>
    %152 = vector.broadcast %9 : vector<1x64xf32> to vector<256x64xf32>
    %153 = arith.addf %151, %152 : vector<256x64xf32>
    %154 = arith.negf %153 : vector<256x64xf32>
    %155 = math.exp %154 : vector<256x64xf32>
    %cst_42 = arith.constant 1.000000e+00 : f32
    %156 = vector.broadcast %cst_42 : f32 to vector<256x64xf32>
    %157 = arith.addf %156, %155 : vector<256x64xf32>
    %158 = arith.divf %156, %157 : vector<256x64xf32>
    %159 = arith.mulf %153, %158 : vector<256x64xf32>
    %160 = arith.truncf %159 : vector<256x64xf32> to vector<256x64xbf16>
    %c0_43 = arith.constant 0 : index
    %c0_44 = arith.constant 0 : index
    %161 = vector.load %arg6[%c0_43, %c0_44] : memref<64x32xbf16, #tpu.memory_space<vmem>>, vector<64x32xbf16>
    %cst_45 = arith.constant dense<0.000000e+00> : vector<256x32xf32>
    %162 = tpu.matmul %160, %161, %cst_45 {dimension_numbers = #tpu.dot_dimension_numbers<[1], [0], [0], [1], [0, 0, 1, 1], [], []>} : vector<256x64xbf16>, vector<64x32xbf16>, vector<256x32xf32> -> vector<256x32xf32>
    %163 = vector.broadcast %8 : vector<1x32xf32> to vector<256x32xf32>
    %164 = arith.addf %162, %163 : vector<256x32xf32>
    %165 = arith.addf %126, %164 : vector<256x32xf32>
    %166 = vector.shape_cast %165 : vector<256x32xf32> to vector<4x64x32xf32>
    %c0_46 = arith.constant 0 : index
    %c0_47 = arith.constant 0 : index
    %c0_48 = arith.constant 0 : index
    %167 = vector.load %arg7[%c0_46, %c0_47, %c0_48] : memref<4x64x32xf32, #tpu.memory_space<vmem>>, vector<4x64x32xf32>
    tpu.vector_store %arg7[%c0_46, %c0_47, %c0_48], %166 {strides = array<i32>} : memref<4x64x32xf32, #tpu.memory_space<vmem>>, vector<4x64x32xf32>,
    return
  }
  func.func @transform_0(%arg0: i32) -> (i32, i32, i32) {
    %c0_i32 = arith.constant 0 : i32
    %c0_i32_0 = arith.constant 0 : i32
    %c0_i32_1 = arith.constant 0 : i32
    return %arg0, %c0_i32, %c0_i32_0 : i32, i32, i32
  }
  func.func @transform_1(%arg0: i32) -> (i32, i32) {
    %c0_i32 = arith.constant 0 : i32
    %c0_i32_0 = arith.constant 0 : i32
    %c0_i32_1 = arith.constant 0 : i32
    return %c0_i32, %c0_i32_0 : i32, i32
  }
  func.func @transform_2(%arg0: i32) -> (i32, i32) {
    %c0_i32 = arith.constant 0 : i32
    %c0_i32_0 = arith.constant 0 : i32
    %c0_i32_1 = arith.constant 0 : i32
    return %c0_i32, %c0_i32_0 : i32, i32
  }
  func.func @transform_3(%arg0: i32) -> (i32, i32) {
    %c0_i32 = arith.constant 0 : i32
    %c0_i32_0 = arith.constant 0 : i32
    %c0_i32_1 = arith.constant 0 : i32
    return %c0_i32, %c0_i32_0 : i32, i32
  }
  func.func @transform_4(%arg0: i32) -> (i32, i32) {
    %c0_i32 = arith.constant 0 : i32
    %c0_i32_0 = arith.constant 0 : i32
    %c0_i32_1 = arith.constant 0 : i32
    return %c0_i32, %c0_i32_0 : i32, i32
  }
  func.func @transform_5(%arg0: i32) -> (i32, i32) {
    %c0_i32 = arith.constant 0 : i32
    %c0_i32_0 = arith.constant 0 : i32
    %c0_i32_1 = arith.constant 0 : i32
    return %c0_i32, %c0_i32_0 : i32, i32
  }
  func.func @transform_6(%arg0: i32) -> (i32, i32, i32) {
    %c0_i32 = arith.constant 0 : i32
    %c0_i32_0 = arith.constant 0 : i32
    %c0_i32_1 = arith.constant 0 : i32
    return %arg0, %c0_i32, %c0_i32_0 : i32, i32, i32
  }
}

module attributes {stable_mosaic.version = 11 : i64} {
  func.func @_matmul_bn_silu_t_kernel(%arg0: i32, %arg1: memref<32x256xbf16, #tpu.memory_space<vmem>>, %arg2: memref<4x32xbf16, #tpu.memory_space<vmem>>, %arg3: memref<4x1xf32, #tpu.memory_space<vmem>>, %arg4: memref<4x1xf32, #tpu.memory_space<vmem>>, %arg5: memref<4x256xf32, #tpu.memory_space<vmem>>) attributes {dimension_semantics = [#tpu.dimension_semantics<parallel>], iteration_bounds = array<i64: 2>, scalar_prefetch = 0 : i64, scratch_operands = 0 : i64, tpu.core_type = #tpu.core_type<tc>, window_params = [{transform_indices = @transform_0, window_bounds = array<i64: 32, 256>}, {pipeline_mode = #tpu.pipeline_mode<synchronous>, transform_indices = @transform_1, window_bounds = array<i64: 4, 32>}, {pipeline_mode = #tpu.pipeline_mode<synchronous>, transform_indices = @transform_2, window_bounds = array<i64: 4, 1>}, {pipeline_mode = #tpu.pipeline_mode<synchronous>, transform_indices = @transform_3, window_bounds = array<i64: 4, 1>}, {transform_indices = @transform_4, window_bounds = array<i64: 4, 256>}]} {
    %c0 = arith.constant 0 : index
    %c0_0 = arith.constant 0 : index
    %0 = vector.load %arg2[%c0, %c0_0] : memref<4x32xbf16, #tpu.memory_space<vmem>>, vector<4x32xbf16>
    %c0_1 = arith.constant 0 : index
    %c0_2 = arith.constant 0 : index
    %1 = vector.load %arg1[%c0_1, %c0_2] : memref<32x256xbf16, #tpu.memory_space<vmem>>, vector<32x256xbf16>
    %cst = arith.constant dense<0.000000e+00> : vector<4x256xf32>
    %2 = tpu.matmul %0, %1, %cst {dimension_numbers = #tpu.dot_dimension_numbers<[1], [0], [0], [1], [0, 0, 1, 1], [], []>} : vector<4x32xbf16>, vector<32x256xbf16>, vector<4x256xf32> -> vector<4x256xf32>
    %c0_3 = arith.constant 0 : index
    %c0_4 = arith.constant 0 : index
    %3 = vector.load %arg3[%c0_3, %c0_4] : memref<4x1xf32, #tpu.memory_space<vmem>>, vector<4x1xf32>
    %4 = vector.broadcast %3 : vector<4x1xf32> to vector<4x256xf32>
    %5 = arith.mulf %2, %4 : vector<4x256xf32>
    %c0_5 = arith.constant 0 : index
    %c0_6 = arith.constant 0 : index
    %6 = vector.load %arg4[%c0_5, %c0_6] : memref<4x1xf32, #tpu.memory_space<vmem>>, vector<4x1xf32>
    %7 = vector.broadcast %6 : vector<4x1xf32> to vector<4x256xf32>
    %8 = arith.addf %5, %7 : vector<4x256xf32>
    %9 = arith.negf %8 : vector<4x256xf32>
    %10 = math.exp %9 : vector<4x256xf32>
    %cst_7 = arith.constant 1.000000e+00 : f32
    %11 = vector.broadcast %cst_7 : f32 to vector<4x256xf32>
    %12 = arith.addf %11, %10 : vector<4x256xf32>
    %13 = arith.divf %11, %12 : vector<4x256xf32>
    %14 = arith.mulf %8, %13 : vector<4x256xf32>
    %c0_8 = arith.constant 0 : index
    %c0_9 = arith.constant 0 : index
    %15 = vector.load %arg5[%c0_8, %c0_9] : memref<4x256xf32, #tpu.memory_space<vmem>>, vector<4x256xf32>
    tpu.vector_store %arg5[%c0_8, %c0_9], %14 {strides = array<i32>} : memref<4x256xf32, #tpu.memory_space<vmem>>, vector<4x256xf32>,
    return
  }
  func.func @transform_0(%arg0: i32) -> (i32, i32) {
    %c0_i32 = arith.constant 0 : i32
    %c0_i32_0 = arith.constant 0 : i32
    return %c0_i32, %arg0 : i32, i32
  }
  func.func @transform_1(%arg0: i32) -> (i32, i32) {
    %c0_i32 = arith.constant 0 : i32
    %c0_i32_0 = arith.constant 0 : i32
    %c0_i32_1 = arith.constant 0 : i32
    return %c0_i32, %c0_i32_0 : i32, i32
  }
  func.func @transform_2(%arg0: i32) -> (i32, i32) {
    %c0_i32 = arith.constant 0 : i32
    %c0_i32_0 = arith.constant 0 : i32
    %c0_i32_1 = arith.constant 0 : i32
    return %c0_i32, %c0_i32_0 : i32, i32
  }
  func.func @transform_3(%arg0: i32) -> (i32, i32) {
    %c0_i32 = arith.constant 0 : i32
    %c0_i32_0 = arith.constant 0 : i32
    %c0_i32_1 = arith.constant 0 : i32
    return %c0_i32, %c0_i32_0 : i32, i32
  }
  func.func @transform_4(%arg0: i32) -> (i32, i32) {
    %c0_i32 = arith.constant 0 : i32
    %c0_i32_0 = arith.constant 0 : i32
    return %c0_i32, %arg0 : i32, i32
  }
}

module attributes {stable_mosaic.version = 11 : i64} {
  func.func @_matmul_bn_silu_t_kernel(%arg0: i32, %arg1: memref<72x256xbf16, #tpu.memory_space<vmem>>, %arg2: memref<4x72xbf16, #tpu.memory_space<vmem>>, %arg3: memref<4x1xf32, #tpu.memory_space<vmem>>, %arg4: memref<4x1xf32, #tpu.memory_space<vmem>>, %arg5: memref<4x256xf32, #tpu.memory_space<vmem>>) attributes {dimension_semantics = [#tpu.dimension_semantics<parallel>], iteration_bounds = array<i64: 2>, scalar_prefetch = 0 : i64, scratch_operands = 0 : i64, tpu.core_type = #tpu.core_type<tc>, window_params = [{transform_indices = @transform_0, window_bounds = array<i64: 72, 256>}, {pipeline_mode = #tpu.pipeline_mode<synchronous>, transform_indices = @transform_1, window_bounds = array<i64: 4, 72>}, {pipeline_mode = #tpu.pipeline_mode<synchronous>, transform_indices = @transform_2, window_bounds = array<i64: 4, 1>}, {pipeline_mode = #tpu.pipeline_mode<synchronous>, transform_indices = @transform_3, window_bounds = array<i64: 4, 1>}, {transform_indices = @transform_4, window_bounds = array<i64: 4, 256>}]} {
    %c0 = arith.constant 0 : index
    %c0_0 = arith.constant 0 : index
    %0 = vector.load %arg2[%c0, %c0_0] : memref<4x72xbf16, #tpu.memory_space<vmem>>, vector<4x72xbf16>
    %c0_1 = arith.constant 0 : index
    %c0_2 = arith.constant 0 : index
    %1 = vector.load %arg1[%c0_1, %c0_2] : memref<72x256xbf16, #tpu.memory_space<vmem>>, vector<72x256xbf16>
    %cst = arith.constant dense<0.000000e+00> : vector<4x256xf32>
    %2 = tpu.matmul %0, %1, %cst {dimension_numbers = #tpu.dot_dimension_numbers<[1], [0], [0], [1], [0, 0, 1, 1], [], []>} : vector<4x72xbf16>, vector<72x256xbf16>, vector<4x256xf32> -> vector<4x256xf32>
    %c0_3 = arith.constant 0 : index
    %c0_4 = arith.constant 0 : index
    %3 = vector.load %arg3[%c0_3, %c0_4] : memref<4x1xf32, #tpu.memory_space<vmem>>, vector<4x1xf32>
    %4 = vector.broadcast %3 : vector<4x1xf32> to vector<4x256xf32>
    %5 = arith.mulf %2, %4 : vector<4x256xf32>
    %c0_5 = arith.constant 0 : index
    %c0_6 = arith.constant 0 : index
    %6 = vector.load %arg4[%c0_5, %c0_6] : memref<4x1xf32, #tpu.memory_space<vmem>>, vector<4x1xf32>
    %7 = vector.broadcast %6 : vector<4x1xf32> to vector<4x256xf32>
    %8 = arith.addf %5, %7 : vector<4x256xf32>
    %9 = arith.negf %8 : vector<4x256xf32>
    %10 = math.exp %9 : vector<4x256xf32>
    %cst_7 = arith.constant 1.000000e+00 : f32
    %11 = vector.broadcast %cst_7 : f32 to vector<4x256xf32>
    %12 = arith.addf %11, %10 : vector<4x256xf32>
    %13 = arith.divf %11, %12 : vector<4x256xf32>
    %14 = arith.mulf %8, %13 : vector<4x256xf32>
    %c0_8 = arith.constant 0 : index
    %c0_9 = arith.constant 0 : index
    %15 = vector.load %arg5[%c0_8, %c0_9] : memref<4x256xf32, #tpu.memory_space<vmem>>, vector<4x256xf32>
    tpu.vector_store %arg5[%c0_8, %c0_9], %14 {strides = array<i32>} : memref<4x256xf32, #tpu.memory_space<vmem>>, vector<4x256xf32>,
    return
  }
  func.func @transform_0(%arg0: i32) -> (i32, i32) {
    %c0_i32 = arith.constant 0 : i32
    %c0_i32_0 = arith.constant 0 : i32
    return %c0_i32, %arg0 : i32, i32
  }
  func.func @transform_1(%arg0: i32) -> (i32, i32) {
    %c0_i32 = arith.constant 0 : i32
    %c0_i32_0 = arith.constant 0 : i32
    %c0_i32_1 = arith.constant 0 : i32
    return %c0_i32, %c0_i32_0 : i32, i32
  }
  func.func @transform_2(%arg0: i32) -> (i32, i32) {
    %c0_i32 = arith.constant 0 : i32
    %c0_i32_0 = arith.constant 0 : i32
    %c0_i32_1 = arith.constant 0 : i32
    return %c0_i32, %c0_i32_0 : i32, i32
  }
  func.func @transform_3(%arg0: i32) -> (i32, i32) {
    %c0_i32 = arith.constant 0 : i32
    %c0_i32_0 = arith.constant 0 : i32
    %c0_i32_1 = arith.constant 0 : i32
    return %c0_i32, %c0_i32_0 : i32, i32
  }
  func.func @transform_4(%arg0: i32) -> (i32, i32) {
    %c0_i32 = arith.constant 0 : i32
    %c0_i32_0 = arith.constant 0 : i32
    return %c0_i32, %arg0 : i32, i32
  }
}

</mosaic_0001>

<llo_original>
// kernel: mobilevit_block.7
$region0: #{mobilevit_block.7}
  #allocation0 [shape = 'u32[]', space=smem, size = 0x4, offset = 0x4, fixed_abs, tag = 'smem constant byte address 0x4 - core index']
  #allocation1 [shape = 'u32[144,128]{1,0:T(1,128)}', space=vmem, size = 0x12000, scoped, tag = 'internal scratch']
  %s0 = inlined_call_operand.vmem [shape: bf16[4,512], index: 0, kind: input, shape index: {}]
  %s1 = inlined_call_operand.vmem [shape: bf16[32,4], index: 1, kind: input, shape index: {}]
  %s2 = inlined_call_operand.vmem [shape: f32[32,1], index: 2, kind: input, shape index: {}]
  %s3 = inlined_call_operand.vmem [shape: f32[32,1], index: 3, kind: input, shape index: {}]
  %s4 = inlined_call_operand.vmem [shape: f32[32,512], index: 4, kind: output, shape index: {}]
  %s5 = sld [smem:[#allocation0]]
  $region68: #{mobilevit_block.7} parent=0
    _
  %s7 = ssub.s32 1, %s5
  %s8 = scalar_select 0, %s7, %s5
  $region1: #{mobilevit_block.7} parent=0
    #allocation2 [shape = 'u8[65536]{0}', space=vmem, size = 0x10000, scoped, tag = 'output window, operand 0']
    loop: start=0, step=1, limit=4
    $region2: #{mobilevit_block.7} parent=1 // loop_pre_header
      _
    $region3: #{mobilevit_block.7} parent=1 // loop_header
      %s10 = sphi 0, %s14
      %p11 = scmp.ge.s32.totalorder %s10, 4
      %s20 = sphi 0, %s22
      %s23 = sphi 0, %s20
      %s24 = sphi 0, %s23
      %s40 = sphi 0, %s24
      %s44 = sphi 0, %s44
      %s46 = sphi 0, %s44
      %s47 = sphi 0, %s46
      %s61 = sphi 0, %s47
      %s65 = sphi 0, %s65
      %s67 = sphi 0, %s65
      %s68 = sphi 0, %s67
      %s82 = sphi 0, %s68
      %s86 = sphi 0, %s86
      %s88 = sphi 0, %s86
      %s89 = sphi 0, %s88
      %s103 = sphi 0, %s89
      %s109 = sphi 0, %s111
      %s112 = sphi 0, %s109
      %s113 = sphi 0, %s112
      %s129 = sphi 0, %s113
    $region4: #{mobilevit_block.7} parent=1 // loop_header_branch
      %13 = sbr.rel (%p11) target = $region8
    $region5: #{mobilevit_block.7} parent=1 // loop_body
      %s15 = ssub.s32 %s10, 1
      %s16 = ssub.s32 %s10, 2
      %s17 = sadd.s32 %s10, 1
      %s18 = ssub.s32 %s10, %s17
      %p19 = scmp.eq.s32.totalorder %s18, 0
      %s21 = sadd.s32 %s20, 1
      %s22 = scalar_select %p19, %s20, %s21
      %p25 = pneg %p19
      %p26 = scmp.eq.s32.totalorder %s10, 1
      %p27 = por %p25, %p26
      %p28 = scmp.ne.s32.totalorder %s20, %s23
      %p29 = scmp.eq.s32.totalorder %s10, 0
      %p30 = por %p28, %p29
      %p31 = scmp.ne.s32.totalorder %s20, %s23
      %p32 = scmp.eq.s32.totalorder %s15, 1
      %p33 = por %p31, %p32
      %p34 = scmp.ne.s32.totalorder %s23, %s24
      %p35 = scmp.eq.s32.totalorder %s15, 0
      %p36 = por %p34, %p35
      %p37 = scmp.ne.s32.totalorder %s23, %s24
      %p38 = scmp.eq.s32.totalorder %s16, 1
      %p39 = por %p37, %p38
      %p41 = scmp.ne.s32.totalorder %s24, %s40
      %p42 = scmp.eq.s32.totalorder %s16, 0
      %p43 = por %p41, %p42
      %s45 = sadd.s32 %s44, 1
      %p48 = scmp.eq.s32.totalorder %s10, 1
      %p49 = scmp.ne.s32.totalorder %s44, %s46
      %p50 = scmp.eq.s32.totalorder %s10, 0
      %p51 = por %p49, %p50
      %p52 = scmp.ne.s32.totalorder %s44, %s46
      %p53 = scmp.eq.s32.totalorder %s15, 1
      %p54 = por %p52, %p53
      %p55 = scmp.ne.s32.totalorder %s46, %s47
      %p56 = scmp.eq.s32.totalorder %s15, 0
      %p57 = por %p55, %p56
      %p58 = scmp.ne.s32.totalorder %s46, %s47
      %p59 = scmp.eq.s32.totalorder %s16, 1
      %p60 = por %p58, %p59
      %p62 = scmp.ne.s32.totalorder %s47, %s61
      %p63 = scmp.eq.s32.totalorder %s16, 0
      %p64 = por %p62, %p63
      %s66 = sadd.s32 %s65, 1
      %p69 = scmp.eq.s32.totalorder %s10, 1
      %p70 = scmp.ne.s32.totalorder %s65, %s67
      %p71 = scmp.eq.s32.totalorder %s10, 0
      %p72 = por %p70, %p71
      %p73 = scmp.ne.s32.totalorder %s65, %s67
      %p74 = scmp.eq.s32.totalorder %s15, 1
      %p75 = por %p73, %p74
      %p76 = scmp.ne.s32.totalorder %s67, %s68
      %p77 = scmp.eq.s32.totalorder %s15, 0
      %p78 = por %p76, %p77
      %p79 = scmp.ne.s32.totalorder %s67, %s68
      %p80 = scmp.eq.s32.totalorder %s16, 1
      %p81 = por %p79, %p80
      %p83 = scmp.ne.s32.totalorder %s68, %s82
      %p84 = scmp.eq.s32.totalorder %s16, 0
      %p85 = por %p83, %p84
      %s87 = sadd.s32 %s86, 1
      %p90 = scmp.eq.s32.totalorder %s10, 1
      %p91 = scmp.ne.s32.totalorder %s86, %s88
      %p92 = scmp.eq.s32.totalorder %s10, 0
      %p93 = por %p91, %p92
      %p94 = scmp.ne.s32.totalorder %s86, %s88
      %p95 = scmp.eq.s32.totalorder %s15, 1
      %p96 = por %p94, %p95
      %p97 = scmp.ne.s32.totalorder %s88, %s89
      %p98 = scmp.eq.s32.totalorder %s15, 0
      %p99 = por %p97, %p98
      %p100 = scmp.ne.s32.totalorder %s88, %s89
      %p101 = scmp.eq.s32.totalorder %s16, 1
      %p102 = por %p100, %p101
      %p104 = scmp.ne.s32.totalorder %s89, %s103
      %p105 = scmp.eq.s32.totalorder %s16, 0
      %p106 = por %p104, %p105
      %s107 = ssub.s32 %s10, %s17
      %p108 = scmp.eq.s32.totalorder %s107, 0
      %s110 = sadd.s32 %s109, 1
      %s111 = scalar_select %p108, %s109, %s110
      %p114 = pneg %p108
      %p115 = scmp.eq.s32.totalorder %s10, 1
      %p116 = por %p114, %p115
      %p117 = scmp.ne.s32.totalorder %s109, %s112
      %p118 = scmp.eq.s32.totalorder %s10, 0
      %p119 = por %p117, %p118
      %p120 = scmp.ne.s32.totalorder %s109, %s112
      %p121 = scmp.eq.s32.totalorder %s15, 1
      %p122 = por %p120, %p121
      %p123 = scmp.ne.s32.totalorder %s112, %s113
      %p124 = scmp.eq.s32.totalorder %s15, 0
      %p125 = por %p123, %p124
      %p126 = scmp.ne.s32.totalorder %s112, %s113
      %p127 = scmp.eq.s32.totalorder %s16, 1
      %p128 = por %p126, %p127
      %p130 = scmp.ne.s32.totalorder %s113, %s129
      %p131 = scmp.eq.s32.totalorder %s16, 0
      %p132 = por %p130, %p131
      %p133 = scmp.le.s32.totalorder 1, %s10
      %p134 = scmp.lt.s32.totalorder %s10, 3
      %p135 = pnand %p133, %p134
      %p136 = pneg %p135
      // Predicated region
      $region9: #{mobilevit_block.7} parent=5 // pred_check
        _
      $region10: #{mobilevit_block.7} parent=5 // pred_check_branch
        %138 = sbr.rel (%p135) target = $region12
      $region11: #{mobilevit_block.7} parent=5 // pred_region
        %s139 = ssub.s32 %s10, 1
        // Predicated region
        $region13: #{mobilevit_block.7} parent=11 // pred_check
          %p140 = pneg %p57
        $region14: #{mobilevit_block.7} parent=11 // pred_check_branch
          %142 = sbr.rel (%p140) target = $region16
        $region15: #{mobilevit_block.7} parent=11 // pred_region
          _
        $region16: #{mobilevit_block.7} parent=11 // pred_fallthru
          _
        // Predicated region
        $region17: #{mobilevit_block.7} parent=11 // pred_check
          %p143 = pneg %p78
        $region18: #{mobilevit_block.7} parent=11 // pred_check_branch
          %145 = sbr.rel (%p143) target = $region20
        $region19: #{mobilevit_block.7} parent=11 // pred_region
          _
        $region20: #{mobilevit_block.7} parent=11 // pred_fallthru
          _
        // Predicated region
        $region21: #{mobilevit_block.7} parent=11 // pred_check
          %p146 = pneg %p99
        $region22: #{mobilevit_block.7} parent=11 // pred_check_branch
          %148 = sbr.rel (%p146) target = $region24
        $region23: #{mobilevit_block.7} parent=11 // pred_region
          _
        $region24: #{mobilevit_block.7} parent=11 // pred_fallthru
          _
      $region12: #{mobilevit_block.7} parent=5 // pred_fallthru
        _
      %p149 = scmp.lt.s32.totalorder %s10, 2
      // Predicated region
      $region25: #{mobilevit_block.7} parent=5 // pred_check
        %p150 = pneg %p149
      $region26: #{mobilevit_block.7} parent=5 // pred_check_branch
        %152 = sbr.rel (%p150) target = $region28
      $region27: #{mobilevit_block.7} parent=5 // pred_region
        // Predicated region
        $region29: #{mobilevit_block.7} parent=27 // pred_check
          %p153 = pneg %p30
        $region30: #{mobilevit_block.7} parent=27 // pred_check_branch
          %155 = sbr.rel (%p153) target = $region32
        $region31: #{mobilevit_block.7} parent=27 // pred_region
          %s156 = smul.u32 2, %s10
          %p157 = scmp.lt.s32.totalorder %s156, 3
          %s158 = scalar_select %p157, %s156, 3
          %s159 = smul.addr %s158, 2
          %s160 = scalar_lea.vmem %s0, %s159
          %s161 = smul.u32 2, %s10
        $region32: #{mobilevit_block.7} parent=27 // pred_fallthru
          _
      $region28: #{mobilevit_block.7} parent=5 // pred_fallthru
        _
      %p162 = scmp.le.s32.totalorder 1, %s10
      %p163 = scmp.lt.s32.totalorder %s10, 3
      %p164 = pnand %p162, %p163
      %p165 = pneg %p164
      // Predicated region
      $region33: #{mobilevit_block.7} parent=5 // pred_check
        _
      $region34: #{mobilevit_block.7} parent=5 // pred_check_branch
        %167 = sbr.rel (%p164) target = $region36
      $region35: #{mobilevit_block.7} parent=5 // pred_region
        %s168 = ssub.s32 %s10, 1
        %s169 = smul.u32 2, %s15
        %p170 = scmp.lt.s32.totalorder %s169, 3
        %s171 = scalar_select %p170, %s169, 3
        %s172 = smul.addr %s171, 2
        %s173 = scalar_lea.vmem %s0, %s172
        %p174 = pneg %p36
        %p175 = pneg %p33
        %p176 = pneg %p57
        %p177 = pneg %p54
        %p178 = pneg %p78
        %p179 = pneg %p75
        %p180 = pneg %p99
        %p181 = pneg %p96
        %p182 = pneg %p125
        %p183 = pneg %p122
        %s184 = sand.u32 %s112, 1
        %s185 = sand.u32 %s112, 1
        %s186 = smul.addr %s185, 64
        %s187 = scalar_lea.vmem [#allocation2], %s186
        %s188 = smul.u32 2, %s15
        %p189 = scmp.lt.s32.totalorder %s188, 3
        %s190 = scalar_select %p189, %s188, 3
        %s191 = smul.addr %s190, 2
        %s192 = scalar_lea.vmem %s0, %s191
        %s193 = smul.u32 2, %s15
        %s194 = smul.u32 2, %s15
        %v196 = vld [vmem:[%s1] sm:$0xf]
        %v197 = vld [vmem:[%s1 + $0x4] sm:$0xf]
        %v198 = vld [vmem:[%s1 + $0x8] sm:$0xf]
        %v199 = vld [vmem:[%s1 + $0xc] sm:$0xf]
        %v200 = vld [vmem:[%s192] sm:$0xf]
        %v205 = vunpack.c.l.b16 %v196
        %v206 = vunpack.c.l.b16 %v197
        %v207 = vunpack.c.l.b16 %v198
        %v208 = vunpack.c.l.b16 %v199
        %v209 = vpack.c.b16 %v206, %v205
        %v210 = vpack.c.b16 %v208, %v207
        %v213 = vunpack.c.l.s4 1983009808
        %v214 = vunpack.c.0.s8 %v213
        %v215 = vlaneseq
        %v216 = vshrl.u32 %v215, 7
        %v217 = vsub.s32 %v214, %v216
        %v218 = vrot.slane %v200, %v217
        %v219 = vcombine.high %v218, %v218
        %vm220 = vcmask 31744
        %v222 = vsel %vm220, %v209, 0
        %v225 = vsel %vm220, %v210, 0
        %vm227 = vcmask 1041408
        %v229 = vsel %vm227, %v218, 0
        %v232 = vsel %vm227, %v219, 0
        %234 = vmatprep.subr.bf16.mxu0 %v232
        %235 = vmatpush1.bf16.msra.mxu0 %v229
        %236 = vmatprep.subr.bf16.mxu0 0
        %237 = vmatpush1.bf16.msra.mxu0 0
        %238 = vmatprep.subr.bf16.mxu0 0
        %239 = vmatpush1.bf16.msra.mxu0 0
        %240 = vmatprep.subr.bf16.mxu0 0
        %241 = vmatpush1.bf16.msra.mxu0 0
        %242 = vmatprep.subr.bf16.mxu0 0
        %243 = vmatpush1.bf16.msra.mxu0 0
        %244 = vmatprep.subr.bf16.mxu0 0
        %245 = vmatpush1.bf16.msra.mxu0 0
        %246 = vmatprep.subr.bf16.mxu0 0
        %247 = vmatpush1.bf16.msra.mxu0 0
        %248 = vmatprep.subr.bf16.mxu0 0
        %249 = vmatpush1.bf16.msra.mxu0 0
        %250 = vmatprep.subr.bf16.mxu0 0
        %251 = vmatpush1.bf16.msra.mxu0 0
        %252 = vmatprep.subr.bf16.mxu0 0
        %253 = vmatpush1.bf16.msra.mxu0 0
        %254 = vmatprep.subr.bf16.mxu0 0
        %255 = vmatpush1.bf16.msra.mxu0 0
        %256 = vmatprep.subr.bf16.mxu0 0
        %257 = vmatpush1.bf16.msra.mxu0 0
        %258 = vmatprep.subr.bf16.mxu0 0
        %259 = vmatpush1.bf16.msra.mxu0 0
        %260 = vmatprep.subr.bf16.mxu0 0
        %261 = vmatpush1.bf16.msra.mxu0 0
        %262 = vmatprep.subr.bf16.mxu0 0
        %263 = vmatpush1.bf16.msra.mxu0 0
        %264 = vmatprep.subr.bf16.mxu0 0
        %265 = vmatpush1.bf16.msra.mxu0 0
        %266 = vmatprep.mubr.bf16.mxu0 0
        %267 = vmatmul.mubr.bf16.gmra.mrb[0].mxu0 %v222
        %v268 = vpop.f32.mrb[0].mxu0
        %v269 = vadd.f32 0.0, %v268
        %v270 = vpop.f32.mrb[0].mxu0
        %v271 = vadd.f32 0.0, %v270
        %v272 = vpop.f32.mrb[0].mxu0
        %v273 = vadd.f32 0.0, %v272
        %v274 = vpop.f32.mrb[0].mxu0
        %v275 = vadd.f32 0.0, %v274
        %276 = vmatprep.mubr.bf16.mxu0 0
        %277 = vmatmul.mubr.bf16.gmra.mrb[0].mxu0 %v225
        %v278 = vpop.f32.mrb[0].mxu0
        %v279 = vadd.f32 0.0, %v278
        %v280 = vpop.f32.mrb[0].mxu0
        %v281 = vadd.f32 0.0, %v280
        %v282 = vpop.f32.mrb[0].mxu0
        %v283 = vadd.f32 0.0, %v282
        %v284 = vpop.f32.mrb[0].mxu0
        %v285 = vadd.f32 0.0, %v284
        %286 = vdwg.mxu0
        %v287 = vld [vmem:[%s2] sm:$0xff]
        %v288 = vld [vmem:[%s2 + $0x8] sm:$0xff]
        %v289 = vld [vmem:[%s2 + $0x10] sm:$0xff]
        %v290 = vld [vmem:[%s2 + $0x18] sm:$0xff]
        %292 = vset.pattern.permute.xlu0 0
        %293 = vperm.xlu0 %292, %v287
        %v294 = vpop.permute.xlu0 %293
        %297 = vset.pattern.permute.xlu0 0
        %298 = vperm.xlu0 %297, %v288
        %v299 = vpop.permute.xlu0 %298
        %302 = vset.pattern.permute.xlu0 0
        %303 = vperm.xlu0 %302, %v289
        %v304 = vpop.permute.xlu0 %303
        %307 = vset.pattern.permute.xlu0 0
        %308 = vperm.xlu0 %307, %v290
        %v309 = vpop.permute.xlu0 %308
        %v311 = vmul.f32 %v269, %v294
        %v312 = vmul.f32 %v271, %v294
        %v313 = vmul.f32 %v273, %v299
        %v314 = vmul.f32 %v275, %v299
        %v315 = vmul.f32 %v279, %v304
        %v316 = vmul.f32 %v281, %v304
        %v317 = vmul.f32 %v283, %v309
        %v318 = vmul.f32 %v285, %v309
        %v319 = vld [vmem:[%s3] sm:$0xff]
        %v320 = vld [vmem:[%s3 + $0x8] sm:$0xff]
        %v321 = vld [vmem:[%s3 + $0x10] sm:$0xff]
        %v322 = vld [vmem:[%s3 + $0x18] sm:$0xff]
        %324 = vset.pattern.permute.xlu0 0
        %325 = vperm.xlu0 %324, %v319
        %v326 = vpop.permute.xlu0 %325
        %329 = vset.pattern.permute.xlu0 0
        %330 = vperm.xlu0 %329, %v320
        %v331 = vpop.permute.xlu0 %330
        %334 = vset.pattern.permute.xlu0 0
        %335 = vperm.xlu0 %334, %v321
        %v336 = vpop.permute.xlu0 %335
        %339 = vset.pattern.permute.xlu0 0
        %340 = vperm.xlu0 %339, %v322
        %v341 = vpop.permute.xlu0 %340
        %v343 = vadd.f32 %v311, %v326
        %v344 = vadd.f32 %v312, %v326
        %v345 = vadd.f32 %v313, %v331
        %v346 = vadd.f32 %v314, %v331
        %v347 = vadd.f32 %v315, %v336
        %v348 = vadd.f32 %v316, %v336
        %v349 = vadd.f32 %v317, %v341
        %v350 = vadd.f32 %v318, %v341
        %v351 = vxor.u32 %v343, 2147483648
        %v352 = vxor.u32 %v344, 2147483648
        %v353 = vxor.u32 %v345, 2147483648
        %v354 = vxor.u32 %v346, 2147483648
        %v355 = vxor.u32 %v347, 2147483648
        %v356 = vxor.u32 %v348, 2147483648
        %v357 = vxor.u32 %v349, 2147483648
        %v358 = vxor.u32 %v350, 2147483648
        %v359 = vmul.f32 %v351, 1.442695
        %v360 = vpow.pop %v359
        %v361 = vmul.f32 %v352, 1.442695
        %v362 = vpow.pop %v361
        %v363 = vmul.f32 %v353, 1.442695
        %v364 = vpow.pop %v363
        %v365 = vmul.f32 %v354, 1.442695
        %v366 = vpow.pop %v365
        %v367 = vmul.f32 %v355, 1.442695
        %v368 = vpow.pop %v367
        %v369 = vmul.f32 %v356, 1.442695
        %v370 = vpow.pop %v369
        %v371 = vmul.f32 %v357, 1.442695
        %v372 = vpow.pop %v371
        %v373 = vmul.f32 %v358, 1.442695
        %v374 = vpow.pop %v373
        %v375 = vadd.f32 %v360, 1.0
        %v376 = vadd.f32 %v362, 1.0
        %v377 = vadd.f32 %v364, 1.0
        %v378 = vadd.f32 %v366, 1.0
        %v379 = vadd.f32 %v368, 1.0
        %v380 = vadd.f32 %v370, 1.0
        %v381 = vadd.f32 %v372, 1.0
        %v382 = vadd.f32 %v374, 1.0
        %v383 = vrcp.pop %v375
        %v384 = vmul.f32 1.0, %v383
        %v385 = vrcp.pop %v376
        %v386 = vmul.f32 1.0, %v385
        %v387 = vrcp.pop %v377
        %v388 = vmul.f32 1.0, %v387
        %v389 = vrcp.pop %v378
        %v390 = vmul.f32 1.0, %v389
        %v391 = vrcp.pop %v379
        %v392 = vmul.f32 1.0, %v391
        %v393 = vrcp.pop %v380
        %v394 = vmul.f32 1.0, %v393
        %v395 = vrcp.pop %v381
        %v396 = vmul.f32 1.0, %v395
        %v397 = vrcp.pop %v382
        %v398 = vmul.f32 1.0, %v397
        %v399 = vmul.f32 %v343, %v384
        %v400 = vmul.f32 %v344, %v386
        %v401 = vmul.f32 %v345, %v388
        %v402 = vmul.f32 %v346, %v390
        %v403 = vmul.f32 %v347, %v392
        %v404 = vmul.f32 %v348, %v394
        %v405 = vmul.f32 %v349, %v396
        %v406 = vmul.f32 %v350, %v398
        %407 = vst [vmem:[%s187] sm:$0xff] %v399
        %408 = vst [vmem:[%s187 + $0x8] sm:$0xff] %v400
        %409 = vst [vmem:[%s187 + $0x10] sm:$0xff] %v401
        %410 = vst [vmem:[%s187 + $0x18] sm:$0xff] %v402
        %411 = vst [vmem:[%s187 + $0x20] sm:$0xff] %v403
        %412 = vst [vmem:[%s187 + $0x28] sm:$0xff] %v404
        %413 = vst [vmem:[%s187 + $0x30] sm:$0xff] %v405
        %414 = vst [vmem:[%s187 + $0x38] sm:$0xff] %v406
        %s415 = sand.u32 %s112, 1
        %s416 = sand.u32 %s112, 1
        %s417 = smul.addr %s416, 64
        %s418 = scalar_lea.vmem [#allocation2], %s417
        // Predicated region
        $region37: #{mobilevit_block.7} parent=35 // pred_check
          %p419 = pneg %p122
        $region38: #{mobilevit_block.7} parent=35 // pred_check_branch
          %421 = sbr.rel (%p419) target = $region40
        $region39: #{mobilevit_block.7} parent=35 // pred_region
          %s422 = smul.u32 2, %s15
          %s423 = smul.addr %s422, 8
          %s424 = scalar_lea.vmem %s4, %s423
          // Predicated region
          $region41: #{mobilevit_block.7} parent=39 // pred_check
            _
          $region42: #{mobilevit_block.7} parent=39 // pred_check_branch
            %426 = sbr.rel (0) target = $region44
          $region43: #{mobilevit_block.7} parent=39 // pred_region
            // Predicated region
            $region45: #{mobilevit_block.7} parent=43 // pred_check
              _
            $region46: #{mobilevit_block.7} parent=43 // pred_check_branch
              %428 = sbr.rel (0) target = $region48
            $region47: #{mobilevit_block.7} parent=43 // pred_region
              loop: start=0, step=1, limit=1
              $region49: #{mobilevit_block.7} parent=47 // loop_pre_header
                _
              $region50: #{mobilevit_block.7} parent=47 // loop_header
                %s430 = sphi 0, %s434
                %p431 = scmp.ge.s32.totalorder %s430, 1
                %s435 = sphi %s418, %s418
                %s436 = sphi %s424, %s424
              $region51: #{mobilevit_block.7} parent=47 // loop_header_branch
                %433 = sbr.rel (%p431) target = $region55
              $region52: #{mobilevit_block.7} parent=47 // loop_body
                %v437 = vld [vmem:[%s435] sm:$0xff]
                %438 = vst [vmem:[%s436] sm:$0xff] %v437
                %v439 = vld [vmem:[%s435 + $0x8] sm:$0xff]
                %440 = vst [vmem:[%s436 + $0x8] sm:$0xff] %v439
                %v441 = vld [vmem:[%s435 + $0x10] sm:$0xff]
                %442 = vst [vmem:[%s436 + $0x20] sm:$0xff] %v441
                %v443 = vld [vmem:[%s435 + $0x18] sm:$0xff]
                %444 = vst [vmem:[%s436 + $0x28] sm:$0xff] %v443
                %v445 = vld [vmem:[%s435 + $0x20] sm:$0xff]
                %446 = vst [vmem:[%s436 + $0x40] sm:$0xff] %v445
                %v447 = vld [vmem:[%s435 + $0x28] sm:$0xff]
                %448 = vst [vmem:[%s436 + $0x48] sm:$0xff] %v447
                %v449 = vld [vmem:[%s435 + $0x30] sm:$0xff]
                %450 = vst [vmem:[%s436 + $0x60] sm:$0xff] %v449
                %v451 = vld [vmem:[%s435 + $0x38] sm:$0xff]
                %452 = vst [vmem:[%s436 + $0x68] sm:$0xff] %v451
              $region53: #{mobilevit_block.7} parent=47 // loop_footer
                %s434 = sadd.s32 1, %s430
              $region54: #{mobilevit_block.7} parent=47 // loop_footer_branch
                %429 = sbr.rel target = $region50
              $region55: #{mobilevit_block.7} parent=47 // loop_exit
                _
            $region48: #{mobilevit_block.7} parent=43 // pred_fallthru
              _
            // Predicated region
            $region56: #{mobilevit_block.7} parent=43 // pred_check
              _
            $region57: #{mobilevit_block.7} parent=43 // pred_check_branch
              %454 = sbr.rel target = $region59
            $region58: #{mobilevit_block.7} parent=43 // pred_region
              _
            $region59: #{mobilevit_block.7} parent=43 // pred_fallthru
              _
          $region44: #{mobilevit_block.7} parent=39 // pred_fallthru
            _
          %455 = vnop
        $region40: #{mobilevit_block.7} parent=35 // pred_fallthru
          _
      $region36: #{mobilevit_block.7} parent=5 // pred_fallthru
        _
      %p456 = scmp.le.s32.totalorder 2, %s10
      // Predicated region
      $region60: #{mobilevit_block.7} parent=5 // pred_check
        %p457 = pneg %p456
      $region61: #{mobilevit_block.7} parent=5 // pred_check_branch
        %459 = sbr.rel (%p457) target = $region63
      $region62: #{mobilevit_block.7} parent=5 // pred_region
        %s460 = ssub.s32 %s10, 2
        // Predicated region
        $region64: #{mobilevit_block.7} parent=62 // pred_check
          %p461 = pneg %p128
        $region65: #{mobilevit_block.7} parent=62 // pred_check_branch
          %463 = sbr.rel (%p461) target = $region67
        $region66: #{mobilevit_block.7} parent=62 // pred_region
          %s464 = sand.u32 %s113, 1
          %s465 = sand.u32 %s113, 1
          %s466 = smul.addr %s465, 64
          %s467 = scalar_lea.vmem [#allocation2], %s466
        $region67: #{mobilevit_block.7} parent=62 // pred_fallthru
          _
      $region63: #{mobilevit_block.7} parent=5 // pred_fallthru
        _
    $region6: #{mobilevit_block.7} parent=1 // loop_footer
      %s14 = sadd.s32 1, %s10
    $region7: #{mobilevit_block.7} parent=1 // loop_footer_branch
      %9 = sbr.rel target = $region3
    $region8: #{mobilevit_block.7} parent=1 // loop_exit
      _

// kernel: mobilevit_block.6
$region0: #{mobilevit_block.6}
  #allocation0 [shape = 'u32[]', space=smem, size = 0x4, offset = 0x4, fixed_abs, tag = 'smem constant byte address 0x4 - core index']
  #allocation1 [shape = 'u32[144,128]{1,0:T(1,128)}', space=vmem, size = 0x12000, scoped, tag = 'internal scratch']
  %s0 = inlined_call_operand.vmem [shape: bf16[36,512], index: 0, kind: input, shape index: {}]
  %s1 = inlined_call_operand.vmem [shape: bf16[4,36], index: 1, kind: input, shape index: {}]
  %s2 = inlined_call_operand.vmem [shape: f32[4,1], index: 2, kind: input, shape index: {}]
  %s3 = inlined_call_operand.vmem [shape: f32[4,1], index: 3, kind: input, shape index: {}]
  %s4 = inlined_call_operand.vmem [shape: f32[4,512], index: 4, kind: output, shape index: {}]
  %s5 = sld [smem:[#allocation0]]
  $region87: #{mobilevit_block.6} parent=0
    _
  %s7 = ssub.s32 1, %s5
  %s8 = scalar_select 0, %s7, %s5
  $region1: #{mobilevit_block.6} parent=0
    #allocation2 [shape = 'u8[40960]{0}', space=vmem, size = 0xa000, scoped, tag = 'input window, operand 0']
    loop: start=0, step=1, limit=4
    $region2: #{mobilevit_block.6} parent=1 // loop_pre_header
      _
    $region3: #{mobilevit_block.6} parent=1 // loop_header
      %s10 = sphi 0, %s14
      %p11 = scmp.ge.s32.totalorder %s10, 4
      %s20 = sphi 0, %s22
      %s23 = sphi 0, %s20
      %s24 = sphi 0, %s23
      %s40 = sphi 0, %s24
      %s44 = sphi 0, %s44
      %s46 = sphi 0, %s44
      %s47 = sphi 0, %s46
      %s61 = sphi 0, %s47
      %s65 = sphi 0, %s65
      %s67 = sphi 0, %s65
      %s68 = sphi 0, %s67
      %s82 = sphi 0, %s68
      %s86 = sphi 0, %s86
      %s88 = sphi 0, %s86
      %s89 = sphi 0, %s88
      %s103 = sphi 0, %s89
      %s109 = sphi 0, %s111
      %s112 = sphi 0, %s109
      %s113 = sphi 0, %s112
      %s129 = sphi 0, %s113
    $region4: #{mobilevit_block.6} parent=1 // loop_header_branch
      %13 = sbr.rel (%p11) target = $region8
    $region5: #{mobilevit_block.6} parent=1 // loop_body
      %s15 = ssub.s32 %s10, 1
      %s16 = ssub.s32 %s10, 2
      %s17 = sadd.s32 %s10, 1
      %s18 = ssub.s32 %s10, %s17
      %p19 = scmp.eq.s32.totalorder %s18, 0
      %s21 = sadd.s32 %s20, 1
      %s22 = scalar_select %p19, %s20, %s21
      %p25 = pneg %p19
      %p26 = scmp.eq.s32.totalorder %s10, 1
      %p27 = por %p25, %p26
      %p28 = scmp.ne.s32.totalorder %s20, %s23
      %p29 = scmp.eq.s32.totalorder %s10, 0
      %p30 = por %p28, %p29
      %p31 = scmp.ne.s32.totalorder %s20, %s23
      %p32 = scmp.eq.s32.totalorder %s15, 1
      %p33 = por %p31, %p32
      %p34 = scmp.ne.s32.totalorder %s23, %s24
      %p35 = scmp.eq.s32.totalorder %s15, 0
      %p36 = por %p34, %p35
      %p37 = scmp.ne.s32.totalorder %s23, %s24
      %p38 = scmp.eq.s32.totalorder %s16, 1
      %p39 = por %p37, %p38
      %p41 = scmp.ne.s32.totalorder %s24, %s40
      %p42 = scmp.eq.s32.totalorder %s16, 0
      %p43 = por %p41, %p42
      %s45 = sadd.s32 %s44, 1
      %p48 = scmp.eq.s32.totalorder %s10, 1
      %p49 = scmp.ne.s32.totalorder %s44, %s46
      %p50 = scmp.eq.s32.totalorder %s10, 0
      %p51 = por %p49, %p50
      %p52 = scmp.ne.s32.totalorder %s44, %s46
      %p53 = scmp.eq.s32.totalorder %s15, 1
      %p54 = por %p52, %p53
      %p55 = scmp.ne.s32.totalorder %s46, %s47
      %p56 = scmp.eq.s32.totalorder %s15, 0
      %p57 = por %p55, %p56
      %p58 = scmp.ne.s32.totalorder %s46, %s47
      %p59 = scmp.eq.s32.totalorder %s16, 1
      %p60 = por %p58, %p59
      %p62 = scmp.ne.s32.totalorder %s47, %s61
      %p63 = scmp.eq.s32.totalorder %s16, 0
      %p64 = por %p62, %p63
      %s66 = sadd.s32 %s65, 1
      %p69 = scmp.eq.s32.totalorder %s10, 1
      %p70 = scmp.ne.s32.totalorder %s65, %s67
      %p71 = scmp.eq.s32.totalorder %s10, 0
      %p72 = por %p70, %p71
      %p73 = scmp.ne.s32.totalorder %s65, %s67
      %p74 = scmp.eq.s32.totalorder %s15, 1
      %p75 = por %p73, %p74
      %p76 = scmp.ne.s32.totalorder %s67, %s68
      %p77 = scmp.eq.s32.totalorder %s15, 0
      %p78 = por %p76, %p77
      %p79 = scmp.ne.s32.totalorder %s67, %s68
      %p80 = scmp.eq.s32.totalorder %s16, 1
      %p81 = por %p79, %p80
      %p83 = scmp.ne.s32.totalorder %s68, %s82
      %p84 = scmp.eq.s32.totalorder %s16, 0
      %p85 = por %p83, %p84
      %s87 = sadd.s32 %s86, 1
      %p90 = scmp.eq.s32.totalorder %s10, 1
      %p91 = scmp.ne.s32.totalorder %s86, %s88
      %p92 = scmp.eq.s32.totalorder %s10, 0
      %p93 = por %p91, %p92
      %p94 = scmp.ne.s32.totalorder %s86, %s88
      %p95 = scmp.eq.s32.totalorder %s15, 1
      %p96 = por %p94, %p95
      %p97 = scmp.ne.s32.totalorder %s88, %s89
      %p98 = scmp.eq.s32.totalorder %s15, 0
      %p99 = por %p97, %p98
      %p100 = scmp.ne.s32.totalorder %s88, %s89
      %p101 = scmp.eq.s32.totalorder %s16, 1
      %p102 = por %p100, %p101
      %p104 = scmp.ne.s32.totalorder %s89, %s103
      %p105 = scmp.eq.s32.totalorder %s16, 0
      %p106 = por %p104, %p105
      %s107 = ssub.s32 %s10, %s17
      %p108 = scmp.eq.s32.totalorder %s107, 0
      %s110 = sadd.s32 %s109, 1
      %s111 = scalar_select %p108, %s109, %s110
      %p114 = pneg %p108
      %p115 = scmp.eq.s32.totalorder %s10, 1
      %p116 = por %p114, %p115
      %p117 = scmp.ne.s32.totalorder %s109, %s112
      %p118 = scmp.eq.s32.totalorder %s10, 0
      %p119 = por %p117, %p118
      %p120 = scmp.ne.s32.totalorder %s109, %s112
      %p121 = scmp.eq.s32.totalorder %s15, 1
      %p122 = por %p120, %p121
      %p123 = scmp.ne.s32.totalorder %s112, %s113
      %p124 = scmp.eq.s32.totalorder %s15, 0
      %p125 = por %p123, %p124
      %p126 = scmp.ne.s32.totalorder %s112, %s113
      %p127 = scmp.eq.s32.totalorder %s16, 1
      %p128 = por %p126, %p127
      %p130 = scmp.ne.s32.totalorder %s113, %s129
      %p131 = scmp.eq.s32.totalorder %s16, 0
      %p132 = por %p130, %p131
      %p133 = scmp.le.s32.totalorder 1, %s10
      %p134 = scmp.lt.s32.totalorder %s10, 3
      %p135 = pnand %p133, %p134
      %p136 = pneg %p135
      // Predicated region
      $region9: #{mobilevit_block.6} parent=5 // pred_check
        _
      $region10: #{mobilevit_block.6} parent=5 // pred_check_branch
        %138 = sbr.rel (%p135) target = $region12
      $region11: #{mobilevit_block.6} parent=5 // pred_region
        %s139 = ssub.s32 %s10, 1
        // Predicated region
        $region13: #{mobilevit_block.6} parent=11 // pred_check
          %p140 = pneg %p57
        $region14: #{mobilevit_block.6} parent=11 // pred_check_branch
          %142 = sbr.rel (%p140) target = $region16
        $region15: #{mobilevit_block.6} parent=11 // pred_region
          _
        $region16: #{mobilevit_block.6} parent=11 // pred_fallthru
          _
        // Predicated region
        $region17: #{mobilevit_block.6} parent=11 // pred_check
          %p143 = pneg %p78
        $region18: #{mobilevit_block.6} parent=11 // pred_check_branch
          %145 = sbr.rel (%p143) target = $region20
        $region19: #{mobilevit_block.6} parent=11 // pred_region
          _
        $region20: #{mobilevit_block.6} parent=11 // pred_fallthru
          _
        // Predicated region
        $region21: #{mobilevit_block.6} parent=11 // pred_check
          %p146 = pneg %p99
        $region22: #{mobilevit_block.6} parent=11 // pred_check_branch
          %148 = sbr.rel (%p146) target = $region24
        $region23: #{mobilevit_block.6} parent=11 // pred_region
          _
        $region24: #{mobilevit_block.6} parent=11 // pred_fallthru
          _
      $region12: #{mobilevit_block.6} parent=5 // pred_fallthru
        _
      %p149 = scmp.lt.s32.totalorder %s10, 2
      // Predicated region
      $region25: #{mobilevit_block.6} parent=5 // pred_check
        %p150 = pneg %p149
      $region26: #{mobilevit_block.6} parent=5 // pred_check_branch
        %152 = sbr.rel (%p150) target = $region28
      $region27: #{mobilevit_block.6} parent=5 // pred_region
        // Predicated region
        $region29: #{mobilevit_block.6} parent=27 // pred_check
          %p153 = pneg %p30
        $region30: #{mobilevit_block.6} parent=27 // pred_check_branch
          %155 = sbr.rel (%p153) target = $region32
        $region31: #{mobilevit_block.6} parent=27 // pred_region
          %s156 = sand.u32 %s20, 1
          %s157 = sand.u32 %s20, 1
          %s158 = smul.addr %s157, 40
          %s159 = scalar_lea.vmem [#allocation2], %s158
          %s160 = smul.u32 2, %s10
          %s161 = smul.addr %s160, 4
          %s162 = scalar_lea.vmem %s0, %s161
          // Predicated region
          $region33: #{mobilevit_block.6} parent=31 // pred_check
            _
          $region34: #{mobilevit_block.6} parent=31 // pred_check_branch
            %164 = sbr.rel (0) target = $region36
          $region35: #{mobilevit_block.6} parent=31 // pred_region
            // Predicated region
            $region37: #{mobilevit_block.6} parent=35 // pred_check
              _
            $region38: #{mobilevit_block.6} parent=35 // pred_check_branch
              %166 = sbr.rel (0) target = $region40
            $region39: #{mobilevit_block.6} parent=35 // pred_region
              // Predicated region
              $region52: #{mobilevit_block.6} parent=39 // pred_check
                _
              $region53: #{mobilevit_block.6} parent=39 // pred_check_branch
                %189 = sbr.rel (0) target = $region55
              $region54: #{mobilevit_block.6} parent=39 // pred_region
                loop: start=0, step=1, limit=1
                $region56: #{mobilevit_block.6} parent=54 // loop_pre_header
                  _
                $region57: #{mobilevit_block.6} parent=54 // loop_header
                  %s191 = sphi 0, %s195
                  %p192 = scmp.ge.s32.totalorder %s191, 1
                  %s196 = sphi %s162, %s162
                  %s197 = sphi %s159, %s159
                $region58: #{mobilevit_block.6} parent=54 // loop_header_branch
                  %194 = sbr.rel (%p192) target = $region62
                $region59: #{mobilevit_block.6} parent=54 // loop_body
                  %v198 = vld [vmem:[%s196] sm:$0xff]
                  %199 = vst [vmem:[%s197] sm:$0xff] %v198
                  %v200 = vld [vmem:[%s196 + $0x10] sm:$0xff]
                  %201 = vst [vmem:[%s197 + $0x8] sm:$0xff] %v200
                  %v202 = vld [vmem:[%s196 + $0x20] sm:$0xff]
                  %203 = vst [vmem:[%s197 + $0x10] sm:$0xff] %v202
                  %v204 = vld [vmem:[%s196 + $0x30] sm:$0xff]
                  %205 = vst [vmem:[%s197 + $0x18] sm:$0xff] %v204
                  %v206 = vld [vmem:[%s196 + $0x40] sm:$0xff]
                  %207 = vst [vmem:[%s197 + $0x20] sm:$0xff] %v206
                $region60: #{mobilevit_block.6} parent=54 // loop_footer
                  %s195 = sadd.s32 1, %s191
                $region61: #{mobilevit_block.6} parent=54 // loop_footer_branch
                  %190 = sbr.rel target = $region57
                $region62: #{mobilevit_block.6} parent=54 // loop_exit
                  _
              $region55: #{mobilevit_block.6} parent=39 // pred_fallthru
                _
              // Predicated region
              $region63: #{mobilevit_block.6} parent=39 // pred_check
                _
              $region64: #{mobilevit_block.6} parent=39 // pred_check_branch
                %209 = sbr.rel target = $region66
              $region65: #{mobilevit_block.6} parent=39 // pred_region
                _
              $region66: #{mobilevit_block.6} parent=39 // pred_fallthru
                _
            $region40: #{mobilevit_block.6} parent=35 // pred_fallthru
              _
            // Predicated region
            $region41: #{mobilevit_block.6} parent=35 // pred_check
              _
            $region42: #{mobilevit_block.6} parent=35 // pred_check_branch
              %168 = sbr.rel target = $region44
            $region43: #{mobilevit_block.6} parent=35 // pred_region
              loop: start=0, step=1, limit=1
              $region45: #{mobilevit_block.6} parent=43 // loop_pre_header
                _
              $region46: #{mobilevit_block.6} parent=43 // loop_header
                %s171 = sphi 0, %s175
                %p172 = scmp.ge.s32.totalorder %s171, 1
                %s176 = sphi %s162, %s162
                %s177 = sphi %s159, %s159
              $region47: #{mobilevit_block.6} parent=43 // loop_header_branch
                %174 = sbr.rel (%p172) target = $region51
              $region48: #{mobilevit_block.6} parent=43 // loop_body
                %v178 = vld [vmem:[%s176] sm:$0xff]
                %179 = vst [vmem:[%s177] sm:$0xff] %v178
                %v180 = vld [vmem:[%s176 + $0x10] sm:$0xff]
                %181 = vst [vmem:[%s177 + $0x8] sm:$0xff] %v180
                %v182 = vld [vmem:[%s176 + $0x20] sm:$0xff]
                %183 = vst [vmem:[%s177 + $0x10] sm:$0xff] %v182
                %v184 = vld [vmem:[%s176 + $0x30] sm:$0xff]
                %185 = vst [vmem:[%s177 + $0x18] sm:$0xff] %v184
                %v186 = vld [vmem:[%s176 + $0x40] sm:$0xff]
                %187 = vst [vmem:[%s177 + $0x20] sm:$0xff] %v186
              $region49: #{mobilevit_block.6} parent=43 // loop_footer
                %s175 = sadd.s32 1, %s171
              $region50: #{mobilevit_block.6} parent=43 // loop_footer_branch
                %170 = sbr.rel target = $region46
              $region51: #{mobilevit_block.6} parent=43 // loop_exit
                _
            $region44: #{mobilevit_block.6} parent=35 // pred_fallthru
              _
          $region36: #{mobilevit_block.6} parent=31 // pred_fallthru
            _
          %210 = vnop
        $region32: #{mobilevit_block.6} parent=27 // pred_fallthru
          _
      $region28: #{mobilevit_block.6} parent=5 // pred_fallthru
        _
      %p211 = scmp.le.s32.totalorder 1, %s10
      %p212 = scmp.lt.s32.totalorder %s10, 3
      %p213 = pnand %p211, %p212
      %p214 = pneg %p213
      // Predicated region
      $region67: #{mobilevit_block.6} parent=5 // pred_check
        _
      $region68: #{mobilevit_block.6} parent=5 // pred_check_branch
        %216 = sbr.rel (%p213) target = $region70
      $region69: #{mobilevit_block.6} parent=5 // pred_region
        %s217 = ssub.s32 %s10, 1
        %s218 = sand.u32 %s23, 1
        %s219 = sand.u32 %s23, 1
        %s220 = smul.addr %s219, 40
        %s221 = scalar_lea.vmem [#allocation2], %s220
        // Predicated region
        $region71: #{mobilevit_block.6} parent=69 // pred_check
          %p222 = pneg %p36
        $region72: #{mobilevit_block.6} parent=69 // pred_check_branch
          %224 = sbr.rel (%p222) target = $region74
        $region73: #{mobilevit_block.6} parent=69 // pred_region
          _
        $region74: #{mobilevit_block.6} parent=69 // pred_fallthru
          _
        %s225 = sand.u32 %s23, 1
        %s226 = sand.u32 %s23, 1
        %s227 = smul.addr %s226, 40
        %s228 = scalar_lea.vmem [#allocation2], %s227
        %p229 = pneg %p36
        %p230 = pneg %p33
        %p231 = pneg %p57
        %p232 = pneg %p54
        %p233 = pneg %p78
        %p234 = pneg %p75
        %p235 = pneg %p99
        %p236 = pneg %p96
        %p237 = pneg %p125
        %p238 = pneg %p122
        %s239 = smul.u32 2, %s15
        %p240 = scmp.lt.s32.totalorder %s239, 3
        %s241 = scalar_select %p240, %s239, 3
        %s242 = smul.addr %s241, 4
        %s243 = scalar_lea.vmem %s4, %s242
        %s244 = smul.u32 2, %s15
        %s245 = smul.u32 2, %s15
        %p246 = scmp.lt.s32.totalorder %s245, 3
        %s247 = scalar_select %p246, %s245, 3
        %s248 = smul.addr %s247, 4
        %s249 = scalar_lea.vmem %s4, %s248
        %s250 = smul.u32 2, %s15
        %v252 = vld [vmem:[%s1] sm:$0x3]
        %v253 = vld [vmem:[%s221] sm:$0xff]
        %v254 = vld [vmem:[%s221 + $0x8] sm:$0xff]
        %v255 = vld [vmem:[%s221 + $0x10] sm:$0xff]
        %v256 = vld [vmem:[%s221 + $0x18] sm:$0xff]
        %v257 = vld [vmem:[%s221 + $0x20] sm:$0x33]
        %v263 = vunpack.c.l.b16 %v253
        %v264 = vunpack.c.h.b16 %v253
        %v265 = vunpack.c.l.b16 %v254
        %v266 = vunpack.c.h.b16 %v254
        %v267 = vunpack.c.l.b16 %v255
        %v268 = vunpack.c.h.b16 %v255
        %v269 = vunpack.c.l.b16 %v256
        %v270 = vunpack.c.h.b16 %v256
        %v271 = vunpack.c.l.b16 %v257
        %v272 = vunpack.c.h.b16 %v257
        %v273 = vpack.c.b16 %v265, %v263
        %v274 = vpack.c.b16 %v266, %v264
        %v275 = vpack.c.b16 %v269, %v267
        %v276 = vpack.c.b16 %v270, %v268
        %v277 = vpack.c.b16 %v271, %v271
        %v278 = vpack.c.b16 %v272, %v272
        %vm283 = vcmask 293888
        %v285 = vsel %vm283, %v252, 0
        %vm287 = vcmask 1041408
        %v289 = vsel %vm287, %v277, 0
        %v292 = vsel %vm287, %v278, 0
        %294 = vmatprep.subr.bf16.mxu0 %v274
        %295 = vmatpush1.bf16.msra.mxu0 %v273
        %296 = vmatprep.subr.bf16.mxu0 %v276
        %297 = vmatpush1.bf16.msra.mxu0 %v275
        %298 = vmatprep.subr.bf16.mxu0 %v292
        %299 = vmatpush1.bf16.msra.mxu0 %v289
        %300 = vmatprep.subr.bf16.mxu0 0
        %301 = vmatpush1.bf16.msra.mxu0 0
        %302 = vmatprep.subr.bf16.mxu0 0
        %303 = vmatpush1.bf16.msra.mxu0 0
        %304 = vmatprep.subr.bf16.mxu0 0
        %305 = vmatpush1.bf16.msra.mxu0 0
        %306 = vmatprep.subr.bf16.mxu0 0
        %307 = vmatpush1.bf16.msra.mxu0 0
        %308 = vmatprep.subr.bf16.mxu0 0
        %309 = vmatpush1.bf16.msra.mxu0 0
        %310 = vmatprep.subr.bf16.mxu0 0
        %311 = vmatpush1.bf16.msra.mxu0 0
        %312 = vmatprep.subr.bf16.mxu0 0
        %313 = vmatpush1.bf16.msra.mxu0 0
        %314 = vmatprep.subr.bf16.mxu0 0
        %315 = vmatpush1.bf16.msra.mxu0 0
        %316 = vmatprep.subr.bf16.mxu0 0
        %317 = vmatpush1.bf16.msra.mxu0 0
        %318 = vmatprep.subr.bf16.mxu0 0
        %319 = vmatpush1.bf16.msra.mxu0 0
        %320 = vmatprep.subr.bf16.mxu0 0
        %321 = vmatpush1.bf16.msra.mxu0 0
        %322 = vmatprep.subr.bf16.mxu0 0
        %323 = vmatpush1.bf16.msra.mxu0 0
        %324 = vmatprep.subr.bf16.mxu0 0
        %325 = vmatpush1.bf16.msra.mxu0 0
        %326 = vmatprep.mubr.bf16.mxu0 0
        %327 = vmatmul.mubr.bf16.gmra.mrb[0].mxu0 %v285
        %v328 = vpop.f32.mrb[0].mxu0
        %v329 = vadd.f32 0.0, %v328
        %v330 = vpop.f32.mrb[0].mxu0
        %v331 = vadd.f32 0.0, %v330
        %v332 = vpop.f32.mrb[0].mxu0
        %v333 = vpop.f32.mrb[0].mxu0
        %334 = vdwg.mxu0
        %v335 = vld [vmem:[%s2] sm:$0xf]
        %337 = vset.pattern.permute.xlu0 0
        %338 = vperm.xlu0 %337, %v335
        %v339 = vpop.permute.xlu0 %338
        %v341 = vmul.f32 %v329, %v339
        %v342 = vmul.f32 %v331, %v339
        %v343 = vld [vmem:[%s3] sm:$0xf]
        %345 = vset.pattern.permute.xlu0 0
        %346 = vperm.xlu0 %345, %v343
        %v347 = vpop.permute.xlu0 %346
        %v349 = vadd.f32 %v341, %v347
        %v350 = vadd.f32 %v342, %v347
        %v351 = vxor.u32 %v349, 2147483648
        %v352 = vxor.u32 %v350, 2147483648
        %v353 = vmul.f32 %v351, 1.442695
        %v354 = vpow.pop %v353
        %v355 = vmul.f32 %v352, 1.442695
        %v356 = vpow.pop %v355
        %v357 = vadd.f32 %v354, 1.0
        %v358 = vadd.f32 %v356, 1.0
        %v359 = vrcp.pop %v357
        %v360 = vmul.f32 1.0, %v359
        %v361 = vrcp.pop %v358
        %v362 = vmul.f32 1.0, %v361
        %v363 = vmul.f32 %v349, %v360
        %v364 = vmul.f32 %v350, %v362
        %v367 = vcombine.low %v363, %v364
        %369 = vst [vmem:[%s249] sm:$0xff] %v367
        %s370 = smul.u32 2, %s15
        %p371 = scmp.lt.s32.totalorder %s370, 3
        %s372 = scalar_select %p371, %s370, 3
        %s373 = smul.addr %s372, 4
        %s374 = scalar_lea.vmem %s4, %s373
        // Predicated region
        $region75: #{mobilevit_block.6} parent=69 // pred_check
          %p375 = pneg %p122
        $region76: #{mobilevit_block.6} parent=69 // pred_check_branch
          %377 = sbr.rel (%p375) target = $region78
        $region77: #{mobilevit_block.6} parent=69 // pred_region
          %s378 = smul.u32 2, %s15
        $region78: #{mobilevit_block.6} parent=69 // pred_fallthru
          _
      $region70: #{mobilevit_block.6} parent=5 // pred_fallthru
        _
      %p379 = scmp.le.s32.totalorder 2, %s10
      // Predicated region
      $region79: #{mobilevit_block.6} parent=5 // pred_check
        %p380 = pneg %p379
      $region80: #{mobilevit_block.6} parent=5 // pred_check_branch
        %382 = sbr.rel (%p380) target = $region82
      $region81: #{mobilevit_block.6} parent=5 // pred_region
        %s383 = ssub.s32 %s10, 2
        // Predicated region
        $region83: #{mobilevit_block.6} parent=81 // pred_check
          %p384 = pneg %p128
        $region84: #{mobilevit_block.6} parent=81 // pred_check_branch
          %386 = sbr.rel (%p384) target = $region86
        $region85: #{mobilevit_block.6} parent=81 // pred_region
          %s387 = smul.u32 2, %s16
          %p388 = scmp.lt.s32.totalorder %s387, 3
          %s389 = scalar_select %p388, %s387, 3
          %s390 = smul.addr %s389, 4
          %s391 = scalar_lea.vmem %s4, %s390
        $region86: #{mobilevit_block.6} parent=81 // pred_fallthru
          _
      $region82: #{mobilevit_block.6} parent=5 // pred_fallthru
        _
    $region6: #{mobilevit_block.6} parent=1 // loop_footer
      %s14 = sadd.s32 1, %s10
    $region7: #{mobilevit_block.6} parent=1 // loop_footer_branch
      %9 = sbr.rel target = $region3
    $region8: #{mobilevit_block.6} parent=1 // loop_exit
      _

// kernel: mobilevit_block.10
$region0: #{mobilevit_block.10}
  #allocation0 [shape = 'u32[]', space=smem, size = 0x4, offset = 0x4, fixed_abs, tag = 'smem constant byte address 0x4 - core index']
  #allocation1 [shape = 'u32[144,128]{1,0:T(1,128)}', space=vmem, size = 0x12000, scoped, tag = 'internal scratch']
  %s0 = inlined_call_operand.vmem [shape: bf16[32,512], index: 0, kind: input, shape index: {}]
  %s1 = inlined_call_operand.vmem [shape: bf16[4,32], index: 1, kind: input, shape index: {}]
  %s2 = inlined_call_operand.vmem [shape: f32[4,1], index: 2, kind: input, shape index: {}]
  %s3 = inlined_call_operand.vmem [shape: f32[4,1], index: 3, kind: input, shape index: {}]
  %s4 = inlined_call_operand.vmem [shape: f32[4,512], index: 4, kind: output, shape index: {}]
  %s5 = sld [smem:[#allocation0]]
  $region87: #{mobilevit_block.10} parent=0
    _
  %s7 = ssub.s32 1, %s5
  %s8 = scalar_select 0, %s7, %s5
  $region1: #{mobilevit_block.10} parent=0
    #allocation2 [shape = 'u8[32768]{0}', space=vmem, size = 0x8000, scoped, tag = 'input window, operand 0']
    loop: start=0, step=1, limit=4
    $region2: #{mobilevit_block.10} parent=1 // loop_pre_header
      _
    $region3: #{mobilevit_block.10} parent=1 // loop_header
      %s10 = sphi 0, %s14
      %p11 = scmp.ge.s32.totalorder %s10, 4
      %s20 = sphi 0, %s22
      %s23 = sphi 0, %s20
      %s24 = sphi 0, %s23
      %s40 = sphi 0, %s24
      %s44 = sphi 0, %s44
      %s46 = sphi 0, %s44
      %s47 = sphi 0, %s46
      %s61 = sphi 0, %s47
      %s65 = sphi 0, %s65
      %s67 = sphi 0, %s65
      %s68 = sphi 0, %s67
      %s82 = sphi 0, %s68
      %s86 = sphi 0, %s86
      %s88 = sphi 0, %s86
      %s89 = sphi 0, %s88
      %s103 = sphi 0, %s89
      %s109 = sphi 0, %s111
      %s112 = sphi 0, %s109
      %s113 = sphi 0, %s112
      %s129 = sphi 0, %s113
    $region4: #{mobilevit_block.10} parent=1 // loop_header_branch
      %13 = sbr.rel (%p11) target = $region8
    $region5: #{mobilevit_block.10} parent=1 // loop_body
      %s15 = ssub.s32 %s10, 1
      %s16 = ssub.s32 %s10, 2
      %s17 = sadd.s32 %s10, 1
      %s18 = ssub.s32 %s10, %s17
      %p19 = scmp.eq.s32.totalorder %s18, 0
      %s21 = sadd.s32 %s20, 1
      %s22 = scalar_select %p19, %s20, %s21
      %p25 = pneg %p19
      %p26 = scmp.eq.s32.totalorder %s10, 1
      %p27 = por %p25, %p26
      %p28 = scmp.ne.s32.totalorder %s20, %s23
      %p29 = scmp.eq.s32.totalorder %s10, 0
      %p30 = por %p28, %p29
      %p31 = scmp.ne.s32.totalorder %s20, %s23
      %p32 = scmp.eq.s32.totalorder %s15, 1
      %p33 = por %p31, %p32
      %p34 = scmp.ne.s32.totalorder %s23, %s24
      %p35 = scmp.eq.s32.totalorder %s15, 0
      %p36 = por %p34, %p35
      %p37 = scmp.ne.s32.totalorder %s23, %s24
      %p38 = scmp.eq.s32.totalorder %s16, 1
      %p39 = por %p37, %p38
      %p41 = scmp.ne.s32.totalorder %s24, %s40
      %p42 = scmp.eq.s32.totalorder %s16, 0
      %p43 = por %p41, %p42
      %s45 = sadd.s32 %s44, 1
      %p48 = scmp.eq.s32.totalorder %s10, 1
      %p49 = scmp.ne.s32.totalorder %s44, %s46
      %p50 = scmp.eq.s32.totalorder %s10, 0
      %p51 = por %p49, %p50
      %p52 = scmp.ne.s32.totalorder %s44, %s46
      %p53 = scmp.eq.s32.totalorder %s15, 1
      %p54 = por %p52, %p53
      %p55 = scmp.ne.s32.totalorder %s46, %s47
      %p56 = scmp.eq.s32.totalorder %s15, 0
      %p57 = por %p55, %p56
      %p58 = scmp.ne.s32.totalorder %s46, %s47
      %p59 = scmp.eq.s32.totalorder %s16, 1
      %p60 = por %p58, %p59
      %p62 = scmp.ne.s32.totalorder %s47, %s61
      %p63 = scmp.eq.s32.totalorder %s16, 0
      %p64 = por %p62, %p63
      %s66 = sadd.s32 %s65, 1
      %p69 = scmp.eq.s32.totalorder %s10, 1
      %p70 = scmp.ne.s32.totalorder %s65, %s67
      %p71 = scmp.eq.s32.totalorder %s10, 0
      %p72 = por %p70, %p71
      %p73 = scmp.ne.s32.totalorder %s65, %s67
      %p74 = scmp.eq.s32.totalorder %s15, 1
      %p75 = por %p73, %p74
      %p76 = scmp.ne.s32.totalorder %s67, %s68
      %p77 = scmp.eq.s32.totalorder %s15, 0
      %p78 = por %p76, %p77
      %p79 = scmp.ne.s32.totalorder %s67, %s68
      %p80 = scmp.eq.s32.totalorder %s16, 1
      %p81 = por %p79, %p80
      %p83 = scmp.ne.s32.totalorder %s68, %s82
      %p84 = scmp.eq.s32.totalorder %s16, 0
      %p85 = por %p83, %p84
      %s87 = sadd.s32 %s86, 1
      %p90 = scmp.eq.s32.totalorder %s10, 1
      %p91 = scmp.ne.s32.totalorder %s86, %s88
      %p92 = scmp.eq.s32.totalorder %s10, 0
      %p93 = por %p91, %p92
      %p94 = scmp.ne.s32.totalorder %s86, %s88
      %p95 = scmp.eq.s32.totalorder %s15, 1
      %p96 = por %p94, %p95
      %p97 = scmp.ne.s32.totalorder %s88, %s89
      %p98 = scmp.eq.s32.totalorder %s15, 0
      %p99 = por %p97, %p98
      %p100 = scmp.ne.s32.totalorder %s88, %s89
      %p101 = scmp.eq.s32.totalorder %s16, 1
      %p102 = por %p100, %p101
      %p104 = scmp.ne.s32.totalorder %s89, %s103
      %p105 = scmp.eq.s32.totalorder %s16, 0
      %p106 = por %p104, %p105
      %s107 = ssub.s32 %s10, %s17
      %p108 = scmp.eq.s32.totalorder %s107, 0
      %s110 = sadd.s32 %s109, 1
      %s111 = scalar_select %p108, %s109, %s110
      %p114 = pneg %p108
      %p115 = scmp.eq.s32.totalorder %s10, 1
      %p116 = por %p114, %p115
      %p117 = scmp.ne.s32.totalorder %s109, %s112
      %p118 = scmp.eq.s32.totalorder %s10, 0
      %p119 = por %p117, %p118
      %p120 = scmp.ne.s32.totalorder %s109, %s112
      %p121 = scmp.eq.s32.totalorder %s15, 1
      %p122 = por %p120, %p121
      %p123 = scmp.ne.s32.totalorder %s112, %s113
      %p124 = scmp.eq.s32.totalorder %s15, 0
      %p125 = por %p123, %p124
      %p126 = scmp.ne.s32.totalorder %s112, %s113
      %p127 = scmp.eq.s32.totalorder %s16, 1
      %p128 = por %p126, %p127
      %p130 = scmp.ne.s32.totalorder %s113, %s129
      %p131 = scmp.eq.s32.totalorder %s16, 0
      %p132 = por %p130, %p131
      %p133 = scmp.le.s32.totalorder 1, %s10
      %p134 = scmp.lt.s32.totalorder %s10, 3
      %p135 = pnand %p133, %p134
      %p136 = pneg %p135
      // Predicated region
      $region9: #{mobilevit_block.10} parent=5 // pred_check
        _
      $region10: #{mobilevit_block.10} parent=5 // pred_check_branch
        %138 = sbr.rel (%p135) target = $region12
      $region11: #{mobilevit_block.10} parent=5 // pred_region
        %s139 = ssub.s32 %s10, 1
        // Predicated region
        $region13: #{mobilevit_block.10} parent=11 // pred_check
          %p140 = pneg %p57
        $region14: #{mobilevit_block.10} parent=11 // pred_check_branch
          %142 = sbr.rel (%p140) target = $region16
        $region15: #{mobilevit_block.10} parent=11 // pred_region
          _
        $region16: #{mobilevit_block.10} parent=11 // pred_fallthru
          _
        // Predicated region
        $region17: #{mobilevit_block.10} parent=11 // pred_check
          %p143 = pneg %p78
        $region18: #{mobilevit_block.10} parent=11 // pred_check_branch
          %145 = sbr.rel (%p143) target = $region20
        $region19: #{mobilevit_block.10} parent=11 // pred_region
          _
        $region20: #{mobilevit_block.10} parent=11 // pred_fallthru
          _
        // Predicated region
        $region21: #{mobilevit_block.10} parent=11 // pred_check
          %p146 = pneg %p99
        $region22: #{mobilevit_block.10} parent=11 // pred_check_branch
          %148 = sbr.rel (%p146) target = $region24
        $region23: #{mobilevit_block.10} parent=11 // pred_region
          _
        $region24: #{mobilevit_block.10} parent=11 // pred_fallthru
          _
      $region12: #{mobilevit_block.10} parent=5 // pred_fallthru
        _
      %p149 = scmp.lt.s32.totalorder %s10, 2
      // Predicated region
      $region25: #{mobilevit_block.10} parent=5 // pred_check
        %p150 = pneg %p149
      $region26: #{mobilevit_block.10} parent=5 // pred_check_branch
        %152 = sbr.rel (%p150) target = $region28
      $region27: #{mobilevit_block.10} parent=5 // pred_region
        // Predicated region
        $region29: #{mobilevit_block.10} parent=27 // pred_check
          %p153 = pneg %p30
        $region30: #{mobilevit_block.10} parent=27 // pred_check_branch
          %155 = sbr.rel (%p153) target = $region32
        $region31: #{mobilevit_block.10} parent=27 // pred_region
          %s156 = sand.u32 %s20, 1
          %s157 = sand.u32 %s20, 1
          %s158 = smul.addr %s157, 32
          %s159 = scalar_lea.vmem [#allocation2], %s158
          %s160 = smul.u32 2, %s10
          %s161 = smul.addr %s160, 4
          %s162 = scalar_lea.vmem %s0, %s161
          // Predicated region
          $region33: #{mobilevit_block.10} parent=31 // pred_check
            _
          $region34: #{mobilevit_block.10} parent=31 // pred_check_branch
            %164 = sbr.rel (0) target = $region36
          $region35: #{mobilevit_block.10} parent=31 // pred_region
            // Predicated region
            $region37: #{mobilevit_block.10} parent=35 // pred_check
              _
            $region38: #{mobilevit_block.10} parent=35 // pred_check_branch
              %166 = sbr.rel (0) target = $region40
            $region39: #{mobilevit_block.10} parent=35 // pred_region
              // Predicated region
              $region52: #{mobilevit_block.10} parent=39 // pred_check
                _
              $region53: #{mobilevit_block.10} parent=39 // pred_check_branch
                %187 = sbr.rel (0) target = $region55
              $region54: #{mobilevit_block.10} parent=39 // pred_region
                loop: start=0, step=1, limit=1
                $region56: #{mobilevit_block.10} parent=54 // loop_pre_header
                  _
                $region57: #{mobilevit_block.10} parent=54 // loop_header
                  %s189 = sphi 0, %s193
                  %p190 = scmp.ge.s32.totalorder %s189, 1
                  %s194 = sphi %s162, %s162
                  %s195 = sphi %s159, %s159
                $region58: #{mobilevit_block.10} parent=54 // loop_header_branch
                  %192 = sbr.rel (%p190) target = $region62
                $region59: #{mobilevit_block.10} parent=54 // loop_body
                  %v196 = vld [vmem:[%s194] sm:$0xff]
                  %197 = vst [vmem:[%s195] sm:$0xff] %v196
                  %v198 = vld [vmem:[%s194 + $0x10] sm:$0xff]
                  %199 = vst [vmem:[%s195 + $0x8] sm:$0xff] %v198
                  %v200 = vld [vmem:[%s194 + $0x20] sm:$0xff]
                  %201 = vst [vmem:[%s195 + $0x10] sm:$0xff] %v200
                  %v202 = vld [vmem:[%s194 + $0x30] sm:$0xff]
                  %203 = vst [vmem:[%s195 + $0x18] sm:$0xff] %v202
                $region60: #{mobilevit_block.10} parent=54 // loop_footer
                  %s193 = sadd.s32 1, %s189
                $region61: #{mobilevit_block.10} parent=54 // loop_footer_branch
                  %188 = sbr.rel target = $region57
                $region62: #{mobilevit_block.10} parent=54 // loop_exit
                  _
              $region55: #{mobilevit_block.10} parent=39 // pred_fallthru
                _
              // Predicated region
              $region63: #{mobilevit_block.10} parent=39 // pred_check
                _
              $region64: #{mobilevit_block.10} parent=39 // pred_check_branch
                %205 = sbr.rel target = $region66
              $region65: #{mobilevit_block.10} parent=39 // pred_region
                _
              $region66: #{mobilevit_block.10} parent=39 // pred_fallthru
                _
            $region40: #{mobilevit_block.10} parent=35 // pred_fallthru
              _
            // Predicated region
            $region41: #{mobilevit_block.10} parent=35 // pred_check
              _
            $region42: #{mobilevit_block.10} parent=35 // pred_check_branch
              %168 = sbr.rel target = $region44
            $region43: #{mobilevit_block.10} parent=35 // pred_region
              loop: start=0, step=1, limit=1
              $region45: #{mobilevit_block.10} parent=43 // loop_pre_header
                _
              $region46: #{mobilevit_block.10} parent=43 // loop_header
                %s171 = sphi 0, %s175
                %p172 = scmp.ge.s32.totalorder %s171, 1
                %s176 = sphi %s162, %s162
                %s177 = sphi %s159, %s159
              $region47: #{mobilevit_block.10} parent=43 // loop_header_branch
                %174 = sbr.rel (%p172) target = $region51
              $region48: #{mobilevit_block.10} parent=43 // loop_body
                %v178 = vld [vmem:[%s176] sm:$0xff]
                %179 = vst [vmem:[%s177] sm:$0xff] %v178
                %v180 = vld [vmem:[%s176 + $0x10] sm:$0xff]
                %181 = vst [vmem:[%s177 + $0x8] sm:$0xff] %v180
                %v182 = vld [vmem:[%s176 + $0x20] sm:$0xff]
                %183 = vst [vmem:[%s177 + $0x10] sm:$0xff] %v182
                %v184 = vld [vmem:[%s176 + $0x30] sm:$0xff]
                %185 = vst [vmem:[%s177 + $0x18] sm:$0xff] %v184
              $region49: #{mobilevit_block.10} parent=43 // loop_footer
                %s175 = sadd.s32 1, %s171
              $region50: #{mobilevit_block.10} parent=43 // loop_footer_branch
                %170 = sbr.rel target = $region46
              $region51: #{mobilevit_block.10} parent=43 // loop_exit
                _
            $region44: #{mobilevit_block.10} parent=35 // pred_fallthru
              _
          $region36: #{mobilevit_block.10} parent=31 // pred_fallthru
            _
          %206 = vnop
        $region32: #{mobilevit_block.10} parent=27 // pred_fallthru
          _
      $region28: #{mobilevit_block.10} parent=5 // pred_fallthru
        _
      %p207 = scmp.le.s32.totalorder 1, %s10
      %p208 = scmp.lt.s32.totalorder %s10, 3
      %p209 = pnand %p207, %p208
      %p210 = pneg %p209
      // Predicated region
      $region67: #{mobilevit_block.10} parent=5 // pred_check
        _
      $region68: #{mobilevit_block.10} parent=5 // pred_check_branch
        %212 = sbr.rel (%p209) target = $region70
      $region69: #{mobilevit_block.10} parent=5 // pred_region
        %s213 = ssub.s32 %s10, 1
        %s214 = sand.u32 %s23, 1
        %s215 = sand.u32 %s23, 1
        %s216 = smul.addr %s215, 32
        %s217 = scalar_lea.vmem [#allocation2], %s216
        // Predicated region
        $region71: #{mobilevit_block.10} parent=69 // pred_check
          %p218 = pneg %p36
        $region72: #{mobilevit_block.10} parent=69 // pred_check_branch
          %220 = sbr.rel (%p218) target = $region74
        $region73: #{mobilevit_block.10} parent=69 // pred_region
          _
        $region74: #{mobilevit_block.10} parent=69 // pred_fallthru
          _
        %s221 = sand.u32 %s23, 1
        %s222 = sand.u32 %s23, 1
        %s223 = smul.addr %s222, 32
        %s224 = scalar_lea.vmem [#allocation2], %s223
        %p225 = pneg %p36
        %p226 = pneg %p33
        %p227 = pneg %p57
        %p228 = pneg %p54
        %p229 = pneg %p78
        %p230 = pneg %p75
        %p231 = pneg %p99
        %p232 = pneg %p96
        %p233 = pneg %p125
        %p234 = pneg %p122
        %s235 = smul.u32 2, %s15
        %p236 = scmp.lt.s32.totalorder %s235, 3
        %s237 = scalar_select %p236, %s235, 3
        %s238 = smul.addr %s237, 4
        %s239 = scalar_lea.vmem %s4, %s238
        %s240 = smul.u32 2, %s15
        %s241 = smul.u32 2, %s15
        %p242 = scmp.lt.s32.totalorder %s241, 3
        %s243 = scalar_select %p242, %s241, 3
        %s244 = smul.addr %s243, 4
        %s245 = scalar_lea.vmem %s4, %s244
        %s246 = smul.u32 2, %s15
        %v248 = vld [vmem:[%s1] sm:$0x3]
        %v249 = vld [vmem:[%s217] sm:$0xff]
        %v250 = vld [vmem:[%s217 + $0x8] sm:$0xff]
        %v251 = vld [vmem:[%s217 + $0x10] sm:$0xff]
        %v252 = vld [vmem:[%s217 + $0x18] sm:$0xff]
        %v257 = vunpack.c.l.b16 %v249
        %v258 = vunpack.c.h.b16 %v249
        %v259 = vunpack.c.l.b16 %v250
        %v260 = vunpack.c.h.b16 %v250
        %v261 = vunpack.c.l.b16 %v251
        %v262 = vunpack.c.h.b16 %v251
        %v263 = vunpack.c.l.b16 %v252
        %v264 = vunpack.c.h.b16 %v252
        %v265 = vpack.c.b16 %v259, %v257
        %v266 = vpack.c.b16 %v260, %v258
        %v267 = vpack.c.b16 %v263, %v261
        %v268 = vpack.c.b16 %v264, %v262
        %vm273 = vcmask 261120
        %v275 = vsel %vm273, %v248, 0
        %277 = vmatprep.subr.bf16.mxu0 %v266
        %278 = vmatpush1.bf16.msra.mxu0 %v265
        %279 = vmatprep.subr.bf16.mxu0 %v268
        %280 = vmatpush1.bf16.msra.mxu0 %v267
        %281 = vmatprep.subr.bf16.mxu0 0
        %282 = vmatpush1.bf16.msra.mxu0 0
        %283 = vmatprep.subr.bf16.mxu0 0
        %284 = vmatpush1.bf16.msra.mxu0 0
        %285 = vmatprep.subr.bf16.mxu0 0
        %286 = vmatpush1.bf16.msra.mxu0 0
        %287 = vmatprep.subr.bf16.mxu0 0
        %288 = vmatpush1.bf16.msra.mxu0 0
        %289 = vmatprep.subr.bf16.mxu0 0
        %290 = vmatpush1.bf16.msra.mxu0 0
        %291 = vmatprep.subr.bf16.mxu0 0
        %292 = vmatpush1.bf16.msra.mxu0 0
        %293 = vmatprep.subr.bf16.mxu0 0
        %294 = vmatpush1.bf16.msra.mxu0 0
        %295 = vmatprep.subr.bf16.mxu0 0
        %296 = vmatpush1.bf16.msra.mxu0 0
        %297 = vmatprep.subr.bf16.mxu0 0
        %298 = vmatpush1.bf16.msra.mxu0 0
        %299 = vmatprep.subr.bf16.mxu0 0
        %300 = vmatpush1.bf16.msra.mxu0 0
        %301 = vmatprep.subr.bf16.mxu0 0
        %302 = vmatpush1.bf16.msra.mxu0 0
        %303 = vmatprep.subr.bf16.mxu0 0
        %304 = vmatpush1.bf16.msra.mxu0 0
        %305 = vmatprep.subr.bf16.mxu0 0
        %306 = vmatpush1.bf16.msra.mxu0 0
        %307 = vmatprep.subr.bf16.mxu0 0
        %308 = vmatpush1.bf16.msra.mxu0 0
        %309 = vmatprep.mubr.bf16.mxu0 0
        %310 = vmatmul.mubr.bf16.gmra.mrb[0].mxu0 %v275
        %v311 = vpop.f32.mrb[0].mxu0
        %v312 = vadd.f32 0.0, %v311
        %v313 = vpop.f32.mrb[0].mxu0
        %v314 = vadd.f32 0.0, %v313
        %v315 = vpop.f32.mrb[0].mxu0
        %v316 = vpop.f32.mrb[0].mxu0
        %317 = vdwg.mxu0
        %v318 = vld [vmem:[%s2] sm:$0xf]
        %320 = vset.pattern.permute.xlu0 0
        %321 = vperm.xlu0 %320, %v318
        %v322 = vpop.permute.xlu0 %321
        %v324 = vmul.f32 %v312, %v322
        %v325 = vmul.f32 %v314, %v322
        %v326 = vld [vmem:[%s3] sm:$0xf]
        %328 = vset.pattern.permute.xlu0 0
        %329 = vperm.xlu0 %328, %v326
        %v330 = vpop.permute.xlu0 %329
        %v332 = vadd.f32 %v324, %v330
        %v333 = vadd.f32 %v325, %v330
        %v334 = vxor.u32 %v332, 2147483648
        %v335 = vxor.u32 %v333, 2147483648
        %v336 = vmul.f32 %v334, 1.442695
        %v337 = vpow.pop %v336
        %v338 = vmul.f32 %v335, 1.442695
        %v339 = vpow.pop %v338
        %v340 = vadd.f32 %v337, 1.0
        %v341 = vadd.f32 %v339, 1.0
        %v342 = vrcp.pop %v340
        %v343 = vmul.f32 1.0, %v342
        %v344 = vrcp.pop %v341
        %v345 = vmul.f32 1.0, %v344
        %v346 = vmul.f32 %v332, %v343
        %v347 = vmul.f32 %v333, %v345
        %v350 = vcombine.low %v346, %v347
        %352 = vst [vmem:[%s245] sm:$0xff] %v350
        %s353 = smul.u32 2, %s15
        %p354 = scmp.lt.s32.totalorder %s353, 3
        %s355 = scalar_select %p354, %s353, 3
        %s356 = smul.addr %s355, 4
        %s357 = scalar_lea.vmem %s4, %s356
        // Predicated region
        $region75: #{mobilevit_block.10} parent=69 // pred_check
          %p358 = pneg %p122
        $region76: #{mobilevit_block.10} parent=69 // pred_check_branch
          %360 = sbr.rel (%p358) target = $region78
        $region77: #{mobilevit_block.10} parent=69 // pred_region
          %s361 = smul.u32 2, %s15
        $region78: #{mobilevit_block.10} parent=69 // pred_fallthru
          _
      $region70: #{mobilevit_block.10} parent=5 // pred_fallthru
        _
      %p362 = scmp.le.s32.totalorder 2, %s10
      // Predicated region
      $region79: #{mobilevit_block.10} parent=5 // pred_check
        %p363 = pneg %p362
      $region80: #{mobilevit_block.10} parent=5 // pred_check_branch
        %365 = sbr.rel (%p363) target = $region82
      $region81: #{mobilevit_block.10} parent=5 // pred_region
        %s366 = ssub.s32 %s10, 2
        // Predicated region
        $region83: #{mobilevit_block.10} parent=81 // pred_check
          %p367 = pneg %p128
        $region84: #{mobilevit_block.10} parent=81 // pred_check_branch
          %369 = sbr.rel (%p367) target = $region86
        $region85: #{mobilevit_block.10} parent=81 // pred_region
          %s370 = smul.u32 2, %s16
          %p371 = scmp.lt.s32.totalorder %s370, 3
          %s372 = scalar_select %p371, %s370, 3
          %s373 = smul.addr %s372, 4
          %s374 = scalar_lea.vmem %s4, %s373
        $region86: #{mobilevit_block.10} parent=81 // pred_fallthru
          _
      $region82: #{mobilevit_block.10} parent=5 // pred_fallthru
        _
    $region6: #{mobilevit_block.10} parent=1 // loop_footer
      %s14 = sadd.s32 1, %s10
    $region7: #{mobilevit_block.10} parent=1 // loop_footer_branch
      %9 = sbr.rel target = $region3
    $region8: #{mobilevit_block.10} parent=1 // loop_exit
      _

// kernel: mobilevit_block.11
$region0: #{mobilevit_block.11}
  #allocation0 [shape = 'u32[]', space=smem, size = 0x4, offset = 0x4, fixed_abs, tag = 'smem constant byte address 0x4 - core index']
  #allocation1 [shape = 'u32[144,128]{1,0:T(1,128)}', space=vmem, size = 0x12000, scoped, tag = 'internal scratch']
  %s0 = inlined_call_operand.vmem [shape: bf16[72,512], index: 0, kind: input, shape index: {}]
  %s1 = inlined_call_operand.vmem [shape: bf16[4,72], index: 1, kind: input, shape index: {}]
  %s2 = inlined_call_operand.vmem [shape: f32[4,1], index: 2, kind: input, shape index: {}]
  %s3 = inlined_call_operand.vmem [shape: f32[4,1], index: 3, kind: input, shape index: {}]
  %s4 = inlined_call_operand.vmem [shape: f32[4,512], index: 4, kind: output, shape index: {}]
  %s5 = sld [smem:[#allocation0]]
  $region87: #{mobilevit_block.11} parent=0
    _
  %s7 = ssub.s32 1, %s5
  %s8 = scalar_select 0, %s7, %s5
  $region1: #{mobilevit_block.11} parent=0
    #allocation2 [shape = 'u8[73728]{0}', space=vmem, size = 0x12000, scoped, tag = 'input window, operand 0']
    loop: start=0, step=1, limit=4
    $region2: #{mobilevit_block.11} parent=1 // loop_pre_header
      _
    $region3: #{mobilevit_block.11} parent=1 // loop_header
      %s10 = sphi 0, %s14
      %p11 = scmp.ge.s32.totalorder %s10, 4
      %s20 = sphi 0, %s22
      %s23 = sphi 0, %s20
      %s24 = sphi 0, %s23
      %s40 = sphi 0, %s24
      %s44 = sphi 0, %s44
      %s46 = sphi 0, %s44
      %s47 = sphi 0, %s46
      %s61 = sphi 0, %s47
      %s65 = sphi 0, %s65
      %s67 = sphi 0, %s65
      %s68 = sphi 0, %s67
      %s82 = sphi 0, %s68
      %s86 = sphi 0, %s86
      %s88 = sphi 0, %s86
      %s89 = sphi 0, %s88
      %s103 = sphi 0, %s89
      %s109 = sphi 0, %s111
      %s112 = sphi 0, %s109
      %s113 = sphi 0, %s112
      %s129 = sphi 0, %s113
    $region4: #{mobilevit_block.11} parent=1 // loop_header_branch
      %13 = sbr.rel (%p11) target = $region8
    $region5: #{mobilevit_block.11} parent=1 // loop_body
      %s15 = ssub.s32 %s10, 1
      %s16 = ssub.s32 %s10, 2
      %s17 = sadd.s32 %s10, 1
      %s18 = ssub.s32 %s10, %s17
      %p19 = scmp.eq.s32.totalorder %s18, 0
      %s21 = sadd.s32 %s20, 1
      %s22 = scalar_select %p19, %s20, %s21
      %p25 = pneg %p19
      %p26 = scmp.eq.s32.totalorder %s10, 1
      %p27 = por %p25, %p26
      %p28 = scmp.ne.s32.totalorder %s20, %s23
      %p29 = scmp.eq.s32.totalorder %s10, 0
      %p30 = por %p28, %p29
      %p31 = scmp.ne.s32.totalorder %s20, %s23
      %p32 = scmp.eq.s32.totalorder %s15, 1
      %p33 = por %p31, %p32
      %p34 = scmp.ne.s32.totalorder %s23, %s24
      %p35 = scmp.eq.s32.totalorder %s15, 0
      %p36 = por %p34, %p35
      %p37 = scmp.ne.s32.totalorder %s23, %s24
      %p38 = scmp.eq.s32.totalorder %s16, 1
      %p39 = por %p37, %p38
      %p41 = scmp.ne.s32.totalorder %s24, %s40
      %p42 = scmp.eq.s32.totalorder %s16, 0
      %p43 = por %p41, %p42
      %s45 = sadd.s32 %s44, 1
      %p48 = scmp.eq.s32.totalorder %s10, 1
      %p49 = scmp.ne.s32.totalorder %s44, %s46
      %p50 = scmp.eq.s32.totalorder %s10, 0
      %p51 = por %p49, %p50
      %p52 = scmp.ne.s32.totalorder %s44, %s46
      %p53 = scmp.eq.s32.totalorder %s15, 1
      %p54 = por %p52, %p53
      %p55 = scmp.ne.s32.totalorder %s46, %s47
      %p56 = scmp.eq.s32.totalorder %s15, 0
      %p57 = por %p55, %p56
      %p58 = scmp.ne.s32.totalorder %s46, %s47
      %p59 = scmp.eq.s32.totalorder %s16, 1
      %p60 = por %p58, %p59
      %p62 = scmp.ne.s32.totalorder %s47, %s61
      %p63 = scmp.eq.s32.totalorder %s16, 0
      %p64 = por %p62, %p63
      %s66 = sadd.s32 %s65, 1
      %p69 = scmp.eq.s32.totalorder %s10, 1
      %p70 = scmp.ne.s32.totalorder %s65, %s67
      %p71 = scmp.eq.s32.totalorder %s10, 0
      %p72 = por %p70, %p71
      %p73 = scmp.ne.s32.totalorder %s65, %s67
      %p74 = scmp.eq.s32.totalorder %s15, 1
      %p75 = por %p73, %p74
      %p76 = scmp.ne.s32.totalorder %s67, %s68
      %p77 = scmp.eq.s32.totalorder %s15, 0
      %p78 = por %p76, %p77
      %p79 = scmp.ne.s32.totalorder %s67, %s68
      %p80 = scmp.eq.s32.totalorder %s16, 1
      %p81 = por %p79, %p80
      %p83 = scmp.ne.s32.totalorder %s68, %s82
      %p84 = scmp.eq.s32.totalorder %s16, 0
      %p85 = por %p83, %p84
      %s87 = sadd.s32 %s86, 1
      %p90 = scmp.eq.s32.totalorder %s10, 1
      %p91 = scmp.ne.s32.totalorder %s86, %s88
      %p92 = scmp.eq.s32.totalorder %s10, 0
      %p93 = por %p91, %p92
      %p94 = scmp.ne.s32.totalorder %s86, %s88
      %p95 = scmp.eq.s32.totalorder %s15, 1
      %p96 = por %p94, %p95
      %p97 = scmp.ne.s32.totalorder %s88, %s89
      %p98 = scmp.eq.s32.totalorder %s15, 0
      %p99 = por %p97, %p98
      %p100 = scmp.ne.s32.totalorder %s88, %s89
      %p101 = scmp.eq.s32.totalorder %s16, 1
      %p102 = por %p100, %p101
      %p104 = scmp.ne.s32.totalorder %s89, %s103
      %p105 = scmp.eq.s32.totalorder %s16, 0
      %p106 = por %p104, %p105
      %s107 = ssub.s32 %s10, %s17
      %p108 = scmp.eq.s32.totalorder %s107, 0
      %s110 = sadd.s32 %s109, 1
      %s111 = scalar_select %p108, %s109, %s110
      %p114 = pneg %p108
      %p115 = scmp.eq.s32.totalorder %s10, 1
      %p116 = por %p114, %p115
      %p117 = scmp.ne.s32.totalorder %s109, %s112
      %p118 = scmp.eq.s32.totalorder %s10, 0
      %p119 = por %p117, %p118
      %p120 = scmp.ne.s32.totalorder %s109, %s112
      %p121 = scmp.eq.s32.totalorder %s15, 1
      %p122 = por %p120, %p121
      %p123 = scmp.ne.s32.totalorder %s112, %s113
      %p124 = scmp.eq.s32.totalorder %s15, 0
      %p125 = por %p123, %p124
      %p126 = scmp.ne.s32.totalorder %s112, %s113
      %p127 = scmp.eq.s32.totalorder %s16, 1
      %p128 = por %p126, %p127
      %p130 = scmp.ne.s32.totalorder %s113, %s129
      %p131 = scmp.eq.s32.totalorder %s16, 0
      %p132 = por %p130, %p131
      %p133 = scmp.le.s32.totalorder 1, %s10
      %p134 = scmp.lt.s32.totalorder %s10, 3
      %p135 = pnand %p133, %p134
      %p136 = pneg %p135
      // Predicated region
      $region9: #{mobilevit_block.11} parent=5 // pred_check
        _
      $region10: #{mobilevit_block.11} parent=5 // pred_check_branch
        %138 = sbr.rel (%p135) target = $region12
      $region11: #{mobilevit_block.11} parent=5 // pred_region
        %s139 = ssub.s32 %s10, 1
        // Predicated region
        $region13: #{mobilevit_block.11} parent=11 // pred_check
          %p140 = pneg %p57
        $region14: #{mobilevit_block.11} parent=11 // pred_check_branch
          %142 = sbr.rel (%p140) target = $region16
        $region15: #{mobilevit_block.11} parent=11 // pred_region
          _
        $region16: #{mobilevit_block.11} parent=11 // pred_fallthru
          _
        // Predicated region
        $region17: #{mobilevit_block.11} parent=11 // pred_check
          %p143 = pneg %p78
        $region18: #{mobilevit_block.11} parent=11 // pred_check_branch
          %145 = sbr.rel (%p143) target = $region20
        $region19: #{mobilevit_block.11} parent=11 // pred_region
          _
        $region20: #{mobilevit_block.11} parent=11 // pred_fallthru
          _
        // Predicated region
        $region21: #{mobilevit_block.11} parent=11 // pred_check
          %p146 = pneg %p99
        $region22: #{mobilevit_block.11} parent=11 // pred_check_branch
          %148 = sbr.rel (%p146) target = $region24
        $region23: #{mobilevit_block.11} parent=11 // pred_region
          _
        $region24: #{mobilevit_block.11} parent=11 // pred_fallthru
          _
      $region12: #{mobilevit_block.11} parent=5 // pred_fallthru
        _
      %p149 = scmp.lt.s32.totalorder %s10, 2
      // Predicated region
      $region25: #{mobilevit_block.11} parent=5 // pred_check
        %p150 = pneg %p149
      $region26: #{mobilevit_block.11} parent=5 // pred_check_branch
        %152 = sbr.rel (%p150) target = $region28
      $region27: #{mobilevit_block.11} parent=5 // pred_region
        // Predicated region
        $region29: #{mobilevit_block.11} parent=27 // pred_check
          %p153 = pneg %p30
        $region30: #{mobilevit_block.11} parent=27 // pred_check_branch
          %155 = sbr.rel (%p153) target = $region32
        $region31: #{mobilevit_block.11} parent=27 // pred_region
          %s156 = sand.u32 %s20, 1
          %s157 = sand.u32 %s20, 1
          %s158 = smul.addr %s157, 72
          %s159 = scalar_lea.vmem [#allocation2], %s158
          %s160 = smul.u32 2, %s10
          %s161 = smul.addr %s160, 4
          %s162 = scalar_lea.vmem %s0, %s161
          // Predicated region
          $region33: #{mobilevit_block.11} parent=31 // pred_check
            _
          $region34: #{mobilevit_block.11} parent=31 // pred_check_branch
            %164 = sbr.rel (0) target = $region36
          $region35: #{mobilevit_block.11} parent=31 // pred_region
            // Predicated region
            $region37: #{mobilevit_block.11} parent=35 // pred_check
              _
            $region38: #{mobilevit_block.11} parent=35 // pred_check_branch
              %166 = sbr.rel (0) target = $region40
            $region39: #{mobilevit_block.11} parent=35 // pred_region
              // Predicated region
              $region52: #{mobilevit_block.11} parent=39 // pred_check
                _
              $region53: #{mobilevit_block.11} parent=39 // pred_check_branch
                %197 = sbr.rel (0) target = $region55
              $region54: #{mobilevit_block.11} parent=39 // pred_region
                loop: start=0, step=1, limit=1
                $region56: #{mobilevit_block.11} parent=54 // loop_pre_header
                  _
                $region57: #{mobilevit_block.11} parent=54 // loop_header
                  %s199 = sphi 0, %s203
                  %p200 = scmp.ge.s32.totalorder %s199, 1
                  %s204 = sphi %s162, %s162
                  %s205 = sphi %s159, %s159
                $region58: #{mobilevit_block.11} parent=54 // loop_header_branch
                  %202 = sbr.rel (%p200) target = $region62
                $region59: #{mobilevit_block.11} parent=54 // loop_body
                  %v206 = vld [vmem:[%s204] sm:$0xff]
                  %207 = vst [vmem:[%s205] sm:$0xff] %v206
                  %v208 = vld [vmem:[%s204 + $0x10] sm:$0xff]
                  %209 = vst [vmem:[%s205 + $0x8] sm:$0xff] %v208
                  %v210 = vld [vmem:[%s204 + $0x20] sm:$0xff]
                  %211 = vst [vmem:[%s205 + $0x10] sm:$0xff] %v210
                  %v212 = vld [vmem:[%s204 + $0x30] sm:$0xff]
                  %213 = vst [vmem:[%s205 + $0x18] sm:$0xff] %v212
                  %v214 = vld [vmem:[%s204 + $0x40] sm:$0xff]
                  %215 = vst [vmem:[%s205 + $0x20] sm:$0xff] %v214
                  %v216 = vld [vmem:[%s204 + $0x50] sm:$0xff]
                  %217 = vst [vmem:[%s205 + $0x28] sm:$0xff] %v216
                  %v218 = vld [vmem:[%s204 + $0x60] sm:$0xff]
                  %219 = vst [vmem:[%s205 + $0x30] sm:$0xff] %v218
                  %v220 = vld [vmem:[%s204 + $0x70] sm:$0xff]
                  %221 = vst [vmem:[%s205 + $0x38] sm:$0xff] %v220
                  %v222 = vld [vmem:[%s204 + $0x80] sm:$0xff]
                  %223 = vst [vmem:[%s205 + $0x40] sm:$0xff] %v222
                $region60: #{mobilevit_block.11} parent=54 // loop_footer
                  %s203 = sadd.s32 1, %s199
                $region61: #{mobilevit_block.11} parent=54 // loop_footer_branch
                  %198 = sbr.rel target = $region57
                $region62: #{mobilevit_block.11} parent=54 // loop_exit
                  _
              $region55: #{mobilevit_block.11} parent=39 // pred_fallthru
                _
              // Predicated region
              $region63: #{mobilevit_block.11} parent=39 // pred_check
                _
              $region64: #{mobilevit_block.11} parent=39 // pred_check_branch
                %225 = sbr.rel target = $region66
              $region65: #{mobilevit_block.11} parent=39 // pred_region
                _
              $region66: #{mobilevit_block.11} parent=39 // pred_fallthru
                _
            $region40: #{mobilevit_block.11} parent=35 // pred_fallthru
              _
            // Predicated region
            $region41: #{mobilevit_block.11} parent=35 // pred_check
              _
            $region42: #{mobilevit_block.11} parent=35 // pred_check_branch
              %168 = sbr.rel target = $region44
            $region43: #{mobilevit_block.11} parent=35 // pred_region
              loop: start=0, step=1, limit=1
              $region45: #{mobilevit_block.11} parent=43 // loop_pre_header
                _
              $region46: #{mobilevit_block.11} parent=43 // loop_header
                %s171 = sphi 0, %s175
                %p172 = scmp.ge.s32.totalorder %s171, 1
                %s176 = sphi %s162, %s162
                %s177 = sphi %s159, %s159
              $region47: #{mobilevit_block.11} parent=43 // loop_header_branch
                %174 = sbr.rel (%p172) target = $region51
              $region48: #{mobilevit_block.11} parent=43 // loop_body
                %v178 = vld [vmem:[%s176] sm:$0xff]
                %179 = vst [vmem:[%s177] sm:$0xff] %v178
                %v180 = vld [vmem:[%s176 + $0x10] sm:$0xff]
                %181 = vst [vmem:[%s177 + $0x8] sm:$0xff] %v180
                %v182 = vld [vmem:[%s176 + $0x20] sm:$0xff]
                %183 = vst [vmem:[%s177 + $0x10] sm:$0xff] %v182
                %v184 = vld [vmem:[%s176 + $0x30] sm:$0xff]
                %185 = vst [vmem:[%s177 + $0x18] sm:$0xff] %v184
                %v186 = vld [vmem:[%s176 + $0x40] sm:$0xff]
                %187 = vst [vmem:[%s177 + $0x20] sm:$0xff] %v186
                %v188 = vld [vmem:[%s176 + $0x50] sm:$0xff]
                %189 = vst [vmem:[%s177 + $0x28] sm:$0xff] %v188
                %v190 = vld [vmem:[%s176 + $0x60] sm:$0xff]
                %191 = vst [vmem:[%s177 + $0x30] sm:$0xff] %v190
                %v192 = vld [vmem:[%s176 + $0x70] sm:$0xff]
                %193 = vst [vmem:[%s177 + $0x38] sm:$0xff] %v192
                %v194 = vld [vmem:[%s176 + $0x80] sm:$0xff]
                %195 = vst [vmem:[%s177 + $0x40] sm:$0xff] %v194
              $region49: #{mobilevit_block.11} parent=43 // loop_footer
                %s175 = sadd.s32 1, %s171
              $region50: #{mobilevit_block.11} parent=43 // loop_footer_branch
                %170 = sbr.rel target = $region46
              $region51: #{mobilevit_block.11} parent=43 // loop_exit
                _
            $region44: #{mobilevit_block.11} parent=35 // pred_fallthru
              _
          $region36: #{mobilevit_block.11} parent=31 // pred_fallthru
            _
          %226 = vnop
        $region32: #{mobilevit_block.11} parent=27 // pred_fallthru
          _
      $region28: #{mobilevit_block.11} parent=5 // pred_fallthru
        _
      %p227 = scmp.le.s32.totalorder 1, %s10
      %p228 = scmp.lt.s32.totalorder %s10, 3
      %p229 = pnand %p227, %p228
      %p230 = pneg %p229
      // Predicated region
      $region67: #{mobilevit_block.11} parent=5 // pred_check
        _
      $region68: #{mobilevit_block.11} parent=5 // pred_check_branch
        %232 = sbr.rel (%p229) target = $region70
      $region69: #{mobilevit_block.11} parent=5 // pred_region
        %s233 = ssub.s32 %s10, 1
        %s234 = sand.u32 %s23, 1
        %s235 = sand.u32 %s23, 1
        %s236 = smul.addr %s235, 72
        %s237 = scalar_lea.vmem [#allocation2], %s236
        // Predicated region
        $region71: #{mobilevit_block.11} parent=69 // pred_check
          %p238 = pneg %p36
        $region72: #{mobilevit_block.11} parent=69 // pred_check_branch
          %240 = sbr.rel (%p238) target = $region74
        $region73: #{mobilevit_block.11} parent=69 // pred_region
          _
        $region74: #{mobilevit_block.11} parent=69 // pred_fallthru
          _
        %s241 = sand.u32 %s23, 1
        %s242 = sand.u32 %s23, 1
        %s243 = smul.addr %s242, 72
        %s244 = scalar_lea.vmem [#allocation2], %s243
        %p245 = pneg %p36
        %p246 = pneg %p33
        %p247 = pneg %p57
        %p248 = pneg %p54
        %p249 = pneg %p78
        %p250 = pneg %p75
        %p251 = pneg %p99
        %p252 = pneg %p96
        %p253 = pneg %p125
        %p254 = pneg %p122
        %s255 = smul.u32 2, %s15
        %p256 = scmp.lt.s32.totalorder %s255, 3
        %s257 = scalar_select %p256, %s255, 3
        %s258 = smul.addr %s257, 4
        %s259 = scalar_lea.vmem %s4, %s258
        %s260 = smul.u32 2, %s15
        %s261 = smul.u32 2, %s15
        %p262 = scmp.lt.s32.totalorder %s261, 3
        %s263 = scalar_select %p262, %s261, 3
        %s264 = smul.addr %s263, 4
        %s265 = scalar_lea.vmem %s4, %s264
        %s266 = smul.u32 2, %s15
        %v268 = vld [vmem:[%s1] sm:$0x3]
        %v269 = vld [vmem:[%s237] sm:$0xff]
        %v270 = vld [vmem:[%s237 + $0x8] sm:$0xff]
        %v271 = vld [vmem:[%s237 + $0x10] sm:$0xff]
        %v272 = vld [vmem:[%s237 + $0x18] sm:$0xff]
        %v273 = vld [vmem:[%s237 + $0x20] sm:$0xff]
        %v274 = vld [vmem:[%s237 + $0x28] sm:$0xff]
        %v275 = vld [vmem:[%s237 + $0x30] sm:$0xff]
        %v276 = vld [vmem:[%s237 + $0x38] sm:$0xff]
        %v277 = vld [vmem:[%s237 + $0x40] sm:$0xff]
        %v287 = vunpack.c.l.b16 %v269
        %v288 = vunpack.c.h.b16 %v269
        %v289 = vunpack.c.l.b16 %v270
        %v290 = vunpack.c.h.b16 %v270
        %v291 = vunpack.c.l.b16 %v271
        %v292 = vunpack.c.h.b16 %v271
        %v293 = vunpack.c.l.b16 %v272
        %v294 = vunpack.c.h.b16 %v272
        %v295 = vunpack.c.l.b16 %v273
        %v296 = vunpack.c.h.b16 %v273
        %v297 = vunpack.c.l.b16 %v274
        %v298 = vunpack.c.h.b16 %v274
        %v299 = vunpack.c.l.b16 %v275
        %v300 = vunpack.c.h.b16 %v275
        %v301 = vunpack.c.l.b16 %v276
        %v302 = vunpack.c.h.b16 %v276
        %v303 = vunpack.c.l.b16 %v277
        %v304 = vunpack.c.h.b16 %v277
        %v305 = vpack.c.b16 %v289, %v287
        %v306 = vpack.c.b16 %v290, %v288
        %v307 = vpack.c.b16 %v293, %v291
        %v308 = vpack.c.b16 %v294, %v292
        %v309 = vpack.c.b16 %v297, %v295
        %v310 = vpack.c.b16 %v298, %v296
        %v311 = vpack.c.b16 %v301, %v299
        %v312 = vpack.c.b16 %v302, %v300
        %v313 = vpack.c.b16 %v303, %v303
        %v314 = vpack.c.b16 %v304, %v304
        %vm323 = vcmask 588800
        %v325 = vsel %vm323, %v268, 0
        %vm327 = vcmask 1043456
        %v329 = vsel %vm327, %v313, 0
        %v332 = vsel %vm327, %v314, 0
        %334 = vmatprep.subr.bf16.mxu0 %v306
        %335 = vmatpush1.bf16.msra.mxu0 %v305
        %336 = vmatprep.subr.bf16.mxu0 %v308
        %337 = vmatpush1.bf16.msra.mxu0 %v307
        %338 = vmatprep.subr.bf16.mxu0 %v310
        %339 = vmatpush1.bf16.msra.mxu0 %v309
        %340 = vmatprep.subr.bf16.mxu0 %v312
        %341 = vmatpush1.bf16.msra.mxu0 %v311
        %342 = vmatprep.subr.bf16.mxu0 %v332
        %343 = vmatpush1.bf16.msra.mxu0 %v329
        %344 = vmatprep.subr.bf16.mxu0 0
        %345 = vmatpush1.bf16.msra.mxu0 0
        %346 = vmatprep.subr.bf16.mxu0 0
        %347 = vmatpush1.bf16.msra.mxu0 0
        %348 = vmatprep.subr.bf16.mxu0 0
        %349 = vmatpush1.bf16.msra.mxu0 0
        %350 = vmatprep.subr.bf16.mxu0 0
        %351 = vmatpush1.bf16.msra.mxu0 0
        %352 = vmatprep.subr.bf16.mxu0 0
        %353 = vmatpush1.bf16.msra.mxu0 0
        %354 = vmatprep.subr.bf16.mxu0 0
        %355 = vmatpush1.bf16.msra.mxu0 0
        %356 = vmatprep.subr.bf16.mxu0 0
        %357 = vmatpush1.bf16.msra.mxu0 0
        %358 = vmatprep.subr.bf16.mxu0 0
        %359 = vmatpush1.bf16.msra.mxu0 0
        %360 = vmatprep.subr.bf16.mxu0 0
        %361 = vmatpush1.bf16.msra.mxu0 0
        %362 = vmatprep.subr.bf16.mxu0 0
        %363 = vmatpush1.bf16.msra.mxu0 0
        %364 = vmatprep.subr.bf16.mxu0 0
        %365 = vmatpush1.bf16.msra.mxu0 0
        %366 = vmatprep.mubr.bf16.mxu0 0
        %367 = vmatmul.mubr.bf16.gmra.mrb[0].mxu0 %v325
        %v368 = vpop.f32.mrb[0].mxu0
        %v369 = vadd.f32 0.0, %v368
        %v370 = vpop.f32.mrb[0].mxu0
        %v371 = vadd.f32 0.0, %v370
        %v372 = vpop.f32.mrb[0].mxu0
        %v373 = vpop.f32.mrb[0].mxu0
        %374 = vdwg.mxu0
        %v375 = vld [vmem:[%s2] sm:$0xf]
        %377 = vset.pattern.permute.xlu0 0
        %378 = vperm.xlu0 %377, %v375
        %v379 = vpop.permute.xlu0 %378
        %v381 = vmul.f32 %v369, %v379
        %v382 = vmul.f32 %v371, %v379
        %v383 = vld [vmem:[%s3] sm:$0xf]
        %385 = vset.pattern.permute.xlu0 0
        %386 = vperm.xlu0 %385, %v383
        %v387 = vpop.permute.xlu0 %386
        %v389 = vadd.f32 %v381, %v387
        %v390 = vadd.f32 %v382, %v387
        %v391 = vxor.u32 %v389, 2147483648
        %v392 = vxor.u32 %v390, 2147483648
        %v393 = vmul.f32 %v391, 1.442695
        %v394 = vpow.pop %v393
        %v395 = vmul.f32 %v392, 1.442695
        %v396 = vpow.pop %v395
        %v397 = vadd.f32 %v394, 1.0
        %v398 = vadd.f32 %v396, 1.0
        %v399 = vrcp.pop %v397
        %v400 = vmul.f32 1.0, %v399
        %v401 = vrcp.pop %v398
        %v402 = vmul.f32 1.0, %v401
        %v403 = vmul.f32 %v389, %v400
        %v404 = vmul.f32 %v390, %v402
        %v407 = vcombine.low %v403, %v404
        %409 = vst [vmem:[%s265] sm:$0xff] %v407
        %s410 = smul.u32 2, %s15
        %p411 = scmp.lt.s32.totalorder %s410, 3
        %s412 = scalar_select %p411, %s410, 3
        %s413 = smul.addr %s412, 4
        %s414 = scalar_lea.vmem %s4, %s413
        // Predicated region
        $region75: #{mobilevit_block.11} parent=69 // pred_check
          %p415 = pneg %p122
        $region76: #{mobilevit_block.11} parent=69 // pred_check_branch
          %417 = sbr.rel (%p415) target = $region78
        $region77: #{mobilevit_block.11} parent=69 // pred_region
          %s418 = smul.u32 2, %s15
        $region78: #{mobilevit_block.11} parent=69 // pred_fallthru
          _
      $region70: #{mobilevit_block.11} parent=5 // pred_fallthru
        _
      %p419 = scmp.le.s32.totalorder 2, %s10
      // Predicated region
      $region79: #{mobilevit_block.11} parent=5 // pred_check
        %p420 = pneg %p419
      $region80: #{mobilevit_block.11} parent=5 // pred_check_branch
        %422 = sbr.rel (%p420) target = $region82
      $region81: #{mobilevit_block.11} parent=5 // pred_region
        %s423 = ssub.s32 %s10, 2
        // Predicated region
        $region83: #{mobilevit_block.11} parent=81 // pred_check
          %p424 = pneg %p128
        $region84: #{mobilevit_block.11} parent=81 // pred_check_branch
          %426 = sbr.rel (%p424) target = $region86
        $region85: #{mobilevit_block.11} parent=81 // pred_region
          %s427 = smul.u32 2, %s16
          %p428 = scmp.lt.s32.totalorder %s427, 3
          %s429 = scalar_select %p428, %s427, 3
          %s430 = smul.addr %s429, 4
          %s431 = scalar_lea.vmem %s4, %s430
        $region86: #{mobilevit_block.11} parent=81 // pred_fallthru
          _
      $region82: #{mobilevit_block.11} parent=5 // pred_fallthru
        _
    $region6: #{mobilevit_block.11} parent=1 // loop_footer
      %s14 = sadd.s32 1, %s10
    $region7: #{mobilevit_block.11} parent=1 // loop_footer_branch
      %9 = sbr.rel target = $region3
    $region8: #{mobilevit_block.11} parent=1 // loop_exit
      _

// kernel: mobilevit_block.8
$region0: #{mobilevit_block.8}
  #allocation0 [shape = 'u32[]', space=smem, size = 0x4, offset = 0x4, fixed_abs, tag = 'smem constant byte address 0x4 - core index']
  #allocation1 [shape = 'u32[144,128]{1,0:T(1,128)}', space=vmem, size = 0x12000, scoped, tag = 'internal scratch']
  %s0 = inlined_call_operand.vmem [shape: f32[8,64,32], index: 0, kind: input, shape index: {}]
  %s1 = inlined_call_operand.vmem [shape: f32[8,64], index: 1, kind: input, shape index: {}]
  %s2 = inlined_call_operand.vmem [shape: bf16[32,96], index: 2, kind: input, shape index: {}]
  %s3 = inlined_call_operand.vmem [shape: bf16[32,32], index: 3, kind: input, shape index: {}]
  %s4 = inlined_call_operand.vmem [shape: bf16[32,64], index: 4, kind: input, shape index: {}]
  %s5 = inlined_call_operand.vmem [shape: bf16[64,32], index: 5, kind: input, shape index: {}]
  %s6 = inlined_call_operand.vmem [shape: f32[8,64,32], index: 6, kind: output, shape index: {}]
  %s7 = sld [smem:[#allocation0]]
  $region57: #{mobilevit_block.8} parent=0
    _
  %s9 = ssub.s32 1, %s7
  %s10 = scalar_select 0, %s9, %s7
  loop: start=0, step=1, limit=4
  $region2: #{mobilevit_block.8} parent=0 // loop_pre_header
    _
  $region3: #{mobilevit_block.8} parent=0 // loop_header
    %s12 = sphi 0, %s16
    %p13 = scmp.ge.s32.totalorder %s12, 4
    %s22 = sphi 0, %s24
    %s25 = sphi 0, %s22
    %s26 = sphi 0, %s25
    %s42 = sphi 0, %s26
    %s46 = sphi 0, %s46
    %s48 = sphi 0, %s46
    %s49 = sphi 0, %s48
    %s63 = sphi 0, %s49
    %s67 = sphi 0, %s67
    %s69 = sphi 0, %s67
    %s70 = sphi 0, %s69
    %s84 = sphi 0, %s70
    %s88 = sphi 0, %s88
    %s90 = sphi 0, %s88
    %s91 = sphi 0, %s90
    %s105 = sphi 0, %s91
    %s109 = sphi 0, %s109
    %s111 = sphi 0, %s109
    %s112 = sphi 0, %s111
    %s126 = sphi 0, %s112
    %s130 = sphi 0, %s130
    %s132 = sphi 0, %s130
    %s133 = sphi 0, %s132
    %s147 = sphi 0, %s133
    %s153 = sphi 0, %s155
    %s156 = sphi 0, %s153
    %s157 = sphi 0, %s156
    %s173 = sphi 0, %s157
  $region4: #{mobilevit_block.8} parent=0 // loop_header_branch
    %15 = sbr.rel (%p13) target = $region8
  $region5: #{mobilevit_block.8} parent=0 // loop_body
    %s17 = ssub.s32 %s12, 1
    %s18 = ssub.s32 %s12, 2
    %s19 = sadd.s32 %s12, 1
    %s20 = ssub.s32 %s12, %s19
    %p21 = scmp.eq.s32.totalorder %s20, 0
    %s23 = sadd.s32 %s22, 1
    %s24 = scalar_select %p21, %s22, %s23
    %p27 = pneg %p21
    %p28 = scmp.eq.s32.totalorder %s12, 1
    %p29 = por %p27, %p28
    %p30 = scmp.ne.s32.totalorder %s22, %s25
    %p31 = scmp.eq.s32.totalorder %s12, 0
    %p32 = por %p30, %p31
    %p33 = scmp.ne.s32.totalorder %s22, %s25
    %p34 = scmp.eq.s32.totalorder %s17, 1
    %p35 = por %p33, %p34
    %p36 = scmp.ne.s32.totalorder %s25, %s26
    %p37 = scmp.eq.s32.totalorder %s17, 0
    %p38 = por %p36, %p37
    %p39 = scmp.ne.s32.totalorder %s25, %s26
    %p40 = scmp.eq.s32.totalorder %s18, 1
    %p41 = por %p39, %p40
    %p43 = scmp.ne.s32.totalorder %s26, %s42
    %p44 = scmp.eq.s32.totalorder %s18, 0
    %p45 = por %p43, %p44
    %s47 = sadd.s32 %s46, 1
    %p50 = scmp.eq.s32.totalorder %s12, 1
    %p51 = scmp.ne.s32.totalorder %s46, %s48
    %p52 = scmp.eq.s32.totalorder %s12, 0
    %p53 = por %p51, %p52
    %p54 = scmp.ne.s32.totalorder %s46, %s48
    %p55 = scmp.eq.s32.totalorder %s17, 1
    %p56 = por %p54, %p55
    %p57 = scmp.ne.s32.totalorder %s48, %s49
    %p58 = scmp.eq.s32.totalorder %s17, 0
    %p59 = por %p57, %p58
    %p60 = scmp.ne.s32.totalorder %s48, %s49
    %p61 = scmp.eq.s32.totalorder %s18, 1
    %p62 = por %p60, %p61
    %p64 = scmp.ne.s32.totalorder %s49, %s63
    %p65 = scmp.eq.s32.totalorder %s18, 0
    %p66 = por %p64, %p65
    %s68 = sadd.s32 %s67, 1
    %p71 = scmp.eq.s32.totalorder %s12, 1
    %p72 = scmp.ne.s32.totalorder %s67, %s69
    %p73 = scmp.eq.s32.totalorder %s12, 0
    %p74 = por %p72, %p73
    %p75 = scmp.ne.s32.totalorder %s67, %s69
    %p76 = scmp.eq.s32.totalorder %s17, 1
    %p77 = por %p75, %p76
    %p78 = scmp.ne.s32.totalorder %s69, %s70
    %p79 = scmp.eq.s32.totalorder %s17, 0
    %p80 = por %p78, %p79
    %p81 = scmp.ne.s32.totalorder %s69, %s70
    %p82 = scmp.eq.s32.totalorder %s18, 1
    %p83 = por %p81, %p82
    %p85 = scmp.ne.s32.totalorder %s70, %s84
    %p86 = scmp.eq.s32.totalorder %s18, 0
    %p87 = por %p85, %p86
    %s89 = sadd.s32 %s88, 1
    %p92 = scmp.eq.s32.totalorder %s12, 1
    %p93 = scmp.ne.s32.totalorder %s88, %s90
    %p94 = scmp.eq.s32.totalorder %s12, 0
    %p95 = por %p93, %p94
    %p96 = scmp.ne.s32.totalorder %s88, %s90
    %p97 = scmp.eq.s32.totalorder %s17, 1
    %p98 = por %p96, %p97
    %p99 = scmp.ne.s32.totalorder %s90, %s91
    %p100 = scmp.eq.s32.totalorder %s17, 0
    %p101 = por %p99, %p100
    %p102 = scmp.ne.s32.totalorder %s90, %s91
    %p103 = scmp.eq.s32.totalorder %s18, 1
    %p104 = por %p102, %p103
    %p106 = scmp.ne.s32.totalorder %s91, %s105
    %p107 = scmp.eq.s32.totalorder %s18, 0
    %p108 = por %p106, %p107
    %s110 = sadd.s32 %s109, 1
    %p113 = scmp.eq.s32.totalorder %s12, 1
    %p114 = scmp.ne.s32.totalorder %s109, %s111
    %p115 = scmp.eq.s32.totalorder %s12, 0
    %p116 = por %p114, %p115
    %p117 = scmp.ne.s32.totalorder %s109, %s111
    %p118 = scmp.eq.s32.totalorder %s17, 1
    %p119 = por %p117, %p118
    %p120 = scmp.ne.s32.totalorder %s111, %s112
    %p121 = scmp.eq.s32.totalorder %s17, 0
    %p122 = por %p120, %p121
    %p123 = scmp.ne.s32.totalorder %s111, %s112
    %p124 = scmp.eq.s32.totalorder %s18, 1
    %p125 = por %p123, %p124
    %p127 = scmp.ne.s32.totalorder %s112, %s126
    %p128 = scmp.eq.s32.totalorder %s18, 0
    %p129 = por %p127, %p128
    %s131 = sadd.s32 %s130, 1
    %p134 = scmp.eq.s32.totalorder %s12, 1
    %p135 = scmp.ne.s32.totalorder %s130, %s132
    %p136 = scmp.eq.s32.totalorder %s12, 0
    %p137 = por %p135, %p136
    %p138 = scmp.ne.s32.totalorder %s130, %s132
    %p139 = scmp.eq.s32.totalorder %s17, 1
    %p140 = por %p138, %p139
    %p141 = scmp.ne.s32.totalorder %s132, %s133
    %p142 = scmp.eq.s32.totalorder %s17, 0
    %p143 = por %p141, %p142
    %p144 = scmp.ne.s32.totalorder %s132, %s133
    %p145 = scmp.eq.s32.totalorder %s18, 1
    %p146 = por %p144, %p145
    %p148 = scmp.ne.s32.totalorder %s133, %s147
    %p149 = scmp.eq.s32.totalorder %s18, 0
    %p150 = por %p148, %p149
    %s151 = ssub.s32 %s12, %s19
    %p152 = scmp.eq.s32.totalorder %s151, 0
    %s154 = sadd.s32 %s153, 1
    %s155 = scalar_select %p152, %s153, %s154
    %p158 = pneg %p152
    %p159 = scmp.eq.s32.totalorder %s12, 1
    %p160 = por %p158, %p159
    %p161 = scmp.ne.s32.totalorder %s153, %s156
    %p162 = scmp.eq.s32.totalorder %s12, 0
    %p163 = por %p161, %p162
    %p164 = scmp.ne.s32.totalorder %s153, %s156
    %p165 = scmp.eq.s32.totalorder %s17, 1
    %p166 = por %p164, %p165
    %p167 = scmp.ne.s32.totalorder %s156, %s157
    %p168 = scmp.eq.s32.totalorder %s17, 0
    %p169 = por %p167, %p168
    %p170 = scmp.ne.s32.totalorder %s156, %s157
    %p171 = scmp.eq.s32.totalorder %s18, 1
    %p172 = por %p170, %p171
    %p174 = scmp.ne.s32.totalorder %s157, %s173
    %p175 = scmp.eq.s32.totalorder %s18, 0
    %p176 = por %p174, %p175
    %p177 = scmp.le.s32.totalorder 1, %s12
    %p178 = scmp.lt.s32.totalorder %s12, 3
    %p179 = pnand %p177, %p178
    %p180 = pneg %p179
    // Predicated region
    $region9: #{mobilevit_block.8} parent=5 // pred_check
      _
    $region10: #{mobilevit_block.8} parent=5 // pred_check_branch
      %182 = sbr.rel (%p179) target = $region12
    $region11: #{mobilevit_block.8} parent=5 // pred_region
      %s183 = ssub.s32 %s12, 1
      // Predicated region
      $region13: #{mobilevit_block.8} parent=11 // pred_check
        %p184 = pneg %p59
      $region14: #{mobilevit_block.8} parent=11 // pred_check_branch
        %186 = sbr.rel (%p184) target = $region16
      $region15: #{mobilevit_block.8} parent=11 // pred_region
        _
      $region16: #{mobilevit_block.8} parent=11 // pred_fallthru
        _
      // Predicated region
      $region17: #{mobilevit_block.8} parent=11 // pred_check
        %p187 = pneg %p80
      $region18: #{mobilevit_block.8} parent=11 // pred_check_branch
        %189 = sbr.rel (%p187) target = $region20
      $region19: #{mobilevit_block.8} parent=11 // pred_region
        _
      $region20: #{mobilevit_block.8} parent=11 // pred_fallthru
        _
      // Predicated region
      $region21: #{mobilevit_block.8} parent=11 // pred_check
        %p190 = pneg %p101
      $region22: #{mobilevit_block.8} parent=11 // pred_check_branch
        %192 = sbr.rel (%p190) target = $region24
      $region23: #{mobilevit_block.8} parent=11 // pred_region
        _
      $region24: #{mobilevit_block.8} parent=11 // pred_fallthru
        _
      // Predicated region
      $region25: #{mobilevit_block.8} parent=11 // pred_check
        %p193 = pneg %p122
      $region26: #{mobilevit_block.8} parent=11 // pred_check_branch
        %195 = sbr.rel (%p193) target = $region28
      $region27: #{mobilevit_block.8} parent=11 // pred_region
        _
      $region28: #{mobilevit_block.8} parent=11 // pred_fallthru
        _
      // Predicated region
      $region29: #{mobilevit_block.8} parent=11 // pred_check
        %p196 = pneg %p143
      $region30: #{mobilevit_block.8} parent=11 // pred_check_branch
        %198 = sbr.rel (%p196) target = $region32
      $region31: #{mobilevit_block.8} parent=11 // pred_region
        _
      $region32: #{mobilevit_block.8} parent=11 // pred_fallthru
        _
    $region12: #{mobilevit_block.8} parent=5 // pred_fallthru
      _
    %p199 = scmp.lt.s32.totalorder %s12, 2
    // Predicated region
    $region33: #{mobilevit_block.8} parent=5 // pred_check
      %p200 = pneg %p199
    $region34: #{mobilevit_block.8} parent=5 // pred_check_branch
      %202 = sbr.rel (%p200) target = $region36
    $region35: #{mobilevit_block.8} parent=5 // pred_region
      // Predicated region
      $region37: #{mobilevit_block.8} parent=35 // pred_check
        %p203 = pneg %p32
      $region38: #{mobilevit_block.8} parent=35 // pred_check_branch
        %205 = sbr.rel (%p203) target = $region40
      $region39: #{mobilevit_block.8} parent=35 // pred_region
        %s206 = smul.u32 4, %s12
        %p207 = scmp.lt.s32.totalorder %s206, 7
        %s208 = scalar_select %p207, %s206, 7
        %s209 = smul.addr %s208, 8
        %s210 = smul.addr %s209, 8
        %s211 = scalar_lea.vmem %s0, %s210
        %s212 = smul.u32 4, %s12
      $region40: #{mobilevit_block.8} parent=35 // pred_fallthru
        _
    $region36: #{mobilevit_block.8} parent=5 // pred_fallthru
      _
    %p213 = scmp.le.s32.totalorder 1, %s12
    %p214 = scmp.lt.s32.totalorder %s12, 3
    %p215 = pnand %p213, %p214
    %p216 = pneg %p215
    // Predicated region
    $region41: #{mobilevit_block.8} parent=5 // pred_check
      _
    $region42: #{mobilevit_block.8} parent=5 // pred_check_branch
      %218 = sbr.rel (%p215) target = $region44
    $region43: #{mobilevit_block.8} parent=5 // pred_region
      %s219 = ssub.s32 %s12, 1
      %s220 = smul.u32 4, %s17
      %p221 = scmp.lt.s32.totalorder %s220, 7
      %s222 = scalar_select %p221, %s220, 7
      %s223 = smul.addr %s222, 8
      %s224 = smul.addr %s223, 8
      %s225 = scalar_lea.vmem %s0, %s224
      %p226 = pneg %p38
      %p227 = pneg %p35
      %p228 = pneg %p59
      %p229 = pneg %p56
      %p230 = pneg %p80
      %p231 = pneg %p77
      %p232 = pneg %p101
      %p233 = pneg %p98
      %p234 = pneg %p122
      %p235 = pneg %p119
      %p236 = pneg %p143
      %p237 = pneg %p140
      %p238 = pneg %p169
      %p239 = pneg %p166
      %s240 = smul.u32 4, %s17
      %p241 = scmp.lt.s32.totalorder %s240, 7
      %s242 = scalar_select %p241, %s240, 7
      %s243 = smul.addr %s242, 8
      %s244 = smul.addr %s243, 8
      %s245 = scalar_lea.vmem %s6, %s244
      %s246 = smul.u32 4, %s17
      %p247 = scmp.lt.s32.totalorder %s246, 7
      %s248 = scalar_select %p247, %s246, 7
      %s249 = smul.addr %s248, 8
      %s250 = smul.addr %s249, 8
      %s251 = scalar_lea.vmem %s0, %s250
      %s252 = smul.u32 4, %s17
      %s253 = smul.u32 4, %s17
      %p254 = scmp.lt.s32.totalorder %s253, 7
      %s255 = scalar_select %p254, %s253, 7
      %s256 = smul.addr %s255, 8
      %s257 = smul.addr %s256, 8
      %s258 = scalar_lea.vmem %s6, %s257
      %s259 = smul.u32 4, %s17
      %v261 = vld [vmem:[%s251] sm:$0xff]
      %v262 = vld [vmem:[%s251 + $0x8] sm:$0xff]
      %v263 = vld [vmem:[%s251 + $0x10] sm:$0xff]
      %v264 = vld [vmem:[%s251 + $0x18] sm:$0xff]
      %v265 = vld [vmem:[%s251 + $0x20] sm:$0xff]
      %v266 = vld [vmem:[%s251 + $0x28] sm:$0xff]
      %v267 = vld [vmem:[%s251 + $0x30] sm:$0xff]
      %v268 = vld [vmem:[%s251 + $0x38] sm:$0xff]
      %v269 = vld [vmem:[%s251 + $0x40] sm:$0xff]
      %v270 = vld [vmem:[%s251 + $0x48] sm:$0xff]
      %v271 = vld [vmem:[%s251 + $0x50] sm:$0xff]
      %v272 = vld [vmem:[%s251 + $0x58] sm:$0xff]
      %v273 = vld [vmem:[%s251 + $0x60] sm:$0xff]
      %v274 = vld [vmem:[%s251 + $0x68] sm:$0xff]
      %v275 = vld [vmem:[%s251 + $0x70] sm:$0xff]
      %v276 = vld [vmem:[%s251 + $0x78] sm:$0xff]
      %v277 = vld [vmem:[%s251 + $0x80] sm:$0xff]
      %v278 = vld [vmem:[%s251 + $0x88] sm:$0xff]
      %v279 = vld [vmem:[%s251 + $0x90] sm:$0xff]
      %v280 = vld [vmem:[%s251 + $0x98] sm:$0xff]
      %v281 = vld [vmem:[%s251 + $0xa0] sm:$0xff]
      %v282 = vld [vmem:[%s251 + $0xa8] sm:$0xff]
      %v283 = vld [vmem:[%s251 + $0xb0] sm:$0xff]
      %v284 = vld [vmem:[%s251 + $0xb8] sm:$0xff]
      %v285 = vld [vmem:[%s251 + $0xc0] sm:$0xff]
      %v286 = vld [vmem:[%s251 + $0xc8] sm:$0xff]
      %v287 = vld [vmem:[%s251 + $0xd0] sm:$0xff]
      %v288 = vld [vmem:[%s251 + $0xd8] sm:$0xff]
      %v289 = vld [vmem:[%s251 + $0xe0] sm:$0xff]
      %v290 = vld [vmem:[%s251 + $0xe8] sm:$0xff]
      %v291 = vld [vmem:[%s251 + $0xf0] sm:$0xff]
      %v292 = vld [vmem:[%s251 + $0xf8] sm:$0xff]
      %v293 = vld [vmem:[%s1] sm:$0xff]
      %vm294 = vcmask 261120
      %v295 = vsel %vm294, %v261, 0.0
      %296 = vadd.xlane.f32.xlu0 %v295
      %v297 = vpop.xlane.xlu0 %296
      %v298 = vsel %vm294, %v262, 0.0
      %299 = vadd.xlane.f32.xlu0 %v298
      %v300 = vpop.xlane.xlu0 %299
      %v301 = vsel %vm294, %v263, 0.0
      %302 = vadd.xlane.f32.xlu0 %v301
      %v303 = vpop.xlane.xlu0 %302
      %v304 = vsel %vm294, %v264, 0.0
      %305 = vadd.xlane.f32.xlu0 %v304
      %v306 = vpop.xlane.xlu0 %305
      %v307 = vsel %vm294, %v265, 0.0
      %308 = vadd.xlane.f32.xlu0 %v307
      %v309 = vpop.xlane.xlu0 %308
      %v310 = vsel %vm294, %v266, 0.0
      %311 = vadd.xlane.f32.xlu0 %v310
      %v312 = vpop.xlane.xlu0 %311
      %v313 = vsel %vm294, %v267, 0.0
      %314 = vadd.xlane.f32.xlu0 %v313
      %v315 = vpop.xlane.xlu0 %314
      %v316 = vsel %vm294, %v268, 0.0
      %317 = vadd.xlane.f32.xlu0 %v316
      %v318 = vpop.xlane.xlu0 %317
      %v319 = vsel %vm294, %v269, 0.0
      %320 = vadd.xlane.f32.xlu0 %v319
      %v321 = vpop.xlane.xlu0 %320
      %v322 = vsel %vm294, %v270, 0.0
      %323 = vadd.xlane.f32.xlu0 %v322
      %v324 = vpop.xlane.xlu0 %323
      %v325 = vsel %vm294, %v271, 0.0
      %326 = vadd.xlane.f32.xlu0 %v325
      %v327 = vpop.xlane.xlu0 %326
      %v328 = vsel %vm294, %v272, 0.0
      %329 = vadd.xlane.f32.xlu0 %v328
      %v330 = vpop.xlane.xlu0 %329
      %v331 = vsel %vm294, %v273, 0.0
      %332 = vadd.xlane.f32.xlu0 %v331
      %v333 = vpop.xlane.xlu0 %332
      %v334 = vsel %vm294, %v274, 0.0
      %335 = vadd.xlane.f32.xlu0 %v334
      %v336 = vpop.xlane.xlu0 %335
      %v337 = vsel %vm294, %v275, 0.0
      %338 = vadd.xlane.f32.xlu0 %v337
      %v339 = vpop.xlane.xlu0 %338
      %v340 = vsel %vm294, %v276, 0.0
      %341 = vadd.xlane.f32.xlu0 %v340
      %v342 = vpop.xlane.xlu0 %341
      %v343 = vsel %vm294, %v277, 0.0
      %344 = vadd.xlane.f32.xlu0 %v343
      %v345 = vpop.xlane.xlu0 %344
      %v346 = vsel %vm294, %v278, 0.0
      %347 = vadd.xlane.f32.xlu0 %v346
      %v348 = vpop.xlane.xlu0 %347
      %v349 = vsel %vm294, %v279, 0.0
      %350 = vadd.xlane.f32.xlu0 %v349
      %v351 = vpop.xlane.xlu0 %350
      %v352 = vsel %vm294, %v280, 0.0
      %353 = vadd.xlane.f32.xlu0 %v352
      %v354 = vpop.xlane.xlu0 %353
      %v355 = vsel %vm294, %v281, 0.0
      %356 = vadd.xlane.f32.xlu0 %v355
      %v357 = vpop.xlane.xlu0 %356
      %v358 = vsel %vm294, %v282, 0.0
      %359 = vadd.xlane.f32.xlu0 %v358
      %v360 = vpop.xlane.xlu0 %359
      %v361 = vsel %vm294, %v283, 0.0
      %362 = vadd.xlane.f32.xlu0 %v361
      %v363 = vpop.xlane.xlu0 %362
      %v364 = vsel %vm294, %v284, 0.0
      %365 = vadd.xlane.f32.xlu0 %v364
      %v366 = vpop.xlane.xlu0 %365
      %v367 = vsel %vm294, %v285, 0.0
      %368 = vadd.xlane.f32.xlu0 %v367
      %v369 = vpop.xlane.xlu0 %368
      %v370 = vsel %vm294, %v286, 0.0
      %371 = vadd.xlane.f32.xlu0 %v370
      %v372 = vpop.xlane.xlu0 %371
      %v373 = vsel %vm294, %v287, 0.0
      %374 = vadd.xlane.f32.xlu0 %v373
      %v375 = vpop.xlane.xlu0 %374
      %v376 = vsel %vm294, %v288, 0.0
      %377 = vadd.xlane.f32.xlu0 %v376
      %v378 = vpop.xlane.xlu0 %377
      %v379 = vsel %vm294, %v289, 0.0
      %380 = vadd.xlane.f32.xlu0 %v379
      %v381 = vpop.xlane.xlu0 %380
      %v382 = vsel %vm294, %v290, 0.0
      %383 = vadd.xlane.f32.xlu0 %v382
      %v384 = vpop.xlane.xlu0 %383
      %v385 = vsel %vm294, %v291, 0.0
      %386 = vadd.xlane.f32.xlu0 %v385
      %v387 = vpop.xlane.xlu0 %386
      %v388 = vsel %vm294, %v292, 0.0
      %389 = vadd.xlane.f32.xlu0 %v388
      %v390 = vpop.xlane.xlu0 %389
      %v391 = vrcp.pop 32.0
      %v392 = vmul.f32 %v297, %v391
      %v393 = vmul.f32 %v300, %v391
      %v394 = vmul.f32 %v303, %v391
      %v395 = vmul.f32 %v306, %v391
      %v396 = vmul.f32 %v309, %v391
      %v397 = vmul.f32 %v312, %v391
      %v398 = vmul.f32 %v315, %v391
      %v399 = vmul.f32 %v318, %v391
      %v400 = vmul.f32 %v321, %v391
      %v401 = vmul.f32 %v324, %v391
      %v402 = vmul.f32 %v327, %v391
      %v403 = vmul.f32 %v330, %v391
      %v404 = vmul.f32 %v333, %v391
      %v405 = vmul.f32 %v336, %v391
      %v406 = vmul.f32 %v339, %v391
      %v407 = vmul.f32 %v342, %v391
      %v408 = vmul.f32 %v345, %v391
      %v409 = vmul.f32 %v348, %v391
      %v410 = vmul.f32 %v351, %v391
      %v411 = vmul.f32 %v354, %v391
      %v412 = vmul.f32 %v357, %v391
      %v413 = vmul.f32 %v360, %v391
      %v414 = vmul.f32 %v363, %v391
      %v415 = vmul.f32 %v366, %v391
      %v416 = vmul.f32 %v369, %v391
      %v417 = vmul.f32 %v372, %v391
      %v418 = vmul.f32 %v375, %v391
      %v419 = vmul.f32 %v378, %v391
      %v420 = vmul.f32 %v381, %v391
      %v421 = vmul.f32 %v384, %v391
      %v422 = vmul.f32 %v387, %v391
      %v423 = vmul.f32 %v390, %v391
      %v424 = vsub.f32 %v261, %v392
      %v425 = vsub.f32 %v262, %v393
      %v426 = vsub.f32 %v263, %v394
      %v427 = vsub.f32 %v264, %v395
      %v428 = vsub.f32 %v265, %v396
      %v429 = vsub.f32 %v266, %v397
      %v430 = vsub.f32 %v267, %v398
      %v431 = vsub.f32 %v268, %v399
      %v432 = vsub.f32 %v269, %v400
      %v433 = vsub.f32 %v270, %v401
      %v434 = vsub.f32 %v271, %v402
      %v435 = vsub.f32 %v272, %v403
      %v436 = vsub.f32 %v273, %v404
      %v437 = vsub.f32 %v274, %v405
      %v438 = vsub.f32 %v275, %v406
      %v439 = vsub.f32 %v276, %v407
      %v440 = vsub.f32 %v277, %v408
      %v441 = vsub.f32 %v278, %v409
      %v442 = vsub.f32 %v279, %v410
      %v443 = vsub.f32 %v280, %v411
      %v444 = vsub.f32 %v281, %v412
      %v445 = vsub.f32 %v282, %v413
      %v446 = vsub.f32 %v283, %v414
      %v447 = vsub.f32 %v284, %v415
      %v448 = vsub.f32 %v285, %v416
      %v449 = vsub.f32 %v286, %v417
      %v450 = vsub.f32 %v287, %v418
      %v451 = vsub.f32 %v288, %v419
      %v452 = vsub.f32 %v289, %v420
      %v453 = vsub.f32 %v290, %v421
      %v454 = vsub.f32 %v291, %v422
      %v455 = vsub.f32 %v292, %v423
      %v456 = vmul.f32 %v424, %v424
      %v457 = vmul.f32 %v425, %v425
      %v458 = vmul.f32 %v426, %v426
      %v459 = vmul.f32 %v427, %v427
      %v460 = vmul.f32 %v428, %v428
      %v461 = vmul.f32 %v429, %v429
      %v462 = vmul.f32 %v430, %v430
      %v463 = vmul.f32 %v431, %v431
      %v464 = vmul.f32 %v432, %v432
      %v465 = vmul.f32 %v433, %v433
      %v466 = vmul.f32 %v434, %v434
      %v467 = vmul.f32 %v435, %v435
      %v468 = vmul.f32 %v436, %v436
      %v469 = vmul.f32 %v437, %v437
      %v470 = vmul.f32 %v438, %v438
      %v471 = vmul.f32 %v439, %v439
      %v472 = vmul.f32 %v440, %v440
      %v473 = vmul.f32 %v441, %v441
      %v474 = vmul.f32 %v442, %v442
      %v475 = vmul.f32 %v443, %v443
      %v476 = vmul.f32 %v444, %v444
      %v477 = vmul.f32 %v445, %v445
      %v478 = vmul.f32 %v446, %v446
      %v479 = vmul.f32 %v447, %v447
      %v480 = vmul.f32 %v448, %v448
      %v481 = vmul.f32 %v449, %v449
      %v482 = vmul.f32 %v450, %v450
      %v483 = vmul.f32 %v451, %v451
      %v484 = vmul.f32 %v452, %v452
      %v485 = vmul.f32 %v453, %v453
      %v486 = vmul.f32 %v454, %v454
      %v487 = vmul.f32 %v455, %v455
      %v488 = vsel %vm294, %v456, 0.0
      %489 = vadd.xlane.f32.xlu0 %v488
      %v490 = vpop.xlane.xlu0 %489
      %v491 = vsel %vm294, %v457, 0.0
      %492 = vadd.xlane.f32.xlu0 %v491
      %v493 = vpop.xlane.xlu0 %492
      %v494 = vsel %vm294, %v458, 0.0
      %495 = vadd.xlane.f32.xlu0 %v494
      %v496 = vpop.xlane.xlu0 %495
      %v497 = vsel %vm294, %v459, 0.0
      %498 = vadd.xlane.f32.xlu0 %v497
      %v499 = vpop.xlane.xlu0 %498
      %v500 = vsel %vm294, %v460, 0.0
      %501 = vadd.xlane.f32.xlu0 %v500
      %v502 = vpop.xlane.xlu0 %501
      %v503 = vsel %vm294, %v461, 0.0
      %504 = vadd.xlane.f32.xlu0 %v503
      %v505 = vpop.xlane.xlu0 %504
      %v506 = vsel %vm294, %v462, 0.0
      %507 = vadd.xlane.f32.xlu0 %v506
      %v508 = vpop.xlane.xlu0 %507
      %v509 = vsel %vm294, %v463, 0.0
      %510 = vadd.xlane.f32.xlu0 %v509
      %v511 = vpop.xlane.xlu0 %510
      %v512 = vsel %vm294, %v464, 0.0
      %513 = vadd.xlane.f32.xlu0 %v512
      %v514 = vpop.xlane.xlu0 %513
      %v515 = vsel %vm294, %v465, 0.0
      %516 = vadd.xlane.f32.xlu0 %v515
      %v517 = vpop.xlane.xlu0 %516
      %v518 = vsel %vm294, %v466, 0.0
      %519 = vadd.xlane.f32.xlu0 %v518
      %v520 = vpop.xlane.xlu0 %519
      %v521 = vsel %vm294, %v467, 0.0
      %522 = vadd.xlane.f32.xlu0 %v521
      %v523 = vpop.xlane.xlu0 %522
      %v524 = vsel %vm294, %v468, 0.0
      %525 = vadd.xlane.f32.xlu0 %v524
      %v526 = vpop.xlane.xlu0 %525
      %v527 = vsel %vm294, %v469, 0.0
      %528 = vadd.xlane.f32.xlu0 %v527
      %v529 = vpop.xlane.xlu0 %528
      %v530 = vsel %vm294, %v470, 0.0
      %531 = vadd.xlane.f32.xlu0 %v530
      %v532 = vpop.xlane.xlu0 %531
      %v533 = vsel %vm294, %v471, 0.0
      %534 = vadd.xlane.f32.xlu0 %v533
      %v535 = vpop.xlane.xlu0 %534
      %v536 = vsel %vm294, %v472, 0.0
      %537 = vadd.xlane.f32.xlu0 %v536
      %v538 = vpop.xlane.xlu0 %537
      %v539 = vsel %vm294, %v473, 0.0
      %540 = vadd.xlane.f32.xlu0 %v539
      %v541 = vpop.xlane.xlu0 %540
      %v542 = vsel %vm294, %v474, 0.0
      %543 = vadd.xlane.f32.xlu0 %v542
      %v544 = vpop.xlane.xlu0 %543
      %v545 = vsel %vm294, %v475, 0.0
      %546 = vadd.xlane.f32.xlu0 %v545
      %v547 = vpop.xlane.xlu0 %546
      %v548 = vsel %vm294, %v476, 0.0
      %549 = vadd.xlane.f32.xlu0 %v548
      %v550 = vpop.xlane.xlu0 %549
      %v551 = vsel %vm294, %v477, 0.0
      %552 = vadd.xlane.f32.xlu0 %v551
      %v553 = vpop.xlane.xlu0 %552
      %v554 = vsel %vm294, %v478, 0.0
      %555 = vadd.xlane.f32.xlu0 %v554
      %v556 = vpop.xlane.xlu0 %555
      %v557 = vsel %vm294, %v479, 0.0
      %558 = vadd.xlane.f32.xlu0 %v557
      %v559 = vpop.xlane.xlu0 %558
      %v560 = vsel %vm294, %v480, 0.0
      %561 = vadd.xlane.f32.xlu0 %v560
      %v562 = vpop.xlane.xlu0 %561
      %v563 = vsel %vm294, %v481, 0.0
      %564 = vadd.xlane.f32.xlu0 %v563
      %v565 = vpop.xlane.xlu0 %564
      %v566 = vsel %vm294, %v482, 0.0
      %567 = vadd.xlane.f32.xlu0 %v566
      %v568 = vpop.xlane.xlu0 %567
      %v569 = vsel %vm294, %v483, 0.0
      %570 = vadd.xlane.f32.xlu0 %v569
      %v571 = vpop.xlane.xlu0 %570
      %v572 = vsel %vm294, %v484, 0.0
      %573 = vadd.xlane.f32.xlu0 %v572
      %v574 = vpop.xlane.xlu0 %573
      %v575 = vsel %vm294, %v485, 0.0
      %576 = vadd.xlane.f32.xlu0 %v575
      %v577 = vpop.xlane.xlu0 %576
      %v578 = vsel %vm294, %v486, 0.0
      %579 = vadd.xlane.f32.xlu0 %v578
      %v580 = vpop.xlane.xlu0 %579
      %v581 = vsel %vm294, %v487, 0.0
      %582 = vadd.xlane.f32.xlu0 %v581
      %v583 = vpop.xlane.xlu0 %582
      %v584 = vmul.f32 %v490, %v391
      %v585 = vmul.f32 %v493, %v391
      %v586 = vmul.f32 %v496, %v391
      %v587 = vmul.f32 %v499, %v391
      %v588 = vmul.f32 %v502, %v391
      %v589 = vmul.f32 %v505, %v391
      %v590 = vmul.f32 %v508, %v391
      %v591 = vmul.f32 %v511, %v391
      %v592 = vmul.f32 %v514, %v391
      %v593 = vmul.f32 %v517, %v391
      %v594 = vmul.f32 %v520, %v391
      %v595 = vmul.f32 %v523, %v391
      %v596 = vmul.f32 %v526, %v391
      %v597 = vmul.f32 %v529, %v391
      %v598 = vmul.f32 %v532, %v391
      %v599 = vmul.f32 %v535, %v391
      %v600 = vmul.f32 %v538, %v391
      %v601 = vmul.f32 %v541, %v391
      %v602 = vmul.f32 %v544, %v391
      %v603 = vmul.f32 %v547, %v391
      %v604 = vmul.f32 %v550, %v391
      %v605 = vmul.f32 %v553, %v391
      %v606 = vmul.f32 %v556, %v391
      %v607 = vmul.f32 %v559, %v391
      %v608 = vmul.f32 %v562, %v391
      %v609 = vmul.f32 %v565, %v391
      %v610 = vmul.f32 %v568, %v391
      %v611 = vmul.f32 %v571, %v391
      %v612 = vmul.f32 %v574, %v391
      %v613 = vmul.f32 %v577, %v391
      %v614 = vmul.f32 %v580, %v391
      %v615 = vmul.f32 %v583, %v391
      %v616 = vadd.f32 %v584, 1e-05
      %v617 = vadd.f32 %v585, 1e-05
      %v618 = vadd.f32 %v586, 1e-05
      %v619 = vadd.f32 %v587, 1e-05
      %v620 = vadd.f32 %v588, 1e-05
      %v621 = vadd.f32 %v589, 1e-05
      %v622 = vadd.f32 %v590, 1e-05
      %v623 = vadd.f32 %v591, 1e-05
      %v624 = vadd.f32 %v592, 1e-05
      %v625 = vadd.f32 %v593, 1e-05
      %v626 = vadd.f32 %v594, 1e-05
      %v627 = vadd.f32 %v595, 1e-05
      %v628 = vadd.f32 %v596, 1e-05
      %v629 = vadd.f32 %v597, 1e-05
      %v630 = vadd.f32 %v598, 1e-05
      %v631 = vadd.f32 %v599, 1e-05
      %v632 = vadd.f32 %v600, 1e-05
      %v633 = vadd.f32 %v601, 1e-05
      %v634 = vadd.f32 %v602, 1e-05
      %v635 = vadd.f32 %v603, 1e-05
      %v636 = vadd.f32 %v604, 1e-05
      %v637 = vadd.f32 %v605, 1e-05
      %v638 = vadd.f32 %v606, 1e-05
      %v639 = vadd.f32 %v607, 1e-05
      %v640 = vadd.f32 %v608, 1e-05
      %v641 = vadd.f32 %v609, 1e-05
      %v642 = vadd.f32 %v610, 1e-05
      %v643 = vadd.f32 %v611, 1e-05
      %v644 = vadd.f32 %v612, 1e-05
      %v645 = vadd.f32 %v613, 1e-05
      %v646 = vadd.f32 %v614, 1e-05
      %v647 = vadd.f32 %v615, 1e-05
      %v648 = vrsqrt.pop %v616
      %v649 = vrsqrt.pop %v617
      %v650 = vrsqrt.pop %v618
      %v651 = vrsqrt.pop %v619
      %v652 = vrsqrt.pop %v620
      %v653 = vrsqrt.pop %v621
      %v654 = vrsqrt.pop %v622
      %v655 = vrsqrt.pop %v623
      %v656 = vrsqrt.pop %v624
      %v657 = vrsqrt.pop %v625
      %v658 = vrsqrt.pop %v626
      %v659 = vrsqrt.pop %v627
      %v660 = vrsqrt.pop %v628
      %v661 = vrsqrt.pop %v629
      %v662 = vrsqrt.pop %v630
      %v663 = vrsqrt.pop %v631
      %v664 = vrsqrt.pop %v632
      %v665 = vrsqrt.pop %v633
      %v666 = vrsqrt.pop %v634
      %v667 = vrsqrt.pop %v635
      %v668 = vrsqrt.pop %v636
      %v669 = vrsqrt.pop %v637
      %v670 = vrsqrt.pop %v638
      %v671 = vrsqrt.pop %v639
      %v672 = vrsqrt.pop %v640
      %v673 = vrsqrt.pop %v641
      %v674 = vrsqrt.pop %v642
      %v675 = vrsqrt.pop %v643
      %v676 = vrsqrt.pop %v644
      %v677 = vrsqrt.pop %v645
      %v678 = vrsqrt.pop %v646
      %v679 = vrsqrt.pop %v647
      %v680 = vmul.f32 %v424, %v648
      %v681 = vmul.f32 %v425, %v649
      %v682 = vmul.f32 %v426, %v650
      %v683 = vmul.f32 %v427, %v651
      %v684 = vmul.f32 %v428, %v652
      %v685 = vmul.f32 %v429, %v653
      %v686 = vmul.f32 %v430, %v654
      %v687 = vmul.f32 %v431, %v655
      %v688 = vmul.f32 %v432, %v656
      %v689 = vmul.f32 %v433, %v657
      %v690 = vmul.f32 %v434, %v658
      %v691 = vmul.f32 %v435, %v659
      %v692 = vmul.f32 %v436, %v660
      %v693 = vmul.f32 %v437, %v661
      %v694 = vmul.f32 %v438, %v662
      %v695 = vmul.f32 %v439, %v663
      %v696 = vmul.f32 %v440, %v664
      %v697 = vmul.f32 %v441, %v665
      %v698 = vmul.f32 %v442, %v666
      %v699 = vmul.f32 %v443, %v667
      %v700 = vmul.f32 %v444, %v668
      %v701 = vmul.f32 %v445, %v669
      %v702 = vmul.f32 %v446, %v670
      %v703 = vmul.f32 %v447, %v671
      %v704 = vmul.f32 %v448, %v672
      %v705 = vmul.f32 %v449, %v673
      %v706 = vmul.f32 %v450, %v674
      %v707 = vmul.f32 %v451, %v675
      %v708 = vmul.f32 %v452, %v676
      %v709 = vmul.f32 %v453, %v677
      %v710 = vmul.f32 %v454, %v678
      %v711 = vmul.f32 %v455, %v679
      %v712 = vlaneseq
      %v713 = vshrl.u32 %v712, 7
      %v714 = vsub.s32 0, %v713
      %v715 = vrot.slane %v293, %v714
      %v716 = vmul.f32 %v680, %v715
      %v717 = vmul.f32 %v681, %v715
      %v718 = vmul.f32 %v682, %v715
      %v719 = vmul.f32 %v683, %v715
      %v720 = vmul.f32 %v684, %v715
      %v721 = vmul.f32 %v685, %v715
      %v722 = vmul.f32 %v686, %v715
      %v723 = vmul.f32 %v687, %v715
      %v724 = vmul.f32 %v688, %v715
      %v725 = vmul.f32 %v689, %v715
      %v726 = vmul.f32 %v690, %v715
      %v727 = vmul.f32 %v691, %v715
      %v728 = vmul.f32 %v692, %v715
      %v729 = vmul.f32 %v693, %v715
      %v730 = vmul.f32 %v694, %v715
      %v731 = vmul.f32 %v695, %v715
      %v732 = vmul.f32 %v696, %v715
      %v733 = vmul.f32 %v697, %v715
      %v734 = vmul.f32 %v698, %v715
      %v735 = vmul.f32 %v699, %v715
      %v736 = vmul.f32 %v700, %v715
      %v737 = vmul.f32 %v701, %v715
      %v738 = vmul.f32 %v702, %v715
      %v739 = vmul.f32 %v703, %v715
      %v740 = vmul.f32 %v704, %v715
      %v741 = vmul.f32 %v705, %v715
      %v742 = vmul.f32 %v706, %v715
      %v743 = vmul.f32 %v707, %v715
      %v744 = vmul.f32 %v708, %v715
      %v745 = vmul.f32 %v709, %v715
      %v746 = vmul.f32 %v710, %v715
      %v747 = vmul.f32 %v711, %v715
      %v748 = vlaneseq
      %v749 = vshrl.u32 %v748, 7
      %v750 = vsub.s32 1, %v749
      %v751 = vrot.slane %v293, %v750
      %v752 = vadd.f32 %v716, %v751
      %v753 = vadd.f32 %v717, %v751
      %v754 = vadd.f32 %v718, %v751
      %v755 = vadd.f32 %v719, %v751
      %v756 = vadd.f32 %v720, %v751
      %v757 = vadd.f32 %v721, %v751
      %v758 = vadd.f32 %v722, %v751
      %v759 = vadd.f32 %v723, %v751
      %v760 = vadd.f32 %v724, %v751
      %v761 = vadd.f32 %v725, %v751
      %v762 = vadd.f32 %v726, %v751
      %v763 = vadd.f32 %v727, %v751
      %v764 = vadd.f32 %v728, %v751
      %v765 = vadd.f32 %v729, %v751
      %v766 = vadd.f32 %v730, %v751
      %v767 = vadd.f32 %v731, %v751
      %v768 = vadd.f32 %v732, %v751
      %v769 = vadd.f32 %v733, %v751
      %v770 = vadd.f32 %v734, %v751
      %v771 = vadd.f32 %v735, %v751
      %v772 = vadd.f32 %v736, %v751
      %v773 = vadd.f32 %v737, %v751
      %v774 = vadd.f32 %v738, %v751
      %v775 = vadd.f32 %v739, %v751
      %v776 = vadd.f32 %v740, %v751
      %v777 = vadd.f32 %v741, %v751
      %v778 = vadd.f32 %v742, %v751
      %v779 = vadd.f32 %v743, %v751
      %v780 = vadd.f32 %v744, %v751
      %v781 = vadd.f32 %v745, %v751
      %v782 = vadd.f32 %v746, %v751
      %v783 = vadd.f32 %v747, %v751
      %v784 = vpack.c.bf16 %v753, %v752
      %v785 = vpack.c.bf16 %v755, %v754
      %v786 = vpack.c.bf16 %v757, %v756
      %v787 = vpack.c.bf16 %v759, %v758
      %v788 = vpack.c.bf16 %v761, %v760
      %v789 = vpack.c.bf16 %v763, %v762
      %v790 = vpack.c.bf16 %v765, %v764
      %v791 = vpack.c.bf16 %v767, %v766
      %v792 = vpack.c.bf16 %v769, %v768
      %v793 = vpack.c.bf16 %v771, %v770
      %v794 = vpack.c.bf16 %v773, %v772
      %v795 = vpack.c.bf16 %v775, %v774
      %v796 = vpack.c.bf16 %v777, %v776
      %v797 = vpack.c.bf16 %v779, %v778
      %v798 = vpack.c.bf16 %v781, %v780
      %v799 = vpack.c.bf16 %v783, %v782
      %v800 = vld [vmem:[%s2] sm:$0xf]
      %v801 = vld [vmem:[%s2 + $0x4] sm:$0xf]
      %v802 = vld [vmem:[%s2 + $0x8] sm:$0xf]
      %v803 = vld [vmem:[%s2 + $0xc] sm:$0xf]
      %v808 = vunpack.c.l.b16 %v800
      %v809 = vunpack.c.l.b16 %v801
      %v810 = vunpack.c.l.b16 %v802
      %v811 = vunpack.c.l.b16 %v803
      %v812 = vpack.c.b16 %v809, %v808
      %v813 = vpack.c.b16 %v811, %v810
      %v817 = vsel %vm294, %v784, 0
      %v820 = vsel %vm294, %v785, 0
      %v823 = vsel %vm294, %v786, 0
      %v826 = vsel %vm294, %v787, 0
      %v829 = vsel %vm294, %v788, 0
      %v832 = vsel %vm294, %v789, 0
      %v835 = vsel %vm294, %v790, 0
      %v838 = vsel %vm294, %v791, 0
      %v841 = vsel %vm294, %v792, 0
      %v844 = vsel %vm294, %v793, 0
      %v847 = vsel %vm294, %v794, 0
      %v850 = vsel %vm294, %v795, 0
      %v853 = vsel %vm294, %v796, 0
      %v856 = vsel %vm294, %v797, 0
      %v859 = vsel %vm294, %v798, 0
      %v862 = vsel %vm294, %v799, 0
      %864 = vmatprep.subr.bf16.mxu0 0
      %865 = vmatpush1.bf16.msra.mxu0 %v812
      %866 = vmatprep.subr.bf16.mxu0 0
      %867 = vmatpush1.bf16.msra.mxu0 %v813
      %868 = vmatprep.subr.bf16.mxu0 0
      %869 = vmatpush1.bf16.msra.mxu0 0
      %870 = vmatprep.subr.bf16.mxu0 0
      %871 = vmatpush1.bf16.msra.mxu0 0
      %872 = vmatprep.subr.bf16.mxu0 0
      %873 = vmatpush1.bf16.msra.mxu0 0
      %874 = vmatprep.subr.bf16.mxu0 0
      %875 = vmatpush1.bf16.msra.mxu0 0
      %876 = vmatprep.subr.bf16.mxu0 0
      %877 = vmatpush1.bf16.msra.mxu0 0
      %878 = vmatprep.subr.bf16.mxu0 0
      %879 = vmatpush1.bf16.msra.mxu0 0
      %880 = vmatprep.subr.bf16.mxu0 0
      %881 = vmatpush1.bf16.msra.mxu0 0
      %882 = vmatprep.subr.bf16.mxu0 0
      %883 = vmatpush1.bf16.msra.mxu0 0
      %884 = vmatprep.subr.bf16.mxu0 0
      %885 = vmatpush1.bf16.msra.mxu0 0
      %886 = vmatprep.subr.bf16.mxu0 0
      %887 = vmatpush1.bf16.msra.mxu0 0
      %888 = vmatprep.subr.bf16.mxu0 0
      %889 = vmatpush1.bf16.msra.mxu0 0
      %890 = vmatprep.subr.bf16.mxu0 0
      %891 = vmatpush1.bf16.msra.mxu0 0
      %892 = vmatprep.subr.bf16.mxu0 0
      %893 = vmatpush1.bf16.msra.mxu0 0
      %894 = vmatprep.subr.bf16.mxu0 0
      %895 = vmatpush1.bf16.msra.mxu0 0
      %896 = vmatprep.mubr.bf16.mxu0 0
      %897 = vmatmul.mubr.bf16.gmra.mrb[0].mxu0 %v817
      %v898 = vpop.f32.mrb[0].mxu0
      %v899 = vadd.f32 0.0, %v898
      %v900 = vpop.f32.mrb[0].mxu0
      %v901 = vpop.f32.mrb[0].mxu0
      %v902 = vadd.f32 0.0, %v901
      %v903 = vpop.f32.mrb[0].mxu0
      %904 = vmatprep.mubr.bf16.mxu0 0
      %905 = vmatmul.mubr.bf16.gmra.mrb[0].mxu0 %v820
      %v906 = vpop.f32.mrb[0].mxu0
      %v907 = vadd.f32 0.0, %v906
      %v908 = vpop.f32.mrb[0].mxu0
      %v909 = vpop.f32.mrb[0].mxu0
      %v910 = vadd.f32 0.0, %v909
      %v911 = vpop.f32.mrb[0].mxu0
      %912 = vmatprep.mubr.bf16.mxu0 0
      %913 = vmatmul.mubr.bf16.gmra.mrb[0].mxu0 %v823
      %v914 = vpop.f32.mrb[0].mxu0
      %v915 = vadd.f32 0.0, %v914
      %v916 = vpop.f32.mrb[0].mxu0
      %v917 = vpop.f32.mrb[0].mxu0
      %v918 = vadd.f32 0.0, %v917
      %v919 = vpop.f32.mrb[0].mxu0
      %920 = vmatprep.mubr.bf16.mxu0 0
      %921 = vmatmul.mubr.bf16.gmra.mrb[0].mxu0 %v826
      %v922 = vpop.f32.mrb[0].mxu0
      %v923 = vadd.f32 0.0, %v922
      %v924 = vpop.f32.mrb[0].mxu0
      %v925 = vpop.f32.mrb[0].mxu0
      %v926 = vadd.f32 0.0, %v925
      %v927 = vpop.f32.mrb[0].mxu0
      %928 = vmatprep.mubr.bf16.mxu0 0
      %929 = vmatmul.mubr.bf16.gmra.mrb[0].mxu0 %v829
      %v930 = vpop.f32.mrb[0].mxu0
      %v931 = vadd.f32 0.0, %v930
      %v932 = vpop.f32.mrb[0].mxu0
      %v933 = vpop.f32.mrb[0].mxu0
      %v934 = vadd.f32 0.0, %v933
      %v935 = vpop.f32.mrb[0].mxu0
      %936 = vmatprep.mubr.bf16.mxu0 0
      %937 = vmatmul.mubr.bf16.gmra.mrb[0].mxu0 %v832
      %v938 = vpop.f32.mrb[0].mxu0
      %v939 = vadd.f32 0.0, %v938
      %v940 = vpop.f32.mrb[0].mxu0
      %v941 = vpop.f32.mrb[0].mxu0
      %v942 = vadd.f32 0.0, %v941
      %v943 = vpop.f32.mrb[0].mxu0
      %944 = vmatprep.mubr.bf16.mxu0 0
      %945 = vmatmul.mubr.bf16.gmra.mrb[0].mxu0 %v835
      %v946 = vpop.f32.mrb[0].mxu0
      %v947 = vadd.f32 0.0, %v946
      %v948 = vpop.f32.mrb[0].mxu0
      %v949 = vpop.f32.mrb[0].mxu0
      %v950 = vadd.f32 0.0, %v949
      %v951 = vpop.f32.mrb[0].mxu0
      %952 = vmatprep.mubr.bf16.mxu0 0
      %953 = vmatmul.mubr.bf16.gmra.mrb[0].mxu0 %v838
      %v954 = vpop.f32.mrb[0].mxu0
      %v955 = vadd.f32 0.0, %v954
      %v956 = vpop.f32.mrb[0].mxu0
      %v957 = vpop.f32.mrb[0].mxu0
      %v958 = vadd.f32 0.0, %v957
      %v959 = vpop.f32.mrb[0].mxu0
      %960 = vmatprep.mubr.bf16.mxu0 0
      %961 = vmatmul.mubr.bf16.gmra.mrb[0].mxu0 %v841
      %v962 = vpop.f32.mrb[0].mxu0
      %v963 = vadd.f32 0.0, %v962
      %v964 = vpop.f32.mrb[0].mxu0
      %v965 = vpop.f32.mrb[0].mxu0
      %v966 = vadd.f32 0.0, %v965
      %v967 = vpop.f32.mrb[0].mxu0
      %968 = vmatprep.mubr.bf16.mxu0 0
      %969 = vmatmul.mubr.bf16.gmra.mrb[0].mxu0 %v844
      %v970 = vpop.f32.mrb[0].mxu0
      %v971 = vadd.f32 0.0, %v970
      %v972 = vpop.f32.mrb[0].mxu0
      %v973 = vpop.f32.mrb[0].mxu0
      %v974 = vadd.f32 0.0, %v973
      %v975 = vpop.f32.mrb[0].mxu0
      %976 = vmatprep.mubr.bf16.mxu0 0
      %977 = vmatmul.mubr.bf16.gmra.mrb[0].mxu0 %v847
      %v978 = vpop.f32.mrb[0].mxu0
      %v979 = vadd.f32 0.0, %v978
      %v980 = vpop.f32.mrb[0].mxu0
      %v981 = vpop.f32.mrb[0].mxu0
      %v982 = vadd.f32 0.0, %v981
      %v983 = vpop.f32.mrb[0].mxu0
      %984 = vmatprep.mubr.bf16.mxu0 0
      %985 = vmatmul.mubr.bf16.gmra.mrb[0].mxu0 %v850
      %v986 = vpop.f32.mrb[0].mxu0
      %v987 = vadd.f32 0.0, %v986
      %v988 = vpop.f32.mrb[0].mxu0
      %v989 = vpop.f32.mrb[0].mxu0
      %v990 = vadd.f32 0.0, %v989
      %v991 = vpop.f32.mrb[0].mxu0
      %992 = vmatprep.mubr.bf16.mxu0 0
      %993 = vmatmul.mubr.bf16.gmra.mrb[0].mxu0 %v853
      %v994 = vpop.f32.mrb[0].mxu0
      %v995 = vadd.f32 0.0, %v994
      %v996 = vpop.f32.mrb[0].mxu0
      %v997 = vpop.f32.mrb[0].mxu0
      %v998 = vadd.f32 0.0, %v997
      %v999 = vpop.f32.mrb[0].mxu0
      %1000 = vmatprep.mubr.bf16.mxu0 0
      %1001 = vmatmul.mubr.bf16.gmra.mrb[0].mxu0 %v856
      %v1002 = vpop.f32.mrb[0].mxu0
      %v1003 = vadd.f32 0.0, %v1002
      %v1004 = vpop.f32.mrb[0].mxu0
      %v1005 = vpop.f32.mrb[0].mxu0
      %v1006 = vadd.f32 0.0, %v1005
      %v1007 = vpop.f32.mrb[0].mxu0
      %1008 = vmatprep.mubr.bf16.mxu0 0
      %1009 = vmatmul.mubr.bf16.gmra.mrb[0].mxu0 %v859
      %v1010 = vpop.f32.mrb[0].mxu0
      %v1011 = vadd.f32 0.0, %v1010
      %v1012 = vpop.f32.mrb[0].mxu0
      %v1013 = vpop.f32.mrb[0].mxu0
      %v1014 = vadd.f32 0.0, %v1013
      %v1015 = vpop.f32.mrb[0].mxu0
      %1016 = vmatprep.mubr.bf16.mxu0 0
      %1017 = vmatmul.mubr.bf16.gmra.mrb[0].mxu0 %v862
      %v1018 = vpop.f32.mrb[0].mxu0
      %v1019 = vadd.f32 0.0, %v1018
      %v1020 = vpop.f32.mrb[0].mxu0
      %v1021 = vpop.f32.mrb[0].mxu0
      %v1022 = vadd.f32 0.0, %v1021
      %v1023 = vpop.f32.mrb[0].mxu0
      %1024 = vdwg.mxu0
      %v1025 = vpack.c.bf16 %v902, %v899
      %v1026 = vpack.c.bf16 %v910, %v907
      %v1027 = vpack.c.bf16 %v918, %v915
      %v1028 = vpack.c.bf16 %v926, %v923
      %v1029 = vpack.c.bf16 %v934, %v931
      %v1030 = vpack.c.bf16 %v942, %v939
      %v1031 = vpack.c.bf16 %v950, %v947
      %v1032 = vpack.c.bf16 %v958, %v955
      %v1033 = vpack.c.bf16 %v966, %v963
      %v1034 = vpack.c.bf16 %v974, %v971
      %v1035 = vpack.c.bf16 %v982, %v979
      %v1036 = vpack.c.bf16 %v990, %v987
      %v1037 = vpack.c.bf16 %v998, %v995
      %v1038 = vpack.c.bf16 %v1006, %v1003
      %v1039 = vpack.c.bf16 %v1014, %v1011
      %v1040 = vpack.c.bf16 %v1022, %v1019
      %1045 = vrot.lane.b32.xlu0 %v1025, 96
      %v1046 = vpop.permute.xlu0 %1045
      %1047 = vrot.lane.b32.xlu0 %v1026, 96
      %v1048 = vpop.permute.xlu0 %1047
      %1049 = vrot.lane.b32.xlu0 %v1027, 96
      %v1050 = vpop.permute.xlu0 %1049
      %1051 = vrot.lane.b32.xlu0 %v1028, 96
      %v1052 = vpop.permute.xlu0 %1051
      %vm1053 = vcmask 64512
      %v1055 = vsel %vm1053, %v1025, 0
      %v1058 = vsel %vm1053, %v1026, 0
      %v1061 = vsel %vm1053, %v1027, 0
      %v1064 = vsel %vm1053, %v1028, 0
      %v1067 = vsel %vm1053, %v1046, 0
      %v1070 = vsel %vm1053, %v1048, 0
      %v1073 = vsel %vm1053, %v1050, 0
      %v1076 = vsel %vm1053, %v1052, 0
      %1078 = vmatprep.subr.bf16.mxu0 0
      %1079 = vmatpush1.bf16.xpose.msra.mxu0 %v1067
      %1080 = vmatprep.subr.bf16.mxu0 0
      %1081 = vmatpush1.bf16.xpose.msra.mxu0 %v1070
      %1082 = vmatprep.subr.bf16.mxu0 0
      %1083 = vmatpush1.bf16.xpose.msra.mxu0 %v1073
      %1084 = vmatprep.subr.bf16.mxu0 0
      %1085 = vmatpush1.bf16.xpose.msra.mxu0 %v1076
      %1086 = vmatprep.subr.bf16.mxu0 0
      %1087 = vmatpush1.bf16.xpose.msra.mxu0 0
      %1088 = vmatprep.subr.bf16.mxu0 0
      %1089 = vmatpush1.bf16.xpose.msra.mxu0 0
      %1090 = vmatprep.subr.bf16.mxu0 0
      %1091 = vmatpush1.bf16.xpose.msra.mxu0 0
      %1092 = vmatprep.subr.bf16.mxu0 0
      %1093 = vmatpush1.bf16.xpose.msra.mxu0 0
      %1094 = vmatprep.subr.bf16.mxu0 0
      %1095 = vmatpush1.bf16.xpose.msra.mxu0 0
      %1096 = vmatprep.subr.bf16.mxu0 0
      %1097 = vmatpush1.bf16.xpose.msra.mxu0 0
      %1098 = vmatprep.subr.bf16.mxu0 0
      %1099 = vmatpush1.bf16.xpose.msra.mxu0 0
      %1100 = vmatprep.subr.bf16.mxu0 0
      %1101 = vmatpush1.bf16.xpose.msra.mxu0 0
      %1102 = vmatprep.subr.bf16.mxu0 0
      %1103 = vmatpush1.bf16.xpose.msra.mxu0 0
      %1104 = vmatprep.subr.bf16.mxu0 0
      %1105 = vmatpush1.bf16.xpose.msra.mxu0 0
      %1106 = vmatprep.subr.bf16.mxu0 0
      %1107 = vmatpush1.bf16.xpose.msra.mxu0 0
      %1108 = vmatprep.subr.bf16.mxu0 0
      %1109 = vmatpush1.bf16.xpose.msra.mxu0 0
      %1110 = vmatprep.mubr.bf16.mxu0 0
      %1111 = vmatmul.mubr.bf16.gmra.mrb[0].mxu0 %v1055
      %v1112 = vpop.f32.mrb[0].mxu0
      %v1113 = vadd.f32 0.0, %v1112
      %v1114 = vpop.f32.mrb[0].mxu0
      %v1115 = vpop.f32.mrb[0].mxu0
      %v1116 = vadd.f32 0.0, %v1115
      %v1117 = vpop.f32.mrb[0].mxu0
      %1118 = vmatprep.mubr.bf16.mxu0 0
      %1119 = vmatmul.mubr.bf16.gmra.mrb[0].mxu0 %v1058
      %v1120 = vpop.f32.mrb[0].mxu0
      %v1121 = vadd.f32 0.0, %v1120
      %v1122 = vpop.f32.mrb[0].mxu0
      %v1123 = vpop.f32.mrb[0].mxu0
      %v1124 = vadd.f32 0.0, %v1123
      %v1125 = vpop.f32.mrb[0].mxu0
      %1126 = vmatprep.mubr.bf16.mxu0 0
      %1127 = vmatmul.mubr.bf16.gmra.mrb[0].mxu0 %v1061
      %v1128 = vpop.f32.mrb[0].mxu0
      %v1129 = vadd.f32 0.0, %v1128
      %v1130 = vpop.f32.mrb[0].mxu0
      %v1131 = vpop.f32.mrb[0].mxu0
      %v1132 = vadd.f32 0.0, %v1131
      %v1133 = vpop.f32.mrb[0].mxu0
      %1134 = vmatprep.mubr.bf16.mxu0 0
      %1135 = vmatmul.mubr.bf16.gmra.mrb[0].mxu0 %v1064
      %v1136 = vpop.f32.mrb[0].mxu0
      %v1137 = vadd.f32 0.0, %v1136
      %v1138 = vpop.f32.mrb[0].mxu0
      %v1139 = vpop.f32.mrb[0].mxu0
      %v1140 = vadd.f32 0.0, %v1139
      %v1141 = vpop.f32.mrb[0].mxu0
      %1142 = vdwg.mxu0
      %1147 = vrot.lane.b32.xlu0 %v1029, 96
      %v1148 = vpop.permute.xlu0 %1147
      %1149 = vrot.lane.b32.xlu0 %v1030, 96
      %v1150 = vpop.permute.xlu0 %1149
      %1151 = vrot.lane.b32.xlu0 %v1031, 96
      %v1152 = vpop.permute.xlu0 %1151
      %1153 = vrot.lane.b32.xlu0 %v1032, 96
      %v1154 = vpop.permute.xlu0 %1153
      %v1156 = vsel %vm1053, %v1029, 0
      %v1159 = vsel %vm1053, %v1030, 0
      %v1162 = vsel %vm1053, %v1031, 0
      %v1165 = vsel %vm1053, %v1032, 0
      %v1168 = vsel %vm1053, %v1148, 0
      %v1171 = vsel %vm1053, %v1150, 0
      %v1174 = vsel %vm1053, %v1152, 0
      %v1177 = vsel %vm1053, %v1154, 0
      %1179 = vmatprep.subr.bf16.mxu0 0
      %1180 = vmatpush1.bf16.xpose.msra.mxu0 %v1168
      %1181 = vmatprep.subr.bf16.mxu0 0
      %1182 = vmatpush1.bf16.xpose.msra.mxu0 %v1171
      %1183 = vmatprep.subr.bf16.mxu0 0
      %1184 = vmatpush1.bf16.xpose.msra.mxu0 %v1174
      %1185 = vmatprep.subr.bf16.mxu0 0
      %1186 = vmatpush1.bf16.xpose.msra.mxu0 %v1177
      %1187 = vmatprep.subr.bf16.mxu0 0
      %1188 = vmatpush1.bf16.xpose.msra.mxu0 0
      %1189 = vmatprep.subr.bf16.mxu0 0
      %1190 = vmatpush1.bf16.xpose.msra.mxu0 0
      %1191 = vmatprep.subr.bf16.mxu0 0
      %1192 = vmatpush1.bf16.xpose.msra.mxu0 0
      %1193 = vmatprep.subr.bf16.mxu0 0
      %1194 = vmatpush1.bf16.xpose.msra.mxu0 0
      %1195 = vmatprep.subr.bf16.mxu0 0
      %1196 = vmatpush1.bf16.xpose.msra.mxu0 0
      %1197 = vmatprep.subr.bf16.mxu0 0
      %1198 = vmatpush1.bf16.xpose.msra.mxu0 0
      %1199 = vmatprep.subr.bf16.mxu0 0
      %1200 = vmatpush1.bf16.xpose.msra.mxu0 0
      %1201 = vmatprep.subr.bf16.mxu0 0
      %1202 = vmatpush1.bf16.xpose.msra.mxu0 0
      %1203 = vmatprep.subr.bf16.mxu0 0
      %1204 = vmatpush1.bf16.xpose.msra.mxu0 0
      %1205 = vmatprep.subr.bf16.mxu0 0
      %1206 = vmatpush1.bf16.xpose.msra.mxu0 0
      %1207 = vmatprep.subr.bf16.mxu0 0
      %1208 = vmatpush1.bf16.xpose.msra.mxu0 0
      %1209 = vmatprep.subr.bf16.mxu0 0
      %1210 = vmatpush1.bf16.xpose.msra.mxu0 0
      %1211 = vmatprep.mubr.bf16.mxu0 0
      %1212 = vmatmul.mubr.bf16.gmra.mrb[0].mxu0 %v1156
      %v1213 = vpop.f32.mrb[0].mxu0
      %v1214 = vadd.f32 0.0, %v1213
      %v1215 = vpop.f32.mrb[0].mxu0
      %v1216 = vpop.f32.mrb[0].mxu0
      %v1217 = vadd.f32 0.0, %v1216
      %v1218 = vpop.f32.mrb[0].mxu0
      %1219 = vmatprep.mubr.bf16.mxu0 0
      %1220 = vmatmul.mubr.bf16.gmra.mrb[0].mxu0 %v1159
      %v1221 = vpop.f32.mrb[0].mxu0
      %v1222 = vadd.f32 0.0, %v1221
      %v1223 = vpop.f32.mrb[0].mxu0
      %v1224 = vpop.f32.mrb[0].mxu0
      %v1225 = vadd.f32 0.0, %v1224
      %v1226 = vpop.f32.mrb[0].mxu0
      %1227 = vmatprep.mubr.bf16.mxu0 0
      %1228 = vmatmul.mubr.bf16.gmra.mrb[0].mxu0 %v1162
      %v1229 = vpop.f32.mrb[0].mxu0
      %v1230 = vadd.f32 0.0, %v1229
      %v1231 = vpop.f32.mrb[0].mxu0
      %v1232 = vpop.f32.mrb[0].mxu0
      %v1233 = vadd.f32 0.0, %v1232
      %v1234 = vpop.f32.mrb[0].mxu0
      %1235 = vmatprep.mubr.bf16.mxu0 0
      %1236 = vmatmul.mubr.bf16.gmra.mrb[0].mxu0 %v1165
      %v1237 = vpop.f32.mrb[0].mxu0
      %v1238 = vadd.f32 0.0, %v1237
      %v1239 = vpop.f32.mrb[0].mxu0
      %v1240 = vpop.f32.mrb[0].mxu0
      %v1241 = vadd.f32 0.0, %v1240
      %v1242 = vpop.f32.mrb[0].mxu0
      %1243 = vdwg.mxu0
      %1248 = vrot.lane.b32.xlu0 %v1033, 96
      %v1249 = vpop.permute.xlu0 %1248
      %1250 = vrot.lane.b32.xlu0 %v1034, 96
      %v1251 = vpop.permute.xlu0 %1250
      %1252 = vrot.lane.b32.xlu0 %v1035, 96
      %v1253 = vpop.permute.xlu0 %1252
      %1254 = vrot.lane.b32.xlu0 %v1036, 96
      %v1255 = vpop.permute.xlu0 %1254
      %v1257 = vsel %vm1053, %v1033, 0
      %v1260 = vsel %vm1053, %v1034, 0
      %v1263 = vsel %vm1053, %v1035, 0
      %v1266 = vsel %vm1053, %v1036, 0
      %v1269 = vsel %vm1053, %v1249, 0
      %v1272 = vsel %vm1053, %v1251, 0
      %v1275 = vsel %vm1053, %v1253, 0
      %v1278 = vsel %vm1053, %v1255, 0
      %1280 = vmatprep.subr.bf16.mxu0 0
      %1281 = vmatpush1.bf16.xpose.msra.mxu0 %v1269
      %1282 = vmatprep.subr.bf16.mxu0 0
      %1283 = vmatpush1.bf16.xpose.msra.mxu0 %v1272
      %1284 = vmatprep.subr.bf16.mxu0 0
      %1285 = vmatpush1.bf16.xpose.msra.mxu0 %v1275
      %1286 = vmatprep.subr.bf16.mxu0 0
      %1287 = vmatpush1.bf16.xpose.msra.mxu0 %v1278
      %1288 = vmatprep.subr.bf16.mxu0 0
      %1289 = vmatpush1.bf16.xpose.msra.mxu0 0
      %1290 = vmatprep.subr.bf16.mxu0 0
      %1291 = vmatpush1.bf16.xpose.msra.mxu0 0
      %1292 = vmatprep.subr.bf16.mxu0 0
      %1293 = vmatpush1.bf16.xpose.msra.mxu0 0
      %1294 = vmatprep.subr.bf16.mxu0 0
      %1295 = vmatpush1.bf16.xpose.msra.mxu0 0
      %1296 = vmatprep.subr.bf16.mxu0 0
      %1297 = vmatpush1.bf16.xpose.msra.mxu0 0
      %1298 = vmatprep.subr.bf16.mxu0 0
      %1299 = vmatpush1.bf16.xpose.msra.mxu0 0
      %1300 = vmatprep.subr.bf16.mxu0 0
      %1301 = vmatpush1.bf16.xpose.msra.mxu0 0
      %1302 = vmatprep.subr.bf16.mxu0 0
      %1303 = vmatpush1.bf16.xpose.msra.mxu0 0
      %1304 = vmatprep.subr.bf16.mxu0 0
      %1305 = vmatpush1.bf16.xpose.msra.mxu0 0
      %1306 = vmatprep.subr.bf16.mxu0 0
      %1307 = vmatpush1.bf16.xpose.msra.mxu0 0
      %1308 = vmatprep.subr.bf16.mxu0 0
      %1309 = vmatpush1.bf16.xpose.msra.mxu0 0
      %1310 = vmatprep.subr.bf16.mxu0 0
      %1311 = vmatpush1.bf16.xpose.msra.mxu0 0
      %1312 = vmatprep.mubr.bf16.mxu0 0
      %1313 = vmatmul.mubr.bf16.gmra.mrb[0].mxu0 %v1257
      %v1314 = vpop.f32.mrb[0].mxu0
      %v1315 = vadd.f32 0.0, %v1314
      %v1316 = vpop.f32.mrb[0].mxu0
      %v1317 = vpop.f32.mrb[0].mxu0
      %v1318 = vadd.f32 0.0, %v1317
      %v1319 = vpop.f32.mrb[0].mxu0
      %1320 = vmatprep.mubr.bf16.mxu0 0
      %1321 = vmatmul.mubr.bf16.gmra.mrb[0].mxu0 %v1260
      %v1322 = vpop.f32.mrb[0].mxu0
      %v1323 = vadd.f32 0.0, %v1322
      %v1324 = vpop.f32.mrb[0].mxu0
      %v1325 = vpop.f32.mrb[0].mxu0
      %v1326 = vadd.f32 0.0, %v1325
      %v1327 = vpop.f32.mrb[0].mxu0
      %1328 = vmatprep.mubr.bf16.mxu0 0
      %1329 = vmatmul.mubr.bf16.gmra.mrb[0].mxu0 %v1263
      %v1330 = vpop.f32.mrb[0].mxu0
      %v1331 = vadd.f32 0.0, %v1330
      %v1332 = vpop.f32.mrb[0].mxu0
      %v1333 = vpop.f32.mrb[0].mxu0
      %v1334 = vadd.f32 0.0, %v1333
      %v1335 = vpop.f32.mrb[0].mxu0
      %1336 = vmatprep.mubr.bf16.mxu0 0
      %1337 = vmatmul.mubr.bf16.gmra.mrb[0].mxu0 %v1266
      %v1338 = vpop.f32.mrb[0].mxu0
      %v1339 = vadd.f32 0.0, %v1338
      %v1340 = vpop.f32.mrb[0].mxu0
      %v1341 = vpop.f32.mrb[0].mxu0
      %v1342 = vadd.f32 0.0, %v1341
      %v1343 = vpop.f32.mrb[0].mxu0
      %1344 = vdwg.mxu0
      %1349 = vrot.lane.b32.xlu0 %v1037, 96
      %v1350 = vpop.permute.xlu0 %1349
      %1351 = vrot.lane.b32.xlu0 %v1038, 96
      %v1352 = vpop.permute.xlu0 %1351
      %1353 = vrot.lane.b32.xlu0 %v1039, 96
      %v1354 = vpop.permute.xlu0 %1353
      %1355 = vrot.lane.b32.xlu0 %v1040, 96
      %v1356 = vpop.permute.xlu0 %1355
      %v1358 = vsel %vm1053, %v1037, 0
      %v1361 = vsel %vm1053, %v1038, 0
      %v1364 = vsel %vm1053, %v1039, 0
      %v1367 = vsel %vm1053, %v1040, 0
      %v1370 = vsel %vm1053, %v1350, 0
      %v1373 = vsel %vm1053, %v1352, 0
      %v1376 = vsel %vm1053, %v1354, 0
      %v1379 = vsel %vm1053, %v1356, 0
      %1381 = vmatprep.subr.bf16.mxu0 0
      %1382 = vmatpush1.bf16.xpose.msra.mxu0 %v1370
      %1383 = vmatprep.subr.bf16.mxu0 0
      %1384 = vmatpush1.bf16.xpose.msra.mxu0 %v1373
      %1385 = vmatprep.subr.bf16.mxu0 0
      %1386 = vmatpush1.bf16.xpose.msra.mxu0 %v1376
      %1387 = vmatprep.subr.bf16.mxu0 0
      %1388 = vmatpush1.bf16.xpose.msra.mxu0 %v1379
      %1389 = vmatprep.subr.bf16.mxu0 0
      %1390 = vmatpush1.bf16.xpose.msra.mxu0 0
      %1391 = vmatprep.subr.bf16.mxu0 0
      %1392 = vmatpush1.bf16.xpose.msra.mxu0 0
      %1393 = vmatprep.subr.bf16.mxu0 0
      %1394 = vmatpush1.bf16.xpose.msra.mxu0 0
      %1395 = vmatprep.subr.bf16.mxu0 0
      %1396 = vmatpush1.bf16.xpose.msra.mxu0 0
      %1397 = vmatprep.subr.bf16.mxu0 0
      %1398 = vmatpush1.bf16.xpose.msra.mxu0 0
      %1399 = vmatprep.subr.bf16.mxu0 0
      %1400 = vmatpush1.bf16.xpose.msra.mxu0 0
      %1401 = vmatprep.subr.bf16.mxu0 0
      %1402 = vmatpush1.bf16.xpose.msra.mxu0 0
      %1403 = vmatprep.subr.bf16.mxu0 0
      %1404 = vmatpush1.bf16.xpose.msra.mxu0 0
      %1405 = vmatprep.subr.bf16.mxu0 0
      %1406 = vmatpush1.bf16.xpose.msra.mxu0 0
      %1407 = vmatprep.subr.bf16.mxu0 0
      %1408 = vmatpush1.bf16.xpose.msra.mxu0 0
      %1409 = vmatprep.subr.bf16.mxu0 0
      %1410 = vmatpush1.bf16.xpose.msra.mxu0 0
      %1411 = vmatprep.subr.bf16.mxu0 0
      %1412 = vmatpush1.bf16.xpose.msra.mxu0 0
      %1413 = vmatprep.mubr.bf16.mxu0 0
      %1414 = vmatmul.mubr.bf16.gmra.mrb[0].mxu0 %v1358
      %v1415 = vpop.f32.mrb[0].mxu0
      %v1416 = vadd.f32 0.0, %v1415
      %v1417 = vpop.f32.mrb[0].mxu0
      %v1418 = vpop.f32.mrb[0].mxu0
      %v1419 = vadd.f32 0.0, %v1418
      %v1420 = vpop.f32.mrb[0].mxu0
      %1421 = vmatprep.mubr.bf16.mxu0 0
      %1422 = vmatmul.mubr.bf16.gmra.mrb[0].mxu0 %v1361
      %v1423 = vpop.f32.mrb[0].mxu0
      %v1424 = vadd.f32 0.0, %v1423
      %v1425 = vpop.f32.mrb[0].mxu0
      %v1426 = vpop.f32.mrb[0].mxu0
      %v1427 = vadd.f32 0.0, %v1426
      %v1428 = vpop.f32.mrb[0].mxu0
      %1429 = vmatprep.mubr.bf16.mxu0 0
      %1430 = vmatmul.mubr.bf16.gmra.mrb[0].mxu0 %v1364
      %v1431 = vpop.f32.mrb[0].mxu0
      %v1432 = vadd.f32 0.0, %v1431
      %v1433 = vpop.f32.mrb[0].mxu0
      %v1434 = vpop.f32.mrb[0].mxu0
      %v1435 = vadd.f32 0.0, %v1434
      %v1436 = vpop.f32.mrb[0].mxu0
      %1437 = vmatprep.mubr.bf16.mxu0 0
      %1438 = vmatmul.mubr.bf16.gmra.mrb[0].mxu0 %v1367
      %v1439 = vpop.f32.mrb[0].mxu0
      %v1440 = vadd.f32 0.0, %v1439
      %v1441 = vpop.f32.mrb[0].mxu0
      %v1442 = vpop.f32.mrb[0].mxu0
      %v1443 = vadd.f32 0.0, %v1442
      %v1444 = vpop.f32.mrb[0].mxu0
      %1445 = vdwg.mxu0
      %v1446 = vmul.f32 %v1113, 0.35355338
      %v1447 = vmul.f32 %v1116, 0.35355338
      %v1448 = vmul.f32 %v1121, 0.35355338
      %v1449 = vmul.f32 %v1124, 0.35355338
      %v1450 = vmul.f32 %v1129, 0.35355338
      %v1451 = vmul.f32 %v1132, 0.35355338
      %v1452 = vmul.f32 %v1137, 0.35355338
      %v1453 = vmul.f32 %v1140, 0.35355338
      %v1454 = vmul.f32 %v1214, 0.35355338
      %v1455 = vmul.f32 %v1217, 0.35355338
      %v1456 = vmul.f32 %v1222, 0.35355338
      %v1457 = vmul.f32 %v1225, 0.35355338
      %v1458 = vmul.f32 %v1230, 0.35355338
      %v1459 = vmul.f32 %v1233, 0.35355338
      %v1460 = vmul.f32 %v1238, 0.35355338
      %v1461 = vmul.f32 %v1241, 0.35355338
      %v1462 = vmul.f32 %v1315, 0.35355338
      %v1463 = vmul.f32 %v1318, 0.35355338
      %v1464 = vmul.f32 %v1323, 0.35355338
      %v1465 = vmul.f32 %v1326, 0.35355338
      %v1466 = vmul.f32 %v1331, 0.35355338
      %v1467 = vmul.f32 %v1334, 0.35355338
      %v1468 = vmul.f32 %v1339, 0.35355338
      %v1469 = vmul.f32 %v1342, 0.35355338
      %v1470 = vmul.f32 %v1416, 0.35355338
      %v1471 = vmul.f32 %v1419, 0.35355338
      %v1472 = vmul.f32 %v1424, 0.35355338
      %v1473 = vmul.f32 %v1427, 0.35355338
      %v1474 = vmul.f32 %v1432, 0.35355338
      %v1475 = vmul.f32 %v1435, 0.35355338
      %v1476 = vmul.f32 %v1440, 0.35355338
      %v1477 = vmul.f32 %v1443, 0.35355338
      %vm1478 = vcmask 523264
      %v1479 = vsel %vm1478, %v1446, -inf
      %1480 = vmax.xlane.f32.xlu0 %v1479
      %v1481 = vpop.xlane.xlu0 %1480
      %v1482 = vsel %vm1478, %v1447, -inf
      %1483 = vmax.xlane.f32.xlu0 %v1482
      %v1484 = vpop.xlane.xlu0 %1483
      %v1485 = vsel %vm1478, %v1448, -inf
      %1486 = vmax.xlane.f32.xlu0 %v1485
      %v1487 = vpop.xlane.xlu0 %1486
      %v1488 = vsel %vm1478, %v1449, -inf
      %1489 = vmax.xlane.f32.xlu0 %v1488
      %v1490 = vpop.xlane.xlu0 %1489
      %v1491 = vsel %vm1478, %v1450, -inf
      %1492 = vmax.xlane.f32.xlu0 %v1491
      %v1493 = vpop.xlane.xlu0 %1492
      %v1494 = vsel %vm1478, %v1451, -inf
      %1495 = vmax.xlane.f32.xlu0 %v1494
      %v1496 = vpop.xlane.xlu0 %1495
      %v1497 = vsel %vm1478, %v1452, -inf
      %1498 = vmax.xlane.f32.xlu0 %v1497
      %v1499 = vpop.xlane.xlu0 %1498
      %v1500 = vsel %vm1478, %v1453, -inf
      %1501 = vmax.xlane.f32.xlu0 %v1500
      %v1502 = vpop.xlane.xlu0 %1501
      %v1503 = vsel %vm1478, %v1454, -inf
      %1504 = vmax.xlane.f32.xlu0 %v1503
      %v1505 = vpop.xlane.xlu0 %1504
      %v1506 = vsel %vm1478, %v1455, -inf
      %1507 = vmax.xlane.f32.xlu0 %v1506
      %v1508 = vpop.xlane.xlu0 %1507
      %v1509 = vsel %vm1478, %v1456, -inf
      %1510 = vmax.xlane.f32.xlu0 %v1509
      %v1511 = vpop.xlane.xlu0 %1510
      %v1512 = vsel %vm1478, %v1457, -inf
      %1513 = vmax.xlane.f32.xlu0 %v1512
      %v1514 = vpop.xlane.xlu0 %1513
      %v1515 = vsel %vm1478, %v1458, -inf
      %1516 = vmax.xlane.f32.xlu0 %v1515
      %v1517 = vpop.xlane.xlu0 %1516
      %v1518 = vsel %vm1478, %v1459, -inf
      %1519 = vmax.xlane.f32.xlu0 %v1518
      %v1520 = vpop.xlane.xlu0 %1519
      %v1521 = vsel %vm1478, %v1460, -inf
      %1522 = vmax.xlane.f32.xlu0 %v1521
      %v1523 = vpop.xlane.xlu0 %1522
      %v1524 = vsel %vm1478, %v1461, -inf
      %1525 = vmax.xlane.f32.xlu0 %v1524
      %v1526 = vpop.xlane.xlu0 %1525
      %v1527 = vsel %vm1478, %v1462, -inf
      %1528 = vmax.xlane.f32.xlu0 %v1527
      %v1529 = vpop.xlane.xlu0 %1528
      %v1530 = vsel %vm1478, %v1463, -inf
      %1531 = vmax.xlane.f32.xlu0 %v1530
      %v1532 = vpop.xlane.xlu0 %1531
      %v1533 = vsel %vm1478, %v1464, -inf
      %1534 = vmax.xlane.f32.xlu0 %v1533
      %v1535 = vpop.xlane.xlu0 %1534
      %v1536 = vsel %vm1478, %v1465, -inf
      %1537 = vmax.xlane.f32.xlu0 %v1536
      %v1538 = vpop.xlane.xlu0 %1537
      %v1539 = vsel %vm1478, %v1466, -inf
      %1540 = vmax.xlane.f32.xlu0 %v1539
      %v1541 = vpop.xlane.xlu0 %1540
      %v1542 = vsel %vm1478, %v1467, -inf
      %1543 = vmax.xlane.f32.xlu0 %v1542
      %v1544 = vpop.xlane.xlu0 %1543
      %v1545 = vsel %vm1478, %v1468, -inf
      %1546 = vmax.xlane.f32.xlu0 %v1545
      %v1547 = vpop.xlane.xlu0 %1546
      %v1548 = vsel %vm1478, %v1469, -inf
      %1549 = vmax.xlane.f32.xlu0 %v1548
      %v1550 = vpop.xlane.xlu0 %1549
      %v1551 = vsel %vm1478, %v1470, -inf
      %1552 = vmax.xlane.f32.xlu0 %v1551
      %v1553 = vpop.xlane.xlu0 %1552
      %v1554 = vsel %vm1478, %v1471, -inf
      %1555 = vmax.xlane.f32.xlu0 %v1554
      %v1556 = vpop.xlane.xlu0 %1555
      %v1557 = vsel %vm1478, %v1472, -inf
      %1558 = vmax.xlane.f32.xlu0 %v1557
      %v1559 = vpop.xlane.xlu0 %1558
      %v1560 = vsel %vm1478, %v1473, -inf
      %1561 = vmax.xlane.f32.xlu0 %v1560
      %v1562 = vpop.xlane.xlu0 %1561
      %v1563 = vsel %vm1478, %v1474, -inf
      %1564 = vmax.xlane.f32.xlu0 %v1563
      %v1565 = vpop.xlane.xlu0 %1564
      %v1566 = vsel %vm1478, %v1475, -inf
      %1567 = vmax.xlane.f32.xlu0 %v1566
      %v1568 = vpop.xlane.xlu0 %1567
      %v1569 = vsel %vm1478, %v1476, -inf
      %1570 = vmax.xlane.f32.xlu0 %v1569
      %v1571 = vpop.xlane.xlu0 %1570
      %v1572 = vsel %vm1478, %v1477, -inf
      %1573 = vmax.xlane.f32.xlu0 %v1572
      %v1574 = vpop.xlane.xlu0 %1573
      %v1575 = vsub.f32 %v1446, %v1481
      %v1576 = vsub.f32 %v1447, %v1484
      %v1577 = vsub.f32 %v1448, %v1487
      %v1578 = vsub.f32 %v1449, %v1490
      %v1579 = vsub.f32 %v1450, %v1493
      %v1580 = vsub.f32 %v1451, %v1496
      %v1581 = vsub.f32 %v1452, %v1499
      %v1582 = vsub.f32 %v1453, %v1502
      %v1583 = vsub.f32 %v1454, %v1505
      %v1584 = vsub.f32 %v1455, %v1508
      %v1585 = vsub.f32 %v1456, %v1511
      %v1586 = vsub.f32 %v1457, %v1514
      %v1587 = vsub.f32 %v1458, %v1517
      %v1588 = vsub.f32 %v1459, %v1520
      %v1589 = vsub.f32 %v1460, %v1523
      %v1590 = vsub.f32 %v1461, %v1526
      %v1591 = vsub.f32 %v1462, %v1529
      %v1592 = vsub.f32 %v1463, %v1532
      %v1593 = vsub.f32 %v1464, %v1535
      %v1594 = vsub.f32 %v1465, %v1538
      %v1595 = vsub.f32 %v1466, %v1541
      %v1596 = vsub.f32 %v1467, %v1544
      %v1597 = vsub.f32 %v1468, %v1547
      %v1598 = vsub.f32 %v1469, %v1550
      %v1599 = vsub.f32 %v1470, %v1553
      %v1600 = vsub.f32 %v1471, %v1556
      %v1601 = vsub.f32 %v1472, %v1559
      %v1602 = vsub.f32 %v1473, %v1562
      %v1603 = vsub.f32 %v1474, %v1565
      %v1604 = vsub.f32 %v1475, %v1568
      %v1605 = vsub.f32 %v1476, %v1571
      %v1606 = vsub.f32 %v1477, %v1574
      %v1607 = vmul.f32 %v1575, 1.442695
      %v1608 = vpow.pop %v1607
      %v1609 = vmul.f32 %v1576, 1.442695
      %v1610 = vpow.pop %v1609
      %v1611 = vmul.f32 %v1577, 1.442695
      %v1612 = vpow.pop %v1611
      %v1613 = vmul.f32 %v1578, 1.442695
      %v1614 = vpow.pop %v1613
      %v1615 = vmul.f32 %v1579, 1.442695
      %v1616 = vpow.pop %v1615
      %v1617 = vmul.f32 %v1580, 1.442695
      %v1618 = vpow.pop %v1617
      %v1619 = vmul.f32 %v1581, 1.442695
      %v1620 = vpow.pop %v1619
      %v1621 = vmul.f32 %v1582, 1.442695
      %v1622 = vpow.pop %v1621
      %v1623 = vmul.f32 %v1583, 1.442695
      %v1624 = vpow.pop %v1623
      %v1625 = vmul.f32 %v1584, 1.442695
      %v1626 = vpow.pop %v1625
      %v1627 = vmul.f32 %v1585, 1.442695
      %v1628 = vpow.pop %v1627
      %v1629 = vmul.f32 %v1586, 1.442695
      %v1630 = vpow.pop %v1629
      %v1631 = vmul.f32 %v1587, 1.442695
      %v1632 = vpow.pop %v1631
      %v1633 = vmul.f32 %v1588, 1.442695
      %v1634 = vpow.pop %v1633
      %v1635 = vmul.f32 %v1589, 1.442695
      %v1636 = vpow.pop %v1635
      %v1637 = vmul.f32 %v1590, 1.442695
      %v1638 = vpow.pop %v1637
      %v1639 = vmul.f32 %v1591, 1.442695
      %v1640 = vpow.pop %v1639
      %v1641 = vmul.f32 %v1592, 1.442695
      %v1642 = vpow.pop %v1641
      %v1643 = vmul.f32 %v1593, 1.442695
      %v1644 = vpow.pop %v1643
      %v1645 = vmul.f32 %v1594, 1.442695
      %v1646 = vpow.pop %v1645
      %v1647 = vmul.f32 %v1595, 1.442695
      %v1648 = vpow.pop %v1647
      %v1649 = vmul.f32 %v1596, 1.442695
      %v1650 = vpow.pop %v1649
      %v1651 = vmul.f32 %v1597, 1.442695
      %v1652 = vpow.pop %v1651
      %v1653 = vmul.f32 %v1598, 1.442695
      %v1654 = vpow.pop %v1653
      %v1655 = vmul.f32 %v1599, 1.442695
      %v1656 = vpow.pop %v1655
      %v1657 = vmul.f32 %v1600, 1.442695
      %v1658 = vpow.pop %v1657
      %v1659 = vmul.f32 %v1601, 1.442695
      %v1660 = vpow.pop %v1659
      %v1661 = vmul.f32 %v1602, 1.442695
      %v1662 = vpow.pop %v1661
      %v1663 = vmul.f32 %v1603, 1.442695
      %v1664 = vpow.pop %v1663
      %v1665 = vmul.f32 %v1604, 1.442695
      %v1666 = vpow.pop %v1665
      %v1667 = vmul.f32 %v1605, 1.442695
      %v1668 = vpow.pop %v1667
      %v1669 = vmul.f32 %v1606, 1.442695
      %v1670 = vpow.pop %v1669
      %v1671 = vsel %vm1478, %v1608, 0.0
      %1672 = vadd.xlane.f32.xlu0 %v1671
      %v1673 = vpop.xlane.xlu0 %1672
      %v1674 = vsel %vm1478, %v1610, 0.0
      %1675 = vadd.xlane.f32.xlu0 %v1674
      %v1676 = vpop.xlane.xlu0 %1675
      %v1677 = vsel %vm1478, %v1612, 0.0
      %1678 = vadd.xlane.f32.xlu0 %v1677
      %v1679 = vpop.xlane.xlu0 %1678
      %v1680 = vsel %vm1478, %v1614, 0.0
      %1681 = vadd.xlane.f32.xlu0 %v1680
      %v1682 = vpop.xlane.xlu0 %1681
      %v1683 = vsel %vm1478, %v1616, 0.0
      %1684 = vadd.xlane.f32.xlu0 %v1683
      %v1685 = vpop.xlane.xlu0 %1684
      %v1686 = vsel %vm1478, %v1618, 0.0
      %1687 = vadd.xlane.f32.xlu0 %v1686
      %v1688 = vpop.xlane.xlu0 %1687
      %v1689 = vsel %vm1478, %v1620, 0.0
      %1690 = vadd.xlane.f32.xlu0 %v1689
      %v1691 = vpop.xlane.xlu0 %1690
      %v1692 = vsel %vm1478, %v1622, 0.0
      %1693 = vadd.xlane.f32.xlu0 %v1692
      %v1694 = vpop.xlane.xlu0 %1693
      %v1695 = vsel %vm1478, %v1624, 0.0
      %1696 = vadd.xlane.f32.xlu0 %v1695
      %v1697 = vpop.xlane.xlu0 %1696
      %v1698 = vsel %vm1478, %v1626, 0.0
      %1699 = vadd.xlane.f32.xlu0 %v1698
      %v1700 = vpop.xlane.xlu0 %1699
      %v1701 = vsel %vm1478, %v1628, 0.0
      %1702 = vadd.xlane.f32.xlu0 %v1701
      %v1703 = vpop.xlane.xlu0 %1702
      %v1704 = vsel %vm1478, %v1630, 0.0
      %1705 = vadd.xlane.f32.xlu0 %v1704
      %v1706 = vpop.xlane.xlu0 %1705
      %v1707 = vsel %vm1478, %v1632, 0.0
      %1708 = vadd.xlane.f32.xlu0 %v1707
      %v1709 = vpop.xlane.xlu0 %1708
      %v1710 = vsel %vm1478, %v1634, 0.0
      %1711 = vadd.xlane.f32.xlu0 %v1710
      %v1712 = vpop.xlane.xlu0 %1711
      %v1713 = vsel %vm1478, %v1636, 0.0
      %1714 = vadd.xlane.f32.xlu0 %v1713
      %v1715 = vpop.xlane.xlu0 %1714
      %v1716 = vsel %vm1478, %v1638, 0.0
      %1717 = vadd.xlane.f32.xlu0 %v1716
      %v1718 = vpop.xlane.xlu0 %1717
      %v1719 = vsel %vm1478, %v1640, 0.0
      %1720 = vadd.xlane.f32.xlu0 %v1719
      %v1721 = vpop.xlane.xlu0 %1720
      %v1722 = vsel %vm1478, %v1642, 0.0
      %1723 = vadd.xlane.f32.xlu0 %v1722
      %v1724 = vpop.xlane.xlu0 %1723
      %v1725 = vsel %vm1478, %v1644, 0.0
      %1726 = vadd.xlane.f32.xlu0 %v1725
      %v1727 = vpop.xlane.xlu0 %1726
      %v1728 = vsel %vm1478, %v1646, 0.0
      %1729 = vadd.xlane.f32.xlu0 %v1728
      %v1730 = vpop.xlane.xlu0 %1729
      %v1731 = vsel %vm1478, %v1648, 0.0
      %1732 = vadd.xlane.f32.xlu0 %v1731
      %v1733 = vpop.xlane.xlu0 %1732
      %v1734 = vsel %vm1478, %v1650, 0.0
      %1735 = vadd.xlane.f32.xlu0 %v1734
      %v1736 = vpop.xlane.xlu0 %1735
      %v1737 = vsel %vm1478, %v1652, 0.0
      %1738 = vadd.xlane.f32.xlu0 %v1737
      %v1739 = vpop.xlane.xlu0 %1738
      %v1740 = vsel %vm1478, %v1654, 0.0
      %1741 = vadd.xlane.f32.xlu0 %v1740
      %v1742 = vpop.xlane.xlu0 %1741
      %v1743 = vsel %vm1478, %v1656, 0.0
      %1744 = vadd.xlane.f32.xlu0 %v1743
      %v1745 = vpop.xlane.xlu0 %1744
      %v1746 = vsel %vm1478, %v1658, 0.0
      %1747 = vadd.xlane.f32.xlu0 %v1746
      %v1748 = vpop.xlane.xlu0 %1747
      %v1749 = vsel %vm1478, %v1660, 0.0
      %1750 = vadd.xlane.f32.xlu0 %v1749
      %v1751 = vpop.xlane.xlu0 %1750
      %v1752 = vsel %vm1478, %v1662, 0.0
      %1753 = vadd.xlane.f32.xlu0 %v1752
      %v1754 = vpop.xlane.xlu0 %1753
      %v1755 = vsel %vm1478, %v1664, 0.0
      %1756 = vadd.xlane.f32.xlu0 %v1755
      %v1757 = vpop.xlane.xlu0 %1756
      %v1758 = vsel %vm1478, %v1666, 0.0
      %1759 = vadd.xlane.f32.xlu0 %v1758
      %v1760 = vpop.xlane.xlu0 %1759
      %v1761 = vsel %vm1478, %v1668, 0.0
      %1762 = vadd.xlane.f32.xlu0 %v1761
      %v1763 = vpop.xlane.xlu0 %1762
      %v1764 = vsel %vm1478, %v1670, 0.0
      %1765 = vadd.xlane.f32.xlu0 %v1764
      %v1766 = vpop.xlane.xlu0 %1765
      %v1767 = vrcp.pop %v1673
      %v1768 = vmul.f32 %v1608, %v1767
      %v1769 = vrcp.pop %v1676
      %v1770 = vmul.f32 %v1610, %v1769
      %v1771 = vrcp.pop %v1679
      %v1772 = vmul.f32 %v1612, %v1771
      %v1773 = vrcp.pop %v1682
      %v1774 = vmul.f32 %v1614, %v1773
      %v1775 = vrcp.pop %v1685
      %v1776 = vmul.f32 %v1616, %v1775
      %v1777 = vrcp.pop %v1688
      %v1778 = vmul.f32 %v1618, %v1777
      %v1779 = vrcp.pop %v1691
      %v1780 = vmul.f32 %v1620, %v1779
      %v1781 = vrcp.pop %v1694
      %v1782 = vmul.f32 %v1622, %v1781
      %v1783 = vrcp.pop %v1697
      %v1784 = vmul.f32 %v1624, %v1783
      %v1785 = vrcp.pop %v1700
      %v1786 = vmul.f32 %v1626, %v1785
      %v1787 = vrcp.pop %v1703
      %v1788 = vmul.f32 %v1628, %v1787
      %v1789 = vrcp.pop %v1706
      %v1790 = vmul.f32 %v1630, %v1789
      %v1791 = vrcp.pop %v1709
      %v1792 = vmul.f32 %v1632, %v1791
      %v1793 = vrcp.pop %v1712
      %v1794 = vmul.f32 %v1634, %v1793
      %v1795 = vrcp.pop %v1715
      %v1796 = vmul.f32 %v1636, %v1795
      %v1797 = vrcp.pop %v1718
      %v1798 = vmul.f32 %v1638, %v1797
      %v1799 = vrcp.pop %v1721
      %v1800 = vmul.f32 %v1640, %v1799
      %v1801 = vrcp.pop %v1724
      %v1802 = vmul.f32 %v1642, %v1801
      %v1803 = vrcp.pop %v1727
      %v1804 = vmul.f32 %v1644, %v1803
      %v1805 = vrcp.pop %v1730
      %v1806 = vmul.f32 %v1646, %v1805
      %v1807 = vrcp.pop %v1733
      %v1808 = vmul.f32 %v1648, %v1807
      %v1809 = vrcp.pop %v1736
      %v1810 = vmul.f32 %v1650, %v1809
      %v1811 = vrcp.pop %v1739
      %v1812 = vmul.f32 %v1652, %v1811
      %v1813 = vrcp.pop %v1742
      %v1814 = vmul.f32 %v1654, %v1813
      %v1815 = vrcp.pop %v1745
      %v1816 = vmul.f32 %v1656, %v1815
      %v1817 = vrcp.pop %v1748
      %v1818 = vmul.f32 %v1658, %v1817
      %v1819 = vrcp.pop %v1751
      %v1820 = vmul.f32 %v1660, %v1819
      %v1821 = vrcp.pop %v1754
      %v1822 = vmul.f32 %v1662, %v1821
      %v1823 = vrcp.pop %v1757
      %v1824 = vmul.f32 %v1664, %v1823
      %v1825 = vrcp.pop %v1760
      %v1826 = vmul.f32 %v1666, %v1825
      %v1827 = vrcp.pop %v1763
      %v1828 = vmul.f32 %v1668, %v1827
      %v1829 = vrcp.pop %v1766
      %v1830 = vmul.f32 %v1670, %v1829
      %v1831 = vpack.c.bf16 %v1770, %v1768
      %v1832 = vpack.c.bf16 %v1774, %v1772
      %v1833 = vpack.c.bf16 %v1778, %v1776
      %v1834 = vpack.c.bf16 %v1782, %v1780
      %v1835 = vpack.c.bf16 %v1786, %v1784
      %v1836 = vpack.c.bf16 %v1790, %v1788
      %v1837 = vpack.c.bf16 %v1794, %v1792
      %v1838 = vpack.c.bf16 %v1798, %v1796
      %v1839 = vpack.c.bf16 %v1802, %v1800
      %v1840 = vpack.c.bf16 %v1806, %v1804
      %v1841 = vpack.c.bf16 %v1810, %v1808
      %v1842 = vpack.c.bf16 %v1814, %v1812
      %v1843 = vpack.c.bf16 %v1818, %v1816
      %v1844 = vpack.c.bf16 %v1822, %v1820
      %v1845 = vpack.c.bf16 %v1826, %v1824
      %v1846 = vpack.c.bf16 %v1830, %v1828
      %1847 = vrot.lane.b32.xlu0 %v1025, 64
      %v1848 = vpop.permute.xlu0 %1847
      %1849 = vrot.lane.b32.xlu0 %v1026, 64
      %v1850 = vpop.permute.xlu0 %1849
      %1851 = vrot.lane.b32.xlu0 %v1027, 64
      %v1852 = vpop.permute.xlu0 %1851
      %1853 = vrot.lane.b32.xlu0 %v1028, 64
      %v1854 = vpop.permute.xlu0 %1853
      %v1860 = vsel %vm1478, %v1831, 0
      %v1863 = vsel %vm1478, %v1832, 0
      %v1866 = vsel %vm1478, %v1833, 0
      %v1869 = vsel %vm1478, %v1834, 0
      %1871 = vmatprep.subr.bf16.mxu0 0
      %1872 = vmatpush1.bf16.msra.mxu0 %v1848
      %1873 = vmatprep.subr.bf16.mxu0 0
      %1874 = vmatpush1.bf16.msra.mxu0 %v1850
      %1875 = vmatprep.subr.bf16.mxu0 0
      %1876 = vmatpush1.bf16.msra.mxu0 %v1852
      %1877 = vmatprep.subr.bf16.mxu0 0
      %1878 = vmatpush1.bf16.msra.mxu0 %v1854
      %1879 = vmatprep.subr.bf16.mxu0 0
      %1880 = vmatpush1.bf16.msra.mxu0 0
      %1881 = vmatprep.subr.bf16.mxu0 0
      %1882 = vmatpush1.bf16.msra.mxu0 0
      %1883 = vmatprep.subr.bf16.mxu0 0
      %1884 = vmatpush1.bf16.msra.mxu0 0
      %1885 = vmatprep.subr.bf16.mxu0 0
      %1886 = vmatpush1.bf16.msra.mxu0 0
      %1887 = vmatprep.subr.bf16.mxu0 0
      %1888 = vmatpush1.bf16.msra.mxu0 0
      %1889 = vmatprep.subr.bf16.mxu0 0
      %1890 = vmatpush1.bf16.msra.mxu0 0
      %1891 = vmatprep.subr.bf16.mxu0 0
      %1892 = vmatpush1.bf16.msra.mxu0 0
      %1893 = vmatprep.subr.bf16.mxu0 0
      %1894 = vmatpush1.bf16.msra.mxu0 0
      %1895 = vmatprep.subr.bf16.mxu0 0
      %1896 = vmatpush1.bf16.msra.mxu0 0
      %1897 = vmatprep.subr.bf16.mxu0 0
      %1898 = vmatpush1.bf16.msra.mxu0 0
      %1899 = vmatprep.subr.bf16.mxu0 0
      %1900 = vmatpush1.bf16.msra.mxu0 0
      %1901 = vmatprep.subr.bf16.mxu0 0
      %1902 = vmatpush1.bf16.msra.mxu0 0
      %1903 = vmatprep.mubr.bf16.mxu0 0
      %1904 = vmatmul.mubr.bf16.gmra.mrb[0].mxu0 %v1860
      %v1905 = vpop.f32.mrb[0].mxu0
      %v1906 = vadd.f32 0.0, %v1905
      %v1907 = vpop.f32.mrb[0].mxu0
      %v1908 = vpop.f32.mrb[0].mxu0
      %v1909 = vadd.f32 0.0, %v1908
      %v1910 = vpop.f32.mrb[0].mxu0
      %1911 = vmatprep.mubr.bf16.mxu0 0
      %1912 = vmatmul.mubr.bf16.gmra.mrb[0].mxu0 %v1863
      %v1913 = vpop.f32.mrb[0].mxu0
      %v1914 = vadd.f32 0.0, %v1913
      %v1915 = vpop.f32.mrb[0].mxu0
      %v1916 = vpop.f32.mrb[0].mxu0
      %v1917 = vadd.f32 0.0, %v1916
      %v1918 = vpop.f32.mrb[0].mxu0
      %1919 = vmatprep.mubr.bf16.mxu0 0
      %1920 = vmatmul.mubr.bf16.gmra.mrb[0].mxu0 %v1866
      %v1921 = vpop.f32.mrb[0].mxu0
      %v1922 = vadd.f32 0.0, %v1921
      %v1923 = vpop.f32.mrb[0].mxu0
      %v1924 = vpop.f32.mrb[0].mxu0
      %v1925 = vadd.f32 0.0, %v1924
      %v1926 = vpop.f32.mrb[0].mxu0
      %1927 = vmatprep.mubr.bf16.mxu0 0
      %1928 = vmatmul.mubr.bf16.gmra.mrb[0].mxu0 %v1869
      %v1929 = vpop.f32.mrb[0].mxu0
      %v1930 = vadd.f32 0.0, %v1929
      %v1931 = vpop.f32.mrb[0].mxu0
      %v1932 = vpop.f32.mrb[0].mxu0
      %v1933 = vadd.f32 0.0, %v1932
      %v1934 = vpop.f32.mrb[0].mxu0
      %1935 = vdwg.mxu0
      %1936 = vrot.lane.b32.xlu0 %v1029, 64
      %v1937 = vpop.permute.xlu0 %1936
      %1938 = vrot.lane.b32.xlu0 %v1030, 64
      %v1939 = vpop.permute.xlu0 %1938
      %1940 = vrot.lane.b32.xlu0 %v1031, 64
      %v1941 = vpop.permute.xlu0 %1940
      %1942 = vrot.lane.b32.xlu0 %v1032, 64
      %v1943 = vpop.permute.xlu0 %1942
      %v1949 = vsel %vm1478, %v1835, 0
      %v1952 = vsel %vm1478, %v1836, 0
      %v1955 = vsel %vm1478, %v1837, 0
      %v1958 = vsel %vm1478, %v1838, 0
      %1960 = vmatprep.subr.bf16.mxu0 0
      %1961 = vmatpush1.bf16.msra.mxu0 %v1937
      %1962 = vmatprep.subr.bf16.mxu0 0
      %1963 = vmatpush1.bf16.msra.mxu0 %v1939
      %1964 = vmatprep.subr.bf16.mxu0 0
      %1965 = vmatpush1.bf16.msra.mxu0 %v1941
      %1966 = vmatprep.subr.bf16.mxu0 0
      %1967 = vmatpush1.bf16.msra.mxu0 %v1943
      %1968 = vmatprep.subr.bf16.mxu0 0
      %1969 = vmatpush1.bf16.msra.mxu0 0
      %1970 = vmatprep.subr.bf16.mxu0 0
      %1971 = vmatpush1.bf16.msra.mxu0 0
      %1972 = vmatprep.subr.bf16.mxu0 0
      %1973 = vmatpush1.bf16.msra.mxu0 0
      %1974 = vmatprep.subr.bf16.mxu0 0
      %1975 = vmatpush1.bf16.msra.mxu0 0
      %1976 = vmatprep.subr.bf16.mxu0 0
      %1977 = vmatpush1.bf16.msra.mxu0 0
      %1978 = vmatprep.subr.bf16.mxu0 0
      %1979 = vmatpush1.bf16.msra.mxu0 0
      %1980 = vmatprep.subr.bf16.mxu0 0
      %1981 = vmatpush1.bf16.msra.mxu0 0
      %1982 = vmatprep.subr.bf16.mxu0 0
      %1983 = vmatpush1.bf16.msra.mxu0 0
      %1984 = vmatprep.subr.bf16.mxu0 0
      %1985 = vmatpush1.bf16.msra.mxu0 0
      %1986 = vmatprep.subr.bf16.mxu0 0
      %1987 = vmatpush1.bf16.msra.mxu0 0
      %1988 = vmatprep.subr.bf16.mxu0 0
      %1989 = vmatpush1.bf16.msra.mxu0 0
      %1990 = vmatprep.subr.bf16.mxu0 0
      %1991 = vmatpush1.bf16.msra.mxu0 0
      %1992 = vmatprep.mubr.bf16.mxu0 0
      %1993 = vmatmul.mubr.bf16.gmra.mrb[0].mxu0 %v1949
      %v1994 = vpop.f32.mrb[0].mxu0
      %v1995 = vadd.f32 0.0, %v1994
      %v1996 = vpop.f32.mrb[0].mxu0
      %v1997 = vpop.f32.mrb[0].mxu0
      %v1998 = vadd.f32 0.0, %v1997
      %v1999 = vpop.f32.mrb[0].mxu0
      %2000 = vmatprep.mubr.bf16.mxu0 0
      %2001 = vmatmul.mubr.bf16.gmra.mrb[0].mxu0 %v1952
      %v2002 = vpop.f32.mrb[0].mxu0
      %v2003 = vadd.f32 0.0, %v2002
      %v2004 = vpop.f32.mrb[0].mxu0
      %v2005 = vpop.f32.mrb[0].mxu0
      %v2006 = vadd.f32 0.0, %v2005
      %v2007 = vpop.f32.mrb[0].mxu0
      %2008 = vmatprep.mubr.bf16.mxu0 0
      %2009 = vmatmul.mubr.bf16.gmra.mrb[0].mxu0 %v1955
      %v2010 = vpop.f32.mrb[0].mxu0
      %v2011 = vadd.f32 0.0, %v2010
      %v2012 = vpop.f32.mrb[0].mxu0
      %v2013 = vpop.f32.mrb[0].mxu0
      %v2014 = vadd.f32 0.0, %v2013
      %v2015 = vpop.f32.mrb[0].mxu0
      %2016 = vmatprep.mubr.bf16.mxu0 0
      %2017 = vmatmul.mubr.bf16.gmra.mrb[0].mxu0 %v1958
      %v2018 = vpop.f32.mrb[0].mxu0
      %v2019 = vadd.f32 0.0, %v2018
      %v2020 = vpop.f32.mrb[0].mxu0
      %v2021 = vpop.f32.mrb[0].mxu0
      %v2022 = vadd.f32 0.0, %v2021
      %v2023 = vpop.f32.mrb[0].mxu0
      %2024 = vdwg.mxu0
      %2025 = vrot.lane.b32.xlu0 %v1033, 64
      %v2026 = vpop.permute.xlu0 %2025
      %2027 = vrot.lane.b32.xlu0 %v1034, 64
      %v2028 = vpop.permute.xlu0 %2027
      %2029 = vrot.lane.b32.xlu0 %v1035, 64
      %v2030 = vpop.permute.xlu0 %2029
      %2031 = vrot.lane.b32.xlu0 %v1036, 64
      %v2032 = vpop.permute.xlu0 %2031
      %v2038 = vsel %vm1478, %v1839, 0
      %v2041 = vsel %vm1478, %v1840, 0
      %v2044 = vsel %vm1478, %v1841, 0
      %v2047 = vsel %vm1478, %v1842, 0
      %2049 = vmatprep.subr.bf16.mxu0 0
      %2050 = vmatpush1.bf16.msra.mxu0 %v2026
      %2051 = vmatprep.subr.bf16.mxu0 0
      %2052 = vmatpush1.bf16.msra.mxu0 %v2028
      %2053 = vmatprep.subr.bf16.mxu0 0
      %2054 = vmatpush1.bf16.msra.mxu0 %v2030
      %2055 = vmatprep.subr.bf16.mxu0 0
      %2056 = vmatpush1.bf16.msra.mxu0 %v2032
      %2057 = vmatprep.subr.bf16.mxu0 0
      %2058 = vmatpush1.bf16.msra.mxu0 0
      %2059 = vmatprep.subr.bf16.mxu0 0
      %2060 = vmatpush1.bf16.msra.mxu0 0
      %2061 = vmatprep.subr.bf16.mxu0 0
      %2062 = vmatpush1.bf16.msra.mxu0 0
      %2063 = vmatprep.subr.bf16.mxu0 0
      %2064 = vmatpush1.bf16.msra.mxu0 0
      %2065 = vmatprep.subr.bf16.mxu0 0
      %2066 = vmatpush1.bf16.msra.mxu0 0
      %2067 = vmatprep.subr.bf16.mxu0 0
      %2068 = vmatpush1.bf16.msra.mxu0 0
      %2069 = vmatprep.subr.bf16.mxu0 0
      %2070 = vmatpush1.bf16.msra.mxu0 0
      %2071 = vmatprep.subr.bf16.mxu0 0
      %2072 = vmatpush1.bf16.msra.mxu0 0
      %2073 = vmatprep.subr.bf16.mxu0 0
      %2074 = vmatpush1.bf16.msra.mxu0 0
      %2075 = vmatprep.subr.bf16.mxu0 0
      %2076 = vmatpush1.bf16.msra.mxu0 0
      %2077 = vmatprep.subr.bf16.mxu0 0
      %2078 = vmatpush1.bf16.msra.mxu0 0
      %2079 = vmatprep.subr.bf16.mxu0 0
      %2080 = vmatpush1.bf16.msra.mxu0 0
      %2081 = vmatprep.mubr.bf16.mxu0 0
      %2082 = vmatmul.mubr.bf16.gmra.mrb[0].mxu0 %v2038
      %v2083 = vpop.f32.mrb[0].mxu0
      %v2084 = vadd.f32 0.0, %v2083
      %v2085 = vpop.f32.mrb[0].mxu0
      %v2086 = vpop.f32.mrb[0].mxu0
      %v2087 = vadd.f32 0.0, %v2086
      %v2088 = vpop.f32.mrb[0].mxu0
      %2089 = vmatprep.mubr.bf16.mxu0 0
      %2090 = vmatmul.mubr.bf16.gmra.mrb[0].mxu0 %v2041
      %v2091 = vpop.f32.mrb[0].mxu0
      %v2092 = vadd.f32 0.0, %v2091
      %v2093 = vpop.f32.mrb[0].mxu0
      %v2094 = vpop.f32.mrb[0].mxu0
      %v2095 = vadd.f32 0.0, %v2094
      %v2096 = vpop.f32.mrb[0].mxu0
      %2097 = vmatprep.mubr.bf16.mxu0 0
      %2098 = vmatmul.mubr.bf16.gmra.mrb[0].mxu0 %v2044
      %v2099 = vpop.f32.mrb[0].mxu0
      %v2100 = vadd.f32 0.0, %v2099
      %v2101 = vpop.f32.mrb[0].mxu0
      %v2102 = vpop.f32.mrb[0].mxu0
      %v2103 = vadd.f32 0.0, %v2102
      %v2104 = vpop.f32.mrb[0].mxu0
      %2105 = vmatprep.mubr.bf16.mxu0 0
      %2106 = vmatmul.mubr.bf16.gmra.mrb[0].mxu0 %v2047
      %v2107 = vpop.f32.mrb[0].mxu0
      %v2108 = vadd.f32 0.0, %v2107
      %v2109 = vpop.f32.mrb[0].mxu0
      %v2110 = vpop.f32.mrb[0].mxu0
      %v2111 = vadd.f32 0.0, %v2110
      %v2112 = vpop.f32.mrb[0].mxu0
      %2113 = vdwg.mxu0
      %2114 = vrot.lane.b32.xlu0 %v1037, 64
      %v2115 = vpop.permute.xlu0 %2114
      %2116 = vrot.lane.b32.xlu0 %v1038, 64
      %v2117 = vpop.permute.xlu0 %2116
      %2118 = vrot.lane.b32.xlu0 %v1039, 64
      %v2119 = vpop.permute.xlu0 %2118
      %2120 = vrot.lane.b32.xlu0 %v1040, 64
      %v2121 = vpop.permute.xlu0 %2120
      %v2127 = vsel %vm1478, %v1843, 0
      %v2130 = vsel %vm1478, %v1844, 0
      %v2133 = vsel %vm1478, %v1845, 0
      %v2136 = vsel %vm1478, %v1846, 0
      %2138 = vmatprep.subr.bf16.mxu0 0
      %2139 = vmatpush1.bf16.msra.mxu0 %v2115
      %2140 = vmatprep.subr.bf16.mxu0 0
      %2141 = vmatpush1.bf16.msra.mxu0 %v2117
      %2142 = vmatprep.subr.bf16.mxu0 0
      %2143 = vmatpush1.bf16.msra.mxu0 %v2119
      %2144 = vmatprep.subr.bf16.mxu0 0
      %2145 = vmatpush1.bf16.msra.mxu0 %v2121
      %2146 = vmatprep.subr.bf16.mxu0 0
      %2147 = vmatpush1.bf16.msra.mxu0 0
      %2148 = vmatprep.subr.bf16.mxu0 0
      %2149 = vmatpush1.bf16.msra.mxu0 0
      %2150 = vmatprep.subr.bf16.mxu0 0
      %2151 = vmatpush1.bf16.msra.mxu0 0
      %2152 = vmatprep.subr.bf16.mxu0 0
      %2153 = vmatpush1.bf16.msra.mxu0 0
      %2154 = vmatprep.subr.bf16.mxu0 0
      %2155 = vmatpush1.bf16.msra.mxu0 0
      %2156 = vmatprep.subr.bf16.mxu0 0
      %2157 = vmatpush1.bf16.msra.mxu0 0
      %2158 = vmatprep.subr.bf16.mxu0 0
      %2159 = vmatpush1.bf16.msra.mxu0 0
      %2160 = vmatprep.subr.bf16.mxu0 0
      %2161 = vmatpush1.bf16.msra.mxu0 0
      %2162 = vmatprep.subr.bf16.mxu0 0
      %2163 = vmatpush1.bf16.msra.mxu0 0
      %2164 = vmatprep.subr.bf16.mxu0 0
      %2165 = vmatpush1.bf16.msra.mxu0 0
      %2166 = vmatprep.subr.bf16.mxu0 0
      %2167 = vmatpush1.bf16.msra.mxu0 0
      %2168 = vmatprep.subr.bf16.mxu0 0
      %2169 = vmatpush1.bf16.msra.mxu0 0
      %2170 = vmatprep.mubr.bf16.mxu0 0
      %2171 = vmatmul.mubr.bf16.gmra.mrb[0].mxu0 %v2127
      %v2172 = vpop.f32.mrb[0].mxu0
      %v2173 = vadd.f32 0.0, %v2172
      %v2174 = vpop.f32.mrb[0].mxu0
      %v2175 = vpop.f32.mrb[0].mxu0
      %v2176 = vadd.f32 0.0, %v2175
      %v2177 = vpop.f32.mrb[0].mxu0
      %2178 = vmatprep.mubr.bf16.mxu0 0
      %2179 = vmatmul.mubr.bf16.gmra.mrb[0].mxu0 %v2130
      %v2180 = vpop.f32.mrb[0].mxu0
      %v2181 = vadd.f32 0.0, %v2180
      %v2182 = vpop.f32.mrb[0].mxu0
      %v2183 = vpop.f32.mrb[0].mxu0
      %v2184 = vadd.f32 0.0, %v2183
      %v2185 = vpop.f32.mrb[0].mxu0
      %2186 = vmatprep.mubr.bf16.mxu0 0
      %2187 = vmatmul.mubr.bf16.gmra.mrb[0].mxu0 %v2133
      %v2188 = vpop.f32.mrb[0].mxu0
      %v2189 = vadd.f32 0.0, %v2188
      %v2190 = vpop.f32.mrb[0].mxu0
      %v2191 = vpop.f32.mrb[0].mxu0
      %v2192 = vadd.f32 0.0, %v2191
      %v2193 = vpop.f32.mrb[0].mxu0
      %2194 = vmatprep.mubr.bf16.mxu0 0
      %2195 = vmatmul.mubr.bf16.gmra.mrb[0].mxu0 %v2136
      %v2196 = vpop.f32.mrb[0].mxu0
      %v2197 = vadd.f32 0.0, %v2196
      %v2198 = vpop.f32.mrb[0].mxu0
      %v2199 = vpop.f32.mrb[0].mxu0
      %v2200 = vadd.f32 0.0, %v2199
      %v2201 = vpop.f32.mrb[0].mxu0
      %2202 = vdwg.mxu0
      %2203 = vrot.lane.b32.xlu0 %v1025, 120
      %v2204 = vpop.permute.xlu0 %2203
      %2205 = vrot.lane.b32.xlu0 %v1026, 120
      %v2206 = vpop.permute.xlu0 %2205
      %2207 = vrot.lane.b32.xlu0 %v1027, 120
      %v2208 = vpop.permute.xlu0 %2207
      %2209 = vrot.lane.b32.xlu0 %v1028, 120
      %v2210 = vpop.permute.xlu0 %2209
      %2211 = vrot.lane.b32.xlu0 %v1025, 88
      %v2212 = vpop.permute.xlu0 %2211
      %2213 = vrot.lane.b32.xlu0 %v1026, 88
      %v2214 = vpop.permute.xlu0 %2213
      %2215 = vrot.lane.b32.xlu0 %v1027, 88
      %v2216 = vpop.permute.xlu0 %2215
      %2217 = vrot.lane.b32.xlu0 %v1028, 88
      %v2218 = vpop.permute.xlu0 %2217
      %v2220 = vsel %vm1053, %v2204, 0
      %v2223 = vsel %vm1053, %v2206, 0
      %v2226 = vsel %vm1053, %v2208, 0
      %v2229 = vsel %vm1053, %v2210, 0
      %v2232 = vsel %vm1053, %v2212, 0
      %v2235 = vsel %vm1053, %v2214, 0
      %v2238 = vsel %vm1053, %v2216, 0
      %v2241 = vsel %vm1053, %v2218, 0
      %2243 = vmatprep.subr.bf16.mxu0 0
      %2244 = vmatpush1.bf16.xpose.msra.mxu0 %v2232
      %2245 = vmatprep.subr.bf16.mxu0 0
      %2246 = vmatpush1.bf16.xpose.msra.mxu0 %v2235
      %2247 = vmatprep.subr.bf16.mxu0 0
      %2248 = vmatpush1.bf16.xpose.msra.mxu0 %v2238
      %2249 = vmatprep.subr.bf16.mxu0 0
      %2250 = vmatpush1.bf16.xpose.msra.mxu0 %v2241
      %2251 = vmatprep.subr.bf16.mxu0 0
      %2252 = vmatpush1.bf16.xpose.msra.mxu0 0
      %2253 = vmatprep.subr.bf16.mxu0 0
      %2254 = vmatpush1.bf16.xpose.msra.mxu0 0
      %2255 = vmatprep.subr.bf16.mxu0 0
      %2256 = vmatpush1.bf16.xpose.msra.mxu0 0
      %2257 = vmatprep.subr.bf16.mxu0 0
      %2258 = vmatpush1.bf16.xpose.msra.mxu0 0
      %2259 = vmatprep.subr.bf16.mxu0 0
      %2260 = vmatpush1.bf16.xpose.msra.mxu0 0
      %2261 = vmatprep.subr.bf16.mxu0 0
      %2262 = vmatpush1.bf16.xpose.msra.mxu0 0
      %2263 = vmatprep.subr.bf16.mxu0 0
      %2264 = vmatpush1.bf16.xpose.msra.mxu0 0
      %2265 = vmatprep.subr.bf16.mxu0 0
      %2266 = vmatpush1.bf16.xpose.msra.mxu0 0
      %2267 = vmatprep.subr.bf16.mxu0 0
      %2268 = vmatpush1.bf16.xpose.msra.mxu0 0
      %2269 = vmatprep.subr.bf16.mxu0 0
      %2270 = vmatpush1.bf16.xpose.msra.mxu0 0
      %2271 = vmatprep.subr.bf16.mxu0 0
      %2272 = vmatpush1.bf16.xpose.msra.mxu0 0
      %2273 = vmatprep.subr.bf16.mxu0 0
      %2274 = vmatpush1.bf16.xpose.msra.mxu0 0
      %2275 = vmatprep.mubr.bf16.mxu0 0
      %2276 = vmatmul.mubr.bf16.gmra.mrb[0].mxu0 %v2220
      %v2277 = vpop.f32.mrb[0].mxu0
      %v2278 = vadd.f32 0.0, %v2277
      %v2279 = vpop.f32.mrb[0].mxu0
      %v2280 = vpop.f32.mrb[0].mxu0
      %v2281 = vadd.f32 0.0, %v2280
      %v2282 = vpop.f32.mrb[0].mxu0
      %2283 = vmatprep.mubr.bf16.mxu0 0
      %2284 = vmatmul.mubr.bf16.gmra.mrb[0].mxu0 %v2223
      %v2285 = vpop.f32.mrb[0].mxu0
      %v2286 = vadd.f32 0.0, %v2285
      %v2287 = vpop.f32.mrb[0].mxu0
      %v2288 = vpop.f32.mrb[0].mxu0
      %v2289 = vadd.f32 0.0, %v2288
      %v2290 = vpop.f32.mrb[0].mxu0
      %2291 = vmatprep.mubr.bf16.mxu0 0
      %2292 = vmatmul.mubr.bf16.gmra.mrb[0].mxu0 %v2226
      %v2293 = vpop.f32.mrb[0].mxu0
      %v2294 = vadd.f32 0.0, %v2293
      %v2295 = vpop.f32.mrb[0].mxu0
      %v2296 = vpop.f32.mrb[0].mxu0
      %v2297 = vadd.f32 0.0, %v2296
      %v2298 = vpop.f32.mrb[0].mxu0
      %2299 = vmatprep.mubr.bf16.mxu0 0
      %2300 = vmatmul.mubr.bf16.gmra.mrb[0].mxu0 %v2229
      %v2301 = vpop.f32.mrb[0].mxu0
      %v2302 = vadd.f32 0.0, %v2301
      %v2303 = vpop.f32.mrb[0].mxu0
      %v2304 = vpop.f32.mrb[0].mxu0
      %v2305 = vadd.f32 0.0, %v2304
      %v2306 = vpop.f32.mrb[0].mxu0
      %2307 = vdwg.mxu0
      %2308 = vrot.lane.b32.xlu0 %v1029, 120
      %v2309 = vpop.permute.xlu0 %2308
      %2310 = vrot.lane.b32.xlu0 %v1030, 120
      %v2311 = vpop.permute.xlu0 %2310
      %2312 = vrot.lane.b32.xlu0 %v1031, 120
      %v2313 = vpop.permute.xlu0 %2312
      %2314 = vrot.lane.b32.xlu0 %v1032, 120
      %v2315 = vpop.permute.xlu0 %2314
      %2316 = vrot.lane.b32.xlu0 %v1029, 88
      %v2317 = vpop.permute.xlu0 %2316
      %2318 = vrot.lane.b32.xlu0 %v1030, 88
      %v2319 = vpop.permute.xlu0 %2318
      %2320 = vrot.lane.b32.xlu0 %v1031, 88
      %v2321 = vpop.permute.xlu0 %2320
      %2322 = vrot.lane.b32.xlu0 %v1032, 88
      %v2323 = vpop.permute.xlu0 %2322
      %v2325 = vsel %vm1053, %v2309, 0
      %v2328 = vsel %vm1053, %v2311, 0
      %v2331 = vsel %vm1053, %v2313, 0
      %v2334 = vsel %vm1053, %v2315, 0
      %v2337 = vsel %vm1053, %v2317, 0
      %v2340 = vsel %vm1053, %v2319, 0
      %v2343 = vsel %vm1053, %v2321, 0
      %v2346 = vsel %vm1053, %v2323, 0
      %2348 = vmatprep.subr.bf16.mxu0 0
      %2349 = vmatpush1.bf16.xpose.msra.mxu0 %v2337
      %2350 = vmatprep.subr.bf16.mxu0 0
      %2351 = vmatpush1.bf16.xpose.msra.mxu0 %v2340
      %2352 = vmatprep.subr.bf16.mxu0 0
      %2353 = vmatpush1.bf16.xpose.msra.mxu0 %v2343
      %2354 = vmatprep.subr.bf16.mxu0 0
      %2355 = vmatpush1.bf16.xpose.msra.mxu0 %v2346
      %2356 = vmatprep.subr.bf16.mxu0 0
      %2357 = vmatpush1.bf16.xpose.msra.mxu0 0
      %2358 = vmatprep.subr.bf16.mxu0 0
      %2359 = vmatpush1.bf16.xpose.msra.mxu0 0
      %2360 = vmatprep.subr.bf16.mxu0 0
      %2361 = vmatpush1.bf16.xpose.msra.mxu0 0
      %2362 = vmatprep.subr.bf16.mxu0 0
      %2363 = vmatpush1.bf16.xpose.msra.mxu0 0
      %2364 = vmatprep.subr.bf16.mxu0 0
      %2365 = vmatpush1.bf16.xpose.msra.mxu0 0
      %2366 = vmatprep.subr.bf16.mxu0 0
      %2367 = vmatpush1.bf16.xpose.msra.mxu0 0
      %2368 = vmatprep.subr.bf16.mxu0 0
      %2369 = vmatpush1.bf16.xpose.msra.mxu0 0
      %2370 = vmatprep.subr.bf16.mxu0 0
      %2371 = vmatpush1.bf16.xpose.msra.mxu0 0
      %2372 = vmatprep.subr.bf16.mxu0 0
      %2373 = vmatpush1.bf16.xpose.msra.mxu0 0
      %2374 = vmatprep.subr.bf16.mxu0 0
      %2375 = vmatpush1.bf16.xpose.msra.mxu0 0
      %2376 = vmatprep.subr.bf16.mxu0 0
      %2377 = vmatpush1.bf16.xpose.msra.mxu0 0
      %2378 = vmatprep.subr.bf16.mxu0 0
      %2379 = vmatpush1.bf16.xpose.msra.mxu0 0
      %2380 = vmatprep.mubr.bf16.mxu0 0
      %2381 = vmatmul.mubr.bf16.gmra.mrb[0].mxu0 %v2325
      %v2382 = vpop.f32.mrb[0].mxu0
      %v2383 = vadd.f32 0.0, %v2382
      %v2384 = vpop.f32.mrb[0].mxu0
      %v2385 = vpop.f32.mrb[0].mxu0
      %v2386 = vadd.f32 0.0, %v2385
      %v2387 = vpop.f32.mrb[0].mxu0
      %2388 = vmatprep.mubr.bf16.mxu0 0
      %2389 = vmatmul.mubr.bf16.gmra.mrb[0].mxu0 %v2328
      %v2390 = vpop.f32.mrb[0].mxu0
      %v2391 = vadd.f32 0.0, %v2390
      %v2392 = vpop.f32.mrb[0].mxu0
      %v2393 = vpop.f32.mrb[0].mxu0
      %v2394 = vadd.f32 0.0, %v2393
      %v2395 = vpop.f32.mrb[0].mxu0
      %2396 = vmatprep.mubr.bf16.mxu0 0
      %2397 = vmatmul.mubr.bf16.gmra.mrb[0].mxu0 %v2331
      %v2398 = vpop.f32.mrb[0].mxu0
      %v2399 = vadd.f32 0.0, %v2398
      %v2400 = vpop.f32.mrb[0].mxu0
      %v2401 = vpop.f32.mrb[0].mxu0
      %v2402 = vadd.f32 0.0, %v2401
      %v2403 = vpop.f32.mrb[0].mxu0
      %2404 = vmatprep.mubr.bf16.mxu0 0
      %2405 = vmatmul.mubr.bf16.gmra.mrb[0].mxu0 %v2334
      %v2406 = vpop.f32.mrb[0].mxu0
      %v2407 = vadd.f32 0.0, %v2406
      %v2408 = vpop.f32.mrb[0].mxu0
      %v2409 = vpop.f32.mrb[0].mxu0
      %v2410 = vadd.f32 0.0, %v2409
      %v2411 = vpop.f32.mrb[0].mxu0
      %2412 = vdwg.mxu0
      %2413 = vrot.lane.b32.xlu0 %v1033, 120
      %v2414 = vpop.permute.xlu0 %2413
      %2415 = vrot.lane.b32.xlu0 %v1034, 120
      %v2416 = vpop.permute.xlu0 %2415
      %2417 = vrot.lane.b32.xlu0 %v1035, 120
      %v2418 = vpop.permute.xlu0 %2417
      %2419 = vrot.lane.b32.xlu0 %v1036, 120
      %v2420 = vpop.permute.xlu0 %2419
      %2421 = vrot.lane.b32.xlu0 %v1033, 88
      %v2422 = vpop.permute.xlu0 %2421
      %2423 = vrot.lane.b32.xlu0 %v1034, 88
      %v2424 = vpop.permute.xlu0 %2423
      %2425 = vrot.lane.b32.xlu0 %v1035, 88
      %v2426 = vpop.permute.xlu0 %2425
      %2427 = vrot.lane.b32.xlu0 %v1036, 88
      %v2428 = vpop.permute.xlu0 %2427
      %v2430 = vsel %vm1053, %v2414, 0
      %v2433 = vsel %vm1053, %v2416, 0
      %v2436 = vsel %vm1053, %v2418, 0
      %v2439 = vsel %vm1053, %v2420, 0
      %v2442 = vsel %vm1053, %v2422, 0
      %v2445 = vsel %vm1053, %v2424, 0
      %v2448 = vsel %vm1053, %v2426, 0
      %v2451 = vsel %vm1053, %v2428, 0
      %2453 = vmatprep.subr.bf16.mxu0 0
      %2454 = vmatpush1.bf16.xpose.msra.mxu0 %v2442
      %2455 = vmatprep.subr.bf16.mxu0 0
      %2456 = vmatpush1.bf16.xpose.msra.mxu0 %v2445
      %2457 = vmatprep.subr.bf16.mxu0 0
      %2458 = vmatpush1.bf16.xpose.msra.mxu0 %v2448
      %2459 = vmatprep.subr.bf16.mxu0 0
      %2460 = vmatpush1.bf16.xpose.msra.mxu0 %v2451
      %2461 = vmatprep.subr.bf16.mxu0 0
      %2462 = vmatpush1.bf16.xpose.msra.mxu0 0
      %2463 = vmatprep.subr.bf16.mxu0 0
      %2464 = vmatpush1.bf16.xpose.msra.mxu0 0
      %2465 = vmatprep.subr.bf16.mxu0 0
      %2466 = vmatpush1.bf16.xpose.msra.mxu0 0
      %2467 = vmatprep.subr.bf16.mxu0 0
      %2468 = vmatpush1.bf16.xpose.msra.mxu0 0
      %2469 = vmatprep.subr.bf16.mxu0 0
      %2470 = vmatpush1.bf16.xpose.msra.mxu0 0
      %2471 = vmatprep.subr.bf16.mxu0 0
      %2472 = vmatpush1.bf16.xpose.msra.mxu0 0
      %2473 = vmatprep.subr.bf16.mxu0 0
      %2474 = vmatpush1.bf16.xpose.msra.mxu0 0
      %2475 = vmatprep.subr.bf16.mxu0 0
      %2476 = vmatpush1.bf16.xpose.msra.mxu0 0
      %2477 = vmatprep.subr.bf16.mxu0 0
      %2478 = vmatpush1.bf16.xpose.msra.mxu0 0
      %2479 = vmatprep.subr.bf16.mxu0 0
      %2480 = vmatpush1.bf16.xpose.msra.mxu0 0
      %2481 = vmatprep.subr.bf16.mxu0 0
      %2482 = vmatpush1.bf16.xpose.msra.mxu0 0
      %2483 = vmatprep.subr.bf16.mxu0 0
      %2484 = vmatpush1.bf16.xpose.msra.mxu0 0
      %2485 = vmatprep.mubr.bf16.mxu0 0
      %2486 = vmatmul.mubr.bf16.gmra.mrb[0].mxu0 %v2430
      %v2487 = vpop.f32.mrb[0].mxu0
      %v2488 = vadd.f32 0.0, %v2487
      %v2489 = vpop.f32.mrb[0].mxu0
      %v2490 = vpop.f32.mrb[0].mxu0
      %v2491 = vadd.f32 0.0, %v2490
      %v2492 = vpop.f32.mrb[0].mxu0
      %2493 = vmatprep.mubr.bf16.mxu0 0
      %2494 = vmatmul.mubr.bf16.gmra.mrb[0].mxu0 %v2433
      %v2495 = vpop.f32.mrb[0].mxu0
      %v2496 = vadd.f32 0.0, %v2495
      %v2497 = vpop.f32.mrb[0].mxu0
      %v2498 = vpop.f32.mrb[0].mxu0
      %v2499 = vadd.f32 0.0, %v2498
      %v2500 = vpop.f32.mrb[0].mxu0
      %2501 = vmatprep.mubr.bf16.mxu0 0
      %2502 = vmatmul.mubr.bf16.gmra.mrb[0].mxu0 %v2436
      %v2503 = vpop.f32.mrb[0].mxu0
      %v2504 = vadd.f32 0.0, %v2503
      %v2505 = vpop.f32.mrb[0].mxu0
      %v2506 = vpop.f32.mrb[0].mxu0
      %v2507 = vadd.f32 0.0, %v2506
      %v2508 = vpop.f32.mrb[0].mxu0
      %2509 = vmatprep.mubr.bf16.mxu0 0
      %2510 = vmatmul.mubr.bf16.gmra.mrb[0].mxu0 %v2439
      %v2511 = vpop.f32.mrb[0].mxu0
      %v2512 = vadd.f32 0.0, %v2511
      %v2513 = vpop.f32.mrb[0].mxu0
      %v2514 = vpop.f32.mrb[0].mxu0
      %v2515 = vadd.f32 0.0, %v2514
      %v2516 = vpop.f32.mrb[0].mxu0
      %2517 = vdwg.mxu0
      %2518 = vrot.lane.b32.xlu0 %v1037, 120
      %v2519 = vpop.permute.xlu0 %2518
      %2520 = vrot.lane.b32.xlu0 %v1038, 120
      %v2521 = vpop.permute.xlu0 %2520
      %2522 = vrot.lane.b32.xlu0 %v1039, 120
      %v2523 = vpop.permute.xlu0 %2522
      %2524 = vrot.lane.b32.xlu0 %v1040, 120
      %v2525 = vpop.permute.xlu0 %2524
      %2526 = vrot.lane.b32.xlu0 %v1037, 88
      %v2527 = vpop.permute.xlu0 %2526
      %2528 = vrot.lane.b32.xlu0 %v1038, 88
      %v2529 = vpop.permute.xlu0 %2528
      %2530 = vrot.lane.b32.xlu0 %v1039, 88
      %v2531 = vpop.permute.xlu0 %2530
      %2532 = vrot.lane.b32.xlu0 %v1040, 88
      %v2533 = vpop.permute.xlu0 %2532
      %v2535 = vsel %vm1053, %v2519, 0
      %v2538 = vsel %vm1053, %v2521, 0
      %v2541 = vsel %vm1053, %v2523, 0
      %v2544 = vsel %vm1053, %v2525, 0
      %v2547 = vsel %vm1053, %v2527, 0
      %v2550 = vsel %vm1053, %v2529, 0
      %v2553 = vsel %vm1053, %v2531, 0
      %v2556 = vsel %vm1053, %v2533, 0
      %2558 = vmatprep.subr.bf16.mxu0 0
      %2559 = vmatpush1.bf16.xpose.msra.mxu0 %v2547
      %2560 = vmatprep.subr.bf16.mxu0 0
      %2561 = vmatpush1.bf16.xpose.msra.mxu0 %v2550
      %2562 = vmatprep.subr.bf16.mxu0 0
      %2563 = vmatpush1.bf16.xpose.msra.mxu0 %v2553
      %2564 = vmatprep.subr.bf16.mxu0 0
      %2565 = vmatpush1.bf16.xpose.msra.mxu0 %v2556
      %2566 = vmatprep.subr.bf16.mxu0 0
      %2567 = vmatpush1.bf16.xpose.msra.mxu0 0
      %2568 = vmatprep.subr.bf16.mxu0 0
      %2569 = vmatpush1.bf16.xpose.msra.mxu0 0
      %2570 = vmatprep.subr.bf16.mxu0 0
      %2571 = vmatpush1.bf16.xpose.msra.mxu0 0
      %2572 = vmatprep.subr.bf16.mxu0 0
      %2573 = vmatpush1.bf16.xpose.msra.mxu0 0
      %2574 = vmatprep.subr.bf16.mxu0 0
      %2575 = vmatpush1.bf16.xpose.msra.mxu0 0
      %2576 = vmatprep.subr.bf16.mxu0 0
      %2577 = vmatpush1.bf16.xpose.msra.mxu0 0
      %2578 = vmatprep.subr.bf16.mxu0 0
      %2579 = vmatpush1.bf16.xpose.msra.mxu0 0
      %2580 = vmatprep.subr.bf16.mxu0 0
      %2581 = vmatpush1.bf16.xpose.msra.mxu0 0
      %2582 = vmatprep.subr.bf16.mxu0 0
      %2583 = vmatpush1.bf16.xpose.msra.mxu0 0
      %2584 = vmatprep.subr.bf16.mxu0 0
      %2585 = vmatpush1.bf16.xpose.msra.mxu0 0
      %2586 = vmatprep.subr.bf16.mxu0 0
      %2587 = vmatpush1.bf16.xpose.msra.mxu0 0
      %2588 = vmatprep.subr.bf16.mxu0 0
      %2589 = vmatpush1.bf16.xpose.msra.mxu0 0
      %2590 = vmatprep.mubr.bf16.mxu0 0
      %2591 = vmatmul.mubr.bf16.gmra.mrb[0].mxu0 %v2535
      %v2592 = vpop.f32.mrb[0].mxu0
      %v2593 = vadd.f32 0.0, %v2592
      %v2594 = vpop.f32.mrb[0].mxu0
      %v2595 = vpop.f32.mrb[0].mxu0
      %v2596 = vadd.f32 0.0, %v2595
      %v2597 = vpop.f32.mrb[0].mxu0
      %2598 = vmatprep.mubr.bf16.mxu0 0
      %2599 = vmatmul.mubr.bf16.gmra.mrb[0].mxu0 %v2538
      %v2600 = vpop.f32.mrb[0].mxu0
      %v2601 = vadd.f32 0.0, %v2600
      %v2602 = vpop.f32.mrb[0].mxu0
      %v2603 = vpop.f32.mrb[0].mxu0
      %v2604 = vadd.f32 0.0, %v2603
      %v2605 = vpop.f32.mrb[0].mxu0
      %2606 = vmatprep.mubr.bf16.mxu0 0
      %2607 = vmatmul.mubr.bf16.gmra.mrb[0].mxu0 %v2541
      %v2608 = vpop.f32.mrb[0].mxu0
      %v2609 = vadd.f32 0.0, %v2608
      %v2610 = vpop.f32.mrb[0].mxu0
      %v2611 = vpop.f32.mrb[0].mxu0
      %v2612 = vadd.f32 0.0, %v2611
      %v2613 = vpop.f32.mrb[0].mxu0
      %2614 = vmatprep.mubr.bf16.mxu0 0
      %2615 = vmatmul.mubr.bf16.gmra.mrb[0].mxu0 %v2544
      %v2616 = vpop.f32.mrb[0].mxu0
      %v2617 = vadd.f32 0.0, %v2616
      %v2618 = vpop.f32.mrb[0].mxu0
      %v2619 = vpop.f32.mrb[0].mxu0
      %v2620 = vadd.f32 0.0, %v2619
      %v2621 = vpop.f32.mrb[0].mxu0
      %2622 = vdwg.mxu0
      %v2623 = vmul.f32 %v2278, 0.35355338
      %v2624 = vmul.f32 %v2281, 0.35355338
      %v2625 = vmul.f32 %v2286, 0.35355338
      %v2626 = vmul.f32 %v2289, 0.35355338
      %v2627 = vmul.f32 %v2294, 0.35355338
      %v2628 = vmul.f32 %v2297, 0.35355338
      %v2629 = vmul.f32 %v2302, 0.35355338
      %v2630 = vmul.f32 %v2305, 0.35355338
      %v2631 = vmul.f32 %v2383, 0.35355338
      %v2632 = vmul.f32 %v2386, 0.35355338
      %v2633 = vmul.f32 %v2391, 0.35355338
      %v2634 = vmul.f32 %v2394, 0.35355338
      %v2635 = vmul.f32 %v2399, 0.35355338
      %v2636 = vmul.f32 %v2402, 0.35355338
      %v2637 = vmul.f32 %v2407, 0.35355338
      %v2638 = vmul.f32 %v2410, 0.35355338
      %v2639 = vmul.f32 %v2488, 0.35355338
      %v2640 = vmul.f32 %v2491, 0.35355338
      %v2641 = vmul.f32 %v2496, 0.35355338
      %v2642 = vmul.f32 %v2499, 0.35355338
      %v2643 = vmul.f32 %v2504, 0.35355338
      %v2644 = vmul.f32 %v2507, 0.35355338
      %v2645 = vmul.f32 %v2512, 0.35355338
      %v2646 = vmul.f32 %v2515, 0.35355338
      %v2647 = vmul.f32 %v2593, 0.35355338
      %v2648 = vmul.f32 %v2596, 0.35355338
      %v2649 = vmul.f32 %v2601, 0.35355338
      %v2650 = vmul.f32 %v2604, 0.35355338
      %v2651 = vmul.f32 %v2609, 0.35355338
      %v2652 = vmul.f32 %v2612, 0.35355338
      %v2653 = vmul.f32 %v2617, 0.35355338
      %v2654 = vmul.f32 %v2620, 0.35355338
      %v2655 = vsel %vm1478, %v2623, -inf
      %2656 = vmax.xlane.f32.xlu0 %v2655
      %v2657 = vpop.xlane.xlu0 %2656
      %v2658 = vsel %vm1478, %v2624, -inf
      %2659 = vmax.xlane.f32.xlu0 %v2658
      %v2660 = vpop.xlane.xlu0 %2659
      %v2661 = vsel %vm1478, %v2625, -inf
      %2662 = vmax.xlane.f32.xlu0 %v2661
      %v2663 = vpop.xlane.xlu0 %2662
      %v2664 = vsel %vm1478, %v2626, -inf
      %2665 = vmax.xlane.f32.xlu0 %v2664
      %v2666 = vpop.xlane.xlu0 %2665
      %v2667 = vsel %vm1478, %v2627, -inf
      %2668 = vmax.xlane.f32.xlu0 %v2667
      %v2669 = vpop.xlane.xlu0 %2668
      %v2670 = vsel %vm1478, %v2628, -inf
      %2671 = vmax.xlane.f32.xlu0 %v2670
      %v2672 = vpop.xlane.xlu0 %2671
      %v2673 = vsel %vm1478, %v2629, -inf
      %2674 = vmax.xlane.f32.xlu0 %v2673
      %v2675 = vpop.xlane.xlu0 %2674
      %v2676 = vsel %vm1478, %v2630, -inf
      %2677 = vmax.xlane.f32.xlu0 %v2676
      %v2678 = vpop.xlane.xlu0 %2677
      %v2679 = vsel %vm1478, %v2631, -inf
      %2680 = vmax.xlane.f32.xlu0 %v2679
      %v2681 = vpop.xlane.xlu0 %2680
      %v2682 = vsel %vm1478, %v2632, -inf
      %2683 = vmax.xlane.f32.xlu0 %v2682
      %v2684 = vpop.xlane.xlu0 %2683
      %v2685 = vsel %vm1478, %v2633, -inf
      %2686 = vmax.xlane.f32.xlu0 %v2685
      %v2687 = vpop.xlane.xlu0 %2686
      %v2688 = vsel %vm1478, %v2634, -inf
      %2689 = vmax.xlane.f32.xlu0 %v2688
      %v2690 = vpop.xlane.xlu0 %2689
      %v2691 = vsel %vm1478, %v2635, -inf
      %2692 = vmax.xlane.f32.xlu0 %v2691
      %v2693 = vpop.xlane.xlu0 %2692
      %v2694 = vsel %vm1478, %v2636, -inf
      %2695 = vmax.xlane.f32.xlu0 %v2694
      %v2696 = vpop.xlane.xlu0 %2695
      %v2697 = vsel %vm1478, %v2637, -inf
      %2698 = vmax.xlane.f32.xlu0 %v2697
      %v2699 = vpop.xlane.xlu0 %2698
      %v2700 = vsel %vm1478, %v2638, -inf
      %2701 = vmax.xlane.f32.xlu0 %v2700
      %v2702 = vpop.xlane.xlu0 %2701
      %v2703 = vsel %vm1478, %v2639, -inf
      %2704 = vmax.xlane.f32.xlu0 %v2703
      %v2705 = vpop.xlane.xlu0 %2704
      %v2706 = vsel %vm1478, %v2640, -inf
      %2707 = vmax.xlane.f32.xlu0 %v2706
      %v2708 = vpop.xlane.xlu0 %2707
      %v2709 = vsel %vm1478, %v2641, -inf
      %2710 = vmax.xlane.f32.xlu0 %v2709
      %v2711 = vpop.xlane.xlu0 %2710
      %v2712 = vsel %vm1478, %v2642, -inf
      %2713 = vmax.xlane.f32.xlu0 %v2712
      %v2714 = vpop.xlane.xlu0 %2713
      %v2715 = vsel %vm1478, %v2643, -inf
      %2716 = vmax.xlane.f32.xlu0 %v2715
      %v2717 = vpop.xlane.xlu0 %2716
      %v2718 = vsel %vm1478, %v2644, -inf
      %2719 = vmax.xlane.f32.xlu0 %v2718
      %v2720 = vpop.xlane.xlu0 %2719
      %v2721 = vsel %vm1478, %v2645, -inf
      %2722 = vmax.xlane.f32.xlu0 %v2721
      %v2723 = vpop.xlane.xlu0 %2722
      %v2724 = vsel %vm1478, %v2646, -inf
      %2725 = vmax.xlane.f32.xlu0 %v2724
      %v2726 = vpop.xlane.xlu0 %2725
      %v2727 = vsel %vm1478, %v2647, -inf
      %2728 = vmax.xlane.f32.xlu0 %v2727
      %v2729 = vpop.xlane.xlu0 %2728
      %v2730 = vsel %vm1478, %v2648, -inf
      %2731 = vmax.xlane.f32.xlu0 %v2730
      %v2732 = vpop.xlane.xlu0 %2731
      %v2733 = vsel %vm1478, %v2649, -inf
      %2734 = vmax.xlane.f32.xlu0 %v2733
      %v2735 = vpop.xlane.xlu0 %2734
      %v2736 = vsel %vm1478, %v2650, -inf
      %2737 = vmax.xlane.f32.xlu0 %v2736
      %v2738 = vpop.xlane.xlu0 %2737
      %v2739 = vsel %vm1478, %v2651, -inf
      %2740 = vmax.xlane.f32.xlu0 %v2739
      %v2741 = vpop.xlane.xlu0 %2740
      %v2742 = vsel %vm1478, %v2652, -inf
      %2743 = vmax.xlane.f32.xlu0 %v2742
      %v2744 = vpop.xlane.xlu0 %2743
      %v2745 = vsel %vm1478, %v2653, -inf
      %2746 = vmax.xlane.f32.xlu0 %v2745
      %v2747 = vpop.xlane.xlu0 %2746
      %v2748 = vsel %vm1478, %v2654, -inf
      %2749 = vmax.xlane.f32.xlu0 %v2748
      %v2750 = vpop.xlane.xlu0 %2749
      %v2751 = vsub.f32 %v2623, %v2657
      %v2752 = vsub.f32 %v2624, %v2660
      %v2753 = vsub.f32 %v2625, %v2663
      %v2754 = vsub.f32 %v2626, %v2666
      %v2755 = vsub.f32 %v2627, %v2669
      %v2756 = vsub.f32 %v2628, %v2672
      %v2757 = vsub.f32 %v2629, %v2675
      %v2758 = vsub.f32 %v2630, %v2678
      %v2759 = vsub.f32 %v2631, %v2681
      %v2760 = vsub.f32 %v2632, %v2684
      %v2761 = vsub.f32 %v2633, %v2687
      %v2762 = vsub.f32 %v2634, %v2690
      %v2763 = vsub.f32 %v2635, %v2693
      %v2764 = vsub.f32 %v2636, %v2696
      %v2765 = vsub.f32 %v2637, %v2699
      %v2766 = vsub.f32 %v2638, %v2702
      %v2767 = vsub.f32 %v2639, %v2705
      %v2768 = vsub.f32 %v2640, %v2708
      %v2769 = vsub.f32 %v2641, %v2711
      %v2770 = vsub.f32 %v2642, %v2714
      %v2771 = vsub.f32 %v2643, %v2717
      %v2772 = vsub.f32 %v2644, %v2720
      %v2773 = vsub.f32 %v2645, %v2723
      %v2774 = vsub.f32 %v2646, %v2726
      %v2775 = vsub.f32 %v2647, %v2729
      %v2776 = vsub.f32 %v2648, %v2732
      %v2777 = vsub.f32 %v2649, %v2735
      %v2778 = vsub.f32 %v2650, %v2738
      %v2779 = vsub.f32 %v2651, %v2741
      %v2780 = vsub.f32 %v2652, %v2744
      %v2781 = vsub.f32 %v2653, %v2747
      %v2782 = vsub.f32 %v2654, %v2750
      %v2783 = vmul.f32 %v2751, 1.442695
      %v2784 = vpow.pop %v2783
      %v2785 = vmul.f32 %v2752, 1.442695
      %v2786 = vpow.pop %v2785
      %v2787 = vmul.f32 %v2753, 1.442695
      %v2788 = vpow.pop %v2787
      %v2789 = vmul.f32 %v2754, 1.442695
      %v2790 = vpow.pop %v2789
      %v2791 = vmul.f32 %v2755, 1.442695
      %v2792 = vpow.pop %v2791
      %v2793 = vmul.f32 %v2756, 1.442695
      %v2794 = vpow.pop %v2793
      %v2795 = vmul.f32 %v2757, 1.442695
      %v2796 = vpow.pop %v2795
      %v2797 = vmul.f32 %v2758, 1.442695
      %v2798 = vpow.pop %v2797
      %v2799 = vmul.f32 %v2759, 1.442695
      %v2800 = vpow.pop %v2799
      %v2801 = vmul.f32 %v2760, 1.442695
      %v2802 = vpow.pop %v2801
      %v2803 = vmul.f32 %v2761, 1.442695
      %v2804 = vpow.pop %v2803
      %v2805 = vmul.f32 %v2762, 1.442695
      %v2806 = vpow.pop %v2805
      %v2807 = vmul.f32 %v2763, 1.442695
      %v2808 = vpow.pop %v2807
      %v2809 = vmul.f32 %v2764, 1.442695
      %v2810 = vpow.pop %v2809
      %v2811 = vmul.f32 %v2765, 1.442695
      %v2812 = vpow.pop %v2811
      %v2813 = vmul.f32 %v2766, 1.442695
      %v2814 = vpow.pop %v2813
      %v2815 = vmul.f32 %v2767, 1.442695
      %v2816 = vpow.pop %v2815
      %v2817 = vmul.f32 %v2768, 1.442695
      %v2818 = vpow.pop %v2817
      %v2819 = vmul.f32 %v2769, 1.442695
      %v2820 = vpow.pop %v2819
      %v2821 = vmul.f32 %v2770, 1.442695
      %v2822 = vpow.pop %v2821
      %v2823 = vmul.f32 %v2771, 1.442695
      %v2824 = vpow.pop %v2823
      %v2825 = vmul.f32 %v2772, 1.442695
      %v2826 = vpow.pop %v2825
      %v2827 = vmul.f32 %v2773, 1.442695
      %v2828 = vpow.pop %v2827
      %v2829 = vmul.f32 %v2774, 1.442695
      %v2830 = vpow.pop %v2829
      %v2831 = vmul.f32 %v2775, 1.442695
      %v2832 = vpow.pop %v2831
      %v2833 = vmul.f32 %v2776, 1.442695
      %v2834 = vpow.pop %v2833
      %v2835 = vmul.f32 %v2777, 1.442695
      %v2836 = vpow.pop %v2835
      %v2837 = vmul.f32 %v2778, 1.442695
      %v2838 = vpow.pop %v2837
      %v2839 = vmul.f32 %v2779, 1.442695
      %v2840 = vpow.pop %v2839
      %v2841 = vmul.f32 %v2780, 1.442695
      %v2842 = vpow.pop %v2841
      %v2843 = vmul.f32 %v2781, 1.442695
      %v2844 = vpow.pop %v2843
      %v2845 = vmul.f32 %v2782, 1.442695
      %v2846 = vpow.pop %v2845
      %v2847 = vsel %vm1478, %v2784, 0.0
      %2848 = vadd.xlane.f32.xlu0 %v2847
      %v2849 = vpop.xlane.xlu0 %2848
      %v2850 = vsel %vm1478, %v2786, 0.0
      %2851 = vadd.xlane.f32.xlu0 %v2850
      %v2852 = vpop.xlane.xlu0 %2851
      %v2853 = vsel %vm1478, %v2788, 0.0
      %2854 = vadd.xlane.f32.xlu0 %v2853
      %v2855 = vpop.xlane.xlu0 %2854
      %v2856 = vsel %vm1478, %v2790, 0.0
      %2857 = vadd.xlane.f32.xlu0 %v2856
      %v2858 = vpop.xlane.xlu0 %2857
      %v2859 = vsel %vm1478, %v2792, 0.0
      %2860 = vadd.xlane.f32.xlu0 %v2859
      %v2861 = vpop.xlane.xlu0 %2860
      %v2862 = vsel %vm1478, %v2794, 0.0
      %2863 = vadd.xlane.f32.xlu0 %v2862
      %v2864 = vpop.xlane.xlu0 %2863
      %v2865 = vsel %vm1478, %v2796, 0.0
      %2866 = vadd.xlane.f32.xlu0 %v2865
      %v2867 = vpop.xlane.xlu0 %2866
      %v2868 = vsel %vm1478, %v2798, 0.0
      %2869 = vadd.xlane.f32.xlu0 %v2868
      %v2870 = vpop.xlane.xlu0 %2869
      %v2871 = vsel %vm1478, %v2800, 0.0
      %2872 = vadd.xlane.f32.xlu0 %v2871
      %v2873 = vpop.xlane.xlu0 %2872
      %v2874 = vsel %vm1478, %v2802, 0.0
      %2875 = vadd.xlane.f32.xlu0 %v2874
      %v2876 = vpop.xlane.xlu0 %2875
      %v2877 = vsel %vm1478, %v2804, 0.0
      %2878 = vadd.xlane.f32.xlu0 %v2877
      %v2879 = vpop.xlane.xlu0 %2878
      %v2880 = vsel %vm1478, %v2806, 0.0
      %2881 = vadd.xlane.f32.xlu0 %v2880
      %v2882 = vpop.xlane.xlu0 %2881
      %v2883 = vsel %vm1478, %v2808, 0.0
      %2884 = vadd.xlane.f32.xlu0 %v2883
      %v2885 = vpop.xlane.xlu0 %2884
      %v2886 = vsel %vm1478, %v2810, 0.0
      %2887 = vadd.xlane.f32.xlu0 %v2886
      %v2888 = vpop.xlane.xlu0 %2887
      %v2889 = vsel %vm1478, %v2812, 0.0
      %2890 = vadd.xlane.f32.xlu0 %v2889
      %v2891 = vpop.xlane.xlu0 %2890
      %v2892 = vsel %vm1478, %v2814, 0.0
      %2893 = vadd.xlane.f32.xlu0 %v2892
      %v2894 = vpop.xlane.xlu0 %2893
      %v2895 = vsel %vm1478, %v2816, 0.0
      %2896 = vadd.xlane.f32.xlu0 %v2895
      %v2897 = vpop.xlane.xlu0 %2896
      %v2898 = vsel %vm1478, %v2818, 0.0
      %2899 = vadd.xlane.f32.xlu0 %v2898
      %v2900 = vpop.xlane.xlu0 %2899
      %v2901 = vsel %vm1478, %v2820, 0.0
      %2902 = vadd.xlane.f32.xlu0 %v2901
      %v2903 = vpop.xlane.xlu0 %2902
      %v2904 = vsel %vm1478, %v2822, 0.0
      %2905 = vadd.xlane.f32.xlu0 %v2904
      %v2906 = vpop.xlane.xlu0 %2905
      %v2907 = vsel %vm1478, %v2824, 0.0
      %2908 = vadd.xlane.f32.xlu0 %v2907
      %v2909 = vpop.xlane.xlu0 %2908
      %v2910 = vsel %vm1478, %v2826, 0.0
      %2911 = vadd.xlane.f32.xlu0 %v2910
      %v2912 = vpop.xlane.xlu0 %2911
      %v2913 = vsel %vm1478, %v2828, 0.0
      %2914 = vadd.xlane.f32.xlu0 %v2913
      %v2915 = vpop.xlane.xlu0 %2914
      %v2916 = vsel %vm1478, %v2830, 0.0
      %2917 = vadd.xlane.f32.xlu0 %v2916
      %v2918 = vpop.xlane.xlu0 %2917
      %v2919 = vsel %vm1478, %v2832, 0.0
      %2920 = vadd.xlane.f32.xlu0 %v2919
      %v2921 = vpop.xlane.xlu0 %2920
      %v2922 = vsel %vm1478, %v2834, 0.0
      %2923 = vadd.xlane.f32.xlu0 %v2922
      %v2924 = vpop.xlane.xlu0 %2923
      %v2925 = vsel %vm1478, %v2836, 0.0
      %2926 = vadd.xlane.f32.xlu0 %v2925
      %v2927 = vpop.xlane.xlu0 %2926
      %v2928 = vsel %vm1478, %v2838, 0.0
      %2929 = vadd.xlane.f32.xlu0 %v2928
      %v2930 = vpop.xlane.xlu0 %2929
      %v2931 = vsel %vm1478, %v2840, 0.0
      %2932 = vadd.xlane.f32.xlu0 %v2931
      %v2933 = vpop.xlane.xlu0 %2932
      %v2934 = vsel %vm1478, %v2842, 0.0
      %2935 = vadd.xlane.f32.xlu0 %v2934
      %v2936 = vpop.xlane.xlu0 %2935
      %v2937 = vsel %vm1478, %v2844, 0.0
      %2938 = vadd.xlane.f32.xlu0 %v2937
      %v2939 = vpop.xlane.xlu0 %2938
      %v2940 = vsel %vm1478, %v2846, 0.0
      %2941 = vadd.xlane.f32.xlu0 %v2940
      %v2942 = vpop.xlane.xlu0 %2941
      %v2943 = vrcp.pop %v2849
      %v2944 = vmul.f32 %v2784, %v2943
      %v2945 = vrcp.pop %v2852
      %v2946 = vmul.f32 %v2786, %v2945
      %v2947 = vrcp.pop %v2855
      %v2948 = vmul.f32 %v2788, %v2947
      %v2949 = vrcp.pop %v2858
      %v2950 = vmul.f32 %v2790, %v2949
      %v2951 = vrcp.pop %v2861
      %v2952 = vmul.f32 %v2792, %v2951
      %v2953 = vrcp.pop %v2864
      %v2954 = vmul.f32 %v2794, %v2953
      %v2955 = vrcp.pop %v2867
      %v2956 = vmul.f32 %v2796, %v2955
      %v2957 = vrcp.pop %v2870
      %v2958 = vmul.f32 %v2798, %v2957
      %v2959 = vrcp.pop %v2873
      %v2960 = vmul.f32 %v2800, %v2959
      %v2961 = vrcp.pop %v2876
      %v2962 = vmul.f32 %v2802, %v2961
      %v2963 = vrcp.pop %v2879
      %v2964 = vmul.f32 %v2804, %v2963
      %v2965 = vrcp.pop %v2882
      %v2966 = vmul.f32 %v2806, %v2965
      %v2967 = vrcp.pop %v2885
      %v2968 = vmul.f32 %v2808, %v2967
      %v2969 = vrcp.pop %v2888
      %v2970 = vmul.f32 %v2810, %v2969
      %v2971 = vrcp.pop %v2891
      %v2972 = vmul.f32 %v2812, %v2971
      %v2973 = vrcp.pop %v2894
      %v2974 = vmul.f32 %v2814, %v2973
      %v2975 = vrcp.pop %v2897
      %v2976 = vmul.f32 %v2816, %v2975
      %v2977 = vrcp.pop %v2900
      %v2978 = vmul.f32 %v2818, %v2977
      %v2979 = vrcp.pop %v2903
      %v2980 = vmul.f32 %v2820, %v2979
      %v2981 = vrcp.pop %v2906
      %v2982 = vmul.f32 %v2822, %v2981
      %v2983 = vrcp.pop %v2909
      %v2984 = vmul.f32 %v2824, %v2983
      %v2985 = vrcp.pop %v2912
      %v2986 = vmul.f32 %v2826, %v2985
      %v2987 = vrcp.pop %v2915
      %v2988 = vmul.f32 %v2828, %v2987
      %v2989 = vrcp.pop %v2918
      %v2990 = vmul.f32 %v2830, %v2989
      %v2991 = vrcp.pop %v2921
      %v2992 = vmul.f32 %v2832, %v2991
      %v2993 = vrcp.pop %v2924
      %v2994 = vmul.f32 %v2834, %v2993
      %v2995 = vrcp.pop %v2927
      %v2996 = vmul.f32 %v2836, %v2995
      %v2997 = vrcp.pop %v2930
      %v2998 = vmul.f32 %v2838, %v2997
      %v2999 = vrcp.pop %v2933
      %v3000 = vmul.f32 %v2840, %v2999
      %v3001 = vrcp.pop %v2936
      %v3002 = vmul.f32 %v2842, %v3001
      %v3003 = vrcp.pop %v2939
      %v3004 = vmul.f32 %v2844, %v3003
      %v3005 = vrcp.pop %v2942
      %v3006 = vmul.f32 %v2846, %v3005
      %v3007 = vpack.c.bf16 %v2946, %v2944
      %v3008 = vpack.c.bf16 %v2950, %v2948
      %v3009 = vpack.c.bf16 %v2954, %v2952
      %v3010 = vpack.c.bf16 %v2958, %v2956
      %v3011 = vpack.c.bf16 %v2962, %v2960
      %v3012 = vpack.c.bf16 %v2966, %v2964
      %v3013 = vpack.c.bf16 %v2970, %v2968
      %v3014 = vpack.c.bf16 %v2974, %v2972
      %v3015 = vpack.c.bf16 %v2978, %v2976
      %v3016 = vpack.c.bf16 %v2982, %v2980
      %v3017 = vpack.c.bf16 %v2986, %v2984
      %v3018 = vpack.c.bf16 %v2990, %v2988
      %v3019 = vpack.c.bf16 %v2994, %v2992
      %v3020 = vpack.c.bf16 %v2998, %v2996
      %v3021 = vpack.c.bf16 %v3002, %v3000
      %v3022 = vpack.c.bf16 %v3006, %v3004
      %3023 = vrot.lane.b32.xlu0 %v1025, 56
      %v3024 = vpop.permute.xlu0 %3023
      %3025 = vrot.lane.b32.xlu0 %v1026, 56
      %v3026 = vpop.permute.xlu0 %3025
      %3027 = vrot.lane.b32.xlu0 %v1027, 56
      %v3028 = vpop.permute.xlu0 %3027
      %3029 = vrot.lane.b32.xlu0 %v1028, 56
      %v3030 = vpop.permute.xlu0 %3029
      %v3036 = vsel %vm1478, %v3007, 0
      %v3039 = vsel %vm1478, %v3008, 0
      %v3042 = vsel %vm1478, %v3009, 0
      %v3045 = vsel %vm1478, %v3010, 0
      %3047 = vmatprep.subr.bf16.mxu0 0
      %3048 = vmatpush1.bf16.msra.mxu0 %v3024
      %3049 = vmatprep.subr.bf16.mxu0 0
      %3050 = vmatpush1.bf16.msra.mxu0 %v3026
      %3051 = vmatprep.subr.bf16.mxu0 0
      %3052 = vmatpush1.bf16.msra.mxu0 %v3028
      %3053 = vmatprep.subr.bf16.mxu0 0
      %3054 = vmatpush1.bf16.msra.mxu0 %v3030
      %3055 = vmatprep.subr.bf16.mxu0 0
      %3056 = vmatpush1.bf16.msra.mxu0 0
      %3057 = vmatprep.subr.bf16.mxu0 0
      %3058 = vmatpush1.bf16.msra.mxu0 0
      %3059 = vmatprep.subr.bf16.mxu0 0
      %3060 = vmatpush1.bf16.msra.mxu0 0
      %3061 = vmatprep.subr.bf16.mxu0 0
      %3062 = vmatpush1.bf16.msra.mxu0 0
      %3063 = vmatprep.subr.bf16.mxu0 0
      %3064 = vmatpush1.bf16.msra.mxu0 0
      %3065 = vmatprep.subr.bf16.mxu0 0
      %3066 = vmatpush1.bf16.msra.mxu0 0
      %3067 = vmatprep.subr.bf16.mxu0 0
      %3068 = vmatpush1.bf16.msra.mxu0 0
      %3069 = vmatprep.subr.bf16.mxu0 0
      %3070 = vmatpush1.bf16.msra.mxu0 0
      %3071 = vmatprep.subr.bf16.mxu0 0
      %3072 = vmatpush1.bf16.msra.mxu0 0
      %3073 = vmatprep.subr.bf16.mxu0 0
      %3074 = vmatpush1.bf16.msra.mxu0 0
      %3075 = vmatprep.subr.bf16.mxu0 0
      %3076 = vmatpush1.bf16.msra.mxu0 0
      %3077 = vmatprep.subr.bf16.mxu0 0
      %3078 = vmatpush1.bf16.msra.mxu0 0
      %3079 = vmatprep.mubr.bf16.mxu0 0
      %3080 = vmatmul.mubr.bf16.gmra.mrb[0].mxu0 %v3036
      %v3081 = vpop.f32.mrb[0].mxu0
      %v3082 = vadd.f32 0.0, %v3081
      %v3083 = vpop.f32.mrb[0].mxu0
      %v3084 = vpop.f32.mrb[0].mxu0
      %v3085 = vadd.f32 0.0, %v3084
      %v3086 = vpop.f32.mrb[0].mxu0
      %3087 = vmatprep.mubr.bf16.mxu0 0
      %3088 = vmatmul.mubr.bf16.gmra.mrb[0].mxu0 %v3039
      %v3089 = vpop.f32.mrb[0].mxu0
      %v3090 = vadd.f32 0.0, %v3089
      %v3091 = vpop.f32.mrb[0].mxu0
      %v3092 = vpop.f32.mrb[0].mxu0
      %v3093 = vadd.f32 0.0, %v3092
      %v3094 = vpop.f32.mrb[0].mxu0
      %3095 = vmatprep.mubr.bf16.mxu0 0
      %3096 = vmatmul.mubr.bf16.gmra.mrb[0].mxu0 %v3042
      %v3097 = vpop.f32.mrb[0].mxu0
      %v3098 = vadd.f32 0.0, %v3097
      %v3099 = vpop.f32.mrb[0].mxu0
      %v3100 = vpop.f32.mrb[0].mxu0
      %v3101 = vadd.f32 0.0, %v3100
      %v3102 = vpop.f32.mrb[0].mxu0
      %3103 = vmatprep.mubr.bf16.mxu0 0
      %3104 = vmatmul.mubr.bf16.gmra.mrb[0].mxu0 %v3045
      %v3105 = vpop.f32.mrb[0].mxu0
      %v3106 = vadd.f32 0.0, %v3105
      %v3107 = vpop.f32.mrb[0].mxu0
      %v3108 = vpop.f32.mrb[0].mxu0
      %v3109 = vadd.f32 0.0, %v3108
      %v3110 = vpop.f32.mrb[0].mxu0
      %3111 = vdwg.mxu0
      %3112 = vrot.lane.b32.xlu0 %v1029, 56
      %v3113 = vpop.permute.xlu0 %3112
      %3114 = vrot.lane.b32.xlu0 %v1030, 56
      %v3115 = vpop.permute.xlu0 %3114
      %3116 = vrot.lane.b32.xlu0 %v1031, 56
      %v3117 = vpop.permute.xlu0 %3116
      %3118 = vrot.lane.b32.xlu0 %v1032, 56
      %v3119 = vpop.permute.xlu0 %3118
      %v3125 = vsel %vm1478, %v3011, 0
      %v3128 = vsel %vm1478, %v3012, 0
      %v3131 = vsel %vm1478, %v3013, 0
      %v3134 = vsel %vm1478, %v3014, 0
      %3136 = vmatprep.subr.bf16.mxu0 0
      %3137 = vmatpush1.bf16.msra.mxu0 %v3113
      %3138 = vmatprep.subr.bf16.mxu0 0
      %3139 = vmatpush1.bf16.msra.mxu0 %v3115
      %3140 = vmatprep.subr.bf16.mxu0 0
      %3141 = vmatpush1.bf16.msra.mxu0 %v3117
      %3142 = vmatprep.subr.bf16.mxu0 0
      %3143 = vmatpush1.bf16.msra.mxu0 %v3119
      %3144 = vmatprep.subr.bf16.mxu0 0
      %3145 = vmatpush1.bf16.msra.mxu0 0
      %3146 = vmatprep.subr.bf16.mxu0 0
      %3147 = vmatpush1.bf16.msra.mxu0 0
      %3148 = vmatprep.subr.bf16.mxu0 0
      %3149 = vmatpush1.bf16.msra.mxu0 0
      %3150 = vmatprep.subr.bf16.mxu0 0
      %3151 = vmatpush1.bf16.msra.mxu0 0
      %3152 = vmatprep.subr.bf16.mxu0 0
      %3153 = vmatpush1.bf16.msra.mxu0 0
      %3154 = vmatprep.subr.bf16.mxu0 0
      %3155 = vmatpush1.bf16.msra.mxu0 0
      %3156 = vmatprep.subr.bf16.mxu0 0
      %3157 = vmatpush1.bf16.msra.mxu0 0
      %3158 = vmatprep.subr.bf16.mxu0 0
      %3159 = vmatpush1.bf16.msra.mxu0 0
      %3160 = vmatprep.subr.bf16.mxu0 0
      %3161 = vmatpush1.bf16.msra.mxu0 0
      %3162 = vmatprep.subr.bf16.mxu0 0
      %3163 = vmatpush1.bf16.msra.mxu0 0
      %3164 = vmatprep.subr.bf16.mxu0 0
      %3165 = vmatpush1.bf16.msra.mxu0 0
      %3166 = vmatprep.subr.bf16.mxu0 0
      %3167 = vmatpush1.bf16.msra.mxu0 0
      %3168 = vmatprep.mubr.bf16.mxu0 0
      %3169 = vmatmul.mubr.bf16.gmra.mrb[0].mxu0 %v3125
      %v3170 = vpop.f32.mrb[0].mxu0
      %v3171 = vadd.f32 0.0, %v3170
      %v3172 = vpop.f32.mrb[0].mxu0
      %v3173 = vpop.f32.mrb[0].mxu0
      %v3174 = vadd.f32 0.0, %v3173
      %v3175 = vpop.f32.mrb[0].mxu0
      %3176 = vmatprep.mubr.bf16.mxu0 0
      %3177 = vmatmul.mubr.bf16.gmra.mrb[0].mxu0 %v3128
      %v3178 = vpop.f32.mrb[0].mxu0
      %v3179 = vadd.f32 0.0, %v3178
      %v3180 = vpop.f32.mrb[0].mxu0
      %v3181 = vpop.f32.mrb[0].mxu0
      %v3182 = vadd.f32 0.0, %v3181
      %v3183 = vpop.f32.mrb[0].mxu0
      %3184 = vmatprep.mubr.bf16.mxu0 0
      %3185 = vmatmul.mubr.bf16.gmra.mrb[0].mxu0 %v3131
      %v3186 = vpop.f32.mrb[0].mxu0
      %v3187 = vadd.f32 0.0, %v3186
      %v3188 = vpop.f32.mrb[0].mxu0
      %v3189 = vpop.f32.mrb[0].mxu0
      %v3190 = vadd.f32 0.0, %v3189
      %v3191 = vpop.f32.mrb[0].mxu0
      %3192 = vmatprep.mubr.bf16.mxu0 0
      %3193 = vmatmul.mubr.bf16.gmra.mrb[0].mxu0 %v3134
      %v3194 = vpop.f32.mrb[0].mxu0
      %v3195 = vadd.f32 0.0, %v3194
      %v3196 = vpop.f32.mrb[0].mxu0
      %v3197 = vpop.f32.mrb[0].mxu0
      %v3198 = vadd.f32 0.0, %v3197
      %v3199 = vpop.f32.mrb[0].mxu0
      %3200 = vdwg.mxu0
      %3201 = vrot.lane.b32.xlu0 %v1033, 56
      %v3202 = vpop.permute.xlu0 %3201
      %3203 = vrot.lane.b32.xlu0 %v1034, 56
      %v3204 = vpop.permute.xlu0 %3203
      %3205 = vrot.lane.b32.xlu0 %v1035, 56
      %v3206 = vpop.permute.xlu0 %3205
      %3207 = vrot.lane.b32.xlu0 %v1036, 56
      %v3208 = vpop.permute.xlu0 %3207
      %v3214 = vsel %vm1478, %v3015, 0
      %v3217 = vsel %vm1478, %v3016, 0
      %v3220 = vsel %vm1478, %v3017, 0
      %v3223 = vsel %vm1478, %v3018, 0
      %3225 = vmatprep.subr.bf16.mxu0 0
      %3226 = vmatpush1.bf16.msra.mxu0 %v3202
      %3227 = vmatprep.subr.bf16.mxu0 0
      %3228 = vmatpush1.bf16.msra.mxu0 %v3204
      %3229 = vmatprep.subr.bf16.mxu0 0
      %3230 = vmatpush1.bf16.msra.mxu0 %v3206
      %3231 = vmatprep.subr.bf16.mxu0 0
      %3232 = vmatpush1.bf16.msra.mxu0 %v3208
      %3233 = vmatprep.subr.bf16.mxu0 0
      %3234 = vmatpush1.bf16.msra.mxu0 0
      %3235 = vmatprep.subr.bf16.mxu0 0
      %3236 = vmatpush1.bf16.msra.mxu0 0
      %3237 = vmatprep.subr.bf16.mxu0 0
      %3238 = vmatpush1.bf16.msra.mxu0 0
      %3239 = vmatprep.subr.bf16.mxu0 0
      %3240 = vmatpush1.bf16.msra.mxu0 0
      %3241 = vmatprep.subr.bf16.mxu0 0
      %3242 = vmatpush1.bf16.msra.mxu0 0
      %3243 = vmatprep.subr.bf16.mxu0 0
      %3244 = vmatpush1.bf16.msra.mxu0 0
      %3245 = vmatprep.subr.bf16.mxu0 0
      %3246 = vmatpush1.bf16.msra.mxu0 0
      %3247 = vmatprep.subr.bf16.mxu0 0
      %3248 = vmatpush1.bf16.msra.mxu0 0
      %3249 = vmatprep.subr.bf16.mxu0 0
      %3250 = vmatpush1.bf16.msra.mxu0 0
      %3251 = vmatprep.subr.bf16.mxu0 0
      %3252 = vmatpush1.bf16.msra.mxu0 0
      %3253 = vmatprep.subr.bf16.mxu0 0
      %3254 = vmatpush1.bf16.msra.mxu0 0
      %3255 = vmatprep.subr.bf16.mxu0 0
      %3256 = vmatpush1.bf16.msra.mxu0 0
      %3257 = vmatprep.mubr.bf16.mxu0 0
      %3258 = vmatmul.mubr.bf16.gmra.mrb[0].mxu0 %v3214
      %v3259 = vpop.f32.mrb[0].mxu0
      %v3260 = vadd.f32 0.0, %v3259
      %v3261 = vpop.f32.mrb[0].mxu0
      %v3262 = vpop.f32.mrb[0].mxu0
      %v3263 = vadd.f32 0.0, %v3262
      %v3264 = vpop.f32.mrb[0].mxu0
      %3265 = vmatprep.mubr.bf16.mxu0 0
      %3266 = vmatmul.mubr.bf16.gmra.mrb[0].mxu0 %v3217
      %v3267 = vpop.f32.mrb[0].mxu0
      %v3268 = vadd.f32 0.0, %v3267
      %v3269 = vpop.f32.mrb[0].mxu0
      %v3270 = vpop.f32.mrb[0].mxu0
      %v3271 = vadd.f32 0.0, %v3270
      %v3272 = vpop.f32.mrb[0].mxu0
      %3273 = vmatprep.mubr.bf16.mxu0 0
      %3274 = vmatmul.mubr.bf16.gmra.mrb[0].mxu0 %v3220
      %v3275 = vpop.f32.mrb[0].mxu0
      %v3276 = vadd.f32 0.0, %v3275
      %v3277 = vpop.f32.mrb[0].mxu0
      %v3278 = vpop.f32.mrb[0].mxu0
      %v3279 = vadd.f32 0.0, %v3278
      %v3280 = vpop.f32.mrb[0].mxu0
      %3281 = vmatprep.mubr.bf16.mxu0 0
      %3282 = vmatmul.mubr.bf16.gmra.mrb[0].mxu0 %v3223
      %v3283 = vpop.f32.mrb[0].mxu0
      %v3284 = vadd.f32 0.0, %v3283
      %v3285 = vpop.f32.mrb[0].mxu0
      %v3286 = vpop.f32.mrb[0].mxu0
      %v3287 = vadd.f32 0.0, %v3286
      %v3288 = vpop.f32.mrb[0].mxu0
      %3289 = vdwg.mxu0
      %3290 = vrot.lane.b32.xlu0 %v1037, 56
      %v3291 = vpop.permute.xlu0 %3290
      %3292 = vrot.lane.b32.xlu0 %v1038, 56
      %v3293 = vpop.permute.xlu0 %3292
      %3294 = vrot.lane.b32.xlu0 %v1039, 56
      %v3295 = vpop.permute.xlu0 %3294
      %3296 = vrot.lane.b32.xlu0 %v1040, 56
      %v3297 = vpop.permute.xlu0 %3296
      %v3303 = vsel %vm1478, %v3019, 0
      %v3306 = vsel %vm1478, %v3020, 0
      %v3309 = vsel %vm1478, %v3021, 0
      %v3312 = vsel %vm1478, %v3022, 0
      %3314 = vmatprep.subr.bf16.mxu0 0
      %3315 = vmatpush1.bf16.msra.mxu0 %v3291
      %3316 = vmatprep.subr.bf16.mxu0 0
      %3317 = vmatpush1.bf16.msra.mxu0 %v3293
      %3318 = vmatprep.subr.bf16.mxu0 0
      %3319 = vmatpush1.bf16.msra.mxu0 %v3295
      %3320 = vmatprep.subr.bf16.mxu0 0
      %3321 = vmatpush1.bf16.msra.mxu0 %v3297
      %3322 = vmatprep.subr.bf16.mxu0 0
      %3323 = vmatpush1.bf16.msra.mxu0 0
      %3324 = vmatprep.subr.bf16.mxu0 0
      %3325 = vmatpush1.bf16.msra.mxu0 0
      %3326 = vmatprep.subr.bf16.mxu0 0
      %3327 = vmatpush1.bf16.msra.mxu0 0
      %3328 = vmatprep.subr.bf16.mxu0 0
      %3329 = vmatpush1.bf16.msra.mxu0 0
      %3330 = vmatprep.subr.bf16.mxu0 0
      %3331 = vmatpush1.bf16.msra.mxu0 0
      %3332 = vmatprep.subr.bf16.mxu0 0
      %3333 = vmatpush1.bf16.msra.mxu0 0
      %3334 = vmatprep.subr.bf16.mxu0 0
      %3335 = vmatpush1.bf16.msra.mxu0 0
      %3336 = vmatprep.subr.bf16.mxu0 0
      %3337 = vmatpush1.bf16.msra.mxu0 0
      %3338 = vmatprep.subr.bf16.mxu0 0
      %3339 = vmatpush1.bf16.msra.mxu0 0
      %3340 = vmatprep.subr.bf16.mxu0 0
      %3341 = vmatpush1.bf16.msra.mxu0 0
      %3342 = vmatprep.subr.bf16.mxu0 0
      %3343 = vmatpush1.bf16.msra.mxu0 0
      %3344 = vmatprep.subr.bf16.mxu0 0
      %3345 = vmatpush1.bf16.msra.mxu0 0
      %3346 = vmatprep.mubr.bf16.mxu0 0
      %3347 = vmatmul.mubr.bf16.gmra.mrb[0].mxu0 %v3303
      %v3348 = vpop.f32.mrb[0].mxu0
      %v3349 = vadd.f32 0.0, %v3348
      %v3350 = vpop.f32.mrb[0].mxu0
      %v3351 = vpop.f32.mrb[0].mxu0
      %v3352 = vadd.f32 0.0, %v3351
      %v3353 = vpop.f32.mrb[0].mxu0
      %3354 = vmatprep.mubr.bf16.mxu0 0
      %3355 = vmatmul.mubr.bf16.gmra.mrb[0].mxu0 %v3306
      %v3356 = vpop.f32.mrb[0].mxu0
      %v3357 = vadd.f32 0.0, %v3356
      %v3358 = vpop.f32.mrb[0].mxu0
      %v3359 = vpop.f32.mrb[0].mxu0
      %v3360 = vadd.f32 0.0, %v3359
      %v3361 = vpop.f32.mrb[0].mxu0
      %3362 = vmatprep.mubr.bf16.mxu0 0
      %3363 = vmatmul.mubr.bf16.gmra.mrb[0].mxu0 %v3309
      %v3364 = vpop.f32.mrb[0].mxu0
      %v3365 = vadd.f32 0.0, %v3364
      %v3366 = vpop.f32.mrb[0].mxu0
      %v3367 = vpop.f32.mrb[0].mxu0
      %v3368 = vadd.f32 0.0, %v3367
      %v3369 = vpop.f32.mrb[0].mxu0
      %3370 = vmatprep.mubr.bf16.mxu0 0
      %3371 = vmatmul.mubr.bf16.gmra.mrb[0].mxu0 %v3312
      %v3372 = vpop.f32.mrb[0].mxu0
      %v3373 = vadd.f32 0.0, %v3372
      %v3374 = vpop.f32.mrb[0].mxu0
      %v3375 = vpop.f32.mrb[0].mxu0
      %v3376 = vadd.f32 0.0, %v3375
      %v3377 = vpop.f32.mrb[0].mxu0
      %3378 = vdwg.mxu0
      %3379 = vrot.lane.b32.xlu0 %v1025, 112
      %v3380 = vpop.permute.xlu0 %3379
      %3381 = vrot.lane.b32.xlu0 %v1026, 112
      %v3382 = vpop.permute.xlu0 %3381
      %3383 = vrot.lane.b32.xlu0 %v1027, 112
      %v3384 = vpop.permute.xlu0 %3383
      %3385 = vrot.lane.b32.xlu0 %v1028, 112
      %v3386 = vpop.permute.xlu0 %3385
      %3387 = vrot.lane.b32.xlu0 %v1025, 80
      %v3388 = vpop.permute.xlu0 %3387
      %3389 = vrot.lane.b32.xlu0 %v1026, 80
      %v3390 = vpop.permute.xlu0 %3389
      %3391 = vrot.lane.b32.xlu0 %v1027, 80
      %v3392 = vpop.permute.xlu0 %3391
      %3393 = vrot.lane.b32.xlu0 %v1028, 80
      %v3394 = vpop.permute.xlu0 %3393
      %v3396 = vsel %vm1053, %v3380, 0
      %v3399 = vsel %vm1053, %v3382, 0
      %v3402 = vsel %vm1053, %v3384, 0
      %v3405 = vsel %vm1053, %v3386, 0
      %v3408 = vsel %vm1053, %v3388, 0
      %v3411 = vsel %vm1053, %v3390, 0
      %v3414 = vsel %vm1053, %v3392, 0
      %v3417 = vsel %vm1053, %v3394, 0
      %3419 = vmatprep.subr.bf16.mxu0 0
      %3420 = vmatpush1.bf16.xpose.msra.mxu0 %v3408
      %3421 = vmatprep.subr.bf16.mxu0 0
      %3422 = vmatpush1.bf16.xpose.msra.mxu0 %v3411
      %3423 = vmatprep.subr.bf16.mxu0 0
      %3424 = vmatpush1.bf16.xpose.msra.mxu0 %v3414
      %3425 = vmatprep.subr.bf16.mxu0 0
      %3426 = vmatpush1.bf16.xpose.msra.mxu0 %v3417
      %3427 = vmatprep.subr.bf16.mxu0 0
      %3428 = vmatpush1.bf16.xpose.msra.mxu0 0
      %3429 = vmatprep.subr.bf16.mxu0 0
      %3430 = vmatpush1.bf16.xpose.msra.mxu0 0
      %3431 = vmatprep.subr.bf16.mxu0 0
      %3432 = vmatpush1.bf16.xpose.msra.mxu0 0
      %3433 = vmatprep.subr.bf16.mxu0 0
      %3434 = vmatpush1.bf16.xpose.msra.mxu0 0
      %3435 = vmatprep.subr.bf16.mxu0 0
      %3436 = vmatpush1.bf16.xpose.msra.mxu0 0
      %3437 = vmatprep.subr.bf16.mxu0 0
      %3438 = vmatpush1.bf16.xpose.msra.mxu0 0
      %3439 = vmatprep.subr.bf16.mxu0 0
      %3440 = vmatpush1.bf16.xpose.msra.mxu0 0
      %3441 = vmatprep.subr.bf16.mxu0 0
      %3442 = vmatpush1.bf16.xpose.msra.mxu0 0
      %3443 = vmatprep.subr.bf16.mxu0 0
      %3444 = vmatpush1.bf16.xpose.msra.mxu0 0
      %3445 = vmatprep.subr.bf16.mxu0 0
      %3446 = vmatpush1.bf16.xpose.msra.mxu0 0
      %3447 = vmatprep.subr.bf16.mxu0 0
      %3448 = vmatpush1.bf16.xpose.msra.mxu0 0
      %3449 = vmatprep.subr.bf16.mxu0 0
      %3450 = vmatpush1.bf16.xpose.msra.mxu0 0
      %3451 = vmatprep.mubr.bf16.mxu0 0
      %3452 = vmatmul.mubr.bf16.gmra.mrb[0].mxu0 %v3396
      %v3453 = vpop.f32.mrb[0].mxu0
      %v3454 = vadd.f32 0.0, %v3453
      %v3455 = vpop.f32.mrb[0].mxu0
      %v3456 = vpop.f32.mrb[0].mxu0
      %v3457 = vadd.f32 0.0, %v3456
      %v3458 = vpop.f32.mrb[0].mxu0
      %3459 = vmatprep.mubr.bf16.mxu0 0
      %3460 = vmatmul.mubr.bf16.gmra.mrb[0].mxu0 %v3399
      %v3461 = vpop.f32.mrb[0].mxu0
      %v3462 = vadd.f32 0.0, %v3461
      %v3463 = vpop.f32.mrb[0].mxu0
      %v3464 = vpop.f32.mrb[0].mxu0
      %v3465 = vadd.f32 0.0, %v3464
      %v3466 = vpop.f32.mrb[0].mxu0
      %3467 = vmatprep.mubr.bf16.mxu0 0
      %3468 = vmatmul.mubr.bf16.gmra.mrb[0].mxu0 %v3402
      %v3469 = vpop.f32.mrb[0].mxu0
      %v3470 = vadd.f32 0.0, %v3469
      %v3471 = vpop.f32.mrb[0].mxu0
      %v3472 = vpop.f32.mrb[0].mxu0
      %v3473 = vadd.f32 0.0, %v3472
      %v3474 = vpop.f32.mrb[0].mxu0
      %3475 = vmatprep.mubr.bf16.mxu0 0
      %3476 = vmatmul.mubr.bf16.gmra.mrb[0].mxu0 %v3405
      %v3477 = vpop.f32.mrb[0].mxu0
      %v3478 = vadd.f32 0.0, %v3477
      %v3479 = vpop.f32.mrb[0].mxu0
      %v3480 = vpop.f32.mrb[0].mxu0
      %v3481 = vadd.f32 0.0, %v3480
      %v3482 = vpop.f32.mrb[0].mxu0
      %3483 = vdwg.mxu0
      %3484 = vrot.lane.b32.xlu0 %v1029, 112
      %v3485 = vpop.permute.xlu0 %3484
      %3486 = vrot.lane.b32.xlu0 %v1030, 112
      %v3487 = vpop.permute.xlu0 %3486
      %3488 = vrot.lane.b32.xlu0 %v1031, 112
      %v3489 = vpop.permute.xlu0 %3488
      %3490 = vrot.lane.b32.xlu0 %v1032, 112
      %v3491 = vpop.permute.xlu0 %3490
      %3492 = vrot.lane.b32.xlu0 %v1029, 80
      %v3493 = vpop.permute.xlu0 %3492
      %3494 = vrot.lane.b32.xlu0 %v1030, 80
      %v3495 = vpop.permute.xlu0 %3494
      %3496 = vrot.lane.b32.xlu0 %v1031, 80
      %v3497 = vpop.permute.xlu0 %3496
      %3498 = vrot.lane.b32.xlu0 %v1032, 80
      %v3499 = vpop.permute.xlu0 %3498
      %v3501 = vsel %vm1053, %v3485, 0
      %v3504 = vsel %vm1053, %v3487, 0
      %v3507 = vsel %vm1053, %v3489, 0
      %v3510 = vsel %vm1053, %v3491, 0
      %v3513 = vsel %vm1053, %v3493, 0
      %v3516 = vsel %vm1053, %v3495, 0
      %v3519 = vsel %vm1053, %v3497, 0
      %v3522 = vsel %vm1053, %v3499, 0
      %3524 = vmatprep.subr.bf16.mxu0 0
      %3525 = vmatpush1.bf16.xpose.msra.mxu0 %v3513
      %3526 = vmatprep.subr.bf16.mxu0 0
      %3527 = vmatpush1.bf16.xpose.msra.mxu0 %v3516
      %3528 = vmatprep.subr.bf16.mxu0 0
      %3529 = vmatpush1.bf16.xpose.msra.mxu0 %v3519
      %3530 = vmatprep.subr.bf16.mxu0 0
      %3531 = vmatpush1.bf16.xpose.msra.mxu0 %v3522
      %3532 = vmatprep.subr.bf16.mxu0 0
      %3533 = vmatpush1.bf16.xpose.msra.mxu0 0
      %3534 = vmatprep.subr.bf16.mxu0 0
      %3535 = vmatpush1.bf16.xpose.msra.mxu0 0
      %3536 = vmatprep.subr.bf16.mxu0 0
      %3537 = vmatpush1.bf16.xpose.msra.mxu0 0
      %3538 = vmatprep.subr.bf16.mxu0 0
      %3539 = vmatpush1.bf16.xpose.msra.mxu0 0
      %3540 = vmatprep.subr.bf16.mxu0 0
      %3541 = vmatpush1.bf16.xpose.msra.mxu0 0
      %3542 = vmatprep.subr.bf16.mxu0 0
      %3543 = vmatpush1.bf16.xpose.msra.mxu0 0
      %3544 = vmatprep.subr.bf16.mxu0 0
      %3545 = vmatpush1.bf16.xpose.msra.mxu0 0
      %3546 = vmatprep.subr.bf16.mxu0 0
      %3547 = vmatpush1.bf16.xpose.msra.mxu0 0
      %3548 = vmatprep.subr.bf16.mxu0 0
      %3549 = vmatpush1.bf16.xpose.msra.mxu0 0
      %3550 = vmatprep.subr.bf16.mxu0 0
      %3551 = vmatpush1.bf16.xpose.msra.mxu0 0
      %3552 = vmatprep.subr.bf16.mxu0 0
      %3553 = vmatpush1.bf16.xpose.msra.mxu0 0
      %3554 = vmatprep.subr.bf16.mxu0 0
      %3555 = vmatpush1.bf16.xpose.msra.mxu0 0
      %3556 = vmatprep.mubr.bf16.mxu0 0
      %3557 = vmatmul.mubr.bf16.gmra.mrb[0].mxu0 %v3501
      %v3558 = vpop.f32.mrb[0].mxu0
      %v3559 = vadd.f32 0.0, %v3558
      %v3560 = vpop.f32.mrb[0].mxu0
      %v3561 = vpop.f32.mrb[0].mxu0
      %v3562 = vadd.f32 0.0, %v3561
      %v3563 = vpop.f32.mrb[0].mxu0
      %3564 = vmatprep.mubr.bf16.mxu0 0
      %3565 = vmatmul.mubr.bf16.gmra.mrb[0].mxu0 %v3504
      %v3566 = vpop.f32.mrb[0].mxu0
      %v3567 = vadd.f32 0.0, %v3566
      %v3568 = vpop.f32.mrb[0].mxu0
      %v3569 = vpop.f32.mrb[0].mxu0
      %v3570 = vadd.f32 0.0, %v3569
      %v3571 = vpop.f32.mrb[0].mxu0
      %3572 = vmatprep.mubr.bf16.mxu0 0
      %3573 = vmatmul.mubr.bf16.gmra.mrb[0].mxu0 %v3507
      %v3574 = vpop.f32.mrb[0].mxu0
      %v3575 = vadd.f32 0.0, %v3574
      %v3576 = vpop.f32.mrb[0].mxu0
      %v3577 = vpop.f32.mrb[0].mxu0
      %v3578 = vadd.f32 0.0, %v3577
      %v3579 = vpop.f32.mrb[0].mxu0
      %3580 = vmatprep.mubr.bf16.mxu0 0
      %3581 = vmatmul.mubr.bf16.gmra.mrb[0].mxu0 %v3510
      %v3582 = vpop.f32.mrb[0].mxu0
      %v3583 = vadd.f32 0.0, %v3582
      %v3584 = vpop.f32.mrb[0].mxu0
      %v3585 = vpop.f32.mrb[0].mxu0
      %v3586 = vadd.f32 0.0, %v3585
      %v3587 = vpop.f32.mrb[0].mxu0
      %3588 = vdwg.mxu0
      %3589 = vrot.lane.b32.xlu0 %v1033, 112
      %v3590 = vpop.permute.xlu0 %3589
      %3591 = vrot.lane.b32.xlu0 %v1034, 112
      %v3592 = vpop.permute.xlu0 %3591
      %3593 = vrot.lane.b32.xlu0 %v1035, 112
      %v3594 = vpop.permute.xlu0 %3593
      %3595 = vrot.lane.b32.xlu0 %v1036, 112
      %v3596 = vpop.permute.xlu0 %3595
      %3597 = vrot.lane.b32.xlu0 %v1033, 80
      %v3598 = vpop.permute.xlu0 %3597
      %3599 = vrot.lane.b32.xlu0 %v1034, 80
      %v3600 = vpop.permute.xlu0 %3599
      %3601 = vrot.lane.b32.xlu0 %v1035, 80
      %v3602 = vpop.permute.xlu0 %3601
      %3603 = vrot.lane.b32.xlu0 %v1036, 80
      %v3604 = vpop.permute.xlu0 %3603
      %v3606 = vsel %vm1053, %v3590, 0
      %v3609 = vsel %vm1053, %v3592, 0
      %v3612 = vsel %vm1053, %v3594, 0
      %v3615 = vsel %vm1053, %v3596, 0
      %v3618 = vsel %vm1053, %v3598, 0
      %v3621 = vsel %vm1053, %v3600, 0
      %v3624 = vsel %vm1053, %v3602, 0
      %v3627 = vsel %vm1053, %v3604, 0
      %3629 = vmatprep.subr.bf16.mxu0 0
      %3630 = vmatpush1.bf16.xpose.msra.mxu0 %v3618
      %3631 = vmatprep.subr.bf16.mxu0 0
      %3632 = vmatpush1.bf16.xpose.msra.mxu0 %v3621
      %3633 = vmatprep.subr.bf16.mxu0 0
      %3634 = vmatpush1.bf16.xpose.msra.mxu0 %v3624
      %3635 = vmatprep.subr.bf16.mxu0 0
      %3636 = vmatpush1.bf16.xpose.msra.mxu0 %v3627
      %3637 = vmatprep.subr.bf16.mxu0 0
      %3638 = vmatpush1.bf16.xpose.msra.mxu0 0
      %3639 = vmatprep.subr.bf16.mxu0 0
      %3640 = vmatpush1.bf16.xpose.msra.mxu0 0
      %3641 = vmatprep.subr.bf16.mxu0 0
      %3642 = vmatpush1.bf16.xpose.msra.mxu0 0
      %3643 = vmatprep.subr.bf16.mxu0 0
      %3644 = vmatpush1.bf16.xpose.msra.mxu0 0
      %3645 = vmatprep.subr.bf16.mxu0 0
      %3646 = vmatpush1.bf16.xpose.msra.mxu0 0
      %3647 = vmatprep.subr.bf16.mxu0 0
      %3648 = vmatpush1.bf16.xpose.msra.mxu0 0
      %3649 = vmatprep.subr.bf16.mxu0 0
      %3650 = vmatpush1.bf16.xpose.msra.mxu0 0
      %3651 = vmatprep.subr.bf16.mxu0 0
      %3652 = vmatpush1.bf16.xpose.msra.mxu0 0
      %3653 = vmatprep.subr.bf16.mxu0 0
      %3654 = vmatpush1.bf16.xpose.msra.mxu0 0
      %3655 = vmatprep.subr.bf16.mxu0 0
      %3656 = vmatpush1.bf16.xpose.msra.mxu0 0
      %3657 = vmatprep.subr.bf16.mxu0 0
      %3658 = vmatpush1.bf16.xpose.msra.mxu0 0
      %3659 = vmatprep.subr.bf16.mxu0 0
      %3660 = vmatpush1.bf16.xpose.msra.mxu0 0
      %3661 = vmatprep.mubr.bf16.mxu0 0
      %3662 = vmatmul.mubr.bf16.gmra.mrb[0].mxu0 %v3606
      %v3663 = vpop.f32.mrb[0].mxu0
      %v3664 = vadd.f32 0.0, %v3663
      %v3665 = vpop.f32.mrb[0].mxu0
      %v3666 = vpop.f32.mrb[0].mxu0
      %v3667 = vadd.f32 0.0, %v3666
      %v3668 = vpop.f32.mrb[0].mxu0
      %3669 = vmatprep.mubr.bf16.mxu0 0
      %3670 = vmatmul.mubr.bf16.gmra.mrb[0].mxu0 %v3609
      %v3671 = vpop.f32.mrb[0].mxu0
      %v3672 = vadd.f32 0.0, %v3671
      %v3673 = vpop.f32.mrb[0].mxu0
      %v3674 = vpop.f32.mrb[0].mxu0
      %v3675 = vadd.f32 0.0, %v3674
      %v3676 = vpop.f32.mrb[0].mxu0
      %3677 = vmatprep.mubr.bf16.mxu0 0
      %3678 = vmatmul.mubr.bf16.gmra.mrb[0].mxu0 %v3612
      %v3679 = vpop.f32.mrb[0].mxu0
      %v3680 = vadd.f32 0.0, %v3679
      %v3681 = vpop.f32.mrb[0].mxu0
      %v3682 = vpop.f32.mrb[0].mxu0
      %v3683 = vadd.f32 0.0, %v3682
      %v3684 = vpop.f32.mrb[0].mxu0
      %3685 = vmatprep.mubr.bf16.mxu0 0
      %3686 = vmatmul.mubr.bf16.gmra.mrb[0].mxu0 %v3615
      %v3687 = vpop.f32.mrb[0].mxu0
      %v3688 = vadd.f32 0.0, %v3687
      %v3689 = vpop.f32.mrb[0].mxu0
      %v3690 = vpop.f32.mrb[0].mxu0
      %v3691 = vadd.f32 0.0, %v3690
      %v3692 = vpop.f32.mrb[0].mxu0
      %3693 = vdwg.mxu0
      %3694 = vrot.lane.b32.xlu0 %v1037, 112
      %v3695 = vpop.permute.xlu0 %3694
      %3696 = vrot.lane.b32.xlu0 %v1038, 112
      %v3697 = vpop.permute.xlu0 %3696
      %3698 = vrot.lane.b32.xlu0 %v1039, 112
      %v3699 = vpop.permute.xlu0 %3698
      %3700 = vrot.lane.b32.xlu0 %v1040, 112
      %v3701 = vpop.permute.xlu0 %3700
      %3702 = vrot.lane.b32.xlu0 %v1037, 80
      %v3703 = vpop.permute.xlu0 %3702
      %3704 = vrot.lane.b32.xlu0 %v1038, 80
      %v3705 = vpop.permute.xlu0 %3704
      %3706 = vrot.lane.b32.xlu0 %v1039, 80
      %v3707 = vpop.permute.xlu0 %3706
      %3708 = vrot.lane.b32.xlu0 %v1040, 80
      %v3709 = vpop.permute.xlu0 %3708
      %v3711 = vsel %vm1053, %v3695, 0
      %v3714 = vsel %vm1053, %v3697, 0
      %v3717 = vsel %vm1053, %v3699, 0
      %v3720 = vsel %vm1053, %v3701, 0
      %v3723 = vsel %vm1053, %v3703, 0
      %v3726 = vsel %vm1053, %v3705, 0
      %v3729 = vsel %vm1053, %v3707, 0
      %v3732 = vsel %vm1053, %v3709, 0
      %3734 = vmatprep.subr.bf16.mxu0 0
      %3735 = vmatpush1.bf16.xpose.msra.mxu0 %v3723
      %3736 = vmatprep.subr.bf16.mxu0 0
      %3737 = vmatpush1.bf16.xpose.msra.mxu0 %v3726
      %3738 = vmatprep.subr.bf16.mxu0 0
      %3739 = vmatpush1.bf16.xpose.msra.mxu0 %v3729
      %3740 = vmatprep.subr.bf16.mxu0 0
      %3741 = vmatpush1.bf16.xpose.msra.mxu0 %v3732
      %3742 = vmatprep.subr.bf16.mxu0 0
      %3743 = vmatpush1.bf16.xpose.msra.mxu0 0
      %3744 = vmatprep.subr.bf16.mxu0 0
      %3745 = vmatpush1.bf16.xpose.msra.mxu0 0
      %3746 = vmatprep.subr.bf16.mxu0 0
      %3747 = vmatpush1.bf16.xpose.msra.mxu0 0
      %3748 = vmatprep.subr.bf16.mxu0 0
      %3749 = vmatpush1.bf16.xpose.msra.mxu0 0
      %3750 = vmatprep.subr.bf16.mxu0 0
      %3751 = vmatpush1.bf16.xpose.msra.mxu0 0
      %3752 = vmatprep.subr.bf16.mxu0 0
      %3753 = vmatpush1.bf16.xpose.msra.mxu0 0
      %3754 = vmatprep.subr.bf16.mxu0 0
      %3755 = vmatpush1.bf16.xpose.msra.mxu0 0
      %3756 = vmatprep.subr.bf16.mxu0 0
      %3757 = vmatpush1.bf16.xpose.msra.mxu0 0
      %3758 = vmatprep.subr.bf16.mxu0 0
      %3759 = vmatpush1.bf16.xpose.msra.mxu0 0
      %3760 = vmatprep.subr.bf16.mxu0 0
      %3761 = vmatpush1.bf16.xpose.msra.mxu0 0
      %3762 = vmatprep.subr.bf16.mxu0 0
      %3763 = vmatpush1.bf16.xpose.msra.mxu0 0
      %3764 = vmatprep.subr.bf16.mxu0 0
      %3765 = vmatpush1.bf16.xpose.msra.mxu0 0
      %3766 = vmatprep.mubr.bf16.mxu0 0
      %3767 = vmatmul.mubr.bf16.gmra.mrb[0].mxu0 %v3711
      %v3768 = vpop.f32.mrb[0].mxu0
      %v3769 = vadd.f32 0.0, %v3768
      %v3770 = vpop.f32.mrb[0].mxu0
      %v3771 = vpop.f32.mrb[0].mxu0
      %v3772 = vadd.f32 0.0, %v3771
      %v3773 = vpop.f32.mrb[0].mxu0
      %3774 = vmatprep.mubr.bf16.mxu0 0
      %3775 = vmatmul.mubr.bf16.gmra.mrb[0].mxu0 %v3714
      %v3776 = vpop.f32.mrb[0].mxu0
      %v3777 = vadd.f32 0.0, %v3776
      %v3778 = vpop.f32.mrb[0].mxu0
      %v3779 = vpop.f32.mrb[0].mxu0
      %v3780 = vadd.f32 0.0, %v3779
      %v3781 = vpop.f32.mrb[0].mxu0
      %3782 = vmatprep.mubr.bf16.mxu0 0
      %3783 = vmatmul.mubr.bf16.gmra.mrb[0].mxu0 %v3717
      %v3784 = vpop.f32.mrb[0].mxu0
      %v3785 = vadd.f32 0.0, %v3784
      %v3786 = vpop.f32.mrb[0].mxu0
      %v3787 = vpop.f32.mrb[0].mxu0
      %v3788 = vadd.f32 0.0, %v3787
      %v3789 = vpop.f32.mrb[0].mxu0
      %3790 = vmatprep.mubr.bf16.mxu0 0
      %3791 = vmatmul.mubr.bf16.gmra.mrb[0].mxu0 %v3720
      %v3792 = vpop.f32.mrb[0].mxu0
      %v3793 = vadd.f32 0.0, %v3792
      %v3794 = vpop.f32.mrb[0].mxu0
      %v3795 = vpop.f32.mrb[0].mxu0
      %v3796 = vadd.f32 0.0, %v3795
      %v3797 = vpop.f32.mrb[0].mxu0
      %3798 = vdwg.mxu0
      %v3799 = vmul.f32 %v3454, 0.35355338
      %v3800 = vmul.f32 %v3457, 0.35355338
      %v3801 = vmul.f32 %v3462, 0.35355338
      %v3802 = vmul.f32 %v3465, 0.35355338
      %v3803 = vmul.f32 %v3470, 0.35355338
      %v3804 = vmul.f32 %v3473, 0.35355338
      %v3805 = vmul.f32 %v3478, 0.35355338
      %v3806 = vmul.f32 %v3481, 0.35355338
      %v3807 = vmul.f32 %v3559, 0.35355338
      %v3808 = vmul.f32 %v3562, 0.35355338
      %v3809 = vmul.f32 %v3567, 0.35355338
      %v3810 = vmul.f32 %v3570, 0.35355338
      %v3811 = vmul.f32 %v3575, 0.35355338
      %v3812 = vmul.f32 %v3578, 0.35355338
      %v3813 = vmul.f32 %v3583, 0.35355338
      %v3814 = vmul.f32 %v3586, 0.35355338
      %v3815 = vmul.f32 %v3664, 0.35355338
      %v3816 = vmul.f32 %v3667, 0.35355338
      %v3817 = vmul.f32 %v3672, 0.35355338
      %v3818 = vmul.f32 %v3675, 0.35355338
      %v3819 = vmul.f32 %v3680, 0.35355338
      %v3820 = vmul.f32 %v3683, 0.35355338
      %v3821 = vmul.f32 %v3688, 0.35355338
      %v3822 = vmul.f32 %v3691, 0.35355338
      %v3823 = vmul.f32 %v3769, 0.35355338
      %v3824 = vmul.f32 %v3772, 0.35355338
      %v3825 = vmul.f32 %v3777, 0.35355338
      %v3826 = vmul.f32 %v3780, 0.35355338
      %v3827 = vmul.f32 %v3785, 0.35355338
      %v3828 = vmul.f32 %v3788, 0.35355338
      %v3829 = vmul.f32 %v3793, 0.35355338
      %v3830 = vmul.f32 %v3796, 0.35355338
      %v3831 = vsel %vm1478, %v3799, -inf
      %3832 = vmax.xlane.f32.xlu0 %v3831
      %v3833 = vpop.xlane.xlu0 %3832
      %v3834 = vsel %vm1478, %v3800, -inf
      %3835 = vmax.xlane.f32.xlu0 %v3834
      %v3836 = vpop.xlane.xlu0 %3835
      %v3837 = vsel %vm1478, %v3801, -inf
      %3838 = vmax.xlane.f32.xlu0 %v3837
      %v3839 = vpop.xlane.xlu0 %3838
      %v3840 = vsel %vm1478, %v3802, -inf
      %3841 = vmax.xlane.f32.xlu0 %v3840
      %v3842 = vpop.xlane.xlu0 %3841
      %v3843 = vsel %vm1478, %v3803, -inf
      %3844 = vmax.xlane.f32.xlu0 %v3843
      %v3845 = vpop.xlane.xlu0 %3844
      %v3846 = vsel %vm1478, %v3804, -inf
      %3847 = vmax.xlane.f32.xlu0 %v3846
      %v3848 = vpop.xlane.xlu0 %3847
      %v3849 = vsel %vm1478, %v3805, -inf
      %3850 = vmax.xlane.f32.xlu0 %v3849
      %v3851 = vpop.xlane.xlu0 %3850
      %v3852 = vsel %vm1478, %v3806, -inf
      %3853 = vmax.xlane.f32.xlu0 %v3852
      %v3854 = vpop.xlane.xlu0 %3853
      %v3855 = vsel %vm1478, %v3807, -inf
      %3856 = vmax.xlane.f32.xlu0 %v3855
      %v3857 = vpop.xlane.xlu0 %3856
      %v3858 = vsel %vm1478, %v3808, -inf
      %3859 = vmax.xlane.f32.xlu0 %v3858
      %v3860 = vpop.xlane.xlu0 %3859
      %v3861 = vsel %vm1478, %v3809, -inf
      %3862 = vmax.xlane.f32.xlu0 %v3861
      %v3863 = vpop.xlane.xlu0 %3862
      %v3864 = vsel %vm1478, %v3810, -inf
      %3865 = vmax.xlane.f32.xlu0 %v3864
      %v3866 = vpop.xlane.xlu0 %3865
      %v3867 = vsel %vm1478, %v3811, -inf
      %3868 = vmax.xlane.f32.xlu0 %v3867
      %v3869 = vpop.xlane.xlu0 %3868
      %v3870 = vsel %vm1478, %v3812, -inf
      %3871 = vmax.xlane.f32.xlu0 %v3870
      %v3872 = vpop.xlane.xlu0 %3871
      %v3873 = vsel %vm1478, %v3813, -inf
      %3874 = vmax.xlane.f32.xlu0 %v3873
      %v3875 = vpop.xlane.xlu0 %3874
      %v3876 = vsel %vm1478, %v3814, -inf
      %3877 = vmax.xlane.f32.xlu0 %v3876
      %v3878 = vpop.xlane.xlu0 %3877
      %v3879 = vsel %vm1478, %v3815, -inf
      %3880 = vmax.xlane.f32.xlu0 %v3879
      %v3881 = vpop.xlane.xlu0 %3880
      %v3882 = vsel %vm1478, %v3816, -inf
      %3883 = vmax.xlane.f32.xlu0 %v3882
      %v3884 = vpop.xlane.xlu0 %3883
      %v3885 = vsel %vm1478, %v3817, -inf
      %3886 = vmax.xlane.f32.xlu0 %v3885
      %v3887 = vpop.xlane.xlu0 %3886
      %v3888 = vsel %vm1478, %v3818, -inf
      %3889 = vmax.xlane.f32.xlu0 %v3888
      %v3890 = vpop.xlane.xlu0 %3889
      %v3891 = vsel %vm1478, %v3819, -inf
      %3892 = vmax.xlane.f32.xlu0 %v3891
      %v3893 = vpop.xlane.xlu0 %3892
      %v3894 = vsel %vm1478, %v3820, -inf
      %3895 = vmax.xlane.f32.xlu0 %v3894
      %v3896 = vpop.xlane.xlu0 %3895
      %v3897 = vsel %vm1478, %v3821, -inf
      %3898 = vmax.xlane.f32.xlu0 %v3897
      %v3899 = vpop.xlane.xlu0 %3898
      %v3900 = vsel %vm1478, %v3822, -inf
      %3901 = vmax.xlane.f32.xlu0 %v3900
      %v3902 = vpop.xlane.xlu0 %3901
      %v3903 = vsel %vm1478, %v3823, -inf
      %3904 = vmax.xlane.f32.xlu0 %v3903
      %v3905 = vpop.xlane.xlu0 %3904
      %v3906 = vsel %vm1478, %v3824, -inf
      %3907 = vmax.xlane.f32.xlu0 %v3906
      %v3908 = vpop.xlane.xlu0 %3907
      %v3909 = vsel %vm1478, %v3825, -inf
      %3910 = vmax.xlane.f32.xlu0 %v3909
      %v3911 = vpop.xlane.xlu0 %3910
      %v3912 = vsel %vm1478, %v3826, -inf
      %3913 = vmax.xlane.f32.xlu0 %v3912
      %v3914 = vpop.xlane.xlu0 %3913
      %v3915 = vsel %vm1478, %v3827, -inf
      %3916 = vmax.xlane.f32.xlu0 %v3915
      %v3917 = vpop.xlane.xlu0 %3916
      %v3918 = vsel %vm1478, %v3828, -inf
      %3919 = vmax.xlane.f32.xlu0 %v3918
      %v3920 = vpop.xlane.xlu0 %3919
      %v3921 = vsel %vm1478, %v3829, -inf
      %3922 = vmax.xlane.f32.xlu0 %v3921
      %v3923 = vpop.xlane.xlu0 %3922
      %v3924 = vsel %vm1478, %v3830, -inf
      %3925 = vmax.xlane.f32.xlu0 %v3924
      %v3926 = vpop.xlane.xlu0 %3925
      %v3927 = vsub.f32 %v3799, %v3833
      %v3928 = vsub.f32 %v3800, %v3836
      %v3929 = vsub.f32 %v3801, %v3839
      %v3930 = vsub.f32 %v3802, %v3842
      %v3931 = vsub.f32 %v3803, %v3845
      %v3932 = vsub.f32 %v3804, %v3848
      %v3933 = vsub.f32 %v3805, %v3851
      %v3934 = vsub.f32 %v3806, %v3854
      %v3935 = vsub.f32 %v3807, %v3857
      %v3936 = vsub.f32 %v3808, %v3860
      %v3937 = vsub.f32 %v3809, %v3863
      %v3938 = vsub.f32 %v3810, %v3866
      %v3939 = vsub.f32 %v3811, %v3869
      %v3940 = vsub.f32 %v3812, %v3872
      %v3941 = vsub.f32 %v3813, %v3875
      %v3942 = vsub.f32 %v3814, %v3878
      %v3943 = vsub.f32 %v3815, %v3881
      %v3944 = vsub.f32 %v3816, %v3884
      %v3945 = vsub.f32 %v3817, %v3887
      %v3946 = vsub.f32 %v3818, %v3890
      %v3947 = vsub.f32 %v3819, %v3893
      %v3948 = vsub.f32 %v3820, %v3896
      %v3949 = vsub.f32 %v3821, %v3899
      %v3950 = vsub.f32 %v3822, %v3902
      %v3951 = vsub.f32 %v3823, %v3905
      %v3952 = vsub.f32 %v3824, %v3908
      %v3953 = vsub.f32 %v3825, %v3911
      %v3954 = vsub.f32 %v3826, %v3914
      %v3955 = vsub.f32 %v3827, %v3917
      %v3956 = vsub.f32 %v3828, %v3920
      %v3957 = vsub.f32 %v3829, %v3923
      %v3958 = vsub.f32 %v3830, %v3926
      %v3959 = vmul.f32 %v3927, 1.442695
      %v3960 = vpow.pop %v3959
      %v3961 = vmul.f32 %v3928, 1.442695
      %v3962 = vpow.pop %v3961
      %v3963 = vmul.f32 %v3929, 1.442695
      %v3964 = vpow.pop %v3963
      %v3965 = vmul.f32 %v3930, 1.442695
      %v3966 = vpow.pop %v3965
      %v3967 = vmul.f32 %v3931, 1.442695
      %v3968 = vpow.pop %v3967
      %v3969 = vmul.f32 %v3932, 1.442695
      %v3970 = vpow.pop %v3969
      %v3971 = vmul.f32 %v3933, 1.442695
      %v3972 = vpow.pop %v3971
      %v3973 = vmul.f32 %v3934, 1.442695
      %v3974 = vpow.pop %v3973
      %v3975 = vmul.f32 %v3935, 1.442695
      %v3976 = vpow.pop %v3975
      %v3977 = vmul.f32 %v3936, 1.442695
      %v3978 = vpow.pop %v3977
      %v3979 = vmul.f32 %v3937, 1.442695
      %v3980 = vpow.pop %v3979
      %v3981 = vmul.f32 %v3938, 1.442695
      %v3982 = vpow.pop %v3981
      %v3983 = vmul.f32 %v3939, 1.442695
      %v3984 = vpow.pop %v3983
      %v3985 = vmul.f32 %v3940, 1.442695
      %v3986 = vpow.pop %v3985
      %v3987 = vmul.f32 %v3941, 1.442695
      %v3988 = vpow.pop %v3987
      %v3989 = vmul.f32 %v3942, 1.442695
      %v3990 = vpow.pop %v3989
      %v3991 = vmul.f32 %v3943, 1.442695
      %v3992 = vpow.pop %v3991
      %v3993 = vmul.f32 %v3944, 1.442695
      %v3994 = vpow.pop %v3993
      %v3995 = vmul.f32 %v3945, 1.442695
      %v3996 = vpow.pop %v3995
      %v3997 = vmul.f32 %v3946, 1.442695
      %v3998 = vpow.pop %v3997
      %v3999 = vmul.f32 %v3947, 1.442695
      %v4000 = vpow.pop %v3999
      %v4001 = vmul.f32 %v3948, 1.442695
      %v4002 = vpow.pop %v4001
      %v4003 = vmul.f32 %v3949, 1.442695
      %v4004 = vpow.pop %v4003
      %v4005 = vmul.f32 %v3950, 1.442695
      %v4006 = vpow.pop %v4005
      %v4007 = vmul.f32 %v3951, 1.442695
      %v4008 = vpow.pop %v4007
      %v4009 = vmul.f32 %v3952, 1.442695
      %v4010 = vpow.pop %v4009
      %v4011 = vmul.f32 %v3953, 1.442695
      %v4012 = vpow.pop %v4011
      %v4013 = vmul.f32 %v3954, 1.442695
      %v4014 = vpow.pop %v4013
      %v4015 = vmul.f32 %v3955, 1.442695
      %v4016 = vpow.pop %v4015
      %v4017 = vmul.f32 %v3956, 1.442695
      %v4018 = vpow.pop %v4017
      %v4019 = vmul.f32 %v3957, 1.442695
      %v4020 = vpow.pop %v4019
      %v4021 = vmul.f32 %v3958, 1.442695
      %v4022 = vpow.pop %v4021
      %v4023 = vsel %vm1478, %v3960, 0.0
      %4024 = vadd.xlane.f32.xlu0 %v4023
      %v4025 = vpop.xlane.xlu0 %4024
      %v4026 = vsel %vm1478, %v3962, 0.0
      %4027 = vadd.xlane.f32.xlu0 %v4026
      %v4028 = vpop.xlane.xlu0 %4027
      %v4029 = vsel %vm1478, %v3964, 0.0
      %4030 = vadd.xlane.f32.xlu0 %v4029
      %v4031 = vpop.xlane.xlu0 %4030
      %v4032 = vsel %vm1478, %v3966, 0.0
      %4033 = vadd.xlane.f32.xlu0 %v4032
      %v4034 = vpop.xlane.xlu0 %4033
      %v4035 = vsel %vm1478, %v3968, 0.0
      %4036 = vadd.xlane.f32.xlu0 %v4035
      %v4037 = vpop.xlane.xlu0 %4036
      %v4038 = vsel %vm1478, %v3970, 0.0
      %4039 = vadd.xlane.f32.xlu0 %v4038
      %v4040 = vpop.xlane.xlu0 %4039
      %v4041 = vsel %vm1478, %v3972, 0.0
      %4042 = vadd.xlane.f32.xlu0 %v4041
      %v4043 = vpop.xlane.xlu0 %4042
      %v4044 = vsel %vm1478, %v3974, 0.0
      %4045 = vadd.xlane.f32.xlu0 %v4044
      %v4046 = vpop.xlane.xlu0 %4045
      %v4047 = vsel %vm1478, %v3976, 0.0
      %4048 = vadd.xlane.f32.xlu0 %v4047
      %v4049 = vpop.xlane.xlu0 %4048
      %v4050 = vsel %vm1478, %v3978, 0.0
      %4051 = vadd.xlane.f32.xlu0 %v4050
      %v4052 = vpop.xlane.xlu0 %4051
      %v4053 = vsel %vm1478, %v3980, 0.0
      %4054 = vadd.xlane.f32.xlu0 %v4053
      %v4055 = vpop.xlane.xlu0 %4054
      %v4056 = vsel %vm1478, %v3982, 0.0
      %4057 = vadd.xlane.f32.xlu0 %v4056
      %v4058 = vpop.xlane.xlu0 %4057
      %v4059 = vsel %vm1478, %v3984, 0.0
      %4060 = vadd.xlane.f32.xlu0 %v4059
      %v4061 = vpop.xlane.xlu0 %4060
      %v4062 = vsel %vm1478, %v3986, 0.0
      %4063 = vadd.xlane.f32.xlu0 %v4062
      %v4064 = vpop.xlane.xlu0 %4063
      %v4065 = vsel %vm1478, %v3988, 0.0
      %4066 = vadd.xlane.f32.xlu0 %v4065
      %v4067 = vpop.xlane.xlu0 %4066
      %v4068 = vsel %vm1478, %v3990, 0.0
      %4069 = vadd.xlane.f32.xlu0 %v4068
      %v4070 = vpop.xlane.xlu0 %4069
      %v4071 = vsel %vm1478, %v3992, 0.0
      %4072 = vadd.xlane.f32.xlu0 %v4071
      %v4073 = vpop.xlane.xlu0 %4072
      %v4074 = vsel %vm1478, %v3994, 0.0
      %4075 = vadd.xlane.f32.xlu0 %v4074
      %v4076 = vpop.xlane.xlu0 %4075
      %v4077 = vsel %vm1478, %v3996, 0.0
      %4078 = vadd.xlane.f32.xlu0 %v4077
      %v4079 = vpop.xlane.xlu0 %4078
      %v4080 = vsel %vm1478, %v3998, 0.0
      %4081 = vadd.xlane.f32.xlu0 %v4080
      %v4082 = vpop.xlane.xlu0 %4081
      %v4083 = vsel %vm1478, %v4000, 0.0
      %4084 = vadd.xlane.f32.xlu0 %v4083
      %v4085 = vpop.xlane.xlu0 %4084
      %v4086 = vsel %vm1478, %v4002, 0.0
      %4087 = vadd.xlane.f32.xlu0 %v4086
      %v4088 = vpop.xlane.xlu0 %4087
      %v4089 = vsel %vm1478, %v4004, 0.0
      %4090 = vadd.xlane.f32.xlu0 %v4089
      %v4091 = vpop.xlane.xlu0 %4090
      %v4092 = vsel %vm1478, %v4006, 0.0
      %4093 = vadd.xlane.f32.xlu0 %v4092
      %v4094 = vpop.xlane.xlu0 %4093
      %v4095 = vsel %vm1478, %v4008, 0.0
      %4096 = vadd.xlane.f32.xlu0 %v4095
      %v4097 = vpop.xlane.xlu0 %4096
      %v4098 = vsel %vm1478, %v4010, 0.0
      %4099 = vadd.xlane.f32.xlu0 %v4098
      %v4100 = vpop.xlane.xlu0 %4099
      %v4101 = vsel %vm1478, %v4012, 0.0
      %4102 = vadd.xlane.f32.xlu0 %v4101
      %v4103 = vpop.xlane.xlu0 %4102
      %v4104 = vsel %vm1478, %v4014, 0.0
      %4105 = vadd.xlane.f32.xlu0 %v4104
      %v4106 = vpop.xlane.xlu0 %4105
      %v4107 = vsel %vm1478, %v4016, 0.0
      %4108 = vadd.xlane.f32.xlu0 %v4107
      %v4109 = vpop.xlane.xlu0 %4108
      %v4110 = vsel %vm1478, %v4018, 0.0
      %4111 = vadd.xlane.f32.xlu0 %v4110
      %v4112 = vpop.xlane.xlu0 %4111
      %v4113 = vsel %vm1478, %v4020, 0.0
      %4114 = vadd.xlane.f32.xlu0 %v4113
      %v4115 = vpop.xlane.xlu0 %4114
      %v4116 = vsel %vm1478, %v4022, 0.0
      %4117 = vadd.xlane.f32.xlu0 %v4116
      %v4118 = vpop.xlane.xlu0 %4117
      %v4119 = vrcp.pop %v4025
      %v4120 = vmul.f32 %v3960, %v4119
      %v4121 = vrcp.pop %v4028
      %v4122 = vmul.f32 %v3962, %v4121
      %v4123 = vrcp.pop %v4031
      %v4124 = vmul.f32 %v3964, %v4123
      %v4125 = vrcp.pop %v4034
      %v4126 = vmul.f32 %v3966, %v4125
      %v4127 = vrcp.pop %v4037
      %v4128 = vmul.f32 %v3968, %v4127
      %v4129 = vrcp.pop %v4040
      %v4130 = vmul.f32 %v3970, %v4129
      %v4131 = vrcp.pop %v4043
      %v4132 = vmul.f32 %v3972, %v4131
      %v4133 = vrcp.pop %v4046
      %v4134 = vmul.f32 %v3974, %v4133
      %v4135 = vrcp.pop %v4049
      %v4136 = vmul.f32 %v3976, %v4135
      %v4137 = vrcp.pop %v4052
      %v4138 = vmul.f32 %v3978, %v4137
      %v4139 = vrcp.pop %v4055
      %v4140 = vmul.f32 %v3980, %v4139
      %v4141 = vrcp.pop %v4058
      %v4142 = vmul.f32 %v3982, %v4141
      %v4143 = vrcp.pop %v4061
      %v4144 = vmul.f32 %v3984, %v4143
      %v4145 = vrcp.pop %v4064
      %v4146 = vmul.f32 %v3986, %v4145
      %v4147 = vrcp.pop %v4067
      %v4148 = vmul.f32 %v3988, %v4147
      %v4149 = vrcp.pop %v4070
      %v4150 = vmul.f32 %v3990, %v4149
      %v4151 = vrcp.pop %v4073
      %v4152 = vmul.f32 %v3992, %v4151
      %v4153 = vrcp.pop %v4076
      %v4154 = vmul.f32 %v3994, %v4153
      %v4155 = vrcp.pop %v4079
      %v4156 = vmul.f32 %v3996, %v4155
      %v4157 = vrcp.pop %v4082
      %v4158 = vmul.f32 %v3998, %v4157
      %v4159 = vrcp.pop %v4085
      %v4160 = vmul.f32 %v4000, %v4159
      %v4161 = vrcp.pop %v4088
      %v4162 = vmul.f32 %v4002, %v4161
      %v4163 = vrcp.pop %v4091
      %v4164 = vmul.f32 %v4004, %v4163
      %v4165 = vrcp.pop %v4094
      %v4166 = vmul.f32 %v4006, %v4165
      %v4167 = vrcp.pop %v4097
      %v4168 = vmul.f32 %v4008, %v4167
      %v4169 = vrcp.pop %v4100
      %v4170 = vmul.f32 %v4010, %v4169
      %v4171 = vrcp.pop %v4103
      %v4172 = vmul.f32 %v4012, %v4171
      %v4173 = vrcp.pop %v4106
      %v4174 = vmul.f32 %v4014, %v4173
      %v4175 = vrcp.pop %v4109
      %v4176 = vmul.f32 %v4016, %v4175
      %v4177 = vrcp.pop %v4112
      %v4178 = vmul.f32 %v4018, %v4177
      %v4179 = vrcp.pop %v4115
      %v4180 = vmul.f32 %v4020, %v4179
      %v4181 = vrcp.pop %v4118
      %v4182 = vmul.f32 %v4022, %v4181
      %v4183 = vpack.c.bf16 %v4122, %v4120
      %v4184 = vpack.c.bf16 %v4126, %v4124
      %v4185 = vpack.c.bf16 %v4130, %v4128
      %v4186 = vpack.c.bf16 %v4134, %v4132
      %v4187 = vpack.c.bf16 %v4138, %v4136
      %v4188 = vpack.c.bf16 %v4142, %v4140
      %v4189 = vpack.c.bf16 %v4146, %v4144
      %v4190 = vpack.c.bf16 %v4150, %v4148
      %v4191 = vpack.c.bf16 %v4154, %v4152
      %v4192 = vpack.c.bf16 %v4158, %v4156
      %v4193 = vpack.c.bf16 %v4162, %v4160
      %v4194 = vpack.c.bf16 %v4166, %v4164
      %v4195 = vpack.c.bf16 %v4170, %v4168
      %v4196 = vpack.c.bf16 %v4174, %v4172
      %v4197 = vpack.c.bf16 %v4178, %v4176
      %v4198 = vpack.c.bf16 %v4182, %v4180
      %4199 = vrot.lane.b32.xlu0 %v1025, 48
      %v4200 = vpop.permute.xlu0 %4199
      %4201 = vrot.lane.b32.xlu0 %v1026, 48
      %v4202 = vpop.permute.xlu0 %4201
      %4203 = vrot.lane.b32.xlu0 %v1027, 48
      %v4204 = vpop.permute.xlu0 %4203
      %4205 = vrot.lane.b32.xlu0 %v1028, 48
      %v4206 = vpop.permute.xlu0 %4205
      %v4212 = vsel %vm1478, %v4183, 0
      %v4215 = vsel %vm1478, %v4184, 0
      %v4218 = vsel %vm1478, %v4185, 0
      %v4221 = vsel %vm1478, %v4186, 0
      %4223 = vmatprep.subr.bf16.mxu0 0
      %4224 = vmatpush1.bf16.msra.mxu0 %v4200
      %4225 = vmatprep.subr.bf16.mxu0 0
      %4226 = vmatpush1.bf16.msra.mxu0 %v4202
      %4227 = vmatprep.subr.bf16.mxu0 0
      %4228 = vmatpush1.bf16.msra.mxu0 %v4204
      %4229 = vmatprep.subr.bf16.mxu0 0
      %4230 = vmatpush1.bf16.msra.mxu0 %v4206
      %4231 = vmatprep.subr.bf16.mxu0 0
      %4232 = vmatpush1.bf16.msra.mxu0 0
      %4233 = vmatprep.subr.bf16.mxu0 0
      %4234 = vmatpush1.bf16.msra.mxu0 0
      %4235 = vmatprep.subr.bf16.mxu0 0
      %4236 = vmatpush1.bf16.msra.mxu0 0
      %4237 = vmatprep.subr.bf16.mxu0 0
      %4238 = vmatpush1.bf16.msra.mxu0 0
      %4239 = vmatprep.subr.bf16.mxu0 0
      %4240 = vmatpush1.bf16.msra.mxu0 0
      %4241 = vmatprep.subr.bf16.mxu0 0
      %4242 = vmatpush1.bf16.msra.mxu0 0
      %4243 = vmatprep.subr.bf16.mxu0 0
      %4244 = vmatpush1.bf16.msra.mxu0 0
      %4245 = vmatprep.subr.bf16.mxu0 0
      %4246 = vmatpush1.bf16.msra.mxu0 0
      %4247 = vmatprep.subr.bf16.mxu0 0
      %4248 = vmatpush1.bf16.msra.mxu0 0
      %4249 = vmatprep.subr.bf16.mxu0 0
      %4250 = vmatpush1.bf16.msra.mxu0 0
      %4251 = vmatprep.subr.bf16.mxu0 0
      %4252 = vmatpush1.bf16.msra.mxu0 0
      %4253 = vmatprep.subr.bf16.mxu0 0
      %4254 = vmatpush1.bf16.msra.mxu0 0
      %4255 = vmatprep.mubr.bf16.mxu0 0
      %4256 = vmatmul.mubr.bf16.gmra.mrb[0].mxu0 %v4212
      %v4257 = vpop.f32.mrb[0].mxu0
      %v4258 = vadd.f32 0.0, %v4257
      %v4259 = vpop.f32.mrb[0].mxu0
      %v4260 = vpop.f32.mrb[0].mxu0
      %v4261 = vadd.f32 0.0, %v4260
      %v4262 = vpop.f32.mrb[0].mxu0
      %4263 = vmatprep.mubr.bf16.mxu0 0
      %4264 = vmatmul.mubr.bf16.gmra.mrb[0].mxu0 %v4215
      %v4265 = vpop.f32.mrb[0].mxu0
      %v4266 = vadd.f32 0.0, %v4265
      %v4267 = vpop.f32.mrb[0].mxu0
      %v4268 = vpop.f32.mrb[0].mxu0
      %v4269 = vadd.f32 0.0, %v4268
      %v4270 = vpop.f32.mrb[0].mxu0
      %4271 = vmatprep.mubr.bf16.mxu0 0
      %4272 = vmatmul.mubr.bf16.gmra.mrb[0].mxu0 %v4218
      %v4273 = vpop.f32.mrb[0].mxu0
      %v4274 = vadd.f32 0.0, %v4273
      %v4275 = vpop.f32.mrb[0].mxu0
      %v4276 = vpop.f32.mrb[0].mxu0
      %v4277 = vadd.f32 0.0, %v4276
      %v4278 = vpop.f32.mrb[0].mxu0
      %4279 = vmatprep.mubr.bf16.mxu0 0
      %4280 = vmatmul.mubr.bf16.gmra.mrb[0].mxu0 %v4221
      %v4281 = vpop.f32.mrb[0].mxu0
      %v4282 = vadd.f32 0.0, %v4281
      %v4283 = vpop.f32.mrb[0].mxu0
      %v4284 = vpop.f32.mrb[0].mxu0
      %v4285 = vadd.f32 0.0, %v4284
      %v4286 = vpop.f32.mrb[0].mxu0
      %4287 = vdwg.mxu0
      %4288 = vrot.lane.b32.xlu0 %v1029, 48
      %v4289 = vpop.permute.xlu0 %4288
      %4290 = vrot.lane.b32.xlu0 %v1030, 48
      %v4291 = vpop.permute.xlu0 %4290
      %4292 = vrot.lane.b32.xlu0 %v1031, 48
      %v4293 = vpop.permute.xlu0 %4292
      %4294 = vrot.lane.b32.xlu0 %v1032, 48
      %v4295 = vpop.permute.xlu0 %4294
      %v4301 = vsel %vm1478, %v4187, 0
      %v4304 = vsel %vm1478, %v4188, 0
      %v4307 = vsel %vm1478, %v4189, 0
      %v4310 = vsel %vm1478, %v4190, 0
      %4312 = vmatprep.subr.bf16.mxu0 0
      %4313 = vmatpush1.bf16.msra.mxu0 %v4289
      %4314 = vmatprep.subr.bf16.mxu0 0
      %4315 = vmatpush1.bf16.msra.mxu0 %v4291
      %4316 = vmatprep.subr.bf16.mxu0 0
      %4317 = vmatpush1.bf16.msra.mxu0 %v4293
      %4318 = vmatprep.subr.bf16.mxu0 0
      %4319 = vmatpush1.bf16.msra.mxu0 %v4295
      %4320 = vmatprep.subr.bf16.mxu0 0
      %4321 = vmatpush1.bf16.msra.mxu0 0
      %4322 = vmatprep.subr.bf16.mxu0 0
      %4323 = vmatpush1.bf16.msra.mxu0 0
      %4324 = vmatprep.subr.bf16.mxu0 0
      %4325 = vmatpush1.bf16.msra.mxu0 0
      %4326 = vmatprep.subr.bf16.mxu0 0
      %4327 = vmatpush1.bf16.msra.mxu0 0
      %4328 = vmatprep.subr.bf16.mxu0 0
      %4329 = vmatpush1.bf16.msra.mxu0 0
      %4330 = vmatprep.subr.bf16.mxu0 0
      %4331 = vmatpush1.bf16.msra.mxu0 0
      %4332 = vmatprep.subr.bf16.mxu0 0
      %4333 = vmatpush1.bf16.msra.mxu0 0
      %4334 = vmatprep.subr.bf16.mxu0 0
      %4335 = vmatpush1.bf16.msra.mxu0 0
      %4336 = vmatprep.subr.bf16.mxu0 0
      %4337 = vmatpush1.bf16.msra.mxu0 0
      %4338 = vmatprep.subr.bf16.mxu0 0
      %4339 = vmatpush1.bf16.msra.mxu0 0
      %4340 = vmatprep.subr.bf16.mxu0 0
      %4341 = vmatpush1.bf16.msra.mxu0 0
      %4342 = vmatprep.subr.bf16.mxu0 0
      %4343 = vmatpush1.bf16.msra.mxu0 0
      %4344 = vmatprep.mubr.bf16.mxu0 0
      %4345 = vmatmul.mubr.bf16.gmra.mrb[0].mxu0 %v4301
      %v4346 = vpop.f32.mrb[0].mxu0
      %v4347 = vadd.f32 0.0, %v4346
      %v4348 = vpop.f32.mrb[0].mxu0
      %v4349 = vpop.f32.mrb[0].mxu0
      %v4350 = vadd.f32 0.0, %v4349
      %v4351 = vpop.f32.mrb[0].mxu0
      %4352 = vmatprep.mubr.bf16.mxu0 0
      %4353 = vmatmul.mubr.bf16.gmra.mrb[0].mxu0 %v4304
      %v4354 = vpop.f32.mrb[0].mxu0
      %v4355 = vadd.f32 0.0, %v4354
      %v4356 = vpop.f32.mrb[0].mxu0
      %v4357 = vpop.f32.mrb[0].mxu0
      %v4358 = vadd.f32 0.0, %v4357
      %v4359 = vpop.f32.mrb[0].mxu0
      %4360 = vmatprep.mubr.bf16.mxu0 0
      %4361 = vmatmul.mubr.bf16.gmra.mrb[0].mxu0 %v4307
      %v4362 = vpop.f32.mrb[0].mxu0
      %v4363 = vadd.f32 0.0, %v4362
      %v4364 = vpop.f32.mrb[0].mxu0
      %v4365 = vpop.f32.mrb[0].mxu0
      %v4366 = vadd.f32 0.0, %v4365
      %v4367 = vpop.f32.mrb[0].mxu0
      %4368 = vmatprep.mubr.bf16.mxu0 0
      %4369 = vmatmul.mubr.bf16.gmra.mrb[0].mxu0 %v4310
      %v4370 = vpop.f32.mrb[0].mxu0
      %v4371 = vadd.f32 0.0, %v4370
      %v4372 = vpop.f32.mrb[0].mxu0
      %v4373 = vpop.f32.mrb[0].mxu0
      %v4374 = vadd.f32 0.0, %v4373
      %v4375 = vpop.f32.mrb[0].mxu0
      %4376 = vdwg.mxu0
      %4377 = vrot.lane.b32.xlu0 %v1033, 48
      %v4378 = vpop.permute.xlu0 %4377
      %4379 = vrot.lane.b32.xlu0 %v1034, 48
      %v4380 = vpop.permute.xlu0 %4379
      %4381 = vrot.lane.b32.xlu0 %v1035, 48
      %v4382 = vpop.permute.xlu0 %4381
      %4383 = vrot.lane.b32.xlu0 %v1036, 48
      %v4384 = vpop.permute.xlu0 %4383
      %v4390 = vsel %vm1478, %v4191, 0
      %v4393 = vsel %vm1478, %v4192, 0
      %v4396 = vsel %vm1478, %v4193, 0
      %v4399 = vsel %vm1478, %v4194, 0
      %4401 = vmatprep.subr.bf16.mxu0 0
      %4402 = vmatpush1.bf16.msra.mxu0 %v4378
      %4403 = vmatprep.subr.bf16.mxu0 0
      %4404 = vmatpush1.bf16.msra.mxu0 %v4380
      %4405 = vmatprep.subr.bf16.mxu0 0
      %4406 = vmatpush1.bf16.msra.mxu0 %v4382
      %4407 = vmatprep.subr.bf16.mxu0 0
      %4408 = vmatpush1.bf16.msra.mxu0 %v4384
      %4409 = vmatprep.subr.bf16.mxu0 0
      %4410 = vmatpush1.bf16.msra.mxu0 0
      %4411 = vmatprep.subr.bf16.mxu0 0
      %4412 = vmatpush1.bf16.msra.mxu0 0
      %4413 = vmatprep.subr.bf16.mxu0 0
      %4414 = vmatpush1.bf16.msra.mxu0 0
      %4415 = vmatprep.subr.bf16.mxu0 0
      %4416 = vmatpush1.bf16.msra.mxu0 0
      %4417 = vmatprep.subr.bf16.mxu0 0
      %4418 = vmatpush1.bf16.msra.mxu0 0
      %4419 = vmatprep.subr.bf16.mxu0 0
      %4420 = vmatpush1.bf16.msra.mxu0 0
      %4421 = vmatprep.subr.bf16.mxu0 0
      %4422 = vmatpush1.bf16.msra.mxu0 0
      %4423 = vmatprep.subr.bf16.mxu0 0
      %4424 = vmatpush1.bf16.msra.mxu0 0
      %4425 = vmatprep.subr.bf16.mxu0 0
      %4426 = vmatpush1.bf16.msra.mxu0 0
      %4427 = vmatprep.subr.bf16.mxu0 0
      %4428 = vmatpush1.bf16.msra.mxu0 0
      %4429 = vmatprep.subr.bf16.mxu0 0
      %4430 = vmatpush1.bf16.msra.mxu0 0
      %4431 = vmatprep.subr.bf16.mxu0 0
      %4432 = vmatpush1.bf16.msra.mxu0 0
      %4433 = vmatprep.mubr.bf16.mxu0 0
      %4434 = vmatmul.mubr.bf16.gmra.mrb[0].mxu0 %v4390
      %v4435 = vpop.f32.mrb[0].mxu0
      %v4436 = vadd.f32 0.0, %v4435
      %v4437 = vpop.f32.mrb[0].mxu0
      %v4438 = vpop.f32.mrb[0].mxu0
      %v4439 = vadd.f32 0.0, %v4438
      %v4440 = vpop.f32.mrb[0].mxu0
      %4441 = vmatprep.mubr.bf16.mxu0 0
      %4442 = vmatmul.mubr.bf16.gmra.mrb[0].mxu0 %v4393
      %v4443 = vpop.f32.mrb[0].mxu0
      %v4444 = vadd.f32 0.0, %v4443
      %v4445 = vpop.f32.mrb[0].mxu0
      %v4446 = vpop.f32.mrb[0].mxu0
      %v4447 = vadd.f32 0.0, %v4446
      %v4448 = vpop.f32.mrb[0].mxu0
      %4449 = vmatprep.mubr.bf16.mxu0 0
      %4450 = vmatmul.mubr.bf16.gmra.mrb[0].mxu0 %v4396
      %v4451 = vpop.f32.mrb[0].mxu0
      %v4452 = vadd.f32 0.0, %v4451
      %v4453 = vpop.f32.mrb[0].mxu0
      %v4454 = vpop.f32.mrb[0].mxu0
      %v4455 = vadd.f32 0.0, %v4454
      %v4456 = vpop.f32.mrb[0].mxu0
      %4457 = vmatprep.mubr.bf16.mxu0 0
      %4458 = vmatmul.mubr.bf16.gmra.mrb[0].mxu0 %v4399
      %v4459 = vpop.f32.mrb[0].mxu0
      %v4460 = vadd.f32 0.0, %v4459
      %v4461 = vpop.f32.mrb[0].mxu0
      %v4462 = vpop.f32.mrb[0].mxu0
      %v4463 = vadd.f32 0.0, %v4462
      %v4464 = vpop.f32.mrb[0].mxu0
      %4465 = vdwg.mxu0
      %4466 = vrot.lane.b32.xlu0 %v1037, 48
      %v4467 = vpop.permute.xlu0 %4466
      %4468 = vrot.lane.b32.xlu0 %v1038, 48
      %v4469 = vpop.permute.xlu0 %4468
      %4470 = vrot.lane.b32.xlu0 %v1039, 48
      %v4471 = vpop.permute.xlu0 %4470
      %4472 = vrot.lane.b32.xlu0 %v1040, 48
      %v4473 = vpop.permute.xlu0 %4472
      %v4479 = vsel %vm1478, %v4195, 0
      %v4482 = vsel %vm1478, %v4196, 0
      %v4485 = vsel %vm1478, %v4197, 0
      %v4488 = vsel %vm1478, %v4198, 0
      %4490 = vmatprep.subr.bf16.mxu0 0
      %4491 = vmatpush1.bf16.msra.mxu0 %v4467
      %4492 = vmatprep.subr.bf16.mxu0 0
      %4493 = vmatpush1.bf16.msra.mxu0 %v4469
      %4494 = vmatprep.subr.bf16.mxu0 0
      %4495 = vmatpush1.bf16.msra.mxu0 %v4471
      %4496 = vmatprep.subr.bf16.mxu0 0
      %4497 = vmatpush1.bf16.msra.mxu0 %v4473
      %4498 = vmatprep.subr.bf16.mxu0 0
      %4499 = vmatpush1.bf16.msra.mxu0 0
      %4500 = vmatprep.subr.bf16.mxu0 0
      %4501 = vmatpush1.bf16.msra.mxu0 0
      %4502 = vmatprep.subr.bf16.mxu0 0
      %4503 = vmatpush1.bf16.msra.mxu0 0
      %4504 = vmatprep.subr.bf16.mxu0 0
      %4505 = vmatpush1.bf16.msra.mxu0 0
      %4506 = vmatprep.subr.bf16.mxu0 0
      %4507 = vmatpush1.bf16.msra.mxu0 0
      %4508 = vmatprep.subr.bf16.mxu0 0
      %4509 = vmatpush1.bf16.msra.mxu0 0
      %4510 = vmatprep.subr.bf16.mxu0 0
      %4511 = vmatpush1.bf16.msra.mxu0 0
      %4512 = vmatprep.subr.bf16.mxu0 0
      %4513 = vmatpush1.bf16.msra.mxu0 0
      %4514 = vmatprep.subr.bf16.mxu0 0
      %4515 = vmatpush1.bf16.msra.mxu0 0
      %4516 = vmatprep.subr.bf16.mxu0 0
      %4517 = vmatpush1.bf16.msra.mxu0 0
      %4518 = vmatprep.subr.bf16.mxu0 0
      %4519 = vmatpush1.bf16.msra.mxu0 0
      %4520 = vmatprep.subr.bf16.mxu0 0
      %4521 = vmatpush1.bf16.msra.mxu0 0
      %4522 = vmatprep.mubr.bf16.mxu0 0
      %4523 = vmatmul.mubr.bf16.gmra.mrb[0].mxu0 %v4479
      %v4524 = vpop.f32.mrb[0].mxu0
      %v4525 = vadd.f32 0.0, %v4524
      %v4526 = vpop.f32.mrb[0].mxu0
      %v4527 = vpop.f32.mrb[0].mxu0
      %v4528 = vadd.f32 0.0, %v4527
      %v4529 = vpop.f32.mrb[0].mxu0
      %4530 = vmatprep.mubr.bf16.mxu0 0
      %4531 = vmatmul.mubr.bf16.gmra.mrb[0].mxu0 %v4482
      %v4532 = vpop.f32.mrb[0].mxu0
      %v4533 = vadd.f32 0.0, %v4532
      %v4534 = vpop.f32.mrb[0].mxu0
      %v4535 = vpop.f32.mrb[0].mxu0
      %v4536 = vadd.f32 0.0, %v4535
      %v4537 = vpop.f32.mrb[0].mxu0
      %4538 = vmatprep.mubr.bf16.mxu0 0
      %4539 = vmatmul.mubr.bf16.gmra.mrb[0].mxu0 %v4485
      %v4540 = vpop.f32.mrb[0].mxu0
      %v4541 = vadd.f32 0.0, %v4540
      %v4542 = vpop.f32.mrb[0].mxu0
      %v4543 = vpop.f32.mrb[0].mxu0
      %v4544 = vadd.f32 0.0, %v4543
      %v4545 = vpop.f32.mrb[0].mxu0
      %4546 = vmatprep.mubr.bf16.mxu0 0
      %4547 = vmatmul.mubr.bf16.gmra.mrb[0].mxu0 %v4488
      %v4548 = vpop.f32.mrb[0].mxu0
      %v4549 = vadd.f32 0.0, %v4548
      %v4550 = vpop.f32.mrb[0].mxu0
      %v4551 = vpop.f32.mrb[0].mxu0
      %v4552 = vadd.f32 0.0, %v4551
      %v4553 = vpop.f32.mrb[0].mxu0
      %4554 = vdwg.mxu0
      %4555 = vrot.lane.b32.xlu0 %v1025, 104
      %v4556 = vpop.permute.xlu0 %4555
      %4557 = vrot.lane.b32.xlu0 %v1026, 104
      %v4558 = vpop.permute.xlu0 %4557
      %4559 = vrot.lane.b32.xlu0 %v1027, 104
      %v4560 = vpop.permute.xlu0 %4559
      %4561 = vrot.lane.b32.xlu0 %v1028, 104
      %v4562 = vpop.permute.xlu0 %4561
      %4563 = vrot.lane.b32.xlu0 %v1025, 72
      %v4564 = vpop.permute.xlu0 %4563
      %4565 = vrot.lane.b32.xlu0 %v1026, 72
      %v4566 = vpop.permute.xlu0 %4565
      %4567 = vrot.lane.b32.xlu0 %v1027, 72
      %v4568 = vpop.permute.xlu0 %4567
      %4569 = vrot.lane.b32.xlu0 %v1028, 72
      %v4570 = vpop.permute.xlu0 %4569
      %v4572 = vsel %vm1053, %v4556, 0
      %v4575 = vsel %vm1053, %v4558, 0
      %v4578 = vsel %vm1053, %v4560, 0
      %v4581 = vsel %vm1053, %v4562, 0
      %v4584 = vsel %vm1053, %v4564, 0
      %v4587 = vsel %vm1053, %v4566, 0
      %v4590 = vsel %vm1053, %v4568, 0
      %v4593 = vsel %vm1053, %v4570, 0
      %4595 = vmatprep.subr.bf16.mxu0 0
      %4596 = vmatpush1.bf16.xpose.msra.mxu0 %v4584
      %4597 = vmatprep.subr.bf16.mxu0 0
      %4598 = vmatpush1.bf16.xpose.msra.mxu0 %v4587
      %4599 = vmatprep.subr.bf16.mxu0 0
      %4600 = vmatpush1.bf16.xpose.msra.mxu0 %v4590
      %4601 = vmatprep.subr.bf16.mxu0 0
      %4602 = vmatpush1.bf16.xpose.msra.mxu0 %v4593
      %4603 = vmatprep.subr.bf16.mxu0 0
      %4604 = vmatpush1.bf16.xpose.msra.mxu0 0
      %4605 = vmatprep.subr.bf16.mxu0 0
      %4606 = vmatpush1.bf16.xpose.msra.mxu0 0
      %4607 = vmatprep.subr.bf16.mxu0 0
      %4608 = vmatpush1.bf16.xpose.msra.mxu0 0
      %4609 = vmatprep.subr.bf16.mxu0 0
      %4610 = vmatpush1.bf16.xpose.msra.mxu0 0
      %4611 = vmatprep.subr.bf16.mxu0 0
      %4612 = vmatpush1.bf16.xpose.msra.mxu0 0
      %4613 = vmatprep.subr.bf16.mxu0 0
      %4614 = vmatpush1.bf16.xpose.msra.mxu0 0
      %4615 = vmatprep.subr.bf16.mxu0 0
      %4616 = vmatpush1.bf16.xpose.msra.mxu0 0
      %4617 = vmatprep.subr.bf16.mxu0 0
      %4618 = vmatpush1.bf16.xpose.msra.mxu0 0
      %4619 = vmatprep.subr.bf16.mxu0 0
      %4620 = vmatpush1.bf16.xpose.msra.mxu0 0
      %4621 = vmatprep.subr.bf16.mxu0 0
      %4622 = vmatpush1.bf16.xpose.msra.mxu0 0
      %4623 = vmatprep.subr.bf16.mxu0 0
      %4624 = vmatpush1.bf16.xpose.msra.mxu0 0
      %4625 = vmatprep.subr.bf16.mxu0 0
      %4626 = vmatpush1.bf16.xpose.msra.mxu0 0
      %4627 = vmatprep.mubr.bf16.mxu0 0
      %4628 = vmatmul.mubr.bf16.gmra.mrb[0].mxu0 %v4572
      %v4629 = vpop.f32.mrb[0].mxu0
      %v4630 = vadd.f32 0.0, %v4629
      %v4631 = vpop.f32.mrb[0].mxu0
      %v4632 = vpop.f32.mrb[0].mxu0
      %v4633 = vadd.f32 0.0, %v4632
      %v4634 = vpop.f32.mrb[0].mxu0
      %4635 = vmatprep.mubr.bf16.mxu0 0
      %4636 = vmatmul.mubr.bf16.gmra.mrb[0].mxu0 %v4575
      %v4637 = vpop.f32.mrb[0].mxu0
      %v4638 = vadd.f32 0.0, %v4637
      %v4639 = vpop.f32.mrb[0].mxu0
      %v4640 = vpop.f32.mrb[0].mxu0
      %v4641 = vadd.f32 0.0, %v4640
      %v4642 = vpop.f32.mrb[0].mxu0
      %4643 = vmatprep.mubr.bf16.mxu0 0
      %4644 = vmatmul.mubr.bf16.gmra.mrb[0].mxu0 %v4578
      %v4645 = vpop.f32.mrb[0].mxu0
      %v4646 = vadd.f32 0.0, %v4645
      %v4647 = vpop.f32.mrb[0].mxu0
      %v4648 = vpop.f32.mrb[0].mxu0
      %v4649 = vadd.f32 0.0, %v4648
      %v4650 = vpop.f32.mrb[0].mxu0
      %4651 = vmatprep.mubr.bf16.mxu0 0
      %4652 = vmatmul.mubr.bf16.gmra.mrb[0].mxu0 %v4581
      %v4653 = vpop.f32.mrb[0].mxu0
      %v4654 = vadd.f32 0.0, %v4653
      %v4655 = vpop.f32.mrb[0].mxu0
      %v4656 = vpop.f32.mrb[0].mxu0
      %v4657 = vadd.f32 0.0, %v4656
      %v4658 = vpop.f32.mrb[0].mxu0
      %4659 = vdwg.mxu0
      %4660 = vrot.lane.b32.xlu0 %v1029, 104
      %v4661 = vpop.permute.xlu0 %4660
      %4662 = vrot.lane.b32.xlu0 %v1030, 104
      %v4663 = vpop.permute.xlu0 %4662
      %4664 = vrot.lane.b32.xlu0 %v1031, 104
      %v4665 = vpop.permute.xlu0 %4664
      %4666 = vrot.lane.b32.xlu0 %v1032, 104
      %v4667 = vpop.permute.xlu0 %4666
      %4668 = vrot.lane.b32.xlu0 %v1029, 72
      %v4669 = vpop.permute.xlu0 %4668
      %4670 = vrot.lane.b32.xlu0 %v1030, 72
      %v4671 = vpop.permute.xlu0 %4670
      %4672 = vrot.lane.b32.xlu0 %v1031, 72
      %v4673 = vpop.permute.xlu0 %4672
      %4674 = vrot.lane.b32.xlu0 %v1032, 72
      %v4675 = vpop.permute.xlu0 %4674
      %v4677 = vsel %vm1053, %v4661, 0
      %v4680 = vsel %vm1053, %v4663, 0
      %v4683 = vsel %vm1053, %v4665, 0
      %v4686 = vsel %vm1053, %v4667, 0
      %v4689 = vsel %vm1053, %v4669, 0
      %v4692 = vsel %vm1053, %v4671, 0
      %v4695 = vsel %vm1053, %v4673, 0
      %v4698 = vsel %vm1053, %v4675, 0
      %4700 = vmatprep.subr.bf16.mxu0 0
      %4701 = vmatpush1.bf16.xpose.msra.mxu0 %v4689
      %4702 = vmatprep.subr.bf16.mxu0 0
      %4703 = vmatpush1.bf16.xpose.msra.mxu0 %v4692
      %4704 = vmatprep.subr.bf16.mxu0 0
      %4705 = vmatpush1.bf16.xpose.msra.mxu0 %v4695
      %4706 = vmatprep.subr.bf16.mxu0 0
      %4707 = vmatpush1.bf16.xpose.msra.mxu0 %v4698
      %4708 = vmatprep.subr.bf16.mxu0 0
      %4709 = vmatpush1.bf16.xpose.msra.mxu0 0
      %4710 = vmatprep.subr.bf16.mxu0 0
      %4711 = vmatpush1.bf16.xpose.msra.mxu0 0
      %4712 = vmatprep.subr.bf16.mxu0 0
      %4713 = vmatpush1.bf16.xpose.msra.mxu0 0
      %4714 = vmatprep.subr.bf16.mxu0 0
      %4715 = vmatpush1.bf16.xpose.msra.mxu0 0
      %4716 = vmatprep.subr.bf16.mxu0 0
      %4717 = vmatpush1.bf16.xpose.msra.mxu0 0
      %4718 = vmatprep.subr.bf16.mxu0 0
      %4719 = vmatpush1.bf16.xpose.msra.mxu0 0
      %4720 = vmatprep.subr.bf16.mxu0 0
      %4721 = vmatpush1.bf16.xpose.msra.mxu0 0
      %4722 = vmatprep.subr.bf16.mxu0 0
      %4723 = vmatpush1.bf16.xpose.msra.mxu0 0
      %4724 = vmatprep.subr.bf16.mxu0 0
      %4725 = vmatpush1.bf16.xpose.msra.mxu0 0
      %4726 = vmatprep.subr.bf16.mxu0 0
      %4727 = vmatpush1.bf16.xpose.msra.mxu0 0
      %4728 = vmatprep.subr.bf16.mxu0 0
      %4729 = vmatpush1.bf16.xpose.msra.mxu0 0
      %4730 = vmatprep.subr.bf16.mxu0 0
      %4731 = vmatpush1.bf16.xpose.msra.mxu0 0
      %4732 = vmatprep.mubr.bf16.mxu0 0
      %4733 = vmatmul.mubr.bf16.gmra.mrb[0].mxu0 %v4677
      %v4734 = vpop.f32.mrb[0].mxu0
      %v4735 = vadd.f32 0.0, %v4734
      %v4736 = vpop.f32.mrb[0].mxu0
      %v4737 = vpop.f32.mrb[0].mxu0
      %v4738 = vadd.f32 0.0, %v4737
      %v4739 = vpop.f32.mrb[0].mxu0
      %4740 = vmatprep.mubr.bf16.mxu0 0
      %4741 = vmatmul.mubr.bf16.gmra.mrb[0].mxu0 %v4680
      %v4742 = vpop.f32.mrb[0].mxu0
      %v4743 = vadd.f32 0.0, %v4742
      %v4744 = vpop.f32.mrb[0].mxu0
      %v4745 = vpop.f32.mrb[0].mxu0
      %v4746 = vadd.f32 0.0, %v4745
      %v4747 = vpop.f32.mrb[0].mxu0
      %4748 = vmatprep.mubr.bf16.mxu0 0
      %4749 = vmatmul.mubr.bf16.gmra.mrb[0].mxu0 %v4683
      %v4750 = vpop.f32.mrb[0].mxu0
      %v4751 = vadd.f32 0.0, %v4750
      %v4752 = vpop.f32.mrb[0].mxu0
      %v4753 = vpop.f32.mrb[0].mxu0
      %v4754 = vadd.f32 0.0, %v4753
      %v4755 = vpop.f32.mrb[0].mxu0
      %4756 = vmatprep.mubr.bf16.mxu0 0
      %4757 = vmatmul.mubr.bf16.gmra.mrb[0].mxu0 %v4686
      %v4758 = vpop.f32.mrb[0].mxu0
      %v4759 = vadd.f32 0.0, %v4758
      %v4760 = vpop.f32.mrb[0].mxu0
      %v4761 = vpop.f32.mrb[0].mxu0
      %v4762 = vadd.f32 0.0, %v4761
      %v4763 = vpop.f32.mrb[0].mxu0
      %4764 = vdwg.mxu0
      %4765 = vrot.lane.b32.xlu0 %v1033, 104
      %v4766 = vpop.permute.xlu0 %4765
      %4767 = vrot.lane.b32.xlu0 %v1034, 104
      %v4768 = vpop.permute.xlu0 %4767
      %4769 = vrot.lane.b32.xlu0 %v1035, 104
      %v4770 = vpop.permute.xlu0 %4769
      %4771 = vrot.lane.b32.xlu0 %v1036, 104
      %v4772 = vpop.permute.xlu0 %4771
      %4773 = vrot.lane.b32.xlu0 %v1033, 72
      %v4774 = vpop.permute.xlu0 %4773
      %4775 = vrot.lane.b32.xlu0 %v1034, 72
      %v4776 = vpop.permute.xlu0 %4775
      %4777 = vrot.lane.b32.xlu0 %v1035, 72
      %v4778 = vpop.permute.xlu0 %4777
      %4779 = vrot.lane.b32.xlu0 %v1036, 72
      %v4780 = vpop.permute.xlu0 %4779
      %v4782 = vsel %vm1053, %v4766, 0
      %v4785 = vsel %vm1053, %v4768, 0
      %v4788 = vsel %vm1053, %v4770, 0
      %v4791 = vsel %vm1053, %v4772, 0
      %v4794 = vsel %vm1053, %v4774, 0
      %v4797 = vsel %vm1053, %v4776, 0
      %v4800 = vsel %vm1053, %v4778, 0
      %v4803 = vsel %vm1053, %v4780, 0
      %4805 = vmatprep.subr.bf16.mxu0 0
      %4806 = vmatpush1.bf16.xpose.msra.mxu0 %v4794
      %4807 = vmatprep.subr.bf16.mxu0 0
      %4808 = vmatpush1.bf16.xpose.msra.mxu0 %v4797
      %4809 = vmatprep.subr.bf16.mxu0 0
      %4810 = vmatpush1.bf16.xpose.msra.mxu0 %v4800
      %4811 = vmatprep.subr.bf16.mxu0 0
      %4812 = vmatpush1.bf16.xpose.msra.mxu0 %v4803
      %4813 = vmatprep.subr.bf16.mxu0 0
      %4814 = vmatpush1.bf16.xpose.msra.mxu0 0
      %4815 = vmatprep.subr.bf16.mxu0 0
      %4816 = vmatpush1.bf16.xpose.msra.mxu0 0
      %4817 = vmatprep.subr.bf16.mxu0 0
      %4818 = vmatpush1.bf16.xpose.msra.mxu0 0
      %4819 = vmatprep.subr.bf16.mxu0 0
      %4820 = vmatpush1.bf16.xpose.msra.mxu0 0
      %4821 = vmatprep.subr.bf16.mxu0 0
      %4822 = vmatpush1.bf16.xpose.msra.mxu0 0
      %4823 = vmatprep.subr.bf16.mxu0 0
      %4824 = vmatpush1.bf16.xpose.msra.mxu0 0
      %4825 = vmatprep.subr.bf16.mxu0 0
      %4826 = vmatpush1.bf16.xpose.msra.mxu0 0
      %4827 = vmatprep.subr.bf16.mxu0 0
      %4828 = vmatpush1.bf16.xpose.msra.mxu0 0
      %4829 = vmatprep.subr.bf16.mxu0 0
      %4830 = vmatpush1.bf16.xpose.msra.mxu0 0
      %4831 = vmatprep.subr.bf16.mxu0 0
      %4832 = vmatpush1.bf16.xpose.msra.mxu0 0
      %4833 = vmatprep.subr.bf16.mxu0 0
      %4834 = vmatpush1.bf16.xpose.msra.mxu0 0
      %4835 = vmatprep.subr.bf16.mxu0 0
      %4836 = vmatpush1.bf16.xpose.msra.mxu0 0
      %4837 = vmatprep.mubr.bf16.mxu0 0
      %4838 = vmatmul.mubr.bf16.gmra.mrb[0].mxu0 %v4782
      %v4839 = vpop.f32.mrb[0].mxu0
      %v4840 = vadd.f32 0.0, %v4839
      %v4841 = vpop.f32.mrb[0].mxu0
      %v4842 = vpop.f32.mrb[0].mxu0
      %v4843 = vadd.f32 0.0, %v4842
      %v4844 = vpop.f32.mrb[0].mxu0
      %4845 = vmatprep.mubr.bf16.mxu0 0
      %4846 = vmatmul.mubr.bf16.gmra.mrb[0].mxu0 %v4785
      %v4847 = vpop.f32.mrb[0].mxu0
      %v4848 = vadd.f32 0.0, %v4847
      %v4849 = vpop.f32.mrb[0].mxu0
      %v4850 = vpop.f32.mrb[0].mxu0
      %v4851 = vadd.f32 0.0, %v4850
      %v4852 = vpop.f32.mrb[0].mxu0
      %4853 = vmatprep.mubr.bf16.mxu0 0
      %4854 = vmatmul.mubr.bf16.gmra.mrb[0].mxu0 %v4788
      %v4855 = vpop.f32.mrb[0].mxu0
      %v4856 = vadd.f32 0.0, %v4855
      %v4857 = vpop.f32.mrb[0].mxu0
      %v4858 = vpop.f32.mrb[0].mxu0
      %v4859 = vadd.f32 0.0, %v4858
      %v4860 = vpop.f32.mrb[0].mxu0
      %4861 = vmatprep.mubr.bf16.mxu0 0
      %4862 = vmatmul.mubr.bf16.gmra.mrb[0].mxu0 %v4791
      %v4863 = vpop.f32.mrb[0].mxu0
      %v4864 = vadd.f32 0.0, %v4863
      %v4865 = vpop.f32.mrb[0].mxu0
      %v4866 = vpop.f32.mrb[0].mxu0
      %v4867 = vadd.f32 0.0, %v4866
      %v4868 = vpop.f32.mrb[0].mxu0
      %4869 = vdwg.mxu0
      %4870 = vrot.lane.b32.xlu0 %v1037, 104
      %v4871 = vpop.permute.xlu0 %4870
      %4872 = vrot.lane.b32.xlu0 %v1038, 104
      %v4873 = vpop.permute.xlu0 %4872
      %4874 = vrot.lane.b32.xlu0 %v1039, 104
      %v4875 = vpop.permute.xlu0 %4874
      %4876 = vrot.lane.b32.xlu0 %v1040, 104
      %v4877 = vpop.permute.xlu0 %4876
      %4878 = vrot.lane.b32.xlu0 %v1037, 72
      %v4879 = vpop.permute.xlu0 %4878
      %4880 = vrot.lane.b32.xlu0 %v1038, 72
      %v4881 = vpop.permute.xlu0 %4880
      %4882 = vrot.lane.b32.xlu0 %v1039, 72
      %v4883 = vpop.permute.xlu0 %4882
      %4884 = vrot.lane.b32.xlu0 %v1040, 72
      %v4885 = vpop.permute.xlu0 %4884
      %v4887 = vsel %vm1053, %v4871, 0
      %v4890 = vsel %vm1053, %v4873, 0
      %v4893 = vsel %vm1053, %v4875, 0
      %v4896 = vsel %vm1053, %v4877, 0
      %v4899 = vsel %vm1053, %v4879, 0
      %v4902 = vsel %vm1053, %v4881, 0
      %v4905 = vsel %vm1053, %v4883, 0
      %v4908 = vsel %vm1053, %v4885, 0
      %4910 = vmatprep.subr.bf16.mxu0 0
      %4911 = vmatpush1.bf16.xpose.msra.mxu0 %v4899
      %4912 = vmatprep.subr.bf16.mxu0 0
      %4913 = vmatpush1.bf16.xpose.msra.mxu0 %v4902
      %4914 = vmatprep.subr.bf16.mxu0 0
      %4915 = vmatpush1.bf16.xpose.msra.mxu0 %v4905
      %4916 = vmatprep.subr.bf16.mxu0 0
      %4917 = vmatpush1.bf16.xpose.msra.mxu0 %v4908
      %4918 = vmatprep.subr.bf16.mxu0 0
      %4919 = vmatpush1.bf16.xpose.msra.mxu0 0
      %4920 = vmatprep.subr.bf16.mxu0 0
      %4921 = vmatpush1.bf16.xpose.msra.mxu0 0
      %4922 = vmatprep.subr.bf16.mxu0 0
      %4923 = vmatpush1.bf16.xpose.msra.mxu0 0
      %4924 = vmatprep.subr.bf16.mxu0 0
      %4925 = vmatpush1.bf16.xpose.msra.mxu0 0
      %4926 = vmatprep.subr.bf16.mxu0 0
      %4927 = vmatpush1.bf16.xpose.msra.mxu0 0
      %4928 = vmatprep.subr.bf16.mxu0 0
      %4929 = vmatpush1.bf16.xpose.msra.mxu0 0
      %4930 = vmatprep.subr.bf16.mxu0 0
      %4931 = vmatpush1.bf16.xpose.msra.mxu0 0
      %4932 = vmatprep.subr.bf16.mxu0 0
      %4933 = vmatpush1.bf16.xpose.msra.mxu0 0
      %4934 = vmatprep.subr.bf16.mxu0 0
      %4935 = vmatpush1.bf16.xpose.msra.mxu0 0
      %4936 = vmatprep.subr.bf16.mxu0 0
      %4937 = vmatpush1.bf16.xpose.msra.mxu0 0
      %4938 = vmatprep.subr.bf16.mxu0 0
      %4939 = vmatpush1.bf16.xpose.msra.mxu0 0
      %4940 = vmatprep.subr.bf16.mxu0 0
      %4941 = vmatpush1.bf16.xpose.msra.mxu0 0
      %4942 = vmatprep.mubr.bf16.mxu0 0
      %4943 = vmatmul.mubr.bf16.gmra.mrb[0].mxu0 %v4887
      %v4944 = vpop.f32.mrb[0].mxu0
      %v4945 = vadd.f32 0.0, %v4944
      %v4946 = vpop.f32.mrb[0].mxu0
      %v4947 = vpop.f32.mrb[0].mxu0
      %v4948 = vadd.f32 0.0, %v4947
      %v4949 = vpop.f32.mrb[0].mxu0
      %4950 = vmatprep.mubr.bf16.mxu0 0
      %4951 = vmatmul.mubr.bf16.gmra.mrb[0].mxu0 %v4890
      %v4952 = vpop.f32.mrb[0].mxu0
      %v4953 = vadd.f32 0.0, %v4952
      %v4954 = vpop.f32.mrb[0].mxu0
      %v4955 = vpop.f32.mrb[0].mxu0
      %v4956 = vadd.f32 0.0, %v4955
      %v4957 = vpop.f32.mrb[0].mxu0
      %4958 = vmatprep.mubr.bf16.mxu0 0
      %4959 = vmatmul.mubr.bf16.gmra.mrb[0].mxu0 %v4893
      %v4960 = vpop.f32.mrb[0].mxu0
      %v4961 = vadd.f32 0.0, %v4960
      %v4962 = vpop.f32.mrb[0].mxu0
      %v4963 = vpop.f32.mrb[0].mxu0
      %v4964 = vadd.f32 0.0, %v4963
      %v4965 = vpop.f32.mrb[0].mxu0
      %4966 = vmatprep.mubr.bf16.mxu0 0
      %4967 = vmatmul.mubr.bf16.gmra.mrb[0].mxu0 %v4896
      %v4968 = vpop.f32.mrb[0].mxu0
      %v4969 = vadd.f32 0.0, %v4968
      %v4970 = vpop.f32.mrb[0].mxu0
      %v4971 = vpop.f32.mrb[0].mxu0
      %v4972 = vadd.f32 0.0, %v4971
      %v4973 = vpop.f32.mrb[0].mxu0
      %4974 = vdwg.mxu0
      %v4975 = vmul.f32 %v4630, 0.35355338
      %v4976 = vmul.f32 %v4633, 0.35355338
      %v4977 = vmul.f32 %v4638, 0.35355338
      %v4978 = vmul.f32 %v4641, 0.35355338
      %v4979 = vmul.f32 %v4646, 0.35355338
      %v4980 = vmul.f32 %v4649, 0.35355338
      %v4981 = vmul.f32 %v4654, 0.35355338
      %v4982 = vmul.f32 %v4657, 0.35355338
      %v4983 = vmul.f32 %v4735, 0.35355338
      %v4984 = vmul.f32 %v4738, 0.35355338
      %v4985 = vmul.f32 %v4743, 0.35355338
      %v4986 = vmul.f32 %v4746, 0.35355338
      %v4987 = vmul.f32 %v4751, 0.35355338
      %v4988 = vmul.f32 %v4754, 0.35355338
      %v4989 = vmul.f32 %v4759, 0.35355338
      %v4990 = vmul.f32 %v4762, 0.35355338
      %v4991 = vmul.f32 %v4840, 0.35355338
      %v4992 = vmul.f32 %v4843, 0.35355338
      %v4993 = vmul.f32 %v4848, 0.35355338
      %v4994 = vmul.f32 %v4851, 0.35355338
      %v4995 = vmul.f32 %v4856, 0.35355338
      %v4996 = vmul.f32 %v4859, 0.35355338
      %v4997 = vmul.f32 %v4864, 0.35355338
      %v4998 = vmul.f32 %v4867, 0.35355338
      %v4999 = vmul.f32 %v4945, 0.35355338
      %v5000 = vmul.f32 %v4948, 0.35355338
      %v5001 = vmul.f32 %v4953, 0.35355338
      %v5002 = vmul.f32 %v4956, 0.35355338
      %v5003 = vmul.f32 %v4961, 0.35355338
      %v5004 = vmul.f32 %v4964, 0.35355338
      %v5005 = vmul.f32 %v4969, 0.35355338
      %v5006 = vmul.f32 %v4972, 0.35355338
      %v5007 = vsel %vm1478, %v4975, -inf
      %5008 = vmax.xlane.f32.xlu0 %v5007
      %v5009 = vpop.xlane.xlu0 %5008
      %v5010 = vsel %vm1478, %v4976, -inf
      %5011 = vmax.xlane.f32.xlu0 %v5010
      %v5012 = vpop.xlane.xlu0 %5011
      %v5013 = vsel %vm1478, %v4977, -inf
      %5014 = vmax.xlane.f32.xlu0 %v5013
      %v5015 = vpop.xlane.xlu0 %5014
      %v5016 = vsel %vm1478, %v4978, -inf
      %5017 = vmax.xlane.f32.xlu0 %v5016
      %v5018 = vpop.xlane.xlu0 %5017
      %v5019 = vsel %vm1478, %v4979, -inf
      %5020 = vmax.xlane.f32.xlu0 %v5019
      %v5021 = vpop.xlane.xlu0 %5020
      %v5022 = vsel %vm1478, %v4980, -inf
      %5023 = vmax.xlane.f32.xlu0 %v5022
      %v5024 = vpop.xlane.xlu0 %5023
      %v5025 = vsel %vm1478, %v4981, -inf
      %5026 = vmax.xlane.f32.xlu0 %v5025
      %v5027 = vpop.xlane.xlu0 %5026
      %v5028 = vsel %vm1478, %v4982, -inf
      %5029 = vmax.xlane.f32.xlu0 %v5028
      %v5030 = vpop.xlane.xlu0 %5029
      %v5031 = vsel %vm1478, %v4983, -inf
      %5032 = vmax.xlane.f32.xlu0 %v5031
      %v5033 = vpop.xlane.xlu0 %5032
      %v5034 = vsel %vm1478, %v4984, -inf
      %5035 = vmax.xlane.f32.xlu0 %v5034
      %v5036 = vpop.xlane.xlu0 %5035
      %v5037 = vsel %vm1478, %v4985, -inf
      %5038 = vmax.xlane.f32.xlu0 %v5037
      %v5039 = vpop.xlane.xlu0 %5038
      %v5040 = vsel %vm1478, %v4986, -inf
      %5041 = vmax.xlane.f32.xlu0 %v5040
      %v5042 = vpop.xlane.xlu0 %5041
      %v5043 = vsel %vm1478, %v4987, -inf
      %5044 = vmax.xlane.f32.xlu0 %v5043
      %v5045 = vpop.xlane.xlu0 %5044
      %v5046 = vsel %vm1478, %v4988, -inf
      %5047 = vmax.xlane.f32.xlu0 %v5046
      %v5048 = vpop.xlane.xlu0 %5047
      %v5049 = vsel %vm1478, %v4989, -inf
      %5050 = vmax.xlane.f32.xlu0 %v5049
      %v5051 = vpop.xlane.xlu0 %5050
      %v5052 = vsel %vm1478, %v4990, -inf
      %5053 = vmax.xlane.f32.xlu0 %v5052
      %v5054 = vpop.xlane.xlu0 %5053
      %v5055 = vsel %vm1478, %v4991, -inf
      %5056 = vmax.xlane.f32.xlu0 %v5055
      %v5057 = vpop.xlane.xlu0 %5056
      %v5058 = vsel %vm1478, %v4992, -inf
      %5059 = vmax.xlane.f32.xlu0 %v5058
      %v5060 = vpop.xlane.xlu0 %5059
      %v5061 = vsel %vm1478, %v4993, -inf
      %5062 = vmax.xlane.f32.xlu0 %v5061
      %v5063 = vpop.xlane.xlu0 %5062
      %v5064 = vsel %vm1478, %v4994, -inf
      %5065 = vmax.xlane.f32.xlu0 %v5064
      %v5066 = vpop.xlane.xlu0 %5065
      %v5067 = vsel %vm1478, %v4995, -inf
      %5068 = vmax.xlane.f32.xlu0 %v5067
      %v5069 = vpop.xlane.xlu0 %5068
      %v5070 = vsel %vm1478, %v4996, -inf
      %5071 = vmax.xlane.f32.xlu0 %v5070
      %v5072 = vpop.xlane.xlu0 %5071
      %v5073 = vsel %vm1478, %v4997, -inf
      %5074 = vmax.xlane.f32.xlu0 %v5073
      %v5075 = vpop.xlane.xlu0 %5074
      %v5076 = vsel %vm1478, %v4998, -inf
      %5077 = vmax.xlane.f32.xlu0 %v5076
      %v5078 = vpop.xlane.xlu0 %5077
      %v5079 = vsel %vm1478, %v4999, -inf
      %5080 = vmax.xlane.f32.xlu0 %v5079
      %v5081 = vpop.xlane.xlu0 %5080
      %v5082 = vsel %vm1478, %v5000, -inf
      %5083 = vmax.xlane.f32.xlu0 %v5082
      %v5084 = vpop.xlane.xlu0 %5083
      %v5085 = vsel %vm1478, %v5001, -inf
      %5086 = vmax.xlane.f32.xlu0 %v5085
      %v5087 = vpop.xlane.xlu0 %5086
      %v5088 = vsel %vm1478, %v5002, -inf
      %5089 = vmax.xlane.f32.xlu0 %v5088
      %v5090 = vpop.xlane.xlu0 %5089
      %v5091 = vsel %vm1478, %v5003, -inf
      %5092 = vmax.xlane.f32.xlu0 %v5091
      %v5093 = vpop.xlane.xlu0 %5092
      %v5094 = vsel %vm1478, %v5004, -inf
      %5095 = vmax.xlane.f32.xlu0 %v5094
      %v5096 = vpop.xlane.xlu0 %5095
      %v5097 = vsel %vm1478, %v5005, -inf
      %5098 = vmax.xlane.f32.xlu0 %v5097
      %v5099 = vpop.xlane.xlu0 %5098
      %v5100 = vsel %vm1478, %v5006, -inf
      %5101 = vmax.xlane.f32.xlu0 %v5100
      %v5102 = vpop.xlane.xlu0 %5101
      %v5103 = vsub.f32 %v4975, %v5009
      %v5104 = vsub.f32 %v4976, %v5012
      %v5105 = vsub.f32 %v4977, %v5015
      %v5106 = vsub.f32 %v4978, %v5018
      %v5107 = vsub.f32 %v4979, %v5021
      %v5108 = vsub.f32 %v4980, %v5024
      %v5109 = vsub.f32 %v4981, %v5027
      %v5110 = vsub.f32 %v4982, %v5030
      %v5111 = vsub.f32 %v4983, %v5033
      %v5112 = vsub.f32 %v4984, %v5036
      %v5113 = vsub.f32 %v4985, %v5039
      %v5114 = vsub.f32 %v4986, %v5042
      %v5115 = vsub.f32 %v4987, %v5045
      %v5116 = vsub.f32 %v4988, %v5048
      %v5117 = vsub.f32 %v4989, %v5051
      %v5118 = vsub.f32 %v4990, %v5054
      %v5119 = vsub.f32 %v4991, %v5057
      %v5120 = vsub.f32 %v4992, %v5060
      %v5121 = vsub.f32 %v4993, %v5063
      %v5122 = vsub.f32 %v4994, %v5066
      %v5123 = vsub.f32 %v4995, %v5069
      %v5124 = vsub.f32 %v4996, %v5072
      %v5125 = vsub.f32 %v4997, %v5075
      %v5126 = vsub.f32 %v4998, %v5078
      %v5127 = vsub.f32 %v4999, %v5081
      %v5128 = vsub.f32 %v5000, %v5084
      %v5129 = vsub.f32 %v5001, %v5087
      %v5130 = vsub.f32 %v5002, %v5090
      %v5131 = vsub.f32 %v5003, %v5093
      %v5132 = vsub.f32 %v5004, %v5096
      %v5133 = vsub.f32 %v5005, %v5099
      %v5134 = vsub.f32 %v5006, %v5102
      %v5135 = vmul.f32 %v5103, 1.442695
      %v5136 = vpow.pop %v5135
      %v5137 = vmul.f32 %v5104, 1.442695
      %v5138 = vpow.pop %v5137
      %v5139 = vmul.f32 %v5105, 1.442695
      %v5140 = vpow.pop %v5139
      %v5141 = vmul.f32 %v5106, 1.442695
      %v5142 = vpow.pop %v5141
      %v5143 = vmul.f32 %v5107, 1.442695
      %v5144 = vpow.pop %v5143
      %v5145 = vmul.f32 %v5108, 1.442695
      %v5146 = vpow.pop %v5145
      %v5147 = vmul.f32 %v5109, 1.442695
      %v5148 = vpow.pop %v5147
      %v5149 = vmul.f32 %v5110, 1.442695
      %v5150 = vpow.pop %v5149
      %v5151 = vmul.f32 %v5111, 1.442695
      %v5152 = vpow.pop %v5151
      %v5153 = vmul.f32 %v5112, 1.442695
      %v5154 = vpow.pop %v5153
      %v5155 = vmul.f32 %v5113, 1.442695
      %v5156 = vpow.pop %v5155
      %v5157 = vmul.f32 %v5114, 1.442695
      %v5158 = vpow.pop %v5157
      %v5159 = vmul.f32 %v5115, 1.442695
      %v5160 = vpow.pop %v5159
      %v5161 = vmul.f32 %v5116, 1.442695
      %v5162 = vpow.pop %v5161
      %v5163 = vmul.f32 %v5117, 1.442695
      %v5164 = vpow.pop %v5163
      %v5165 = vmul.f32 %v5118, 1.442695
      %v5166 = vpow.pop %v5165
      %v5167 = vmul.f32 %v5119, 1.442695
      %v5168 = vpow.pop %v5167
      %v5169 = vmul.f32 %v5120, 1.442695
      %v5170 = vpow.pop %v5169
      %v5171 = vmul.f32 %v5121, 1.442695
      %v5172 = vpow.pop %v5171
      %v5173 = vmul.f32 %v5122, 1.442695
      %v5174 = vpow.pop %v5173
      %v5175 = vmul.f32 %v5123, 1.442695
      %v5176 = vpow.pop %v5175
      %v5177 = vmul.f32 %v5124, 1.442695
      %v5178 = vpow.pop %v5177
      %v5179 = vmul.f32 %v5125, 1.442695
      %v5180 = vpow.pop %v5179
      %v5181 = vmul.f32 %v5126, 1.442695
      %v5182 = vpow.pop %v5181
      %v5183 = vmul.f32 %v5127, 1.442695
      %v5184 = vpow.pop %v5183
      %v5185 = vmul.f32 %v5128, 1.442695
      %v5186 = vpow.pop %v5185
      %v5187 = vmul.f32 %v5129, 1.442695
      %v5188 = vpow.pop %v5187
      %v5189 = vmul.f32 %v5130, 1.442695
      %v5190 = vpow.pop %v5189
      %v5191 = vmul.f32 %v5131, 1.442695
      %v5192 = vpow.pop %v5191
      %v5193 = vmul.f32 %v5132, 1.442695
      %v5194 = vpow.pop %v5193
      %v5195 = vmul.f32 %v5133, 1.442695
      %v5196 = vpow.pop %v5195
      %v5197 = vmul.f32 %v5134, 1.442695
      %v5198 = vpow.pop %v5197
      %v5199 = vsel %vm1478, %v5136, 0.0
      %5200 = vadd.xlane.f32.xlu0 %v5199
      %v5201 = vpop.xlane.xlu0 %5200
      %v5202 = vsel %vm1478, %v5138, 0.0
      %5203 = vadd.xlane.f32.xlu0 %v5202
      %v5204 = vpop.xlane.xlu0 %5203
      %v5205 = vsel %vm1478, %v5140, 0.0
      %5206 = vadd.xlane.f32.xlu0 %v5205
      %v5207 = vpop.xlane.xlu0 %5206
      %v5208 = vsel %vm1478, %v5142, 0.0
      %5209 = vadd.xlane.f32.xlu0 %v5208
      %v5210 = vpop.xlane.xlu0 %5209
      %v5211 = vsel %vm1478, %v5144, 0.0
      %5212 = vadd.xlane.f32.xlu0 %v5211
      %v5213 = vpop.xlane.xlu0 %5212
      %v5214 = vsel %vm1478, %v5146, 0.0
      %5215 = vadd.xlane.f32.xlu0 %v5214
      %v5216 = vpop.xlane.xlu0 %5215
      %v5217 = vsel %vm1478, %v5148, 0.0
      %5218 = vadd.xlane.f32.xlu0 %v5217
      %v5219 = vpop.xlane.xlu0 %5218
      %v5220 = vsel %vm1478, %v5150, 0.0
      %5221 = vadd.xlane.f32.xlu0 %v5220
      %v5222 = vpop.xlane.xlu0 %5221
      %v5223 = vsel %vm1478, %v5152, 0.0
      %5224 = vadd.xlane.f32.xlu0 %v5223
      %v5225 = vpop.xlane.xlu0 %5224
      %v5226 = vsel %vm1478, %v5154, 0.0
      %5227 = vadd.xlane.f32.xlu0 %v5226
      %v5228 = vpop.xlane.xlu0 %5227
      %v5229 = vsel %vm1478, %v5156, 0.0
      %5230 = vadd.xlane.f32.xlu0 %v5229
      %v5231 = vpop.xlane.xlu0 %5230
      %v5232 = vsel %vm1478, %v5158, 0.0
      %5233 = vadd.xlane.f32.xlu0 %v5232
      %v5234 = vpop.xlane.xlu0 %5233
      %v5235 = vsel %vm1478, %v5160, 0.0
      %5236 = vadd.xlane.f32.xlu0 %v5235
      %v5237 = vpop.xlane.xlu0 %5236
      %v5238 = vsel %vm1478, %v5162, 0.0
      %5239 = vadd.xlane.f32.xlu0 %v5238
      %v5240 = vpop.xlane.xlu0 %5239
      %v5241 = vsel %vm1478, %v5164, 0.0
      %5242 = vadd.xlane.f32.xlu0 %v5241
      %v5243 = vpop.xlane.xlu0 %5242
      %v5244 = vsel %vm1478, %v5166, 0.0
      %5245 = vadd.xlane.f32.xlu0 %v5244
      %v5246 = vpop.xlane.xlu0 %5245
      %v5247 = vsel %vm1478, %v5168, 0.0
      %5248 = vadd.xlane.f32.xlu0 %v5247
      %v5249 = vpop.xlane.xlu0 %5248
      %v5250 = vsel %vm1478, %v5170, 0.0
      %5251 = vadd.xlane.f32.xlu0 %v5250
      %v5252 = vpop.xlane.xlu0 %5251
      %v5253 = vsel %vm1478, %v5172, 0.0
      %5254 = vadd.xlane.f32.xlu0 %v5253
      %v5255 = vpop.xlane.xlu0 %5254
      %v5256 = vsel %vm1478, %v5174, 0.0
      %5257 = vadd.xlane.f32.xlu0 %v5256
      %v5258 = vpop.xlane.xlu0 %5257
      %v5259 = vsel %vm1478, %v5176, 0.0
      %5260 = vadd.xlane.f32.xlu0 %v5259
      %v5261 = vpop.xlane.xlu0 %5260
      %v5262 = vsel %vm1478, %v5178, 0.0
      %5263 = vadd.xlane.f32.xlu0 %v5262
      %v5264 = vpop.xlane.xlu0 %5263
      %v5265 = vsel %vm1478, %v5180, 0.0
      %5266 = vadd.xlane.f32.xlu0 %v5265
      %v5267 = vpop.xlane.xlu0 %5266
      %v5268 = vsel %vm1478, %v5182, 0.0
      %5269 = vadd.xlane.f32.xlu0 %v5268
      %v5270 = vpop.xlane.xlu0 %5269
      %v5271 = vsel %vm1478, %v5184, 0.0
      %5272 = vadd.xlane.f32.xlu0 %v5271
      %v5273 = vpop.xlane.xlu0 %5272
      %v5274 = vsel %vm1478, %v5186, 0.0
      %5275 = vadd.xlane.f32.xlu0 %v5274
      %v5276 = vpop.xlane.xlu0 %5275
      %v5277 = vsel %vm1478, %v5188, 0.0
      %5278 = vadd.xlane.f32.xlu0 %v5277
      %v5279 = vpop.xlane.xlu0 %5278
      %v5280 = vsel %vm1478, %v5190, 0.0
      %5281 = vadd.xlane.f32.xlu0 %v5280
      %v5282 = vpop.xlane.xlu0 %5281
      %v5283 = vsel %vm1478, %v5192, 0.0
      %5284 = vadd.xlane.f32.xlu0 %v5283
      %v5285 = vpop.xlane.xlu0 %5284
      %v5286 = vsel %vm1478, %v5194, 0.0
      %5287 = vadd.xlane.f32.xlu0 %v5286
      %v5288 = vpop.xlane.xlu0 %5287
      %v5289 = vsel %vm1478, %v5196, 0.0
      %5290 = vadd.xlane.f32.xlu0 %v5289
      %v5291 = vpop.xlane.xlu0 %5290
      %v5292 = vsel %vm1478, %v5198, 0.0
      %5293 = vadd.xlane.f32.xlu0 %v5292
      %v5294 = vpop.xlane.xlu0 %5293
      %v5295 = vrcp.pop %v5201
      %v5296 = vmul.f32 %v5136, %v5295
      %v5297 = vrcp.pop %v5204
      %v5298 = vmul.f32 %v5138, %v5297
      %v5299 = vrcp.pop %v5207
      %v5300 = vmul.f32 %v5140, %v5299
      %v5301 = vrcp.pop %v5210
      %v5302 = vmul.f32 %v5142, %v5301
      %v5303 = vrcp.pop %v5213
      %v5304 = vmul.f32 %v5144, %v5303
      %v5305 = vrcp.pop %v5216
      %v5306 = vmul.f32 %v5146, %v5305
      %v5307 = vrcp.pop %v5219
      %v5308 = vmul.f32 %v5148, %v5307
      %v5309 = vrcp.pop %v5222
      %v5310 = vmul.f32 %v5150, %v5309
      %v5311 = vrcp.pop %v5225
      %v5312 = vmul.f32 %v5152, %v5311
      %v5313 = vrcp.pop %v5228
      %v5314 = vmul.f32 %v5154, %v5313
      %v5315 = vrcp.pop %v5231
      %v5316 = vmul.f32 %v5156, %v5315
      %v5317 = vrcp.pop %v5234
      %v5318 = vmul.f32 %v5158, %v5317
      %v5319 = vrcp.pop %v5237
      %v5320 = vmul.f32 %v5160, %v5319
      %v5321 = vrcp.pop %v5240
      %v5322 = vmul.f32 %v5162, %v5321
      %v5323 = vrcp.pop %v5243
      %v5324 = vmul.f32 %v5164, %v5323
      %v5325 = vrcp.pop %v5246
      %v5326 = vmul.f32 %v5166, %v5325
      %v5327 = vrcp.pop %v5249
      %v5328 = vmul.f32 %v5168, %v5327
      %v5329 = vrcp.pop %v5252
      %v5330 = vmul.f32 %v5170, %v5329
      %v5331 = vrcp.pop %v5255
      %v5332 = vmul.f32 %v5172, %v5331
      %v5333 = vrcp.pop %v5258
      %v5334 = vmul.f32 %v5174, %v5333
      %v5335 = vrcp.pop %v5261
      %v5336 = vmul.f32 %v5176, %v5335
      %v5337 = vrcp.pop %v5264
      %v5338 = vmul.f32 %v5178, %v5337
      %v5339 = vrcp.pop %v5267
      %v5340 = vmul.f32 %v5180, %v5339
      %v5341 = vrcp.pop %v5270
      %v5342 = vmul.f32 %v5182, %v5341
      %v5343 = vrcp.pop %v5273
      %v5344 = vmul.f32 %v5184, %v5343
      %v5345 = vrcp.pop %v5276
      %v5346 = vmul.f32 %v5186, %v5345
      %v5347 = vrcp.pop %v5279
      %v5348 = vmul.f32 %v5188, %v5347
      %v5349 = vrcp.pop %v5282
      %v5350 = vmul.f32 %v5190, %v5349
      %v5351 = vrcp.pop %v5285
      %v5352 = vmul.f32 %v5192, %v5351
      %v5353 = vrcp.pop %v5288
      %v5354 = vmul.f32 %v5194, %v5353
      %v5355 = vrcp.pop %v5291
      %v5356 = vmul.f32 %v5196, %v5355
      %v5357 = vrcp.pop %v5294
      %v5358 = vmul.f32 %v5198, %v5357
      %v5359 = vpack.c.bf16 %v5298, %v5296
      %v5360 = vpack.c.bf16 %v5302, %v5300
      %v5361 = vpack.c.bf16 %v5306, %v5304
      %v5362 = vpack.c.bf16 %v5310, %v5308
      %v5363 = vpack.c.bf16 %v5314, %v5312
      %v5364 = vpack.c.bf16 %v5318, %v5316
      %v5365 = vpack.c.bf16 %v5322, %v5320
      %v5366 = vpack.c.bf16 %v5326, %v5324
      %v5367 = vpack.c.bf16 %v5330, %v5328
      %v5368 = vpack.c.bf16 %v5334, %v5332
      %v5369 = vpack.c.bf16 %v5338, %v5336
      %v5370 = vpack.c.bf16 %v5342, %v5340
      %v5371 = vpack.c.bf16 %v5346, %v5344
      %v5372 = vpack.c.bf16 %v5350, %v5348
      %v5373 = vpack.c.bf16 %v5354, %v5352
      %v5374 = vpack.c.bf16 %v5358, %v5356
      %5375 = vrot.lane.b32.xlu0 %v1025, 40
      %v5376 = vpop.permute.xlu0 %5375
      %5377 = vrot.lane.b32.xlu0 %v1026, 40
      %v5378 = vpop.permute.xlu0 %5377
      %5379 = vrot.lane.b32.xlu0 %v1027, 40
      %v5380 = vpop.permute.xlu0 %5379
      %5381 = vrot.lane.b32.xlu0 %v1028, 40
      %v5382 = vpop.permute.xlu0 %5381
      %v5388 = vsel %vm1478, %v5359, 0
      %v5391 = vsel %vm1478, %v5360, 0
      %v5394 = vsel %vm1478, %v5361, 0
      %v5397 = vsel %vm1478, %v5362, 0
      %5399 = vmatprep.subr.bf16.mxu0 0
      %5400 = vmatpush1.bf16.msra.mxu0 %v5376
      %5401 = vmatprep.subr.bf16.mxu0 0
      %5402 = vmatpush1.bf16.msra.mxu0 %v5378
      %5403 = vmatprep.subr.bf16.mxu0 0
      %5404 = vmatpush1.bf16.msra.mxu0 %v5380
      %5405 = vmatprep.subr.bf16.mxu0 0
      %5406 = vmatpush1.bf16.msra.mxu0 %v5382
      %5407 = vmatprep.subr.bf16.mxu0 0
      %5408 = vmatpush1.bf16.msra.mxu0 0
      %5409 = vmatprep.subr.bf16.mxu0 0
      %5410 = vmatpush1.bf16.msra.mxu0 0
      %5411 = vmatprep.subr.bf16.mxu0 0
      %5412 = vmatpush1.bf16.msra.mxu0 0
      %5413 = vmatprep.subr.bf16.mxu0 0
      %5414 = vmatpush1.bf16.msra.mxu0 0
      %5415 = vmatprep.subr.bf16.mxu0 0
      %5416 = vmatpush1.bf16.msra.mxu0 0
      %5417 = vmatprep.subr.bf16.mxu0 0
      %5418 = vmatpush1.bf16.msra.mxu0 0
      %5419 = vmatprep.subr.bf16.mxu0 0
      %5420 = vmatpush1.bf16.msra.mxu0 0
      %5421 = vmatprep.subr.bf16.mxu0 0
      %5422 = vmatpush1.bf16.msra.mxu0 0
      %5423 = vmatprep.subr.bf16.mxu0 0
      %5424 = vmatpush1.bf16.msra.mxu0 0
      %5425 = vmatprep.subr.bf16.mxu0 0
      %5426 = vmatpush1.bf16.msra.mxu0 0
      %5427 = vmatprep.subr.bf16.mxu0 0
      %5428 = vmatpush1.bf16.msra.mxu0 0
      %5429 = vmatprep.subr.bf16.mxu0 0
      %5430 = vmatpush1.bf16.msra.mxu0 0
      %5431 = vmatprep.mubr.bf16.mxu0 0
      %5432 = vmatmul.mubr.bf16.gmra.mrb[0].mxu0 %v5388
      %v5433 = vpop.f32.mrb[0].mxu0
      %v5434 = vadd.f32 0.0, %v5433
      %v5435 = vpop.f32.mrb[0].mxu0
      %v5436 = vpop.f32.mrb[0].mxu0
      %v5437 = vadd.f32 0.0, %v5436
      %v5438 = vpop.f32.mrb[0].mxu0
      %5439 = vmatprep.mubr.bf16.mxu0 0
      %5440 = vmatmul.mubr.bf16.gmra.mrb[0].mxu0 %v5391
      %v5441 = vpop.f32.mrb[0].mxu0
      %v5442 = vadd.f32 0.0, %v5441
      %v5443 = vpop.f32.mrb[0].mxu0
      %v5444 = vpop.f32.mrb[0].mxu0
      %v5445 = vadd.f32 0.0, %v5444
      %v5446 = vpop.f32.mrb[0].mxu0
      %5447 = vmatprep.mubr.bf16.mxu0 0
      %5448 = vmatmul.mubr.bf16.gmra.mrb[0].mxu0 %v5394
      %v5449 = vpop.f32.mrb[0].mxu0
      %v5450 = vadd.f32 0.0, %v5449
      %v5451 = vpop.f32.mrb[0].mxu0
      %v5452 = vpop.f32.mrb[0].mxu0
      %v5453 = vadd.f32 0.0, %v5452
      %v5454 = vpop.f32.mrb[0].mxu0
      %5455 = vmatprep.mubr.bf16.mxu0 0
      %5456 = vmatmul.mubr.bf16.gmra.mrb[0].mxu0 %v5397
      %v5457 = vpop.f32.mrb[0].mxu0
      %v5458 = vadd.f32 0.0, %v5457
      %v5459 = vpop.f32.mrb[0].mxu0
      %v5460 = vpop.f32.mrb[0].mxu0
      %v5461 = vadd.f32 0.0, %v5460
      %v5462 = vpop.f32.mrb[0].mxu0
      %5463 = vdwg.mxu0
      %5464 = vrot.lane.b32.xlu0 %v1029, 40
      %v5465 = vpop.permute.xlu0 %5464
      %5466 = vrot.lane.b32.xlu0 %v1030, 40
      %v5467 = vpop.permute.xlu0 %5466
      %5468 = vrot.lane.b32.xlu0 %v1031, 40
      %v5469 = vpop.permute.xlu0 %5468
      %5470 = vrot.lane.b32.xlu0 %v1032, 40
      %v5471 = vpop.permute.xlu0 %5470
      %v5477 = vsel %vm1478, %v5363, 0
      %v5480 = vsel %vm1478, %v5364, 0
      %v5483 = vsel %vm1478, %v5365, 0
      %v5486 = vsel %vm1478, %v5366, 0
      %5488 = vmatprep.subr.bf16.mxu0 0
      %5489 = vmatpush1.bf16.msra.mxu0 %v5465
      %5490 = vmatprep.subr.bf16.mxu0 0
      %5491 = vmatpush1.bf16.msra.mxu0 %v5467
      %5492 = vmatprep.subr.bf16.mxu0 0
      %5493 = vmatpush1.bf16.msra.mxu0 %v5469
      %5494 = vmatprep.subr.bf16.mxu0 0
      %5495 = vmatpush1.bf16.msra.mxu0 %v5471
      %5496 = vmatprep.subr.bf16.mxu0 0
      %5497 = vmatpush1.bf16.msra.mxu0 0
      %5498 = vmatprep.subr.bf16.mxu0 0
      %5499 = vmatpush1.bf16.msra.mxu0 0
      %5500 = vmatprep.subr.bf16.mxu0 0
      %5501 = vmatpush1.bf16.msra.mxu0 0
      %5502 = vmatprep.subr.bf16.mxu0 0
      %5503 = vmatpush1.bf16.msra.mxu0 0
      %5504 = vmatprep.subr.bf16.mxu0 0
      %5505 = vmatpush1.bf16.msra.mxu0 0
      %5506 = vmatprep.subr.bf16.mxu0 0
      %5507 = vmatpush1.bf16.msra.mxu0 0
      %5508 = vmatprep.subr.bf16.mxu0 0
      %5509 = vmatpush1.bf16.msra.mxu0 0
      %5510 = vmatprep.subr.bf16.mxu0 0
      %5511 = vmatpush1.bf16.msra.mxu0 0
      %5512 = vmatprep.subr.bf16.mxu0 0
      %5513 = vmatpush1.bf16.msra.mxu0 0
      %5514 = vmatprep.subr.bf16.mxu0 0
      %5515 = vmatpush1.bf16.msra.mxu0 0
      %5516 = vmatprep.subr.bf16.mxu0 0
      %5517 = vmatpush1.bf16.msra.mxu0 0
      %5518 = vmatprep.subr.bf16.mxu0 0
      %5519 = vmatpush1.bf16.msra.mxu0 0
      %5520 = vmatprep.mubr.bf16.mxu0 0
      %5521 = vmatmul.mubr.bf16.gmra.mrb[0].mxu0 %v5477
      %v5522 = vpop.f32.mrb[0].mxu0
      %v5523 = vadd.f32 0.0, %v5522
      %v5524 = vpop.f32.mrb[0].mxu0
      %v5525 = vpop.f32.mrb[0].mxu0
      %v5526 = vadd.f32 0.0, %v5525
      %v5527 = vpop.f32.mrb[0].mxu0
      %5528 = vmatprep.mubr.bf16.mxu0 0
      %5529 = vmatmul.mubr.bf16.gmra.mrb[0].mxu0 %v5480
      %v5530 = vpop.f32.mrb[0].mxu0
      %v5531 = vadd.f32 0.0, %v5530
      %v5532 = vpop.f32.mrb[0].mxu0
      %v5533 = vpop.f32.mrb[0].mxu0
      %v5534 = vadd.f32 0.0, %v5533
      %v5535 = vpop.f32.mrb[0].mxu0
      %5536 = vmatprep.mubr.bf16.mxu0 0
      %5537 = vmatmul.mubr.bf16.gmra.mrb[0].mxu0 %v5483
      %v5538 = vpop.f32.mrb[0].mxu0
      %v5539 = vadd.f32 0.0, %v5538
      %v5540 = vpop.f32.mrb[0].mxu0
      %v5541 = vpop.f32.mrb[0].mxu0
      %v5542 = vadd.f32 0.0, %v5541
      %v5543 = vpop.f32.mrb[0].mxu0
      %5544 = vmatprep.mubr.bf16.mxu0 0
      %5545 = vmatmul.mubr.bf16.gmra.mrb[0].mxu0 %v5486
      %v5546 = vpop.f32.mrb[0].mxu0
      %v5547 = vadd.f32 0.0, %v5546
      %v5548 = vpop.f32.mrb[0].mxu0
      %v5549 = vpop.f32.mrb[0].mxu0
      %v5550 = vadd.f32 0.0, %v5549
      %v5551 = vpop.f32.mrb[0].mxu0
      %5552 = vdwg.mxu0
      %5553 = vrot.lane.b32.xlu0 %v1033, 40
      %v5554 = vpop.permute.xlu0 %5553
      %5555 = vrot.lane.b32.xlu0 %v1034, 40
      %v5556 = vpop.permute.xlu0 %5555
      %5557 = vrot.lane.b32.xlu0 %v1035, 40
      %v5558 = vpop.permute.xlu0 %5557
      %5559 = vrot.lane.b32.xlu0 %v1036, 40
      %v5560 = vpop.permute.xlu0 %5559
      %v5566 = vsel %vm1478, %v5367, 0
      %v5569 = vsel %vm1478, %v5368, 0
      %v5572 = vsel %vm1478, %v5369, 0
      %v5575 = vsel %vm1478, %v5370, 0
      %5577 = vmatprep.subr.bf16.mxu0 0
      %5578 = vmatpush1.bf16.msra.mxu0 %v5554
      %5579 = vmatprep.subr.bf16.mxu0 0
      %5580 = vmatpush1.bf16.msra.mxu0 %v5556
      %5581 = vmatprep.subr.bf16.mxu0 0
      %5582 = vmatpush1.bf16.msra.mxu0 %v5558
      %5583 = vmatprep.subr.bf16.mxu0 0
      %5584 = vmatpush1.bf16.msra.mxu0 %v5560
      %5585 = vmatprep.subr.bf16.mxu0 0
      %5586 = vmatpush1.bf16.msra.mxu0 0
      %5587 = vmatprep.subr.bf16.mxu0 0
      %5588 = vmatpush1.bf16.msra.mxu0 0
      %5589 = vmatprep.subr.bf16.mxu0 0
      %5590 = vmatpush1.bf16.msra.mxu0 0
      %5591 = vmatprep.subr.bf16.mxu0 0
      %5592 = vmatpush1.bf16.msra.mxu0 0
      %5593 = vmatprep.subr.bf16.mxu0 0
      %5594 = vmatpush1.bf16.msra.mxu0 0
      %5595 = vmatprep.subr.bf16.mxu0 0
      %5596 = vmatpush1.bf16.msra.mxu0 0
      %5597 = vmatprep.subr.bf16.mxu0 0
      %5598 = vmatpush1.bf16.msra.mxu0 0
      %5599 = vmatprep.subr.bf16.mxu0 0
      %5600 = vmatpush1.bf16.msra.mxu0 0
      %5601 = vmatprep.subr.bf16.mxu0 0
      %5602 = vmatpush1.bf16.msra.mxu0 0
      %5603 = vmatprep.subr.bf16.mxu0 0
      %5604 = vmatpush1.bf16.msra.mxu0 0
      %5605 = vmatprep.subr.bf16.mxu0 0
      %5606 = vmatpush1.bf16.msra.mxu0 0
      %5607 = vmatprep.subr.bf16.mxu0 0
      %5608 = vmatpush1.bf16.msra.mxu0 0
      %5609 = vmatprep.mubr.bf16.mxu0 0
      %5610 = vmatmul.mubr.bf16.gmra.mrb[0].mxu0 %v5566
      %v5611 = vpop.f32.mrb[0].mxu0
      %v5612 = vadd.f32 0.0, %v5611
      %v5613 = vpop.f32.mrb[0].mxu0
      %v5614 = vpop.f32.mrb[0].mxu0
      %v5615 = vadd.f32 0.0, %v5614
      %v5616 = vpop.f32.mrb[0].mxu0
      %5617 = vmatprep.mubr.bf16.mxu0 0
      %5618 = vmatmul.mubr.bf16.gmra.mrb[0].mxu0 %v5569
      %v5619 = vpop.f32.mrb[0].mxu0
      %v5620 = vadd.f32 0.0, %v5619
      %v5621 = vpop.f32.mrb[0].mxu0
      %v5622 = vpop.f32.mrb[0].mxu0
      %v5623 = vadd.f32 0.0, %v5622
      %v5624 = vpop.f32.mrb[0].mxu0
      %5625 = vmatprep.mubr.bf16.mxu0 0
      %5626 = vmatmul.mubr.bf16.gmra.mrb[0].mxu0 %v5572
      %v5627 = vpop.f32.mrb[0].mxu0
      %v5628 = vadd.f32 0.0, %v5627
      %v5629 = vpop.f32.mrb[0].mxu0
      %v5630 = vpop.f32.mrb[0].mxu0
      %v5631 = vadd.f32 0.0, %v5630
      %v5632 = vpop.f32.mrb[0].mxu0
      %5633 = vmatprep.mubr.bf16.mxu0 0
      %5634 = vmatmul.mubr.bf16.gmra.mrb[0].mxu0 %v5575
      %v5635 = vpop.f32.mrb[0].mxu0
      %v5636 = vadd.f32 0.0, %v5635
      %v5637 = vpop.f32.mrb[0].mxu0
      %v5638 = vpop.f32.mrb[0].mxu0
      %v5639 = vadd.f32 0.0, %v5638
      %v5640 = vpop.f32.mrb[0].mxu0
      %5641 = vdwg.mxu0
      %5642 = vrot.lane.b32.xlu0 %v1037, 40
      %v5643 = vpop.permute.xlu0 %5642
      %5644 = vrot.lane.b32.xlu0 %v1038, 40
      %v5645 = vpop.permute.xlu0 %5644
      %5646 = vrot.lane.b32.xlu0 %v1039, 40
      %v5647 = vpop.permute.xlu0 %5646
      %5648 = vrot.lane.b32.xlu0 %v1040, 40
      %v5649 = vpop.permute.xlu0 %5648
      %v5655 = vsel %vm1478, %v5371, 0
      %v5658 = vsel %vm1478, %v5372, 0
      %v5661 = vsel %vm1478, %v5373, 0
      %v5664 = vsel %vm1478, %v5374, 0
      %5666 = vmatprep.subr.bf16.mxu0 0
      %5667 = vmatpush1.bf16.msra.mxu0 %v5643
      %5668 = vmatprep.subr.bf16.mxu0 0
      %5669 = vmatpush1.bf16.msra.mxu0 %v5645
      %5670 = vmatprep.subr.bf16.mxu0 0
      %5671 = vmatpush1.bf16.msra.mxu0 %v5647
      %5672 = vmatprep.subr.bf16.mxu0 0
      %5673 = vmatpush1.bf16.msra.mxu0 %v5649
      %5674 = vmatprep.subr.bf16.mxu0 0
      %5675 = vmatpush1.bf16.msra.mxu0 0
      %5676 = vmatprep.subr.bf16.mxu0 0
      %5677 = vmatpush1.bf16.msra.mxu0 0
      %5678 = vmatprep.subr.bf16.mxu0 0
      %5679 = vmatpush1.bf16.msra.mxu0 0
      %5680 = vmatprep.subr.bf16.mxu0 0
      %5681 = vmatpush1.bf16.msra.mxu0 0
      %5682 = vmatprep.subr.bf16.mxu0 0
      %5683 = vmatpush1.bf16.msra.mxu0 0
      %5684 = vmatprep.subr.bf16.mxu0 0
      %5685 = vmatpush1.bf16.msra.mxu0 0
      %5686 = vmatprep.subr.bf16.mxu0 0
      %5687 = vmatpush1.bf16.msra.mxu0 0
      %5688 = vmatprep.subr.bf16.mxu0 0
      %5689 = vmatpush1.bf16.msra.mxu0 0
      %5690 = vmatprep.subr.bf16.mxu0 0
      %5691 = vmatpush1.bf16.msra.mxu0 0
      %5692 = vmatprep.subr.bf16.mxu0 0
      %5693 = vmatpush1.bf16.msra.mxu0 0
      %5694 = vmatprep.subr.bf16.mxu0 0
      %5695 = vmatpush1.bf16.msra.mxu0 0
      %5696 = vmatprep.subr.bf16.mxu0 0
      %5697 = vmatpush1.bf16.msra.mxu0 0
      %5698 = vmatprep.mubr.bf16.mxu0 0
      %5699 = vmatmul.mubr.bf16.gmra.mrb[0].mxu0 %v5655
      %v5700 = vpop.f32.mrb[0].mxu0
      %v5701 = vadd.f32 0.0, %v5700
      %v5702 = vpop.f32.mrb[0].mxu0
      %v5703 = vpop.f32.mrb[0].mxu0
      %v5704 = vadd.f32 0.0, %v5703
      %v5705 = vpop.f32.mrb[0].mxu0
      %5706 = vmatprep.mubr.bf16.mxu0 0
      %5707 = vmatmul.mubr.bf16.gmra.mrb[0].mxu0 %v5658
      %v5708 = vpop.f32.mrb[0].mxu0
      %v5709 = vadd.f32 0.0, %v5708
      %v5710 = vpop.f32.mrb[0].mxu0
      %v5711 = vpop.f32.mrb[0].mxu0
      %v5712 = vadd.f32 0.0, %v5711
      %v5713 = vpop.f32.mrb[0].mxu0
      %5714 = vmatprep.mubr.bf16.mxu0 0
      %5715 = vmatmul.mubr.bf16.gmra.mrb[0].mxu0 %v5661
      %v5716 = vpop.f32.mrb[0].mxu0
      %v5717 = vadd.f32 0.0, %v5716
      %v5718 = vpop.f32.mrb[0].mxu0
      %v5719 = vpop.f32.mrb[0].mxu0
      %v5720 = vadd.f32 0.0, %v5719
      %v5721 = vpop.f32.mrb[0].mxu0
      %5722 = vmatprep.mubr.bf16.mxu0 0
      %5723 = vmatmul.mubr.bf16.gmra.mrb[0].mxu0 %v5664
      %v5724 = vpop.f32.mrb[0].mxu0
      %v5725 = vadd.f32 0.0, %v5724
      %v5726 = vpop.f32.mrb[0].mxu0
      %v5727 = vpop.f32.mrb[0].mxu0
      %v5728 = vadd.f32 0.0, %v5727
      %v5729 = vpop.f32.mrb[0].mxu0
      %5730 = vdwg.mxu0
      %5763 = vrot.lane.b32.xlu0 %v3082, 8
      %v5764 = vpop.permute.xlu0 %5763
      %5765 = vrot.lane.b32.xlu0 %v3085, 8
      %v5766 = vpop.permute.xlu0 %5765
      %5767 = vrot.lane.b32.xlu0 %v3090, 8
      %v5768 = vpop.permute.xlu0 %5767
      %5769 = vrot.lane.b32.xlu0 %v3093, 8
      %v5770 = vpop.permute.xlu0 %5769
      %5771 = vrot.lane.b32.xlu0 %v3098, 8
      %v5772 = vpop.permute.xlu0 %5771
      %5773 = vrot.lane.b32.xlu0 %v3101, 8
      %v5774 = vpop.permute.xlu0 %5773
      %5775 = vrot.lane.b32.xlu0 %v3106, 8
      %v5776 = vpop.permute.xlu0 %5775
      %5777 = vrot.lane.b32.xlu0 %v3109, 8
      %v5778 = vpop.permute.xlu0 %5777
      %5779 = vrot.lane.b32.xlu0 %v3171, 8
      %v5780 = vpop.permute.xlu0 %5779
      %5781 = vrot.lane.b32.xlu0 %v3174, 8
      %v5782 = vpop.permute.xlu0 %5781
      %5783 = vrot.lane.b32.xlu0 %v3179, 8
      %v5784 = vpop.permute.xlu0 %5783
      %5785 = vrot.lane.b32.xlu0 %v3182, 8
      %v5786 = vpop.permute.xlu0 %5785
      %5787 = vrot.lane.b32.xlu0 %v3187, 8
      %v5788 = vpop.permute.xlu0 %5787
      %5789 = vrot.lane.b32.xlu0 %v3190, 8
      %v5790 = vpop.permute.xlu0 %5789
      %5791 = vrot.lane.b32.xlu0 %v3195, 8
      %v5792 = vpop.permute.xlu0 %5791
      %5793 = vrot.lane.b32.xlu0 %v3198, 8
      %v5794 = vpop.permute.xlu0 %5793
      %5795 = vrot.lane.b32.xlu0 %v3260, 8
      %v5796 = vpop.permute.xlu0 %5795
      %5797 = vrot.lane.b32.xlu0 %v3263, 8
      %v5798 = vpop.permute.xlu0 %5797
      %5799 = vrot.lane.b32.xlu0 %v3268, 8
      %v5800 = vpop.permute.xlu0 %5799
      %5801 = vrot.lane.b32.xlu0 %v3271, 8
      %v5802 = vpop.permute.xlu0 %5801
      %5803 = vrot.lane.b32.xlu0 %v3276, 8
      %v5804 = vpop.permute.xlu0 %5803
      %5805 = vrot.lane.b32.xlu0 %v3279, 8
      %v5806 = vpop.permute.xlu0 %5805
      %5807 = vrot.lane.b32.xlu0 %v3284, 8
      %v5808 = vpop.permute.xlu0 %5807
      %5809 = vrot.lane.b32.xlu0 %v3287, 8
      %v5810 = vpop.permute.xlu0 %5809
      %5811 = vrot.lane.b32.xlu0 %v3349, 8
      %v5812 = vpop.permute.xlu0 %5811
      %5813 = vrot.lane.b32.xlu0 %v3352, 8
      %v5814 = vpop.permute.xlu0 %5813
      %5815 = vrot.lane.b32.xlu0 %v3357, 8
      %v5816 = vpop.permute.xlu0 %5815
      %5817 = vrot.lane.b32.xlu0 %v3360, 8
      %v5818 = vpop.permute.xlu0 %5817
      %5819 = vrot.lane.b32.xlu0 %v3365, 8
      %v5820 = vpop.permute.xlu0 %5819
      %5821 = vrot.lane.b32.xlu0 %v3368, 8
      %v5822 = vpop.permute.xlu0 %5821
      %5823 = vrot.lane.b32.xlu0 %v3373, 8
      %v5824 = vpop.permute.xlu0 %5823
      %5825 = vrot.lane.b32.xlu0 %v3376, 8
      %v5826 = vpop.permute.xlu0 %5825
      %5891 = vrot.lane.b32.xlu0 %v4258, 16
      %v5892 = vpop.permute.xlu0 %5891
      %5893 = vrot.lane.b32.xlu0 %v4261, 16
      %v5894 = vpop.permute.xlu0 %5893
      %5895 = vrot.lane.b32.xlu0 %v4266, 16
      %v5896 = vpop.permute.xlu0 %5895
      %5897 = vrot.lane.b32.xlu0 %v4269, 16
      %v5898 = vpop.permute.xlu0 %5897
      %5899 = vrot.lane.b32.xlu0 %v4274, 16
      %v5900 = vpop.permute.xlu0 %5899
      %5901 = vrot.lane.b32.xlu0 %v4277, 16
      %v5902 = vpop.permute.xlu0 %5901
      %5903 = vrot.lane.b32.xlu0 %v4282, 16
      %v5904 = vpop.permute.xlu0 %5903
      %5905 = vrot.lane.b32.xlu0 %v4285, 16
      %v5906 = vpop.permute.xlu0 %5905
      %5907 = vrot.lane.b32.xlu0 %v4347, 16
      %v5908 = vpop.permute.xlu0 %5907
      %5909 = vrot.lane.b32.xlu0 %v4350, 16
      %v5910 = vpop.permute.xlu0 %5909
      %5911 = vrot.lane.b32.xlu0 %v4355, 16
      %v5912 = vpop.permute.xlu0 %5911
      %5913 = vrot.lane.b32.xlu0 %v4358, 16
      %v5914 = vpop.permute.xlu0 %5913
      %5915 = vrot.lane.b32.xlu0 %v4363, 16
      %v5916 = vpop.permute.xlu0 %5915
      %5917 = vrot.lane.b32.xlu0 %v4366, 16
      %v5918 = vpop.permute.xlu0 %5917
      %5919 = vrot.lane.b32.xlu0 %v4371, 16
      %v5920 = vpop.permute.xlu0 %5919
      %5921 = vrot.lane.b32.xlu0 %v4374, 16
      %v5922 = vpop.permute.xlu0 %5921
      %5923 = vrot.lane.b32.xlu0 %v4436, 16
      %v5924 = vpop.permute.xlu0 %5923
      %5925 = vrot.lane.b32.xlu0 %v4439, 16
      %v5926 = vpop.permute.xlu0 %5925
      %5927 = vrot.lane.b32.xlu0 %v4444, 16
      %v5928 = vpop.permute.xlu0 %5927
      %5929 = vrot.lane.b32.xlu0 %v4447, 16
      %v5930 = vpop.permute.xlu0 %5929
      %5931 = vrot.lane.b32.xlu0 %v4452, 16
      %v5932 = vpop.permute.xlu0 %5931
      %5933 = vrot.lane.b32.xlu0 %v4455, 16
      %v5934 = vpop.permute.xlu0 %5933
      %5935 = vrot.lane.b32.xlu0 %v4460, 16
      %v5936 = vpop.permute.xlu0 %5935
      %5937 = vrot.lane.b32.xlu0 %v4463, 16
      %v5938 = vpop.permute.xlu0 %5937
      %5939 = vrot.lane.b32.xlu0 %v4525, 16
      %v5940 = vpop.permute.xlu0 %5939
      %5941 = vrot.lane.b32.xlu0 %v4528, 16
      %v5942 = vpop.permute.xlu0 %5941
      %5943 = vrot.lane.b32.xlu0 %v4533, 16
      %v5944 = vpop.permute.xlu0 %5943
      %5945 = vrot.lane.b32.xlu0 %v4536, 16
      %v5946 = vpop.permute.xlu0 %5945
      %5947 = vrot.lane.b32.xlu0 %v4541, 16
      %v5948 = vpop.permute.xlu0 %5947
      %5949 = vrot.lane.b32.xlu0 %v4544, 16
      %v5950 = vpop.permute.xlu0 %5949
      %5951 = vrot.lane.b32.xlu0 %v4549, 16
      %v5952 = vpop.permute.xlu0 %5951
      %5953 = vrot.lane.b32.xlu0 %v4552, 16
      %v5954 = vpop.permute.xlu0 %5953
      %6019 = vrot.lane.b32.xlu0 %v5434, 24
      %v6020 = vpop.permute.xlu0 %6019
      %6021 = vrot.lane.b32.xlu0 %v5437, 24
      %v6022 = vpop.permute.xlu0 %6021
      %6023 = vrot.lane.b32.xlu0 %v5442, 24
      %v6024 = vpop.permute.xlu0 %6023
      %6025 = vrot.lane.b32.xlu0 %v5445, 24
      %v6026 = vpop.permute.xlu0 %6025
      %6027 = vrot.lane.b32.xlu0 %v5450, 24
      %v6028 = vpop.permute.xlu0 %6027
      %6029 = vrot.lane.b32.xlu0 %v5453, 24
      %v6030 = vpop.permute.xlu0 %6029
      %6031 = vrot.lane.b32.xlu0 %v5458, 24
      %v6032 = vpop.permute.xlu0 %6031
      %6033 = vrot.lane.b32.xlu0 %v5461, 24
      %v6034 = vpop.permute.xlu0 %6033
      %6035 = vrot.lane.b32.xlu0 %v5523, 24
      %v6036 = vpop.permute.xlu0 %6035
      %6037 = vrot.lane.b32.xlu0 %v5526, 24
      %v6038 = vpop.permute.xlu0 %6037
      %6039 = vrot.lane.b32.xlu0 %v5531, 24
      %v6040 = vpop.permute.xlu0 %6039
      %6041 = vrot.lane.b32.xlu0 %v5534, 24
      %v6042 = vpop.permute.xlu0 %6041
      %6043 = vrot.lane.b32.xlu0 %v5539, 24
      %v6044 = vpop.permute.xlu0 %6043
      %6045 = vrot.lane.b32.xlu0 %v5542, 24
      %v6046 = vpop.permute.xlu0 %6045
      %6047 = vrot.lane.b32.xlu0 %v5547, 24
      %v6048 = vpop.permute.xlu0 %6047
      %6049 = vrot.lane.b32.xlu0 %v5550, 24
      %v6050 = vpop.permute.xlu0 %6049
      %6051 = vrot.lane.b32.xlu0 %v5612, 24
      %v6052 = vpop.permute.xlu0 %6051
      %6053 = vrot.lane.b32.xlu0 %v5615, 24
      %v6054 = vpop.permute.xlu0 %6053
      %6055 = vrot.lane.b32.xlu0 %v5620, 24
      %v6056 = vpop.permute.xlu0 %6055
      %6057 = vrot.lane.b32.xlu0 %v5623, 24
      %v6058 = vpop.permute.xlu0 %6057
      %6059 = vrot.lane.b32.xlu0 %v5628, 24
      %v6060 = vpop.permute.xlu0 %6059
      %6061 = vrot.lane.b32.xlu0 %v5631, 24
      %v6062 = vpop.permute.xlu0 %6061
      %6063 = vrot.lane.b32.xlu0 %v5636, 24
      %v6064 = vpop.permute.xlu0 %6063
      %6065 = vrot.lane.b32.xlu0 %v5639, 24
      %v6066 = vpop.permute.xlu0 %6065
      %6067 = vrot.lane.b32.xlu0 %v5701, 24
      %v6068 = vpop.permute.xlu0 %6067
      %6069 = vrot.lane.b32.xlu0 %v5704, 24
      %v6070 = vpop.permute.xlu0 %6069
      %6071 = vrot.lane.b32.xlu0 %v5709, 24
      %v6072 = vpop.permute.xlu0 %6071
      %6073 = vrot.lane.b32.xlu0 %v5712, 24
      %v6074 = vpop.permute.xlu0 %6073
      %6075 = vrot.lane.b32.xlu0 %v5717, 24
      %v6076 = vpop.permute.xlu0 %6075
      %6077 = vrot.lane.b32.xlu0 %v5720, 24
      %v6078 = vpop.permute.xlu0 %6077
      %6079 = vrot.lane.b32.xlu0 %v5725, 24
      %v6080 = vpop.permute.xlu0 %6079
      %6081 = vrot.lane.b32.xlu0 %v5728, 24
      %v6082 = vpop.permute.xlu0 %6081
      %v6115 = vsel %vm1053, %v1906, %v5764
      %v6116 = vsel %vm1053, %v1909, %v5766
      %v6117 = vsel %vm1053, %v1914, %v5768
      %v6118 = vsel %vm1053, %v1917, %v5770
      %v6119 = vsel %vm1053, %v1922, %v5772
      %v6120 = vsel %vm1053, %v1925, %v5774
      %v6121 = vsel %vm1053, %v1930, %v5776
      %v6122 = vsel %vm1053, %v1933, %v5778
      %v6123 = vsel %vm1053, %v1995, %v5780
      %v6124 = vsel %vm1053, %v1998, %v5782
      %v6125 = vsel %vm1053, %v2003, %v5784
      %v6126 = vsel %vm1053, %v2006, %v5786
      %v6127 = vsel %vm1053, %v2011, %v5788
      %v6128 = vsel %vm1053, %v2014, %v5790
      %v6129 = vsel %vm1053, %v2019, %v5792
      %v6130 = vsel %vm1053, %v2022, %v5794
      %v6131 = vsel %vm1053, %v2084, %v5796
      %v6132 = vsel %vm1053, %v2087, %v5798
      %v6133 = vsel %vm1053, %v2092, %v5800
      %v6134 = vsel %vm1053, %v2095, %v5802
      %v6135 = vsel %vm1053, %v2100, %v5804
      %v6136 = vsel %vm1053, %v2103, %v5806
      %v6137 = vsel %vm1053, %v2108, %v5808
      %v6138 = vsel %vm1053, %v2111, %v5810
      %v6139 = vsel %vm1053, %v2173, %v5812
      %v6140 = vsel %vm1053, %v2176, %v5814
      %v6141 = vsel %vm1053, %v2181, %v5816
      %v6142 = vsel %vm1053, %v2184, %v5818
      %v6143 = vsel %vm1053, %v2189, %v5820
      %v6144 = vsel %vm1053, %v2192, %v5822
      %v6145 = vsel %vm1053, %v2197, %v5824
      %v6146 = vsel %vm1053, %v2200, %v5826
      %vm6147 = vcmask 130048
      %v6148 = vsel %vm6147, %v6115, %v5892
      %v6149 = vsel %vm6147, %v6116, %v5894
      %v6150 = vsel %vm6147, %v6117, %v5896
      %v6151 = vsel %vm6147, %v6118, %v5898
      %v6152 = vsel %vm6147, %v6119, %v5900
      %v6153 = vsel %vm6147, %v6120, %v5902
      %v6154 = vsel %vm6147, %v6121, %v5904
      %v6155 = vsel %vm6147, %v6122, %v5906
      %v6156 = vsel %vm6147, %v6123, %v5908
      %v6157 = vsel %vm6147, %v6124, %v5910
      %v6158 = vsel %vm6147, %v6125, %v5912
      %v6159 = vsel %vm6147, %v6126, %v5914
      %v6160 = vsel %vm6147, %v6127, %v5916
      %v6161 = vsel %vm6147, %v6128, %v5918
      %v6162 = vsel %vm6147, %v6129, %v5920
      %v6163 = vsel %vm6147, %v6130, %v5922
      %v6164 = vsel %vm6147, %v6131, %v5924
      %v6165 = vsel %vm6147, %v6132, %v5926
      %v6166 = vsel %vm6147, %v6133, %v5928
      %v6167 = vsel %vm6147, %v6134, %v5930
      %v6168 = vsel %vm6147, %v6135, %v5932
      %v6169 = vsel %vm6147, %v6136, %v5934
      %v6170 = vsel %vm6147, %v6137, %v5936
      %v6171 = vsel %vm6147, %v6138, %v5938
      %v6172 = vsel %vm6147, %v6139, %v5940
      %v6173 = vsel %vm6147, %v6140, %v5942
      %v6174 = vsel %vm6147, %v6141, %v5944
      %v6175 = vsel %vm6147, %v6142, %v5946
      %v6176 = vsel %vm6147, %v6143, %v5948
      %v6177 = vsel %vm6147, %v6144, %v5950
      %v6178 = vsel %vm6147, %v6145, %v5952
      %v6179 = vsel %vm6147, %v6146, %v5954
      %vm6180 = vcmask 195584
      %v6181 = vsel %vm6180, %v6148, %v6020
      %v6182 = vsel %vm6180, %v6149, %v6022
      %v6183 = vsel %vm6180, %v6150, %v6024
      %v6184 = vsel %vm6180, %v6151, %v6026
      %v6185 = vsel %vm6180, %v6152, %v6028
      %v6186 = vsel %vm6180, %v6153, %v6030
      %v6187 = vsel %vm6180, %v6154, %v6032
      %v6188 = vsel %vm6180, %v6155, %v6034
      %v6189 = vsel %vm6180, %v6156, %v6036
      %v6190 = vsel %vm6180, %v6157, %v6038
      %v6191 = vsel %vm6180, %v6158, %v6040
      %v6192 = vsel %vm6180, %v6159, %v6042
      %v6193 = vsel %vm6180, %v6160, %v6044
      %v6194 = vsel %vm6180, %v6161, %v6046
      %v6195 = vsel %vm6180, %v6162, %v6048
      %v6196 = vsel %vm6180, %v6163, %v6050
      %v6197 = vsel %vm6180, %v6164, %v6052
      %v6198 = vsel %vm6180, %v6165, %v6054
      %v6199 = vsel %vm6180, %v6166, %v6056
      %v6200 = vsel %vm6180, %v6167, %v6058
      %v6201 = vsel %vm6180, %v6168, %v6060
      %v6202 = vsel %vm6180, %v6169, %v6062
      %v6203 = vsel %vm6180, %v6170, %v6064
      %v6204 = vsel %vm6180, %v6171, %v6066
      %v6205 = vsel %vm6180, %v6172, %v6068
      %v6206 = vsel %vm6180, %v6173, %v6070
      %v6207 = vsel %vm6180, %v6174, %v6072
      %v6208 = vsel %vm6180, %v6175, %v6074
      %v6209 = vsel %vm6180, %v6176, %v6076
      %v6210 = vsel %vm6180, %v6177, %v6078
      %v6211 = vsel %vm6180, %v6178, %v6080
      %v6212 = vsel %vm6180, %v6179, %v6082
      %v6213 = vpack.c.bf16 %v6182, %v6181
      %v6214 = vpack.c.bf16 %v6184, %v6183
      %v6215 = vpack.c.bf16 %v6186, %v6185
      %v6216 = vpack.c.bf16 %v6188, %v6187
      %v6217 = vpack.c.bf16 %v6190, %v6189
      %v6218 = vpack.c.bf16 %v6192, %v6191
      %v6219 = vpack.c.bf16 %v6194, %v6193
      %v6220 = vpack.c.bf16 %v6196, %v6195
      %v6221 = vpack.c.bf16 %v6198, %v6197
      %v6222 = vpack.c.bf16 %v6200, %v6199
      %v6223 = vpack.c.bf16 %v6202, %v6201
      %v6224 = vpack.c.bf16 %v6204, %v6203
      %v6225 = vpack.c.bf16 %v6206, %v6205
      %v6226 = vpack.c.bf16 %v6208, %v6207
      %v6227 = vpack.c.bf16 %v6210, %v6209
      %v6228 = vpack.c.bf16 %v6212, %v6211
      %v6229 = vld [vmem:[%s3] sm:$0xf]
      %v6230 = vld [vmem:[%s3 + $0x4] sm:$0xf]
      %v6231 = vld [vmem:[%s3 + $0x8] sm:$0xf]
      %v6232 = vld [vmem:[%s3 + $0xc] sm:$0xf]
      %v6233 = vlaneseq
      %v6234 = vshrl.u32 %v6233, 7
      %v6235 = vsub.s32 2, %v6234
      %v6236 = vrot.slane %v293, %v6235
      %v6241 = vunpack.c.l.b16 %v6229
      %v6242 = vunpack.c.l.b16 %v6230
      %v6243 = vunpack.c.l.b16 %v6231
      %v6244 = vunpack.c.l.b16 %v6232
      %v6245 = vpack.c.b16 %v6242, %v6241
      %v6246 = vpack.c.b16 %v6244, %v6243
      %v6250 = vsel %vm294, %v6213, 0
      %v6253 = vsel %vm294, %v6214, 0
      %v6256 = vsel %vm294, %v6215, 0
      %v6259 = vsel %vm294, %v6216, 0
      %v6262 = vsel %vm294, %v6217, 0
      %v6265 = vsel %vm294, %v6218, 0
      %v6268 = vsel %vm294, %v6219, 0
      %v6271 = vsel %vm294, %v6220, 0
      %v6274 = vsel %vm294, %v6221, 0
      %v6277 = vsel %vm294, %v6222, 0
      %v6280 = vsel %vm294, %v6223, 0
      %v6283 = vsel %vm294, %v6224, 0
      %v6286 = vsel %vm294, %v6225, 0
      %v6289 = vsel %vm294, %v6226, 0
      %v6292 = vsel %vm294, %v6227, 0
      %v6295 = vsel %vm294, %v6228, 0
      %6297 = vmatprep.subr.bf16.mxu0 0
      %6298 = vmatpush1.bf16.msra.mxu0 %v6245
      %6299 = vmatprep.subr.bf16.mxu0 0
      %6300 = vmatpush1.bf16.msra.mxu0 %v6246
      %6301 = vmatprep.subr.bf16.mxu0 0
      %6302 = vmatpush1.bf16.msra.mxu0 0
      %6303 = vmatprep.subr.bf16.mxu0 0
      %6304 = vmatpush1.bf16.msra.mxu0 0
      %6305 = vmatprep.subr.bf16.mxu0 0
      %6306 = vmatpush1.bf16.msra.mxu0 0
      %6307 = vmatprep.subr.bf16.mxu0 0
      %6308 = vmatpush1.bf16.msra.mxu0 0
      %6309 = vmatprep.subr.bf16.mxu0 0
      %6310 = vmatpush1.bf16.msra.mxu0 0
      %6311 = vmatprep.subr.bf16.mxu0 0
      %6312 = vmatpush1.bf16.msra.mxu0 0
      %6313 = vmatprep.subr.bf16.mxu0 0
      %6314 = vmatpush1.bf16.msra.mxu0 0
      %6315 = vmatprep.subr.bf16.mxu0 0
      %6316 = vmatpush1.bf16.msra.mxu0 0
      %6317 = vmatprep.subr.bf16.mxu0 0
      %6318 = vmatpush1.bf16.msra.mxu0 0
      %6319 = vmatprep.subr.bf16.mxu0 0
      %6320 = vmatpush1.bf16.msra.mxu0 0
      %6321 = vmatprep.subr.bf16.mxu0 0
      %6322 = vmatpush1.bf16.msra.mxu0 0
      %6323 = vmatprep.subr.bf16.mxu0 0
      %6324 = vmatpush1.bf16.msra.mxu0 0
      %6325 = vmatprep.subr.bf16.mxu0 0
      %6326 = vmatpush1.bf16.msra.mxu0 0
      %6327 = vmatprep.subr.bf16.mxu0 0
      %6328 = vmatpush1.bf16.msra.mxu0 0
      %6329 = vmatprep.mubr.bf16.mxu0 0
      %6330 = vmatmul.mubr.bf16.gmra.mrb[0].mxu0 %v6250
      %v6331 = vpop.f32.mrb[0].mxu0
      %v6332 = vadd.f32 %v6236, %v6331
      %v6333 = vpop.f32.mrb[0].mxu0
      %v6334 = vpop.f32.mrb[0].mxu0
      %v6335 = vadd.f32 %v6236, %v6334
      %v6336 = vpop.f32.mrb[0].mxu0
      %6337 = vmatprep.mubr.bf16.mxu0 0
      %6338 = vmatmul.mubr.bf16.gmra.mrb[0].mxu0 %v6253
      %v6339 = vpop.f32.mrb[0].mxu0
      %v6340 = vadd.f32 %v6236, %v6339
      %v6341 = vpop.f32.mrb[0].mxu0
      %v6342 = vpop.f32.mrb[0].mxu0
      %v6343 = vadd.f32 %v6236, %v6342
      %v6344 = vpop.f32.mrb[0].mxu0
      %6345 = vmatprep.mubr.bf16.mxu0 0
      %6346 = vmatmul.mubr.bf16.gmra.mrb[0].mxu0 %v6256
      %v6347 = vpop.f32.mrb[0].mxu0
      %v6348 = vadd.f32 %v6236, %v6347
      %v6349 = vpop.f32.mrb[0].mxu0
      %v6350 = vpop.f32.mrb[0].mxu0
      %v6351 = vadd.f32 %v6236, %v6350
      %v6352 = vpop.f32.mrb[0].mxu0
      %6353 = vmatprep.mubr.bf16.mxu0 0
      %6354 = vmatmul.mubr.bf16.gmra.mrb[0].mxu0 %v6259
      %v6355 = vpop.f32.mrb[0].mxu0
      %v6356 = vadd.f32 %v6236, %v6355
      %v6357 = vpop.f32.mrb[0].mxu0
      %v6358 = vpop.f32.mrb[0].mxu0
      %v6359 = vadd.f32 %v6236, %v6358
      %v6360 = vpop.f32.mrb[0].mxu0
      %6361 = vmatprep.mubr.bf16.mxu0 0
      %6362 = vmatmul.mubr.bf16.gmra.mrb[0].mxu0 %v6262
      %v6363 = vpop.f32.mrb[0].mxu0
      %v6364 = vadd.f32 %v6236, %v6363
      %v6365 = vpop.f32.mrb[0].mxu0
      %v6366 = vpop.f32.mrb[0].mxu0
      %v6367 = vadd.f32 %v6236, %v6366
      %v6368 = vpop.f32.mrb[0].mxu0
      %6369 = vmatprep.mubr.bf16.mxu0 0
      %6370 = vmatmul.mubr.bf16.gmra.mrb[0].mxu0 %v6265
      %v6371 = vpop.f32.mrb[0].mxu0
      %v6372 = vadd.f32 %v6236, %v6371
      %v6373 = vpop.f32.mrb[0].mxu0
      %v6374 = vpop.f32.mrb[0].mxu0
      %v6375 = vadd.f32 %v6236, %v6374
      %v6376 = vpop.f32.mrb[0].mxu0
      %6377 = vmatprep.mubr.bf16.mxu0 0
      %6378 = vmatmul.mubr.bf16.gmra.mrb[0].mxu0 %v6268
      %v6379 = vpop.f32.mrb[0].mxu0
      %v6380 = vadd.f32 %v6236, %v6379
      %v6381 = vpop.f32.mrb[0].mxu0
      %v6382 = vpop.f32.mrb[0].mxu0
      %v6383 = vadd.f32 %v6236, %v6382
      %v6384 = vpop.f32.mrb[0].mxu0
      %6385 = vmatprep.mubr.bf16.mxu0 0
      %6386 = vmatmul.mubr.bf16.gmra.mrb[0].mxu0 %v6271
      %v6387 = vpop.f32.mrb[0].mxu0
      %v6388 = vadd.f32 %v6236, %v6387
      %v6389 = vpop.f32.mrb[0].mxu0
      %v6390 = vpop.f32.mrb[0].mxu0
      %v6391 = vadd.f32 %v6236, %v6390
      %v6392 = vpop.f32.mrb[0].mxu0
      %6393 = vmatprep.mubr.bf16.mxu0 0
      %6394 = vmatmul.mubr.bf16.gmra.mrb[0].mxu0 %v6274
      %v6395 = vpop.f32.mrb[0].mxu0
      %v6396 = vadd.f32 %v6236, %v6395
      %v6397 = vpop.f32.mrb[0].mxu0
      %v6398 = vpop.f32.mrb[0].mxu0
      %v6399 = vadd.f32 %v6236, %v6398
      %v6400 = vpop.f32.mrb[0].mxu0
      %6401 = vmatprep.mubr.bf16.mxu0 0
      %6402 = vmatmul.mubr.bf16.gmra.mrb[0].mxu0 %v6277
      %v6403 = vpop.f32.mrb[0].mxu0
      %v6404 = vadd.f32 %v6236, %v6403
      %v6405 = vpop.f32.mrb[0].mxu0
      %v6406 = vpop.f32.mrb[0].mxu0
      %v6407 = vadd.f32 %v6236, %v6406
      %v6408 = vpop.f32.mrb[0].mxu0
      %6409 = vmatprep.mubr.bf16.mxu0 0
      %6410 = vmatmul.mubr.bf16.gmra.mrb[0].mxu0 %v6280
      %v6411 = vpop.f32.mrb[0].mxu0
      %v6412 = vadd.f32 %v6236, %v6411
      %v6413 = vpop.f32.mrb[0].mxu0
      %v6414 = vpop.f32.mrb[0].mxu0
      %v6415 = vadd.f32 %v6236, %v6414
      %v6416 = vpop.f32.mrb[0].mxu0
      %6417 = vmatprep.mubr.bf16.mxu0 0
      %6418 = vmatmul.mubr.bf16.gmra.mrb[0].mxu0 %v6283
      %v6419 = vpop.f32.mrb[0].mxu0
      %v6420 = vadd.f32 %v6236, %v6419
      %v6421 = vpop.f32.mrb[0].mxu0
      %v6422 = vpop.f32.mrb[0].mxu0
      %v6423 = vadd.f32 %v6236, %v6422
      %v6424 = vpop.f32.mrb[0].mxu0
      %6425 = vmatprep.mubr.bf16.mxu0 0
      %6426 = vmatmul.mubr.bf16.gmra.mrb[0].mxu0 %v6286
      %v6427 = vpop.f32.mrb[0].mxu0
      %v6428 = vadd.f32 %v6236, %v6427
      %v6429 = vpop.f32.mrb[0].mxu0
      %v6430 = vpop.f32.mrb[0].mxu0
      %v6431 = vadd.f32 %v6236, %v6430
      %v6432 = vpop.f32.mrb[0].mxu0
      %6433 = vmatprep.mubr.bf16.mxu0 0
      %6434 = vmatmul.mubr.bf16.gmra.mrb[0].mxu0 %v6289
      %v6435 = vpop.f32.mrb[0].mxu0
      %v6436 = vadd.f32 %v6236, %v6435
      %v6437 = vpop.f32.mrb[0].mxu0
      %v6438 = vpop.f32.mrb[0].mxu0
      %v6439 = vadd.f32 %v6236, %v6438
      %v6440 = vpop.f32.mrb[0].mxu0
      %6441 = vmatprep.mubr.bf16.mxu0 0
      %6442 = vmatmul.mubr.bf16.gmra.mrb[0].mxu0 %v6292
      %v6443 = vpop.f32.mrb[0].mxu0
      %v6444 = vadd.f32 %v6236, %v6443
      %v6445 = vpop.f32.mrb[0].mxu0
      %v6446 = vpop.f32.mrb[0].mxu0
      %v6447 = vadd.f32 %v6236, %v6446
      %v6448 = vpop.f32.mrb[0].mxu0
      %6449 = vmatprep.mubr.bf16.mxu0 0
      %6450 = vmatmul.mubr.bf16.gmra.mrb[0].mxu0 %v6295
      %v6451 = vpop.f32.mrb[0].mxu0
      %v6452 = vadd.f32 %v6236, %v6451
      %v6453 = vpop.f32.mrb[0].mxu0
      %v6454 = vpop.f32.mrb[0].mxu0
      %v6455 = vadd.f32 %v6236, %v6454
      %v6456 = vpop.f32.mrb[0].mxu0
      %6457 = vdwg.mxu0
      %v6458 = vadd.f32 %v261, %v6332
      %v6459 = vadd.f32 %v262, %v6335
      %v6460 = vadd.f32 %v263, %v6340
      %v6461 = vadd.f32 %v264, %v6343
      %v6462 = vadd.f32 %v265, %v6348
      %v6463 = vadd.f32 %v266, %v6351
      %v6464 = vadd.f32 %v267, %v6356
      %v6465 = vadd.f32 %v268, %v6359
      %v6466 = vadd.f32 %v269, %v6364
      %v6467 = vadd.f32 %v270, %v6367
      %v6468 = vadd.f32 %v271, %v6372
      %v6469 = vadd.f32 %v272, %v6375
      %v6470 = vadd.f32 %v273, %v6380
      %v6471 = vadd.f32 %v274, %v6383
      %v6472 = vadd.f32 %v275, %v6388
      %v6473 = vadd.f32 %v276, %v6391
      %v6474 = vadd.f32 %v277, %v6396
      %v6475 = vadd.f32 %v278, %v6399
      %v6476 = vadd.f32 %v279, %v6404
      %v6477 = vadd.f32 %v280, %v6407
      %v6478 = vadd.f32 %v281, %v6412
      %v6479 = vadd.f32 %v282, %v6415
      %v6480 = vadd.f32 %v283, %v6420
      %v6481 = vadd.f32 %v284, %v6423
      %v6482 = vadd.f32 %v285, %v6428
      %v6483 = vadd.f32 %v286, %v6431
      %v6484 = vadd.f32 %v287, %v6436
      %v6485 = vadd.f32 %v288, %v6439
      %v6486 = vadd.f32 %v289, %v6444
      %v6487 = vadd.f32 %v290, %v6447
      %v6488 = vadd.f32 %v291, %v6452
      %v6489 = vadd.f32 %v292, %v6455
      %v6490 = vsel %vm294, %v6458, 0.0
      %6491 = vadd.xlane.f32.xlu0 %v6490
      %v6492 = vpop.xlane.xlu0 %6491
      %v6493 = vsel %vm294, %v6459, 0.0
      %6494 = vadd.xlane.f32.xlu0 %v6493
      %v6495 = vpop.xlane.xlu0 %6494
      %v6496 = vsel %vm294, %v6460, 0.0
      %6497 = vadd.xlane.f32.xlu0 %v6496
      %v6498 = vpop.xlane.xlu0 %6497
      %v6499 = vsel %vm294, %v6461, 0.0
      %6500 = vadd.xlane.f32.xlu0 %v6499
      %v6501 = vpop.xlane.xlu0 %6500
      %v6502 = vsel %vm294, %v6462, 0.0
      %6503 = vadd.xlane.f32.xlu0 %v6502
      %v6504 = vpop.xlane.xlu0 %6503
      %v6505 = vsel %vm294, %v6463, 0.0
      %6506 = vadd.xlane.f32.xlu0 %v6505
      %v6507 = vpop.xlane.xlu0 %6506
      %v6508 = vsel %vm294, %v6464, 0.0
      %6509 = vadd.xlane.f32.xlu0 %v6508
      %v6510 = vpop.xlane.xlu0 %6509
      %v6511 = vsel %vm294, %v6465, 0.0
      %6512 = vadd.xlane.f32.xlu0 %v6511
      %v6513 = vpop.xlane.xlu0 %6512
      %v6514 = vsel %vm294, %v6466, 0.0
      %6515 = vadd.xlane.f32.xlu0 %v6514
      %v6516 = vpop.xlane.xlu0 %6515
      %v6517 = vsel %vm294, %v6467, 0.0
      %6518 = vadd.xlane.f32.xlu0 %v6517
      %v6519 = vpop.xlane.xlu0 %6518
      %v6520 = vsel %vm294, %v6468, 0.0
      %6521 = vadd.xlane.f32.xlu0 %v6520
      %v6522 = vpop.xlane.xlu0 %6521
      %v6523 = vsel %vm294, %v6469, 0.0
      %6524 = vadd.xlane.f32.xlu0 %v6523
      %v6525 = vpop.xlane.xlu0 %6524
      %v6526 = vsel %vm294, %v6470, 0.0
      %6527 = vadd.xlane.f32.xlu0 %v6526
      %v6528 = vpop.xlane.xlu0 %6527
      %v6529 = vsel %vm294, %v6471, 0.0
      %6530 = vadd.xlane.f32.xlu0 %v6529
      %v6531 = vpop.xlane.xlu0 %6530
      %v6532 = vsel %vm294, %v6472, 0.0
      %6533 = vadd.xlane.f32.xlu0 %v6532
      %v6534 = vpop.xlane.xlu0 %6533
      %v6535 = vsel %vm294, %v6473, 0.0
      %6536 = vadd.xlane.f32.xlu0 %v6535
      %v6537 = vpop.xlane.xlu0 %6536
      %v6538 = vsel %vm294, %v6474, 0.0
      %6539 = vadd.xlane.f32.xlu0 %v6538
      %v6540 = vpop.xlane.xlu0 %6539
      %v6541 = vsel %vm294, %v6475, 0.0
      %6542 = vadd.xlane.f32.xlu0 %v6541
      %v6543 = vpop.xlane.xlu0 %6542
      %v6544 = vsel %vm294, %v6476, 0.0
      %6545 = vadd.xlane.f32.xlu0 %v6544
      %v6546 = vpop.xlane.xlu0 %6545
      %v6547 = vsel %vm294, %v6477, 0.0
      %6548 = vadd.xlane.f32.xlu0 %v6547
      %v6549 = vpop.xlane.xlu0 %6548
      %v6550 = vsel %vm294, %v6478, 0.0
      %6551 = vadd.xlane.f32.xlu0 %v6550
      %v6552 = vpop.xlane.xlu0 %6551
      %v6553 = vsel %vm294, %v6479, 0.0
      %6554 = vadd.xlane.f32.xlu0 %v6553
      %v6555 = vpop.xlane.xlu0 %6554
      %v6556 = vsel %vm294, %v6480, 0.0
      %6557 = vadd.xlane.f32.xlu0 %v6556
      %v6558 = vpop.xlane.xlu0 %6557
      %v6559 = vsel %vm294, %v6481, 0.0
      %6560 = vadd.xlane.f32.xlu0 %v6559
      %v6561 = vpop.xlane.xlu0 %6560
      %v6562 = vsel %vm294, %v6482, 0.0
      %6563 = vadd.xlane.f32.xlu0 %v6562
      %v6564 = vpop.xlane.xlu0 %6563
      %v6565 = vsel %vm294, %v6483, 0.0
      %6566 = vadd.xlane.f32.xlu0 %v6565
      %v6567 = vpop.xlane.xlu0 %6566
      %v6568 = vsel %vm294, %v6484, 0.0
      %6569 = vadd.xlane.f32.xlu0 %v6568
      %v6570 = vpop.xlane.xlu0 %6569
      %v6571 = vsel %vm294, %v6485, 0.0
      %6572 = vadd.xlane.f32.xlu0 %v6571
      %v6573 = vpop.xlane.xlu0 %6572
      %v6574 = vsel %vm294, %v6486, 0.0
      %6575 = vadd.xlane.f32.xlu0 %v6574
      %v6576 = vpop.xlane.xlu0 %6575
      %v6577 = vsel %vm294, %v6487, 0.0
      %6578 = vadd.xlane.f32.xlu0 %v6577
      %v6579 = vpop.xlane.xlu0 %6578
      %v6580 = vsel %vm294, %v6488, 0.0
      %6581 = vadd.xlane.f32.xlu0 %v6580
      %v6582 = vpop.xlane.xlu0 %6581
      %v6583 = vsel %vm294, %v6489, 0.0
      %6584 = vadd.xlane.f32.xlu0 %v6583
      %v6585 = vpop.xlane.xlu0 %6584
      %v6586 = vmul.f32 %v6492, %v391
      %v6587 = vmul.f32 %v6495, %v391
      %v6588 = vmul.f32 %v6498, %v391
      %v6589 = vmul.f32 %v6501, %v391
      %v6590 = vmul.f32 %v6504, %v391
      %v6591 = vmul.f32 %v6507, %v391
      %v6592 = vmul.f32 %v6510, %v391
      %v6593 = vmul.f32 %v6513, %v391
      %v6594 = vmul.f32 %v6516, %v391
      %v6595 = vmul.f32 %v6519, %v391
      %v6596 = vmul.f32 %v6522, %v391
      %v6597 = vmul.f32 %v6525, %v391
      %v6598 = vmul.f32 %v6528, %v391
      %v6599 = vmul.f32 %v6531, %v391
      %v6600 = vmul.f32 %v6534, %v391
      %v6601 = vmul.f32 %v6537, %v391
      %v6602 = vmul.f32 %v6540, %v391
      %v6603 = vmul.f32 %v6543, %v391
      %v6604 = vmul.f32 %v6546, %v391
      %v6605 = vmul.f32 %v6549, %v391
      %v6606 = vmul.f32 %v6552, %v391
      %v6607 = vmul.f32 %v6555, %v391
      %v6608 = vmul.f32 %v6558, %v391
      %v6609 = vmul.f32 %v6561, %v391
      %v6610 = vmul.f32 %v6564, %v391
      %v6611 = vmul.f32 %v6567, %v391
      %v6612 = vmul.f32 %v6570, %v391
      %v6613 = vmul.f32 %v6573, %v391
      %v6614 = vmul.f32 %v6576, %v391
      %v6615 = vmul.f32 %v6579, %v391
      %v6616 = vmul.f32 %v6582, %v391
      %v6617 = vmul.f32 %v6585, %v391
      %v6618 = vsub.f32 %v6458, %v6586
      %v6619 = vsub.f32 %v6459, %v6587
      %v6620 = vsub.f32 %v6460, %v6588
      %v6621 = vsub.f32 %v6461, %v6589
      %v6622 = vsub.f32 %v6462, %v6590
      %v6623 = vsub.f32 %v6463, %v6591
      %v6624 = vsub.f32 %v6464, %v6592
      %v6625 = vsub.f32 %v6465, %v6593
      %v6626 = vsub.f32 %v6466, %v6594
      %v6627 = vsub.f32 %v6467, %v6595
      %v6628 = vsub.f32 %v6468, %v6596
      %v6629 = vsub.f32 %v6469, %v6597
      %v6630 = vsub.f32 %v6470, %v6598
      %v6631 = vsub.f32 %v6471, %v6599
      %v6632 = vsub.f32 %v6472, %v6600
      %v6633 = vsub.f32 %v6473, %v6601
      %v6634 = vsub.f32 %v6474, %v6602
      %v6635 = vsub.f32 %v6475, %v6603
      %v6636 = vsub.f32 %v6476, %v6604
      %v6637 = vsub.f32 %v6477, %v6605
      %v6638 = vsub.f32 %v6478, %v6606
      %v6639 = vsub.f32 %v6479, %v6607
      %v6640 = vsub.f32 %v6480, %v6608
      %v6641 = vsub.f32 %v6481, %v6609
      %v6642 = vsub.f32 %v6482, %v6610
      %v6643 = vsub.f32 %v6483, %v6611
      %v6644 = vsub.f32 %v6484, %v6612
      %v6645 = vsub.f32 %v6485, %v6613
      %v6646 = vsub.f32 %v6486, %v6614
      %v6647 = vsub.f32 %v6487, %v6615
      %v6648 = vsub.f32 %v6488, %v6616
      %v6649 = vsub.f32 %v6489, %v6617
      %v6650 = vmul.f32 %v6618, %v6618
      %v6651 = vmul.f32 %v6619, %v6619
      %v6652 = vmul.f32 %v6620, %v6620
      %v6653 = vmul.f32 %v6621, %v6621
      %v6654 = vmul.f32 %v6622, %v6622
      %v6655 = vmul.f32 %v6623, %v6623
      %v6656 = vmul.f32 %v6624, %v6624
      %v6657 = vmul.f32 %v6625, %v6625
      %v6658 = vmul.f32 %v6626, %v6626
      %v6659 = vmul.f32 %v6627, %v6627
      %v6660 = vmul.f32 %v6628, %v6628
      %v6661 = vmul.f32 %v6629, %v6629
      %v6662 = vmul.f32 %v6630, %v6630
      %v6663 = vmul.f32 %v6631, %v6631
      %v6664 = vmul.f32 %v6632, %v6632
      %v6665 = vmul.f32 %v6633, %v6633
      %v6666 = vmul.f32 %v6634, %v6634
      %v6667 = vmul.f32 %v6635, %v6635
      %v6668 = vmul.f32 %v6636, %v6636
      %v6669 = vmul.f32 %v6637, %v6637
      %v6670 = vmul.f32 %v6638, %v6638
      %v6671 = vmul.f32 %v6639, %v6639
      %v6672 = vmul.f32 %v6640, %v6640
      %v6673 = vmul.f32 %v6641, %v6641
      %v6674 = vmul.f32 %v6642, %v6642
      %v6675 = vmul.f32 %v6643, %v6643
      %v6676 = vmul.f32 %v6644, %v6644
      %v6677 = vmul.f32 %v6645, %v6645
      %v6678 = vmul.f32 %v6646, %v6646
      %v6679 = vmul.f32 %v6647, %v6647
      %v6680 = vmul.f32 %v6648, %v6648
      %v6681 = vmul.f32 %v6649, %v6649
      %v6682 = vsel %vm294, %v6650, 0.0
      %6683 = vadd.xlane.f32.xlu0 %v6682
      %v6684 = vpop.xlane.xlu0 %6683
      %v6685 = vsel %vm294, %v6651, 0.0
      %6686 = vadd.xlane.f32.xlu0 %v6685
      %v6687 = vpop.xlane.xlu0 %6686
      %v6688 = vsel %vm294, %v6652, 0.0
      %6689 = vadd.xlane.f32.xlu0 %v6688
      %v6690 = vpop.xlane.xlu0 %6689
      %v6691 = vsel %vm294, %v6653, 0.0
      %6692 = vadd.xlane.f32.xlu0 %v6691
      %v6693 = vpop.xlane.xlu0 %6692
      %v6694 = vsel %vm294, %v6654, 0.0
      %6695 = vadd.xlane.f32.xlu0 %v6694
      %v6696 = vpop.xlane.xlu0 %6695
      %v6697 = vsel %vm294, %v6655, 0.0
      %6698 = vadd.xlane.f32.xlu0 %v6697
      %v6699 = vpop.xlane.xlu0 %6698
      %v6700 = vsel %vm294, %v6656, 0.0
      %6701 = vadd.xlane.f32.xlu0 %v6700
      %v6702 = vpop.xlane.xlu0 %6701
      %v6703 = vsel %vm294, %v6657, 0.0
      %6704 = vadd.xlane.f32.xlu0 %v6703
      %v6705 = vpop.xlane.xlu0 %6704
      %v6706 = vsel %vm294, %v6658, 0.0
      %6707 = vadd.xlane.f32.xlu0 %v6706
      %v6708 = vpop.xlane.xlu0 %6707
      %v6709 = vsel %vm294, %v6659, 0.0
      %6710 = vadd.xlane.f32.xlu0 %v6709
      %v6711 = vpop.xlane.xlu0 %6710
      %v6712 = vsel %vm294, %v6660, 0.0
      %6713 = vadd.xlane.f32.xlu0 %v6712
      %v6714 = vpop.xlane.xlu0 %6713
      %v6715 = vsel %vm294, %v6661, 0.0
      %6716 = vadd.xlane.f32.xlu0 %v6715
      %v6717 = vpop.xlane.xlu0 %6716
      %v6718 = vsel %vm294, %v6662, 0.0
      %6719 = vadd.xlane.f32.xlu0 %v6718
      %v6720 = vpop.xlane.xlu0 %6719
      %v6721 = vsel %vm294, %v6663, 0.0
      %6722 = vadd.xlane.f32.xlu0 %v6721
      %v6723 = vpop.xlane.xlu0 %6722
      %v6724 = vsel %vm294, %v6664, 0.0
      %6725 = vadd.xlane.f32.xlu0 %v6724
      %v6726 = vpop.xlane.xlu0 %6725
      %v6727 = vsel %vm294, %v6665, 0.0
      %6728 = vadd.xlane.f32.xlu0 %v6727
      %v6729 = vpop.xlane.xlu0 %6728
      %v6730 = vsel %vm294, %v6666, 0.0
      %6731 = vadd.xlane.f32.xlu0 %v6730
      %v6732 = vpop.xlane.xlu0 %6731
      %v6733 = vsel %vm294, %v6667, 0.0
      %6734 = vadd.xlane.f32.xlu0 %v6733
      %v6735 = vpop.xlane.xlu0 %6734
      %v6736 = vsel %vm294, %v6668, 0.0
      %6737 = vadd.xlane.f32.xlu0 %v6736
      %v6738 = vpop.xlane.xlu0 %6737
      %v6739 = vsel %vm294, %v6669, 0.0
      %6740 = vadd.xlane.f32.xlu0 %v6739
      %v6741 = vpop.xlane.xlu0 %6740
      %v6742 = vsel %vm294, %v6670, 0.0
      %6743 = vadd.xlane.f32.xlu0 %v6742
      %v6744 = vpop.xlane.xlu0 %6743
      %v6745 = vsel %vm294, %v6671, 0.0
      %6746 = vadd.xlane.f32.xlu0 %v6745
      %v6747 = vpop.xlane.xlu0 %6746
      %v6748 = vsel %vm294, %v6672, 0.0
      %6749 = vadd.xlane.f32.xlu0 %v6748
      %v6750 = vpop.xlane.xlu0 %6749
      %v6751 = vsel %vm294, %v6673, 0.0
      %6752 = vadd.xlane.f32.xlu0 %v6751
      %v6753 = vpop.xlane.xlu0 %6752
      %v6754 = vsel %vm294, %v6674, 0.0
      %6755 = vadd.xlane.f32.xlu0 %v6754
      %v6756 = vpop.xlane.xlu0 %6755
      %v6757 = vsel %vm294, %v6675, 0.0
      %6758 = vadd.xlane.f32.xlu0 %v6757
      %v6759 = vpop.xlane.xlu0 %6758
      %v6760 = vsel %vm294, %v6676, 0.0
      %6761 = vadd.xlane.f32.xlu0 %v6760
      %v6762 = vpop.xlane.xlu0 %6761
      %v6763 = vsel %vm294, %v6677, 0.0
      %6764 = vadd.xlane.f32.xlu0 %v6763
      %v6765 = vpop.xlane.xlu0 %6764
      %v6766 = vsel %vm294, %v6678, 0.0
      %6767 = vadd.xlane.f32.xlu0 %v6766
      %v6768 = vpop.xlane.xlu0 %6767
      %v6769 = vsel %vm294, %v6679, 0.0
      %6770 = vadd.xlane.f32.xlu0 %v6769
      %v6771 = vpop.xlane.xlu0 %6770
      %v6772 = vsel %vm294, %v6680, 0.0
      %6773 = vadd.xlane.f32.xlu0 %v6772
      %v6774 = vpop.xlane.xlu0 %6773
      %v6775 = vsel %vm294, %v6681, 0.0
      %6776 = vadd.xlane.f32.xlu0 %v6775
      %v6777 = vpop.xlane.xlu0 %6776
      %v6778 = vmul.f32 %v6684, %v391
      %v6779 = vmul.f32 %v6687, %v391
      %v6780 = vmul.f32 %v6690, %v391
      %v6781 = vmul.f32 %v6693, %v391
      %v6782 = vmul.f32 %v6696, %v391
      %v6783 = vmul.f32 %v6699, %v391
      %v6784 = vmul.f32 %v6702, %v391
      %v6785 = vmul.f32 %v6705, %v391
      %v6786 = vmul.f32 %v6708, %v391
      %v6787 = vmul.f32 %v6711, %v391
      %v6788 = vmul.f32 %v6714, %v391
      %v6789 = vmul.f32 %v6717, %v391
      %v6790 = vmul.f32 %v6720, %v391
      %v6791 = vmul.f32 %v6723, %v391
      %v6792 = vmul.f32 %v6726, %v391
      %v6793 = vmul.f32 %v6729, %v391
      %v6794 = vmul.f32 %v6732, %v391
      %v6795 = vmul.f32 %v6735, %v391
      %v6796 = vmul.f32 %v6738, %v391
      %v6797 = vmul.f32 %v6741, %v391
      %v6798 = vmul.f32 %v6744, %v391
      %v6799 = vmul.f32 %v6747, %v391
      %v6800 = vmul.f32 %v6750, %v391
      %v6801 = vmul.f32 %v6753, %v391
      %v6802 = vmul.f32 %v6756, %v391
      %v6803 = vmul.f32 %v6759, %v391
      %v6804 = vmul.f32 %v6762, %v391
      %v6805 = vmul.f32 %v6765, %v391
      %v6806 = vmul.f32 %v6768, %v391
      %v6807 = vmul.f32 %v6771, %v391
      %v6808 = vmul.f32 %v6774, %v391
      %v6809 = vmul.f32 %v6777, %v391
      %v6810 = vadd.f32 %v6778, 1e-05
      %v6811 = vadd.f32 %v6779, 1e-05
      %v6812 = vadd.f32 %v6780, 1e-05
      %v6813 = vadd.f32 %v6781, 1e-05
      %v6814 = vadd.f32 %v6782, 1e-05
      %v6815 = vadd.f32 %v6783, 1e-05
      %v6816 = vadd.f32 %v6784, 1e-05
      %v6817 = vadd.f32 %v6785, 1e-05
      %v6818 = vadd.f32 %v6786, 1e-05
      %v6819 = vadd.f32 %v6787, 1e-05
      %v6820 = vadd.f32 %v6788, 1e-05
      %v6821 = vadd.f32 %v6789, 1e-05
      %v6822 = vadd.f32 %v6790, 1e-05
      %v6823 = vadd.f32 %v6791, 1e-05
      %v6824 = vadd.f32 %v6792, 1e-05
      %v6825 = vadd.f32 %v6793, 1e-05
      %v6826 = vadd.f32 %v6794, 1e-05
      %v6827 = vadd.f32 %v6795, 1e-05
      %v6828 = vadd.f32 %v6796, 1e-05
      %v6829 = vadd.f32 %v6797, 1e-05
      %v6830 = vadd.f32 %v6798, 1e-05
      %v6831 = vadd.f32 %v6799, 1e-05
      %v6832 = vadd.f32 %v6800, 1e-05
      %v6833 = vadd.f32 %v6801, 1e-05
      %v6834 = vadd.f32 %v6802, 1e-05
      %v6835 = vadd.f32 %v6803, 1e-05
      %v6836 = vadd.f32 %v6804, 1e-05
      %v6837 = vadd.f32 %v6805, 1e-05
      %v6838 = vadd.f32 %v6806, 1e-05
      %v6839 = vadd.f32 %v6807, 1e-05
      %v6840 = vadd.f32 %v6808, 1e-05
      %v6841 = vadd.f32 %v6809, 1e-05
      %v6842 = vrsqrt.pop %v6810
      %v6843 = vrsqrt.pop %v6811
      %v6844 = vrsqrt.pop %v6812
      %v6845 = vrsqrt.pop %v6813
      %v6846 = vrsqrt.pop %v6814
      %v6847 = vrsqrt.pop %v6815
      %v6848 = vrsqrt.pop %v6816
      %v6849 = vrsqrt.pop %v6817
      %v6850 = vrsqrt.pop %v6818
      %v6851 = vrsqrt.pop %v6819
      %v6852 = vrsqrt.pop %v6820
      %v6853 = vrsqrt.pop %v6821
      %v6854 = vrsqrt.pop %v6822
      %v6855 = vrsqrt.pop %v6823
      %v6856 = vrsqrt.pop %v6824
      %v6857 = vrsqrt.pop %v6825
      %v6858 = vrsqrt.pop %v6826
      %v6859 = vrsqrt.pop %v6827
      %v6860 = vrsqrt.pop %v6828
      %v6861 = vrsqrt.pop %v6829
      %v6862 = vrsqrt.pop %v6830
      %v6863 = vrsqrt.pop %v6831
      %v6864 = vrsqrt.pop %v6832
      %v6865 = vrsqrt.pop %v6833
      %v6866 = vrsqrt.pop %v6834
      %v6867 = vrsqrt.pop %v6835
      %v6868 = vrsqrt.pop %v6836
      %v6869 = vrsqrt.pop %v6837
      %v6870 = vrsqrt.pop %v6838
      %v6871 = vrsqrt.pop %v6839
      %v6872 = vrsqrt.pop %v6840
      %v6873 = vrsqrt.pop %v6841
      %v6874 = vmul.f32 %v6618, %v6842
      %v6875 = vmul.f32 %v6619, %v6843
      %v6876 = vmul.f32 %v6620, %v6844
      %v6877 = vmul.f32 %v6621, %v6845
      %v6878 = vmul.f32 %v6622, %v6846
      %v6879 = vmul.f32 %v6623, %v6847
      %v6880 = vmul.f32 %v6624, %v6848
      %v6881 = vmul.f32 %v6625, %v6849
      %v6882 = vmul.f32 %v6626, %v6850
      %v6883 = vmul.f32 %v6627, %v6851
      %v6884 = vmul.f32 %v6628, %v6852
      %v6885 = vmul.f32 %v6629, %v6853
      %v6886 = vmul.f32 %v6630, %v6854
      %v6887 = vmul.f32 %v6631, %v6855
      %v6888 = vmul.f32 %v6632, %v6856
      %v6889 = vmul.f32 %v6633, %v6857
      %v6890 = vmul.f32 %v6634, %v6858
      %v6891 = vmul.f32 %v6635, %v6859
      %v6892 = vmul.f32 %v6636, %v6860
      %v6893 = vmul.f32 %v6637, %v6861
      %v6894 = vmul.f32 %v6638, %v6862
      %v6895 = vmul.f32 %v6639, %v6863
      %v6896 = vmul.f32 %v6640, %v6864
      %v6897 = vmul.f32 %v6641, %v6865
      %v6898 = vmul.f32 %v6642, %v6866
      %v6899 = vmul.f32 %v6643, %v6867
      %v6900 = vmul.f32 %v6644, %v6868
      %v6901 = vmul.f32 %v6645, %v6869
      %v6902 = vmul.f32 %v6646, %v6870
      %v6903 = vmul.f32 %v6647, %v6871
      %v6904 = vmul.f32 %v6648, %v6872
      %v6905 = vmul.f32 %v6649, %v6873
      %v6906 = vlaneseq
      %v6907 = vshrl.u32 %v6906, 7
      %v6908 = vsub.s32 3, %v6907
      %v6909 = vrot.slane %v293, %v6908
      %v6910 = vmul.f32 %v6874, %v6909
      %v6911 = vmul.f32 %v6875, %v6909
      %v6912 = vmul.f32 %v6876, %v6909
      %v6913 = vmul.f32 %v6877, %v6909
      %v6914 = vmul.f32 %v6878, %v6909
      %v6915 = vmul.f32 %v6879, %v6909
      %v6916 = vmul.f32 %v6880, %v6909
      %v6917 = vmul.f32 %v6881, %v6909
      %v6918 = vmul.f32 %v6882, %v6909
      %v6919 = vmul.f32 %v6883, %v6909
      %v6920 = vmul.f32 %v6884, %v6909
      %v6921 = vmul.f32 %v6885, %v6909
      %v6922 = vmul.f32 %v6886, %v6909
      %v6923 = vmul.f32 %v6887, %v6909
      %v6924 = vmul.f32 %v6888, %v6909
      %v6925 = vmul.f32 %v6889, %v6909
      %v6926 = vmul.f32 %v6890, %v6909
      %v6927 = vmul.f32 %v6891, %v6909
      %v6928 = vmul.f32 %v6892, %v6909
      %v6929 = vmul.f32 %v6893, %v6909
      %v6930 = vmul.f32 %v6894, %v6909
      %v6931 = vmul.f32 %v6895, %v6909
      %v6932 = vmul.f32 %v6896, %v6909
      %v6933 = vmul.f32 %v6897, %v6909
      %v6934 = vmul.f32 %v6898, %v6909
      %v6935 = vmul.f32 %v6899, %v6909
      %v6936 = vmul.f32 %v6900, %v6909
      %v6937 = vmul.f32 %v6901, %v6909
      %v6938 = vmul.f32 %v6902, %v6909
      %v6939 = vmul.f32 %v6903, %v6909
      %v6940 = vmul.f32 %v6904, %v6909
      %v6941 = vmul.f32 %v6905, %v6909
      %v6942 = vlaneseq
      %v6943 = vshrl.u32 %v6942, 7
      %v6944 = vsub.s32 4, %v6943
      %v6945 = vrot.slane %v293, %v6944
      %v6946 = vadd.f32 %v6910, %v6945
      %v6947 = vadd.f32 %v6911, %v6945
      %v6948 = vadd.f32 %v6912, %v6945
      %v6949 = vadd.f32 %v6913, %v6945
      %v6950 = vadd.f32 %v6914, %v6945
      %v6951 = vadd.f32 %v6915, %v6945
      %v6952 = vadd.f32 %v6916, %v6945
      %v6953 = vadd.f32 %v6917, %v6945
      %v6954 = vadd.f32 %v6918, %v6945
      %v6955 = vadd.f32 %v6919, %v6945
      %v6956 = vadd.f32 %v6920, %v6945
      %v6957 = vadd.f32 %v6921, %v6945
      %v6958 = vadd.f32 %v6922, %v6945
      %v6959 = vadd.f32 %v6923, %v6945
      %v6960 = vadd.f32 %v6924, %v6945
      %v6961 = vadd.f32 %v6925, %v6945
      %v6962 = vadd.f32 %v6926, %v6945
      %v6963 = vadd.f32 %v6927, %v6945
      %v6964 = vadd.f32 %v6928, %v6945
      %v6965 = vadd.f32 %v6929, %v6945
      %v6966 = vadd.f32 %v6930, %v6945
      %v6967 = vadd.f32 %v6931, %v6945
      %v6968 = vadd.f32 %v6932, %v6945
      %v6969 = vadd.f32 %v6933, %v6945
      %v6970 = vadd.f32 %v6934, %v6945
      %v6971 = vadd.f32 %v6935, %v6945
      %v6972 = vadd.f32 %v6936, %v6945
      %v6973 = vadd.f32 %v6937, %v6945
      %v6974 = vadd.f32 %v6938, %v6945
      %v6975 = vadd.f32 %v6939, %v6945
      %v6976 = vadd.f32 %v6940, %v6945
      %v6977 = vadd.f32 %v6941, %v6945
      %v6978 = vpack.c.bf16 %v6947, %v6946
      %v6979 = vpack.c.bf16 %v6949, %v6948
      %v6980 = vpack.c.bf16 %v6951, %v6950
      %v6981 = vpack.c.bf16 %v6953, %v6952
      %v6982 = vpack.c.bf16 %v6955, %v6954
      %v6983 = vpack.c.bf16 %v6957, %v6956
      %v6984 = vpack.c.bf16 %v6959, %v6958
      %v6985 = vpack.c.bf16 %v6961, %v6960
      %v6986 = vpack.c.bf16 %v6963, %v6962
      %v6987 = vpack.c.bf16 %v6965, %v6964
      %v6988 = vpack.c.bf16 %v6967, %v6966
      %v6989 = vpack.c.bf16 %v6969, %v6968
      %v6990 = vpack.c.bf16 %v6971, %v6970
      %v6991 = vpack.c.bf16 %v6973, %v6972
      %v6992 = vpack.c.bf16 %v6975, %v6974
      %v6993 = vpack.c.bf16 %v6977, %v6976
      %v6994 = vld [vmem:[%s4] sm:$0xf]
      %v6995 = vld [vmem:[%s4 + $0x4] sm:$0xf]
      %v6996 = vld [vmem:[%s4 + $0x8] sm:$0xf]
      %v6997 = vld [vmem:[%s4 + $0xc] sm:$0xf]
      %v6998 = vlaneseq
      %v6999 = vshrl.u32 %v6998, 7
      %v7000 = vsub.s32 6, %v6999
      %v7001 = vrot.slane %v293, %v7000
      %v7006 = vunpack.c.l.b16 %v6994
      %v7007 = vunpack.c.l.b16 %v6995
      %v7008 = vunpack.c.l.b16 %v6996
      %v7009 = vunpack.c.l.b16 %v6997
      %v7010 = vpack.c.b16 %v7007, %v7006
      %v7011 = vpack.c.b16 %v7009, %v7008
      %v7015 = vsel %vm294, %v6978, 0
      %v7018 = vsel %vm294, %v6979, 0
      %v7021 = vsel %vm294, %v6980, 0
      %v7024 = vsel %vm294, %v6981, 0
      %v7027 = vsel %vm294, %v6982, 0
      %v7030 = vsel %vm294, %v6983, 0
      %v7033 = vsel %vm294, %v6984, 0
      %v7036 = vsel %vm294, %v6985, 0
      %v7039 = vsel %vm294, %v6986, 0
      %v7042 = vsel %vm294, %v6987, 0
      %v7045 = vsel %vm294, %v6988, 0
      %v7048 = vsel %vm294, %v6989, 0
      %v7051 = vsel %vm294, %v6990, 0
      %v7054 = vsel %vm294, %v6991, 0
      %v7057 = vsel %vm294, %v6992, 0
      %v7060 = vsel %vm294, %v6993, 0
      %7062 = vmatprep.subr.bf16.mxu0 0
      %7063 = vmatpush1.bf16.msra.mxu0 %v7010
      %7064 = vmatprep.subr.bf16.mxu0 0
      %7065 = vmatpush1.bf16.msra.mxu0 %v7011
      %7066 = vmatprep.subr.bf16.mxu0 0
      %7067 = vmatpush1.bf16.msra.mxu0 0
      %7068 = vmatprep.subr.bf16.mxu0 0
      %7069 = vmatpush1.bf16.msra.mxu0 0
      %7070 = vmatprep.subr.bf16.mxu0 0
      %7071 = vmatpush1.bf16.msra.mxu0 0
      %7072 = vmatprep.subr.bf16.mxu0 0
      %7073 = vmatpush1.bf16.msra.mxu0 0
      %7074 = vmatprep.subr.bf16.mxu0 0
      %7075 = vmatpush1.bf16.msra.mxu0 0
      %7076 = vmatprep.subr.bf16.mxu0 0
      %7077 = vmatpush1.bf16.msra.mxu0 0
      %7078 = vmatprep.subr.bf16.mxu0 0
      %7079 = vmatpush1.bf16.msra.mxu0 0
      %7080 = vmatprep.subr.bf16.mxu0 0
      %7081 = vmatpush1.bf16.msra.mxu0 0
      %7082 = vmatprep.subr.bf16.mxu0 0
      %7083 = vmatpush1.bf16.msra.mxu0 0
      %7084 = vmatprep.subr.bf16.mxu0 0
      %7085 = vmatpush1.bf16.msra.mxu0 0
      %7086 = vmatprep.subr.bf16.mxu0 0
      %7087 = vmatpush1.bf16.msra.mxu0 0
      %7088 = vmatprep.subr.bf16.mxu0 0
      %7089 = vmatpush1.bf16.msra.mxu0 0
      %7090 = vmatprep.subr.bf16.mxu0 0
      %7091 = vmatpush1.bf16.msra.mxu0 0
      %7092 = vmatprep.subr.bf16.mxu0 0
      %7093 = vmatpush1.bf16.msra.mxu0 0
      %7094 = vmatprep.mubr.bf16.mxu0 0
      %7095 = vmatmul.mubr.bf16.gmra.mrb[0].mxu0 %v7015
      %v7096 = vpop.f32.mrb[0].mxu0
      %v7097 = vadd.f32 %v7001, %v7096
      %v7098 = vpop.f32.mrb[0].mxu0
      %v7099 = vpop.f32.mrb[0].mxu0
      %v7100 = vadd.f32 %v7001, %v7099
      %v7101 = vpop.f32.mrb[0].mxu0
      %7102 = vmatprep.mubr.bf16.mxu0 0
      %7103 = vmatmul.mubr.bf16.gmra.mrb[0].mxu0 %v7018
      %v7104 = vpop.f32.mrb[0].mxu0
      %v7105 = vadd.f32 %v7001, %v7104
      %v7106 = vpop.f32.mrb[0].mxu0
      %v7107 = vpop.f32.mrb[0].mxu0
      %v7108 = vadd.f32 %v7001, %v7107
      %v7109 = vpop.f32.mrb[0].mxu0
      %7110 = vmatprep.mubr.bf16.mxu0 0
      %7111 = vmatmul.mubr.bf16.gmra.mrb[0].mxu0 %v7021
      %v7112 = vpop.f32.mrb[0].mxu0
      %v7113 = vadd.f32 %v7001, %v7112
      %v7114 = vpop.f32.mrb[0].mxu0
      %v7115 = vpop.f32.mrb[0].mxu0
      %v7116 = vadd.f32 %v7001, %v7115
      %v7117 = vpop.f32.mrb[0].mxu0
      %7118 = vmatprep.mubr.bf16.mxu0 0
      %7119 = vmatmul.mubr.bf16.gmra.mrb[0].mxu0 %v7024
      %v7120 = vpop.f32.mrb[0].mxu0
      %v7121 = vadd.f32 %v7001, %v7120
      %v7122 = vpop.f32.mrb[0].mxu0
      %v7123 = vpop.f32.mrb[0].mxu0
      %v7124 = vadd.f32 %v7001, %v7123
      %v7125 = vpop.f32.mrb[0].mxu0
      %7126 = vmatprep.mubr.bf16.mxu0 0
      %7127 = vmatmul.mubr.bf16.gmra.mrb[0].mxu0 %v7027
      %v7128 = vpop.f32.mrb[0].mxu0
      %v7129 = vadd.f32 %v7001, %v7128
      %v7130 = vpop.f32.mrb[0].mxu0
      %v7131 = vpop.f32.mrb[0].mxu0
      %v7132 = vadd.f32 %v7001, %v7131
      %v7133 = vpop.f32.mrb[0].mxu0
      %7134 = vmatprep.mubr.bf16.mxu0 0
      %7135 = vmatmul.mubr.bf16.gmra.mrb[0].mxu0 %v7030
      %v7136 = vpop.f32.mrb[0].mxu0
      %v7137 = vadd.f32 %v7001, %v7136
      %v7138 = vpop.f32.mrb[0].mxu0
      %v7139 = vpop.f32.mrb[0].mxu0
      %v7140 = vadd.f32 %v7001, %v7139
      %v7141 = vpop.f32.mrb[0].mxu0
      %7142 = vmatprep.mubr.bf16.mxu0 0
      %7143 = vmatmul.mubr.bf16.gmra.mrb[0].mxu0 %v7033
      %v7144 = vpop.f32.mrb[0].mxu0
      %v7145 = vadd.f32 %v7001, %v7144
      %v7146 = vpop.f32.mrb[0].mxu0
      %v7147 = vpop.f32.mrb[0].mxu0
      %v7148 = vadd.f32 %v7001, %v7147
      %v7149 = vpop.f32.mrb[0].mxu0
      %7150 = vmatprep.mubr.bf16.mxu0 0
      %7151 = vmatmul.mubr.bf16.gmra.mrb[0].mxu0 %v7036
      %v7152 = vpop.f32.mrb[0].mxu0
      %v7153 = vadd.f32 %v7001, %v7152
      %v7154 = vpop.f32.mrb[0].mxu0
      %v7155 = vpop.f32.mrb[0].mxu0
      %v7156 = vadd.f32 %v7001, %v7155
      %v7157 = vpop.f32.mrb[0].mxu0
      %7158 = vmatprep.mubr.bf16.mxu0 0
      %7159 = vmatmul.mubr.bf16.gmra.mrb[0].mxu0 %v7039
      %v7160 = vpop.f32.mrb[0].mxu0
      %v7161 = vadd.f32 %v7001, %v7160
      %v7162 = vpop.f32.mrb[0].mxu0
      %v7163 = vpop.f32.mrb[0].mxu0
      %v7164 = vadd.f32 %v7001, %v7163
      %v7165 = vpop.f32.mrb[0].mxu0
      %7166 = vmatprep.mubr.bf16.mxu0 0
      %7167 = vmatmul.mubr.bf16.gmra.mrb[0].mxu0 %v7042
      %v7168 = vpop.f32.mrb[0].mxu0
      %v7169 = vadd.f32 %v7001, %v7168
      %v7170 = vpop.f32.mrb[0].mxu0
      %v7171 = vpop.f32.mrb[0].mxu0
      %v7172 = vadd.f32 %v7001, %v7171
      %v7173 = vpop.f32.mrb[0].mxu0
      %7174 = vmatprep.mubr.bf16.mxu0 0
      %7175 = vmatmul.mubr.bf16.gmra.mrb[0].mxu0 %v7045
      %v7176 = vpop.f32.mrb[0].mxu0
      %v7177 = vadd.f32 %v7001, %v7176
      %v7178 = vpop.f32.mrb[0].mxu0
      %v7179 = vpop.f32.mrb[0].mxu0
      %v7180 = vadd.f32 %v7001, %v7179
      %v7181 = vpop.f32.mrb[0].mxu0
      %7182 = vmatprep.mubr.bf16.mxu0 0
      %7183 = vmatmul.mubr.bf16.gmra.mrb[0].mxu0 %v7048
      %v7184 = vpop.f32.mrb[0].mxu0
      %v7185 = vadd.f32 %v7001, %v7184
      %v7186 = vpop.f32.mrb[0].mxu0
      %v7187 = vpop.f32.mrb[0].mxu0
      %v7188 = vadd.f32 %v7001, %v7187
      %v7189 = vpop.f32.mrb[0].mxu0
      %7190 = vmatprep.mubr.bf16.mxu0 0
      %7191 = vmatmul.mubr.bf16.gmra.mrb[0].mxu0 %v7051
      %v7192 = vpop.f32.mrb[0].mxu0
      %v7193 = vadd.f32 %v7001, %v7192
      %v7194 = vpop.f32.mrb[0].mxu0
      %v7195 = vpop.f32.mrb[0].mxu0
      %v7196 = vadd.f32 %v7001, %v7195
      %v7197 = vpop.f32.mrb[0].mxu0
      %7198 = vmatprep.mubr.bf16.mxu0 0
      %7199 = vmatmul.mubr.bf16.gmra.mrb[0].mxu0 %v7054
      %v7200 = vpop.f32.mrb[0].mxu0
      %v7201 = vadd.f32 %v7001, %v7200
      %v7202 = vpop.f32.mrb[0].mxu0
      %v7203 = vpop.f32.mrb[0].mxu0
      %v7204 = vadd.f32 %v7001, %v7203
      %v7205 = vpop.f32.mrb[0].mxu0
      %7206 = vmatprep.mubr.bf16.mxu0 0
      %7207 = vmatmul.mubr.bf16.gmra.mrb[0].mxu0 %v7057
      %v7208 = vpop.f32.mrb[0].mxu0
      %v7209 = vadd.f32 %v7001, %v7208
      %v7210 = vpop.f32.mrb[0].mxu0
      %v7211 = vpop.f32.mrb[0].mxu0
      %v7212 = vadd.f32 %v7001, %v7211
      %v7213 = vpop.f32.mrb[0].mxu0
      %7214 = vmatprep.mubr.bf16.mxu0 0
      %7215 = vmatmul.mubr.bf16.gmra.mrb[0].mxu0 %v7060
      %v7216 = vpop.f32.mrb[0].mxu0
      %v7217 = vadd.f32 %v7001, %v7216
      %v7218 = vpop.f32.mrb[0].mxu0
      %v7219 = vpop.f32.mrb[0].mxu0
      %v7220 = vadd.f32 %v7001, %v7219
      %v7221 = vpop.f32.mrb[0].mxu0
      %7222 = vdwg.mxu0
      %v7223 = vxor.u32 %v7097, 2147483648
      %v7224 = vxor.u32 %v7100, 2147483648
      %v7225 = vxor.u32 %v7105, 2147483648
      %v7226 = vxor.u32 %v7108, 2147483648
      %v7227 = vxor.u32 %v7113, 2147483648
      %v7228 = vxor.u32 %v7116, 2147483648
      %v7229 = vxor.u32 %v7121, 2147483648
      %v7230 = vxor.u32 %v7124, 2147483648
      %v7231 = vxor.u32 %v7129, 2147483648
      %v7232 = vxor.u32 %v7132, 2147483648
      %v7233 = vxor.u32 %v7137, 2147483648
      %v7234 = vxor.u32 %v7140, 2147483648
      %v7235 = vxor.u32 %v7145, 2147483648
      %v7236 = vxor.u32 %v7148, 2147483648
      %v7237 = vxor.u32 %v7153, 2147483648
      %v7238 = vxor.u32 %v7156, 2147483648
      %v7239 = vxor.u32 %v7161, 2147483648
      %v7240 = vxor.u32 %v7164, 2147483648
      %v7241 = vxor.u32 %v7169, 2147483648
      %v7242 = vxor.u32 %v7172, 2147483648
      %v7243 = vxor.u32 %v7177, 2147483648
      %v7244 = vxor.u32 %v7180, 2147483648
      %v7245 = vxor.u32 %v7185, 2147483648
      %v7246 = vxor.u32 %v7188, 2147483648
      %v7247 = vxor.u32 %v7193, 2147483648
      %v7248 = vxor.u32 %v7196, 2147483648
      %v7249 = vxor.u32 %v7201, 2147483648
      %v7250 = vxor.u32 %v7204, 2147483648
      %v7251 = vxor.u32 %v7209, 2147483648
      %v7252 = vxor.u32 %v7212, 2147483648
      %v7253 = vxor.u32 %v7217, 2147483648
      %v7254 = vxor.u32 %v7220, 2147483648
      %v7255 = vmul.f32 %v7223, 1.442695
      %v7256 = vpow.pop %v7255
      %v7257 = vmul.f32 %v7224, 1.442695
      %v7258 = vpow.pop %v7257
      %v7259 = vmul.f32 %v7225, 1.442695
      %v7260 = vpow.pop %v7259
      %v7261 = vmul.f32 %v7226, 1.442695
      %v7262 = vpow.pop %v7261
      %v7263 = vmul.f32 %v7227, 1.442695
      %v7264 = vpow.pop %v7263
      %v7265 = vmul.f32 %v7228, 1.442695
      %v7266 = vpow.pop %v7265
      %v7267 = vmul.f32 %v7229, 1.442695
      %v7268 = vpow.pop %v7267
      %v7269 = vmul.f32 %v7230, 1.442695
      %v7270 = vpow.pop %v7269
      %v7271 = vmul.f32 %v7231, 1.442695
      %v7272 = vpow.pop %v7271
      %v7273 = vmul.f32 %v7232, 1.442695
      %v7274 = vpow.pop %v7273
      %v7275 = vmul.f32 %v7233, 1.442695
      %v7276 = vpow.pop %v7275
      %v7277 = vmul.f32 %v7234, 1.442695
      %v7278 = vpow.pop %v7277
      %v7279 = vmul.f32 %v7235, 1.442695
      %v7280 = vpow.pop %v7279
      %v7281 = vmul.f32 %v7236, 1.442695
      %v7282 = vpow.pop %v7281
      %v7283 = vmul.f32 %v7237, 1.442695
      %v7284 = vpow.pop %v7283
      %v7285 = vmul.f32 %v7238, 1.442695
      %v7286 = vpow.pop %v7285
      %v7287 = vmul.f32 %v7239, 1.442695
      %v7288 = vpow.pop %v7287
      %v7289 = vmul.f32 %v7240, 1.442695
      %v7290 = vpow.pop %v7289
      %v7291 = vmul.f32 %v7241, 1.442695
      %v7292 = vpow.pop %v7291
      %v7293 = vmul.f32 %v7242, 1.442695
      %v7294 = vpow.pop %v7293
      %v7295 = vmul.f32 %v7243, 1.442695
      %v7296 = vpow.pop %v7295
      %v7297 = vmul.f32 %v7244, 1.442695
      %v7298 = vpow.pop %v7297
      %v7299 = vmul.f32 %v7245, 1.442695
      %v7300 = vpow.pop %v7299
      %v7301 = vmul.f32 %v7246, 1.442695
      %v7302 = vpow.pop %v7301
      %v7303 = vmul.f32 %v7247, 1.442695
      %v7304 = vpow.pop %v7303
      %v7305 = vmul.f32 %v7248, 1.442695
      %v7306 = vpow.pop %v7305
      %v7307 = vmul.f32 %v7249, 1.442695
      %v7308 = vpow.pop %v7307
      %v7309 = vmul.f32 %v7250, 1.442695
      %v7310 = vpow.pop %v7309
      %v7311 = vmul.f32 %v7251, 1.442695
      %v7312 = vpow.pop %v7311
      %v7313 = vmul.f32 %v7252, 1.442695
      %v7314 = vpow.pop %v7313
      %v7315 = vmul.f32 %v7253, 1.442695
      %v7316 = vpow.pop %v7315
      %v7317 = vmul.f32 %v7254, 1.442695
      %v7318 = vpow.pop %v7317
      %v7319 = vadd.f32 %v7256, 1.0
      %v7320 = vadd.f32 %v7258, 1.0
      %v7321 = vadd.f32 %v7260, 1.0
      %v7322 = vadd.f32 %v7262, 1.0
      %v7323 = vadd.f32 %v7264, 1.0
      %v7324 = vadd.f32 %v7266, 1.0
      %v7325 = vadd.f32 %v7268, 1.0
      %v7326 = vadd.f32 %v7270, 1.0
      %v7327 = vadd.f32 %v7272, 1.0
      %v7328 = vadd.f32 %v7274, 1.0
      %v7329 = vadd.f32 %v7276, 1.0
      %v7330 = vadd.f32 %v7278, 1.0
      %v7331 = vadd.f32 %v7280, 1.0
      %v7332 = vadd.f32 %v7282, 1.0
      %v7333 = vadd.f32 %v7284, 1.0
      %v7334 = vadd.f32 %v7286, 1.0
      %v7335 = vadd.f32 %v7288, 1.0
      %v7336 = vadd.f32 %v7290, 1.0
      %v7337 = vadd.f32 %v7292, 1.0
      %v7338 = vadd.f32 %v7294, 1.0
      %v7339 = vadd.f32 %v7296, 1.0
      %v7340 = vadd.f32 %v7298, 1.0
      %v7341 = vadd.f32 %v7300, 1.0
      %v7342 = vadd.f32 %v7302, 1.0
      %v7343 = vadd.f32 %v7304, 1.0
      %v7344 = vadd.f32 %v7306, 1.0
      %v7345 = vadd.f32 %v7308, 1.0
      %v7346 = vadd.f32 %v7310, 1.0
      %v7347 = vadd.f32 %v7312, 1.0
      %v7348 = vadd.f32 %v7314, 1.0
      %v7349 = vadd.f32 %v7316, 1.0
      %v7350 = vadd.f32 %v7318, 1.0
      %v7351 = vrcp.pop %v7319
      %v7352 = vmul.f32 1.0, %v7351
      %v7353 = vrcp.pop %v7320
      %v7354 = vmul.f32 1.0, %v7353
      %v7355 = vrcp.pop %v7321
      %v7356 = vmul.f32 1.0, %v7355
      %v7357 = vrcp.pop %v7322
      %v7358 = vmul.f32 1.0, %v7357
      %v7359 = vrcp.pop %v7323
      %v7360 = vmul.f32 1.0, %v7359
      %v7361 = vrcp.pop %v7324
      %v7362 = vmul.f32 1.0, %v7361
      %v7363 = vrcp.pop %v7325
      %v7364 = vmul.f32 1.0, %v7363
      %v7365 = vrcp.pop %v7326
      %v7366 = vmul.f32 1.0, %v7365
      %v7367 = vrcp.pop %v7327
      %v7368 = vmul.f32 1.0, %v7367
      %v7369 = vrcp.pop %v7328
      %v7370 = vmul.f32 1.0, %v7369
      %v7371 = vrcp.pop %v7329
      %v7372 = vmul.f32 1.0, %v7371
      %v7373 = vrcp.pop %v7330
      %v7374 = vmul.f32 1.0, %v7373
      %v7375 = vrcp.pop %v7331
      %v7376 = vmul.f32 1.0, %v7375
      %v7377 = vrcp.pop %v7332
      %v7378 = vmul.f32 1.0, %v7377
      %v7379 = vrcp.pop %v7333
      %v7380 = vmul.f32 1.0, %v7379
      %v7381 = vrcp.pop %v7334
      %v7382 = vmul.f32 1.0, %v7381
      %v7383 = vrcp.pop %v7335
      %v7384 = vmul.f32 1.0, %v7383
      %v7385 = vrcp.pop %v7336
      %v7386 = vmul.f32 1.0, %v7385
      %v7387 = vrcp.pop %v7337
      %v7388 = vmul.f32 1.0, %v7387
      %v7389 = vrcp.pop %v7338
      %v7390 = vmul.f32 1.0, %v7389
      %v7391 = vrcp.pop %v7339
      %v7392 = vmul.f32 1.0, %v7391
      %v7393 = vrcp.pop %v7340
      %v7394 = vmul.f32 1.0, %v7393
      %v7395 = vrcp.pop %v7341
      %v7396 = vmul.f32 1.0, %v7395
      %v7397 = vrcp.pop %v7342
      %v7398 = vmul.f32 1.0, %v7397
      %v7399 = vrcp.pop %v7343
      %v7400 = vmul.f32 1.0, %v7399
      %v7401 = vrcp.pop %v7344
      %v7402 = vmul.f32 1.0, %v7401
      %v7403 = vrcp.pop %v7345
      %v7404 = vmul.f32 1.0, %v7403
      %v7405 = vrcp.pop %v7346
      %v7406 = vmul.f32 1.0, %v7405
      %v7407 = vrcp.pop %v7347
      %v7408 = vmul.f32 1.0, %v7407
      %v7409 = vrcp.pop %v7348
      %v7410 = vmul.f32 1.0, %v7409
      %v7411 = vrcp.pop %v7349
      %v7412 = vmul.f32 1.0, %v7411
      %v7413 = vrcp.pop %v7350
      %v7414 = vmul.f32 1.0, %v7413
      %v7415 = vmul.f32 %v7097, %v7352
      %v7416 = vmul.f32 %v7100, %v7354
      %v7417 = vmul.f32 %v7105, %v7356
      %v7418 = vmul.f32 %v7108, %v7358
      %v7419 = vmul.f32 %v7113, %v7360
      %v7420 = vmul.f32 %v7116, %v7362
      %v7421 = vmul.f32 %v7121, %v7364
      %v7422 = vmul.f32 %v7124, %v7366
      %v7423 = vmul.f32 %v7129, %v7368
      %v7424 = vmul.f32 %v7132, %v7370
      %v7425 = vmul.f32 %v7137, %v7372
      %v7426 = vmul.f32 %v7140, %v7374
      %v7427 = vmul.f32 %v7145, %v7376
      %v7428 = vmul.f32 %v7148, %v7378
      %v7429 = vmul.f32 %v7153, %v7380
      %v7430 = vmul.f32 %v7156, %v7382
      %v7431 = vmul.f32 %v7161, %v7384
      %v7432 = vmul.f32 %v7164, %v7386
      %v7433 = vmul.f32 %v7169, %v7388
      %v7434 = vmul.f32 %v7172, %v7390
      %v7435 = vmul.f32 %v7177, %v7392
      %v7436 = vmul.f32 %v7180, %v7394
      %v7437 = vmul.f32 %v7185, %v7396
      %v7438 = vmul.f32 %v7188, %v7398
      %v7439 = vmul.f32 %v7193, %v7400
      %v7440 = vmul.f32 %v7196, %v7402
      %v7441 = vmul.f32 %v7201, %v7404
      %v7442 = vmul.f32 %v7204, %v7406
      %v7443 = vmul.f32 %v7209, %v7408
      %v7444 = vmul.f32 %v7212, %v7410
      %v7445 = vmul.f32 %v7217, %v7412
      %v7446 = vmul.f32 %v7220, %v7414
      %v7447 = vpack.c.bf16 %v7416, %v7415
      %v7448 = vpack.c.bf16 %v7418, %v7417
      %v7449 = vpack.c.bf16 %v7420, %v7419
      %v7450 = vpack.c.bf16 %v7422, %v7421
      %v7451 = vpack.c.bf16 %v7424, %v7423
      %v7452 = vpack.c.bf16 %v7426, %v7425
      %v7453 = vpack.c.bf16 %v7428, %v7427
      %v7454 = vpack.c.bf16 %v7430, %v7429
      %v7455 = vpack.c.bf16 %v7432, %v7431
      %v7456 = vpack.c.bf16 %v7434, %v7433
      %v7457 = vpack.c.bf16 %v7436, %v7435
      %v7458 = vpack.c.bf16 %v7438, %v7437
      %v7459 = vpack.c.bf16 %v7440, %v7439
      %v7460 = vpack.c.bf16 %v7442, %v7441
      %v7461 = vpack.c.bf16 %v7444, %v7443
      %v7462 = vpack.c.bf16 %v7446, %v7445
      %v7463 = vld [vmem:[%s5] sm:$0xf]
      %v7464 = vld [vmem:[%s5 + $0x4] sm:$0xf]
      %v7465 = vld [vmem:[%s5 + $0x8] sm:$0xf]
      %v7466 = vld [vmem:[%s5 + $0xc] sm:$0xf]
      %v7467 = vld [vmem:[%s5 + $0x10] sm:$0xf]
      %v7468 = vld [vmem:[%s5 + $0x14] sm:$0xf]
      %v7469 = vld [vmem:[%s5 + $0x18] sm:$0xf]
      %v7470 = vld [vmem:[%s5 + $0x1c] sm:$0xf]
      %v7471 = vlaneseq
      %v7472 = vshrl.u32 %v7471, 7
      %v7473 = vsub.s32 5, %v7472
      %v7474 = vrot.slane %v293, %v7473
      %v7483 = vunpack.c.l.b16 %v7463
      %v7484 = vunpack.c.l.b16 %v7464
      %v7485 = vunpack.c.l.b16 %v7465
      %v7486 = vunpack.c.l.b16 %v7466
      %v7487 = vunpack.c.l.b16 %v7467
      %v7488 = vunpack.c.l.b16 %v7468
      %v7489 = vunpack.c.l.b16 %v7469
      %v7490 = vunpack.c.l.b16 %v7470
      %v7491 = vpack.c.b16 %v7484, %v7483
      %v7492 = vpack.c.b16 %v7486, %v7485
      %v7493 = vpack.c.b16 %v7488, %v7487
      %v7494 = vpack.c.b16 %v7490, %v7489
      %v7500 = vsel %vm1478, %v7447, 0
      %v7503 = vsel %vm1478, %v7448, 0
      %v7506 = vsel %vm1478, %v7449, 0
      %v7509 = vsel %vm1478, %v7450, 0
      %v7512 = vsel %vm1478, %v7451, 0
      %v7515 = vsel %vm1478, %v7452, 0
      %v7518 = vsel %vm1478, %v7453, 0
      %v7521 = vsel %vm1478, %v7454, 0
      %v7524 = vsel %vm1478, %v7455, 0
      %v7527 = vsel %vm1478, %v7456, 0
      %v7530 = vsel %vm1478, %v7457, 0
      %v7533 = vsel %vm1478, %v7458, 0
      %v7536 = vsel %vm1478, %v7459, 0
      %v7539 = vsel %vm1478, %v7460, 0
      %v7542 = vsel %vm1478, %v7461, 0
      %v7545 = vsel %vm1478, %v7462, 0
      %7547 = vmatprep.subr.bf16.mxu0 0
      %7548 = vmatpush1.bf16.msra.mxu0 %v7491
      %7549 = vmatprep.subr.bf16.mxu0 0
      %7550 = vmatpush1.bf16.msra.mxu0 %v7492
      %7551 = vmatprep.subr.bf16.mxu0 0
      %7552 = vmatpush1.bf16.msra.mxu0 %v7493
      %7553 = vmatprep.subr.bf16.mxu0 0
      %7554 = vmatpush1.bf16.msra.mxu0 %v7494
      %7555 = vmatprep.subr.bf16.mxu0 0
      %7556 = vmatpush1.bf16.msra.mxu0 0
      %7557 = vmatprep.subr.bf16.mxu0 0
      %7558 = vmatpush1.bf16.msra.mxu0 0
      %7559 = vmatprep.subr.bf16.mxu0 0
      %7560 = vmatpush1.bf16.msra.mxu0 0
      %7561 = vmatprep.subr.bf16.mxu0 0
      %7562 = vmatpush1.bf16.msra.mxu0 0
      %7563 = vmatprep.subr.bf16.mxu0 0
      %7564 = vmatpush1.bf16.msra.mxu0 0
      %7565 = vmatprep.subr.bf16.mxu0 0
      %7566 = vmatpush1.bf16.msra.mxu0 0
      %7567 = vmatprep.subr.bf16.mxu0 0
      %7568 = vmatpush1.bf16.msra.mxu0 0
      %7569 = vmatprep.subr.bf16.mxu0 0
      %7570 = vmatpush1.bf16.msra.mxu0 0
      %7571 = vmatprep.subr.bf16.mxu0 0
      %7572 = vmatpush1.bf16.msra.mxu0 0
      %7573 = vmatprep.subr.bf16.mxu0 0
      %7574 = vmatpush1.bf16.msra.mxu0 0
      %7575 = vmatprep.subr.bf16.mxu0 0
      %7576 = vmatpush1.bf16.msra.mxu0 0
      %7577 = vmatprep.subr.bf16.mxu0 0
      %7578 = vmatpush1.bf16.msra.mxu0 0
      %7579 = vmatprep.mubr.bf16.mxu0 0
      %7580 = vmatmul.mubr.bf16.gmra.mrb[0].mxu0 %v7500
      %v7581 = vpop.f32.mrb[0].mxu0
      %v7582 = vadd.f32 %v7474, %v7581
      %v7583 = vpop.f32.mrb[0].mxu0
      %v7584 = vpop.f32.mrb[0].mxu0
      %v7585 = vadd.f32 %v7474, %v7584
      %v7586 = vpop.f32.mrb[0].mxu0
      %7587 = vmatprep.mubr.bf16.mxu0 0
      %7588 = vmatmul.mubr.bf16.gmra.mrb[0].mxu0 %v7503
      %v7589 = vpop.f32.mrb[0].mxu0
      %v7590 = vadd.f32 %v7474, %v7589
      %v7591 = vpop.f32.mrb[0].mxu0
      %v7592 = vpop.f32.mrb[0].mxu0
      %v7593 = vadd.f32 %v7474, %v7592
      %v7594 = vpop.f32.mrb[0].mxu0
      %7595 = vmatprep.mubr.bf16.mxu0 0
      %7596 = vmatmul.mubr.bf16.gmra.mrb[0].mxu0 %v7506
      %v7597 = vpop.f32.mrb[0].mxu0
      %v7598 = vadd.f32 %v7474, %v7597
      %v7599 = vpop.f32.mrb[0].mxu0
      %v7600 = vpop.f32.mrb[0].mxu0
      %v7601 = vadd.f32 %v7474, %v7600
      %v7602 = vpop.f32.mrb[0].mxu0
      %7603 = vmatprep.mubr.bf16.mxu0 0
      %7604 = vmatmul.mubr.bf16.gmra.mrb[0].mxu0 %v7509
      %v7605 = vpop.f32.mrb[0].mxu0
      %v7606 = vadd.f32 %v7474, %v7605
      %v7607 = vpop.f32.mrb[0].mxu0
      %v7608 = vpop.f32.mrb[0].mxu0
      %v7609 = vadd.f32 %v7474, %v7608
      %v7610 = vpop.f32.mrb[0].mxu0
      %7611 = vmatprep.mubr.bf16.mxu0 0
      %7612 = vmatmul.mubr.bf16.gmra.mrb[0].mxu0 %v7512
      %v7613 = vpop.f32.mrb[0].mxu0
      %v7614 = vadd.f32 %v7474, %v7613
      %v7615 = vpop.f32.mrb[0].mxu0
      %v7616 = vpop.f32.mrb[0].mxu0
      %v7617 = vadd.f32 %v7474, %v7616
      %v7618 = vpop.f32.mrb[0].mxu0
      %7619 = vmatprep.mubr.bf16.mxu0 0
      %7620 = vmatmul.mubr.bf16.gmra.mrb[0].mxu0 %v7515
      %v7621 = vpop.f32.mrb[0].mxu0
      %v7622 = vadd.f32 %v7474, %v7621
      %v7623 = vpop.f32.mrb[0].mxu0
      %v7624 = vpop.f32.mrb[0].mxu0
      %v7625 = vadd.f32 %v7474, %v7624
      %v7626 = vpop.f32.mrb[0].mxu0
      %7627 = vmatprep.mubr.bf16.mxu0 0
      %7628 = vmatmul.mubr.bf16.gmra.mrb[0].mxu0 %v7518
      %v7629 = vpop.f32.mrb[0].mxu0
      %v7630 = vadd.f32 %v7474, %v7629
      %v7631 = vpop.f32.mrb[0].mxu0
      %v7632 = vpop.f32.mrb[0].mxu0
      %v7633 = vadd.f32 %v7474, %v7632
      %v7634 = vpop.f32.mrb[0].mxu0
      %7635 = vmatprep.mubr.bf16.mxu0 0
      %7636 = vmatmul.mubr.bf16.gmra.mrb[0].mxu0 %v7521
      %v7637 = vpop.f32.mrb[0].mxu0
      %v7638 = vadd.f32 %v7474, %v7637
      %v7639 = vpop.f32.mrb[0].mxu0
      %v7640 = vpop.f32.mrb[0].mxu0
      %v7641 = vadd.f32 %v7474, %v7640
      %v7642 = vpop.f32.mrb[0].mxu0
      %7643 = vmatprep.mubr.bf16.mxu0 0
      %7644 = vmatmul.mubr.bf16.gmra.mrb[0].mxu0 %v7524
      %v7645 = vpop.f32.mrb[0].mxu0
      %v7646 = vadd.f32 %v7474, %v7645
      %v7647 = vpop.f32.mrb[0].mxu0
      %v7648 = vpop.f32.mrb[0].mxu0
      %v7649 = vadd.f32 %v7474, %v7648
      %v7650 = vpop.f32.mrb[0].mxu0
      %7651 = vmatprep.mubr.bf16.mxu0 0
      %7652 = vmatmul.mubr.bf16.gmra.mrb[0].mxu0 %v7527
      %v7653 = vpop.f32.mrb[0].mxu0
      %v7654 = vadd.f32 %v7474, %v7653
      %v7655 = vpop.f32.mrb[0].mxu0
      %v7656 = vpop.f32.mrb[0].mxu0
      %v7657 = vadd.f32 %v7474, %v7656
      %v7658 = vpop.f32.mrb[0].mxu0
      %7659 = vmatprep.mubr.bf16.mxu0 0
      %7660 = vmatmul.mubr.bf16.gmra.mrb[0].mxu0 %v7530
      %v7661 = vpop.f32.mrb[0].mxu0
      %v7662 = vadd.f32 %v7474, %v7661
      %v7663 = vpop.f32.mrb[0].mxu0
      %v7664 = vpop.f32.mrb[0].mxu0
      %v7665 = vadd.f32 %v7474, %v7664
      %v7666 = vpop.f32.mrb[0].mxu0
      %7667 = vmatprep.mubr.bf16.mxu0 0
      %7668 = vmatmul.mubr.bf16.gmra.mrb[0].mxu0 %v7533
      %v7669 = vpop.f32.mrb[0].mxu0
      %v7670 = vadd.f32 %v7474, %v7669
      %v7671 = vpop.f32.mrb[0].mxu0
      %v7672 = vpop.f32.mrb[0].mxu0
      %v7673 = vadd.f32 %v7474, %v7672
      %v7674 = vpop.f32.mrb[0].mxu0
      %7675 = vmatprep.mubr.bf16.mxu0 0
      %7676 = vmatmul.mubr.bf16.gmra.mrb[0].mxu0 %v7536
      %v7677 = vpop.f32.mrb[0].mxu0
      %v7678 = vadd.f32 %v7474, %v7677
      %v7679 = vpop.f32.mrb[0].mxu0
      %v7680 = vpop.f32.mrb[0].mxu0
      %v7681 = vadd.f32 %v7474, %v7680
      %v7682 = vpop.f32.mrb[0].mxu0
      %7683 = vmatprep.mubr.bf16.mxu0 0
      %7684 = vmatmul.mubr.bf16.gmra.mrb[0].mxu0 %v7539
      %v7685 = vpop.f32.mrb[0].mxu0
      %v7686 = vadd.f32 %v7474, %v7685
      %v7687 = vpop.f32.mrb[0].mxu0
      %v7688 = vpop.f32.mrb[0].mxu0
      %v7689 = vadd.f32 %v7474, %v7688
      %v7690 = vpop.f32.mrb[0].mxu0
      %7691 = vmatprep.mubr.bf16.mxu0 0
      %7692 = vmatmul.mubr.bf16.gmra.mrb[0].mxu0 %v7542
      %v7693 = vpop.f32.mrb[0].mxu0
      %v7694 = vadd.f32 %v7474, %v7693
      %v7695 = vpop.f32.mrb[0].mxu0
      %v7696 = vpop.f32.mrb[0].mxu0
      %v7697 = vadd.f32 %v7474, %v7696
      %v7698 = vpop.f32.mrb[0].mxu0
      %7699 = vmatprep.mubr.bf16.mxu0 0
      %7700 = vmatmul.mubr.bf16.gmra.mrb[0].mxu0 %v7545
      %v7701 = vpop.f32.mrb[0].mxu0
      %v7702 = vadd.f32 %v7474, %v7701
      %v7703 = vpop.f32.mrb[0].mxu0
      %v7704 = vpop.f32.mrb[0].mxu0
      %v7705 = vadd.f32 %v7474, %v7704
      %v7706 = vpop.f32.mrb[0].mxu0
      %7707 = vdwg.mxu0
      %v7708 = vadd.f32 %v6458, %v7582
      %v7709 = vadd.f32 %v6459, %v7585
      %v7710 = vadd.f32 %v6460, %v7590
      %v7711 = vadd.f32 %v6461, %v7593
      %v7712 = vadd.f32 %v6462, %v7598
      %v7713 = vadd.f32 %v6463, %v7601
      %v7714 = vadd.f32 %v6464, %v7606
      %v7715 = vadd.f32 %v6465, %v7609
      %v7716 = vadd.f32 %v6466, %v7614
      %v7717 = vadd.f32 %v6467, %v7617
      %v7718 = vadd.f32 %v6468, %v7622
      %v7719 = vadd.f32 %v6469, %v7625
      %v7720 = vadd.f32 %v6470, %v7630
      %v7721 = vadd.f32 %v6471, %v7633
      %v7722 = vadd.f32 %v6472, %v7638
      %v7723 = vadd.f32 %v6473, %v7641
      %v7724 = vadd.f32 %v6474, %v7646
      %v7725 = vadd.f32 %v6475, %v7649
      %v7726 = vadd.f32 %v6476, %v7654
      %v7727 = vadd.f32 %v6477, %v7657
      %v7728 = vadd.f32 %v6478, %v7662
      %v7729 = vadd.f32 %v6479, %v7665
      %v7730 = vadd.f32 %v6480, %v7670
      %v7731 = vadd.f32 %v6481, %v7673
      %v7732 = vadd.f32 %v6482, %v7678
      %v7733 = vadd.f32 %v6483, %v7681
      %v7734 = vadd.f32 %v6484, %v7686
      %v7735 = vadd.f32 %v6485, %v7689
      %v7736 = vadd.f32 %v6486, %v7694
      %v7737 = vadd.f32 %v6487, %v7697
      %v7738 = vadd.f32 %v6488, %v7702
      %v7739 = vadd.f32 %v6489, %v7705
      %7740 = vst.msk [vmem:[%s258] sm:$0xff] %vm294, %v7708
      %7741 = vst.msk [vmem:[%s258 + $0x8] sm:$0xff] %vm294, %v7709
      %7742 = vst.msk [vmem:[%s258 + $0x10] sm:$0xff] %vm294, %v7710
      %7743 = vst.msk [vmem:[%s258 + $0x18] sm:$0xff] %vm294, %v7711
      %7744 = vst.msk [vmem:[%s258 + $0x20] sm:$0xff] %vm294, %v7712
      %7745 = vst.msk [vmem:[%s258 + $0x28] sm:$0xff] %vm294, %v7713
      %7746 = vst.msk [vmem:[%s258 + $0x30] sm:$0xff] %vm294, %v7714
      %7747 = vst.msk [vmem:[%s258 + $0x38] sm:$0xff] %vm294, %v7715
      %7748 = vst.msk [vmem:[%s258 + $0x40] sm:$0xff] %vm294, %v7716
      %7749 = vst.msk [vmem:[%s258 + $0x48] sm:$0xff] %vm294, %v7717
      %7750 = vst.msk [vmem:[%s258 + $0x50] sm:$0xff] %vm294, %v7718
      %7751 = vst.msk [vmem:[%s258 + $0x58] sm:$0xff] %vm294, %v7719
      %7752 = vst.msk [vmem:[%s258 + $0x60] sm:$0xff] %vm294, %v7720
      %7753 = vst.msk [vmem:[%s258 + $0x68] sm:$0xff] %vm294, %v7721
      %7754 = vst.msk [vmem:[%s258 + $0x70] sm:$0xff] %vm294, %v7722
      %7755 = vst.msk [vmem:[%s258 + $0x78] sm:$0xff] %vm294, %v7723
      %7756 = vst.msk [vmem:[%s258 + $0x80] sm:$0xff] %vm294, %v7724
      %7757 = vst.msk [vmem:[%s258 + $0x88] sm:$0xff] %vm294, %v7725
      %7758 = vst.msk [vmem:[%s258 + $0x90] sm:$0xff] %vm294, %v7726
      %7759 = vst.msk [vmem:[%s258 + $0x98] sm:$0xff] %vm294, %v7727
      %7760 = vst.msk [vmem:[%s258 + $0xa0] sm:$0xff] %vm294, %v7728
      %7761 = vst.msk [vmem:[%s258 + $0xa8] sm:$0xff] %vm294, %v7729
      %7762 = vst.msk [vmem:[%s258 + $0xb0] sm:$0xff] %vm294, %v7730
      %7763 = vst.msk [vmem:[%s258 + $0xb8] sm:$0xff] %vm294, %v7731
      %7764 = vst.msk [vmem:[%s258 + $0xc0] sm:$0xff] %vm294, %v7732
      %7765 = vst.msk [vmem:[%s258 + $0xc8] sm:$0xff] %vm294, %v7733
      %7766 = vst.msk [vmem:[%s258 + $0xd0] sm:$0xff] %vm294, %v7734
      %7767 = vst.msk [vmem:[%s258 + $0xd8] sm:$0xff] %vm294, %v7735
      %7768 = vst.msk [vmem:[%s258 + $0xe0] sm:$0xff] %vm294, %v7736
      %7769 = vst.msk [vmem:[%s258 + $0xe8] sm:$0xff] %vm294, %v7737
      %7770 = vst.msk [vmem:[%s258 + $0xf0] sm:$0xff] %vm294, %v7738
      %7771 = vst.msk [vmem:[%s258 + $0xf8] sm:$0xff] %vm294, %v7739
      %s7772 = smul.u32 4, %s17
      %p7773 = scmp.lt.s32.totalorder %s7772, 7
      %s7774 = scalar_select %p7773, %s7772, 7
      %s7775 = smul.addr %s7774, 8
      %s7776 = smul.addr %s7775, 8
      %s7777 = scalar_lea.vmem %s6, %s7776
      // Predicated region
      $region45: #{mobilevit_block.8} parent=43 // pred_check
        %p7778 = pneg %p166
      $region46: #{mobilevit_block.8} parent=43 // pred_check_branch
        %7780 = sbr.rel (%p7778) target = $region48
      $region47: #{mobilevit_block.8} parent=43 // pred_region
        %s7781 = smul.u32 4, %s17
      $region48: #{mobilevit_block.8} parent=43 // pred_fallthru
        _
    $region44: #{mobilevit_block.8} parent=5 // pred_fallthru
      _
    %p7782 = scmp.le.s32.totalorder 2, %s12
    // Predicated region
    $region49: #{mobilevit_block.8} parent=5 // pred_check
      %p7783 = pneg %p7782
    $region50: #{mobilevit_block.8} parent=5 // pred_check_branch
      %7785 = sbr.rel (%p7783) target = $region52
    $region51: #{mobilevit_block.8} parent=5 // pred_region
      %s7786 = ssub.s32 %s12, 2
      // Predicated region
      $region53: #{mobilevit_block.8} parent=51 // pred_check
        %p7787 = pneg %p172
      $region54: #{mobilevit_block.8} parent=51 // pred_check_branch
        %7789 = sbr.rel (%p7787) target = $region56
      $region55: #{mobilevit_block.8} parent=51 // pred_region
        %s7790 = smul.u32 4, %s18
        %p7791 = scmp.lt.s32.totalorder %s7790, 7
        %s7792 = scalar_select %p7791, %s7790, 7
        %s7793 = smul.addr %s7792, 8
        %s7794 = smul.addr %s7793, 8
        %s7795 = scalar_lea.vmem %s6, %s7794
      $region56: #{mobilevit_block.8} parent=51 // pred_fallthru
        _
    $region52: #{mobilevit_block.8} parent=5 // pred_fallthru
      _
  $region6: #{mobilevit_block.8} parent=0 // loop_footer
    %s16 = sadd.s32 1, %s12
  $region7: #{mobilevit_block.8} parent=0 // loop_footer_branch
    %11 = sbr.rel target = $region3
  $region8: #{mobilevit_block.8} parent=0 // loop_exit
    _

</llo_original>
